<compile_context>
chip_gen: v7x
topology: tpu7x:2x2x1
jax: 0.10.0
libtpu: 0.0.40
codegen_flags: <defaults>
</compile_context>

<pallas_src>
import jax
import jax.numpy as jnp
from jax.experimental import pallas as pl
from jax.experimental.pallas import tpu as pltpu

EPS = 1e-5
_VMEM_LIMIT = 48 * 1024 * 1024   # > v5e 16 MiB default scoped VMEM, < v7x 64 MiB physical


# ------------------------------ helpers -------------------------------------

def _round_up(x, m):
    return (x + m - 1) // m * m


def _row_tile(H, W, cin_p, co_p, budget=12 << 20):
    """Largest even row tile dividing H whose per-step VMEM footprint (double-buffered
    blocks + scratch) stays within `budget`, leaving pipelining headroom under
    _VMEM_LIMIT on v5e / v6e / v7x."""
    best = 2
    for t in (2, 4, 8, 16, 32, 64, 128):
        if H % t:
            continue
        per = (2 * t * W * cin_p * 2          # double-buffered input body block (bf16)
               + 2 * t * W * co_p * 2         # double-buffered y output block (bf16)
               + (t + 2) * W * 3 * cin_p * 2  # xcat scratch (bf16)
               + t * W * co_p * 4)            # f32 accumulator scratch
        if per <= budget:
            best = t
    return best


# ----------------------------- Pallas kernels -------------------------------

def _make_conv_kernel(fused_input_bn):
    """3x3 conv (stride 1, zero pad 1, no bias) over one (TH x W) row tile of one batch
    element, plus per-tile BN partial statistics.  If fused_input_bn, the PREVIOUS
    stage's BatchNorm+ReLU (y = relu(x*scale + shift)) is applied to the input tile in
    VMEM before the convolution (so that activation never round-trips HBM)."""

    def kernel(*refs):
        if fused_input_bn:
            (xt_ref, xb_ref, xe_ref, w_ref, s_ref, b_ref,
             y_ref, st_ref, xcat_ref, acc_ref) = refs
        else:
            (xt_ref, xb_ref, xe_ref, w_ref,
             y_ref, st_ref, xcat_ref, acc_ref) = refs
            s_ref = b_ref = None

        h = pl.program_id(1)
        nh = pl.num_programs(1)
        _, TH, W, Cp = xb_ref.shape
        Co = y_ref.shape[3]
        K = 3 * Cp

        def act(v):                      # previous-stage BN + ReLU (fused), f32 math
            if not fused_input_bn:
                return v
            a = v.astype(jnp.float32) * s_ref[0, 0] + b_ref[0, 0]
            return jnp.maximum(a, 0.0).astype(v.dtype)

        # (TH+2, W, Cp) activation window.  Halo rows at the image border are zeroed:
        # conv padding applies AFTER the previous stage's ReLU, hence plain zeros.
        top = act(xt_ref[0])                               # (1, W, Cp)
        top = jnp.where(h == 0, jnp.zeros_like(top), top)
        bot = act(xe_ref[0])                               # (1, W, Cp)
        bot = jnp.where(h == nh - 1, jnp.zeros_like(bot), bot)
        win = jnp.concatenate([top, act(xb_ref[0]), bot], axis=0)   # (TH+2, W, Cp)

        # Shift-by-dx channel-concat operand:
        #   xcat[r, c, dx*Cp:(dx+1)*Cp] = win[r, c+dx-1]   (zero outside [0, W))
        zcol = jnp.zeros((TH + 2, 1, Cp), win.dtype)
        xcat_ref[...] = jnp.concatenate(
            [jnp.concatenate([zcol, win[:, :W - 1, :]], axis=1),   # dx = 0
             win,                                                   # dx = 1
             jnp.concatenate([win[:, 1:, :], zcol], axis=1)],       # dx = 2
            axis=2)

        # 3 accumulated MXU matmuls (K = 3*Cp) over contiguous leading-row slices,
        # bf16 in / f32 accumulate into a VMEM scratch.
        for dy in range(3):
            part = jnp.dot(xcat_ref[dy:dy + TH, :, :].reshape(TH * W, K),
                           w_ref[dy], preferred_element_type=jnp.float32)
            if dy == 0:
                acc_ref[...] = part
            else:
                acc_ref[...] += part

        acc = acc_ref[...]                                 # (TH*W, Co) f32
        y_ref[...] = acc.reshape(1, TH, W, Co).astype(y_ref.dtype)

        # Per-tile BN partial statistics (summed over (n, h) in a tiny XLA epilogue).
        st_ref[...] = jnp.concatenate(
            [jnp.sum(acc, axis=0, keepdims=True),
             jnp.sum(acc * acc, axis=0, keepdims=True)], axis=0).reshape(1, 1, 2, Co)

    return kernel


def _bn_relu_pool_kernel(y_ref, s_ref, b_ref, x_ref, p_ref):
    # BN-apply + ReLU (f32 math; bf16 input), with the 2x2 max-pool fused.
    a = jnp.maximum(y_ref[...].astype(jnp.float32) * s_ref[...] + b_ref[...], 0.0)
    x_ref[...] = a.astype(x_ref.dtype)
    _, TH, W, C = a.shape
    ar = a.reshape(TH // 2, 2, W, C)
    rm = jnp.maximum(ar[:, 0], ar[:, 1])                   # (TH//2, W, C)
    cr = rm.reshape(TH // 2, W // 2, 2, C)
    pm = jnp.maximum(cr[:, :, 0], cr[:, :, 1])             # (TH//2, W//2, C)
    p_ref[...] = pm.reshape(1, TH // 2, W // 2, C).astype(p_ref.dtype)


# ------------------------------ wrappers -------------------------------------

def _conv_stats_stage(xpad, w, gamma, beta, *, in_scale=None, in_shift=None):
    """One Conv2d(3x3, pad=1, bias cancelled by train-BN) producing the raw conv
    output (bf16) and the folded BatchNorm scale/shift of THIS stage (to be applied
    by the consumer).  If in_scale/in_shift are given, the previous stage's BN+ReLU
    is applied to the input tiles inside the kernel."""
    N, H, W, Cin_p = xpad.shape
    Co, Cin = w.shape[0], w.shape[1]
    assert Cin <= Cin_p
    Co_p = _round_up(Co, 128) if Co >= 128 else _round_up(Co, 8)
    TH = _row_tile(H, W, Cin_p, Co_p)
    nht = H // TH
    K = 3 * Cin_p

    # torch (Co, Cin, 3, 3) -> (3, 3*Cin_p, Co_p); tap dy holds [w[dy,0]; w[dy,1]; w[dy,2]].
    wt = jnp.transpose(w, (2, 3, 1, 0))
    wt = jnp.pad(wt, ((0, 0), (0, 0), (0, Cin_p - Cin), (0, Co_p - Co)))
    wt = wt.reshape(3, K, Co_p).astype(jnp.bfloat16)

    fused = in_scale is not None
    kernel = _make_conv_kernel(fused)

    in_specs = [
        # 1-row halo above / TH-row body / 1-row halo below of the SAME array.
        pl.BlockSpec((1, 1, W, Cin_p),
                     lambda n, h: (n, jnp.maximum(h * TH - 1, 0), 0, 0)),
        pl.BlockSpec((1, TH, W, Cin_p), lambda n, h: (n, h, 0, 0)),
        pl.BlockSpec((1, 1, W, Cin_p),
                     lambda n, h: (n, jnp.minimum((h + 1) * TH, H - 1), 0, 0)),
        pl.BlockSpec((3, K, Co_p), lambda n, h: (0, 0, 0)),   # resident weights
    ]
    args = [xpad, xpad, xpad, wt]
    if fused:
        sspec = pl.BlockSpec((1, 1, 1, Cin_p), lambda n, h: (0, 0, 0, 0))
        in_specs += [sspec, sspec]
        args += [in_scale, in_shift]

    flops = 2 * N * H * W * 9 * Cin_p * Co_p
    bytes_accessed = int(N * H * W * Cin_p * 2 * (1.0 + 2.0 / TH)
                         + wt.size * 2
                         + N * H * W * Co_p * 2
                         + N * nht * 2 * Co_p * 4)

    y, stats = pl.pallas_call(
        kernel,
        out_shape=(jax.ShapeDtypeStruct((N, H, W, Co_p), jnp.bfloat16),
                   jax.ShapeDtypeStruct((N, nht, 2, Co_p), jnp.float32)),
        grid=(N, nht),
        in_specs=in_specs,
        out_specs=(pl.BlockSpec((1, TH, W, Co_p), lambda n, h: (n, h, 0, 0)),
                   pl.BlockSpec((1, 1, 2, Co_p), lambda n, h: (n, h, 0, 0))),
        scratch_shapes=[pltpu.VMEM((TH + 2, W, K), jnp.bfloat16),
                        pltpu.VMEM((TH * W, Co_p), jnp.float32)],
        compiler_params=pltpu.CompilerParams(
            dimension_semantics=("parallel", "parallel"),
            vmem_limit_bytes=_VMEM_LIMIT),
        cost_estimate=pl.CostEstimate(flops=flops, transcendentals=0,
                                      bytes_accessed=bytes_accessed),
    )(*args)

    # --- finalize training-mode BN batch statistics (tiny XLA epilogue) -------
    m = N * H * W
    mean = jnp.sum(stats[:, :, 0, :], axis=(0, 1)) / m
    ex2 = jnp.sum(stats[:, :, 1, :], axis=(0, 1)) / m
    var = ex2 - mean * mean                              # biased variance (torch train BN)
    g = jnp.pad(gamma.astype(jnp.float32), (0, Co_p - Co))
    b = jnp.pad(beta.astype(jnp.float32), (0, Co_p - Co))
    scale = g * jax.lax.rsqrt(var + EPS)
    shift = b - mean * scale
    return y, scale.reshape(1, 1, 1, Co_p), shift.reshape(1, 1, 1, Co_p)


def _bn_relu_pool(y, scale4, shift4):
    """Apply the final BN (scale/shift) + ReLU and the fused 2x2 max-pool."""
    N, H, W, Cp = y.shape
    TH = _row_tile(H, W, Cp, Cp)
    nht = H // TH
    yspec = pl.BlockSpec((1, TH, W, Cp), lambda n, h: (n, h, 0, 0))
    sspec = pl.BlockSpec((1, 1, 1, Cp), lambda n, h: (0, 0, 0, 0))
    bytes_accessed = int(y.size * 2 + N * H * W * Cp * 4
                         + N * (H // 2) * (W // 2) * Cp * 4)
    # TODO(synk): if the y read DMA ever shows up exposed at real sizes, bump its
    # BlockSpec to pipeline_mode=pl.Buffered(3).
    return pl.pallas_call(
        _bn_relu_pool_kernel,
        out_shape=(jax.ShapeDtypeStruct((N, H, W, Cp), jnp.float32),
                   jax.ShapeDtypeStruct((N, H // 2, W // 2, Cp), jnp.float32)),
        grid=(N, nht),
        in_specs=[yspec, sspec, sspec],
        out_specs=(yspec,
                   pl.BlockSpec((1, TH // 2, W // 2, Cp), lambda n, h: (n, h, 0, 0))),
        compiler_params=pltpu.CompilerParams(
            dimension_semantics=("parallel", "parallel"),
            vmem_limit_bytes=_VMEM_LIMIT),
        cost_estimate=pl.CostEstimate(flops=int(4 * N * H * W * Cp),
                                      transcendentals=0,
                                      bytes_accessed=bytes_accessed),
    )(y, scale4, shift4)


def down_block_forward(x_nchw, params):
    # NCHW -> NHWC at the module boundary (torch layout outside, TPU layout inside).
    # TODO(synk): in a full UNet keep activations NHWC end-to-end across blocks so
    # these boundary transposes / channel slices (full HBM passes) disappear.
    x = jnp.transpose(x_nchw, (0, 2, 3, 1))
    N, H, W, Ci = x.shape
    assert H % 2 == 0 and W % 2 == 0
    Co = params['w1'].shape[0]

    # Channel pad only (cheap, one-time); no spatial halo pre-pad.
    Cin_p = _round_up(Ci, 8)
    xp = jnp.pad(x.astype(jnp.bfloat16),
                 ((0, 0), (0, 0), (0, 0), (0, Cin_p - Ci)))

    # Conv bias params b1/b2 are intentionally unused: a bias added before
    # training-mode BN is exactly cancelled by the batch-mean subtraction.
    # (Not valid if this block is ever run with running/eval statistics.)
    y1, s1, b1 = _conv_stats_stage(xp, params['w1'], params['g1'], params['be1'])
    # Stage 2: stage-1 BN+ReLU fused onto the conv2 input tiles in VMEM.
    y2, s2, b2 = _conv_stats_stage(y1, params['w2'], params['g2'], params['be2'],
                                   in_scale=s1, in_shift=b1)
    # Final BN2-apply + ReLU + fused 2x2 max-pool.
    x2, p2 = _bn_relu_pool(y2, s2, b2)

    x_out = jnp.transpose(x2[..., :Co], (0, 3, 1, 2))
    p_out = jnp.transpose(p2[..., :Co], (0, 3, 1, 2))
    return x_out, p_out


# ------------------------- pure-JAX reference --------------------------------

def reference_forward(x, params):
    def conv(x, w, b):
        y = jax.lax.conv_general_dilated(
            x, w, window_strides=(1, 1), padding=((1, 1), (1, 1)),
            dimension_numbers=('NCHW', 'OIHW', 'NCHW'))
        return y + b[None, :, None, None]

    def bn(x, g, be):
        mean = jnp.mean(x, axis=(0, 2, 3), keepdims=True)
        var = jnp.mean((x - mean) ** 2, axis=(0, 2, 3), keepdims=True)
        return ((x - mean) * jax.lax.rsqrt(var + EPS)
                * g[None, :, None, None] + be[None, :, None, None])

    y = jax.nn.relu(bn(conv(x, params['w1'], params['b1']), params['g1'], params['be1']))
    y = jax.nn.relu(bn(conv(y, params['w2'], params['b2']), params['g2'], params['be2']))
    p = jax.lax.reduce_window(y, -jnp.inf, jax.lax.max,
                              (1, 1, 2, 2), (1, 1, 2, 2), 'VALID')
    return y, p


# --------------------------------- main ---------------------------------------

if __name__ == "__main__":
    key = jax.random.PRNGKey(0)
    N, Ci, Co, H, W = 2, 4, 8, 16, 16
    ks = jax.random.split(key, 9)
    params = {
        'w1': 0.1 * jax.random.normal(ks[0], (Co, Ci, 3, 3), jnp.float32),
        'b1': 0.1 * jax.random.normal(ks[1], (Co,), jnp.float32),
        'g1': 1.0 + 0.1 * jax.random.normal(ks[2], (Co,), jnp.float32),
        'be1': 0.1 * jax.random.normal(ks[3], (Co,), jnp.float32),
        'w2': 0.1 * jax.random.normal(ks[4], (Co, Co, 3, 3), jnp.float32),
        'b2': 0.1 * jax.random.normal(ks[5], (Co,), jnp.float32),
        'g2': 1.0 + 0.1 * jax.random.normal(ks[6], (Co,), jnp.float32),
        'be2': 0.1 * jax.random.normal(ks[7], (Co,), jnp.float32),
    }
    x = jax.random.normal(ks[8], (N, Ci, H, W), jnp.float32)

    fwd = jax.jit(down_block_forward)
    x_out, p_out = jax.block_until_ready(fwd(x, params))

    assert x_out.shape == (N, Co, H, W)
    assert p_out.shape == (N, Co, H // 2, W // 2)

    x_ref, p_ref = reference_forward(x, params)
    # bf16 MXU inputs + bf16 conv-output storage -> compare at a bf16-level tolerance
    # against the pure-f32 reference.
    err_x = float(jnp.max(jnp.abs(x_out - x_ref)))
    err_p = float(jnp.max(jnp.abs(p_out - p_ref)))
    assert jnp.allclose(x_out, x_ref, atol=3e-2, rtol=3e-2), err_x
    assert jnp.allclose(p_out, p_ref, atol=3e-2, rtol=3e-2), err_p

    print("KERNEL_OK")
</pallas_src>

<mosaic_0001>
module attributes {stable_mosaic.version = 11 : i64} {
  func.func @kernel(%arg0: i32, %arg1: i32, %arg2: memref<1x1x16x8xbf16, #tpu.memory_space<vmem>>, %arg3: memref<1x16x16x8xbf16, #tpu.memory_space<vmem>>, %arg4: memref<1x1x16x8xbf16, #tpu.memory_space<vmem>>, %arg5: memref<3x24x8xbf16, #tpu.memory_space<vmem>>, %arg6: memref<1x16x16x8xbf16, #tpu.memory_space<vmem>>, %arg7: memref<1x1x2x8xf32, #tpu.memory_space<vmem>>, %arg8: memref<18x16x24xbf16, #tpu.memory_space<vmem>>, %arg9: memref<256x8xf32, #tpu.memory_space<vmem>>) attributes {dimension_semantics = [#tpu.dimension_semantics<parallel>, #tpu.dimension_semantics<parallel>], iteration_bounds = array<i64: 2, 1>, scalar_prefetch = 0 : i64, scratch_operands = 2 : i64, tpu.core_type = #tpu.core_type<tc>, window_params = [{transform_indices = @transform_0, window_bounds = array<i64: 1, 1, 16, 8>}, {transform_indices = @transform_1, window_bounds = array<i64: 1, 16, 16, 8>}, {transform_indices = @transform_2, window_bounds = array<i64: 1, 1, 16, 8>}, {pipeline_mode = #tpu.pipeline_mode<synchronous>, transform_indices = @transform_3, window_bounds = array<i64: 3, 24, 8>}, {transform_indices = @transform_4, window_bounds = array<i64: 1, 16, 16, 8>}, {transform_indices = @transform_5, window_bounds = array<i64: 1, 1, 2, 8>}]} {
    %c0 = arith.constant 0 : index
    %c0_0 = arith.constant 0 : index
    %c0_1 = arith.constant 0 : index
    %c0_2 = arith.constant 0 : index
    %0 = vector.load %arg2[%c0, %c0_0, %c0_1, %c0_2] : memref<1x1x16x8xbf16, #tpu.memory_space<vmem>>, vector<1x1x16x8xbf16>
    %1 = vector.shape_cast %0 : vector<1x1x16x8xbf16> to vector<1x16x8xbf16>
    %c0_i32 = arith.constant 0 : i32
    %2 = arith.cmpi eq, %arg1, %c0_i32 : i32
    %cst = arith.constant 0.000000e+00 : bf16
    %3 = vector.broadcast %cst : bf16 to vector<1x16x8xbf16>
    %4 = arith.select %2, %3, %1 : vector<1x16x8xbf16>
    %c0_3 = arith.constant 0 : index
    %c0_4 = arith.constant 0 : index
    %c0_5 = arith.constant 0 : index
    %c0_6 = arith.constant 0 : index
    %5 = vector.load %arg4[%c0_3, %c0_4, %c0_5, %c0_6] : memref<1x1x16x8xbf16, #tpu.memory_space<vmem>>, vector<1x1x16x8xbf16>
    %6 = vector.shape_cast %5 : vector<1x1x16x8xbf16> to vector<1x16x8xbf16>
    %c0_i32_7 = arith.constant 0 : i32
    %7 = arith.cmpi eq, %arg1, %c0_i32_7 : i32
    %cst_8 = arith.constant 0.000000e+00 : bf16
    %8 = vector.broadcast %cst_8 : bf16 to vector<1x16x8xbf16>
    %9 = arith.select %7, %8, %6 : vector<1x16x8xbf16>
    %c0_9 = arith.constant 0 : index
    %c0_10 = arith.constant 0 : index
    %c0_11 = arith.constant 0 : index
    %c0_12 = arith.constant 0 : index
    %10 = vector.load %arg3[%c0_9, %c0_10, %c0_11, %c0_12] : memref<1x16x16x8xbf16, #tpu.memory_space<vmem>>, vector<1x16x16x8xbf16>
    %11 = vector.shape_cast %10 : vector<1x16x16x8xbf16> to vector<16x16x8xbf16>
    %12 = tpu.concatenate %4, %11, %9 in 0 : vector<1x16x8xbf16>, vector<16x16x8xbf16>, vector<1x16x8xbf16> -> vector<18x16x8xbf16>
    %cst_13 = arith.constant 0.000000e+00 : bf16
    %13 = vector.broadcast %cst_13 : bf16 to vector<18x1x8xbf16>
    %14 = vector.extract_strided_slice %12 {offsets = [0, 0, 0], sizes = [18, 15, 8], strides = [1, 1, 1]} : vector<18x16x8xbf16> to vector<18x15x8xbf16>
    %15 = tpu.concatenate %13, %14 in 1 : vector<18x1x8xbf16>, vector<18x15x8xbf16> -> vector<18x16x8xbf16>
    %16 = vector.extract_strided_slice %12 {offsets = [0, 1, 0], sizes = [18, 15, 8], strides = [1, 1, 1]} : vector<18x16x8xbf16> to vector<18x15x8xbf16>
    %17 = tpu.concatenate %16, %13 in 1 : vector<18x15x8xbf16>, vector<18x1x8xbf16> -> vector<18x16x8xbf16>
    %18 = tpu.concatenate %15, %12, %17 in 2 : vector<18x16x8xbf16>, vector<18x16x8xbf16>, vector<18x16x8xbf16> -> vector<18x16x24xbf16>
    %c0_14 = arith.constant 0 : index
    %c0_15 = arith.constant 0 : index
    %c0_16 = arith.constant 0 : index
    %19 = vector.load %arg8[%c0_14, %c0_15, %c0_16] : memref<18x16x24xbf16, #tpu.memory_space<vmem>>, vector<18x16x24xbf16>
    tpu.vector_store %arg8[%c0_14, %c0_15, %c0_16], %18 {strides = array<i32>} : memref<18x16x24xbf16, #tpu.memory_space<vmem>>, vector<18x16x24xbf16>,
    %c0_17 = arith.constant 0 : index
    %c0_18 = arith.constant 0 : index
    %c0_19 = arith.constant 0 : index
    %20 = vector.load %arg8[%c0_17, %c0_18, %c0_19] : memref<18x16x24xbf16, #tpu.memory_space<vmem>>, vector<16x16x24xbf16>
    %21 = vector.shape_cast %20 : vector<16x16x24xbf16> to vector<256x24xbf16>
    %c0_20 = arith.constant 0 : index
    %c0_21 = arith.constant 0 : index
    %c0_22 = arith.constant 0 : index
    %22 = vector.load %arg5[%c0_20, %c0_21, %c0_22] : memref<3x24x8xbf16, #tpu.memory_space<vmem>>, vector<1x24x8xbf16>
    %23 = vector.shape_cast %22 : vector<1x24x8xbf16> to vector<24x8xbf16>
    %cst_23 = arith.constant dense<0.000000e+00> : vector<256x8xf32>
    %24 = tpu.matmul %21, %23, %cst_23 {dimension_numbers = #tpu.dot_dimension_numbers<[1], [0], [0], [1], [0, 0, 1, 1], [], []>} : vector<256x24xbf16>, vector<24x8xbf16>, vector<256x8xf32> -> vector<256x8xf32>
    %c0_24 = arith.constant 0 : index
    %c0_25 = arith.constant 0 : index
    %25 = vector.load %arg9[%c0_24, %c0_25] : memref<256x8xf32, #tpu.memory_space<vmem>>, vector<256x8xf32>
    tpu.vector_store %arg9[%c0_24, %c0_25], %24 {strides = array<i32>} : memref<256x8xf32, #tpu.memory_space<vmem>>, vector<256x8xf32>,
    %c1 = arith.constant 1 : index
    %c0_26 = arith.constant 0 : index
    %c0_27 = arith.constant 0 : index
    %26 = vector.load %arg8[%c1, %c0_26, %c0_27] : memref<18x16x24xbf16, #tpu.memory_space<vmem>>, vector<16x16x24xbf16>
    %27 = vector.shape_cast %26 : vector<16x16x24xbf16> to vector<256x24xbf16>
    %c1_28 = arith.constant 1 : index
    %c0_29 = arith.constant 0 : index
    %c0_30 = arith.constant 0 : index
    %28 = vector.load %arg5[%c1_28, %c0_29, %c0_30] : memref<3x24x8xbf16, #tpu.memory_space<vmem>>, vector<1x24x8xbf16>
    %29 = vector.shape_cast %28 : vector<1x24x8xbf16> to vector<24x8xbf16>
    %cst_31 = arith.constant dense<0.000000e+00> : vector<256x8xf32>
    %30 = tpu.matmul %27, %29, %cst_31 {dimension_numbers = #tpu.dot_dimension_numbers<[1], [0], [0], [1], [0, 0, 1, 1], [], []>} : vector<256x24xbf16>, vector<24x8xbf16>, vector<256x8xf32> -> vector<256x8xf32>
    %c0_32 = arith.constant 0 : index
    %c0_33 = arith.constant 0 : index
    %31 = vector.load %arg9[%c0_32, %c0_33] : memref<256x8xf32, #tpu.memory_space<vmem>>, vector<256x8xf32>
    %32 = arith.addf %31, %30 : vector<256x8xf32>
    %c0_34 = arith.constant 0 : index
    %c0_35 = arith.constant 0 : index
    %33 = vector.load %arg9[%c0_34, %c0_35] : memref<256x8xf32, #tpu.memory_space<vmem>>, vector<256x8xf32>
    tpu.vector_store %arg9[%c0_34, %c0_35], %32 {strides = array<i32>} : memref<256x8xf32, #tpu.memory_space<vmem>>, vector<256x8xf32>,
    %c2 = arith.constant 2 : index
    %c0_36 = arith.constant 0 : index
    %c0_37 = arith.constant 0 : index
    %34 = vector.load %arg8[%c2, %c0_36, %c0_37] : memref<18x16x24xbf16, #tpu.memory_space<vmem>>, vector<16x16x24xbf16>
    %35 = vector.shape_cast %34 : vector<16x16x24xbf16> to vector<256x24xbf16>
    %c2_38 = arith.constant 2 : index
    %c0_39 = arith.constant 0 : index
    %c0_40 = arith.constant 0 : index
    %36 = vector.load %arg5[%c2_38, %c0_39, %c0_40] : memref<3x24x8xbf16, #tpu.memory_space<vmem>>, vector<1x24x8xbf16>
    %37 = vector.shape_cast %36 : vector<1x24x8xbf16> to vector<24x8xbf16>
    %cst_41 = arith.constant dense<0.000000e+00> : vector<256x8xf32>
    %38 = tpu.matmul %35, %37, %cst_41 {dimension_numbers = #tpu.dot_dimension_numbers<[1], [0], [0], [1], [0, 0, 1, 1], [], []>} : vector<256x24xbf16>, vector<24x8xbf16>, vector<256x8xf32> -> vector<256x8xf32>
    %c0_42 = arith.constant 0 : index
    %c0_43 = arith.constant 0 : index
    %39 = vector.load %arg9[%c0_42, %c0_43] : memref<256x8xf32, #tpu.memory_space<vmem>>, vector<256x8xf32>
    %40 = arith.addf %39, %38 : vector<256x8xf32>
    %c0_44 = arith.constant 0 : index
    %c0_45 = arith.constant 0 : index
    %41 = vector.load %arg9[%c0_44, %c0_45] : memref<256x8xf32, #tpu.memory_space<vmem>>, vector<256x8xf32>
    tpu.vector_store %arg9[%c0_44, %c0_45], %40 {strides = array<i32>} : memref<256x8xf32, #tpu.memory_space<vmem>>, vector<256x8xf32>,
    %c0_46 = arith.constant 0 : index
    %c0_47 = arith.constant 0 : index
    %42 = vector.load %arg9[%c0_46, %c0_47] : memref<256x8xf32, #tpu.memory_space<vmem>>, vector<256x8xf32>
    %43 = vector.shape_cast %42 : vector<256x8xf32> to vector<1x16x16x8xf32>
    %44 = arith.truncf %43 : vector<1x16x16x8xf32> to vector<1x16x16x8xbf16>
    %c0_48 = arith.constant 0 : index
    %c0_49 = arith.constant 0 : index
    %c0_50 = arith.constant 0 : index
    %c0_51 = arith.constant 0 : index
    %45 = vector.load %arg6[%c0_48, %c0_49, %c0_50, %c0_51] : memref<1x16x16x8xbf16, #tpu.memory_space<vmem>>, vector<1x16x16x8xbf16>
    tpu.vector_store %arg6[%c0_48, %c0_49, %c0_50, %c0_51], %44 {strides = array<i32>} : memref<1x16x16x8xbf16, #tpu.memory_space<vmem>>, vector<1x16x16x8xbf16>,
    %cst_52 = arith.constant dense<0.000000e+00> : vector<8xf32>
    %46 = vector.multi_reduction <add>, %42, %cst_52 [0] : vector<256x8xf32> to vector<8xf32>
    %47 = vector.shape_cast %46 : vector<8xf32> to vector<1x8xf32>
    %48 = arith.mulf %42, %42 : vector<256x8xf32>
    %cst_53 = arith.constant dense<0.000000e+00> : vector<8xf32>
    %49 = vector.multi_reduction <add>, %48, %cst_53 [0] : vector<256x8xf32> to vector<8xf32>
    %50 = vector.shape_cast %49 : vector<8xf32> to vector<1x8xf32>
    %51 = tpu.concatenate %47, %50 in 0 : vector<1x8xf32>, vector<1x8xf32> -> vector<2x8xf32>
    %52 = vector.shape_cast %51 : vector<2x8xf32> to vector<1x1x2x8xf32>
    %c0_54 = arith.constant 0 : index
    %c0_55 = arith.constant 0 : index
    %c0_56 = arith.constant 0 : index
    %c0_57 = arith.constant 0 : index
    %53 = vector.load %arg7[%c0_54, %c0_55, %c0_56, %c0_57] : memref<1x1x2x8xf32, #tpu.memory_space<vmem>>, vector<1x1x2x8xf32>
    tpu.vector_store %arg7[%c0_54, %c0_55, %c0_56, %c0_57], %52 {strides = array<i32>} : memref<1x1x2x8xf32, #tpu.memory_space<vmem>>, vector<1x1x2x8xf32>,
    return
  }
  func.func @transform_0(%arg0: i32, %arg1: i32) -> (i32, i32, i32, i32) {
    %c16_i32 = arith.constant 16 : i32
    %0 = arith.muli %arg1, %c16_i32 : i32
    %c1_i32 = arith.constant 1 : i32
    %1 = arith.subi %0, %c1_i32 : i32
    %c0_i32 = arith.constant 0 : i32
    %2 = arith.maxsi %1, %c0_i32 : i32
    %c0_i32_0 = arith.constant 0 : i32
    %c0_i32_1 = arith.constant 0 : i32
    %c0_i32_2 = arith.constant 0 : i32
    return %arg0, %2, %c0_i32_0, %c0_i32_1 : i32, i32, i32, i32
  }
  func.func @transform_1(%arg0: i32, %arg1: i32) -> (i32, i32, i32, i32) {
    %c0_i32 = arith.constant 0 : i32
    %c0_i32_0 = arith.constant 0 : i32
    %c0_i32_1 = arith.constant 0 : i32
    return %arg0, %arg1, %c0_i32, %c0_i32_0 : i32, i32, i32, i32
  }
  func.func @transform_2(%arg0: i32, %arg1: i32) -> (i32, i32, i32, i32) {
    %c1_i32 = arith.constant 1 : i32
    %0 = arith.addi %arg1, %c1_i32 : i32
    %c16_i32 = arith.constant 16 : i32
    %1 = arith.muli %0, %c16_i32 : i32
    %c15_i32 = arith.constant 15 : i32
    %2 = arith.minsi %1, %c15_i32 : i32
    %c0_i32 = arith.constant 0 : i32
    %c0_i32_0 = arith.constant 0 : i32
    %c0_i32_1 = arith.constant 0 : i32
    return %arg0, %2, %c0_i32, %c0_i32_0 : i32, i32, i32, i32
  }
  func.func @transform_3(%arg0: i32, %arg1: i32) -> (i32, i32, i32) {
    %c0_i32 = arith.constant 0 : i32
    %c0_i32_0 = arith.constant 0 : i32
    %c0_i32_1 = arith.constant 0 : i32
    %c0_i32_2 = arith.constant 0 : i32
    return %c0_i32, %c0_i32_0, %c0_i32_1 : i32, i32, i32
  }
  func.func @transform_4(%arg0: i32, %arg1: i32) -> (i32, i32, i32, i32) {
    %c0_i32 = arith.constant 0 : i32
    %c0_i32_0 = arith.constant 0 : i32
    %c0_i32_1 = arith.constant 0 : i32
    return %arg0, %arg1, %c0_i32, %c0_i32_0 : i32, i32, i32, i32
  }
  func.func @transform_5(%arg0: i32, %arg1: i32) -> (i32, i32, i32, i32) {
    %c0_i32 = arith.constant 0 : i32
    %c0_i32_0 = arith.constant 0 : i32
    %c0_i32_1 = arith.constant 0 : i32
    return %arg0, %arg1, %c0_i32, %c0_i32_0 : i32, i32, i32, i32
  }
}

module attributes {stable_mosaic.version = 11 : i64} {
  func.func @_bn_relu_pool_kernel(%arg0: i32, %arg1: i32, %arg2: memref<1x16x16x8xbf16, #tpu.memory_space<vmem>>, %arg3: memref<1x1x1x8xf32, #tpu.memory_space<vmem>>, %arg4: memref<1x1x1x8xf32, #tpu.memory_space<vmem>>, %arg5: memref<1x16x16x8xf32, #tpu.memory_space<vmem>>, %arg6: memref<1x8x8x8xf32, #tpu.memory_space<vmem>>) attributes {dimension_semantics = [#tpu.dimension_semantics<parallel>, #tpu.dimension_semantics<parallel>], iteration_bounds = array<i64: 2, 1>, scalar_prefetch = 0 : i64, scratch_operands = 0 : i64, tpu.core_type = #tpu.core_type<tc>, window_params = [{transform_indices = @transform_0, window_bounds = array<i64: 1, 16, 16, 8>}, {pipeline_mode = #tpu.pipeline_mode<synchronous>, transform_indices = @transform_1, window_bounds = array<i64: 1, 1, 1, 8>}, {pipeline_mode = #tpu.pipeline_mode<synchronous>, transform_indices = @transform_2, window_bounds = array<i64: 1, 1, 1, 8>}, {transform_indices = @transform_3, window_bounds = array<i64: 1, 16, 16, 8>}, {transform_indices = @transform_4, window_bounds = array<i64: 1, 8, 8, 8>}]} {
    %c0 = arith.constant 0 : index
    %c0_0 = arith.constant 0 : index
    %c0_1 = arith.constant 0 : index
    %c0_2 = arith.constant 0 : index
    %0 = vector.load %arg2[%c0, %c0_0, %c0_1, %c0_2] : memref<1x16x16x8xbf16, #tpu.memory_space<vmem>>, vector<1x16x16x8xbf16>
    %1 = arith.extf %0 : vector<1x16x16x8xbf16> to vector<1x16x16x8xf32>
    %c0_3 = arith.constant 0 : index
    %c0_4 = arith.constant 0 : index
    %c0_5 = arith.constant 0 : index
    %c0_6 = arith.constant 0 : index
    %2 = vector.load %arg3[%c0_3, %c0_4, %c0_5, %c0_6] : memref<1x1x1x8xf32, #tpu.memory_space<vmem>>, vector<1x1x1x8xf32>
    %3 = vector.broadcast %2 : vector<1x1x1x8xf32> to vector<1x16x16x8xf32>
    %4 = arith.mulf %1, %3 : vector<1x16x16x8xf32>
    %c0_7 = arith.constant 0 : index
    %c0_8 = arith.constant 0 : index
    %c0_9 = arith.constant 0 : index
    %c0_10 = arith.constant 0 : index
    %5 = vector.load %arg4[%c0_7, %c0_8, %c0_9, %c0_10] : memref<1x1x1x8xf32, #tpu.memory_space<vmem>>, vector<1x1x1x8xf32>
    %6 = vector.broadcast %5 : vector<1x1x1x8xf32> to vector<1x16x16x8xf32>
    %7 = arith.addf %4, %6 : vector<1x16x16x8xf32>
    %cst = arith.constant 0.000000e+00 : f32
    %8 = vector.broadcast %cst : f32 to vector<1x16x16x8xf32>
    %9 = arith.maximumf %7, %8 : vector<1x16x16x8xf32>
    %c0_11 = arith.constant 0 : index
    %c0_12 = arith.constant 0 : index
    %c0_13 = arith.constant 0 : index
    %c0_14 = arith.constant 0 : index
    %10 = vector.load %arg5[%c0_11, %c0_12, %c0_13, %c0_14] : memref<1x16x16x8xf32, #tpu.memory_space<vmem>>, vector<1x16x16x8xf32>
    tpu.vector_store %arg5[%c0_11, %c0_12, %c0_13, %c0_14], %9 {strides = array<i32>} : memref<1x16x16x8xf32, #tpu.memory_space<vmem>>, vector<1x16x16x8xf32>,
    %11 = vector.shape_cast %9 : vector<1x16x16x8xf32> to vector<8x2x16x8xf32>
    %12 = vector.extract_strided_slice %11 {offsets = [0, 0, 0, 0], sizes = [8, 1, 16, 8], strides = [1, 1, 1, 1]} : vector<8x2x16x8xf32> to vector<8x1x16x8xf32>
    %13 = vector.shape_cast %12 : vector<8x1x16x8xf32> to vector<8x16x8xf32>
    %14 = vector.extract_strided_slice %11 {offsets = [0, 1, 0, 0], sizes = [8, 1, 16, 8], strides = [1, 1, 1, 1]} : vector<8x2x16x8xf32> to vector<8x1x16x8xf32>
    %15 = vector.shape_cast %14 : vector<8x1x16x8xf32> to vector<8x16x8xf32>
    %16 = arith.maximumf %13, %15 : vector<8x16x8xf32>
    %17 = vector.shape_cast %16 : vector<8x16x8xf32> to vector<8x8x2x8xf32>
    %18 = vector.extract_strided_slice %17 {offsets = [0, 0, 0, 0], sizes = [8, 8, 1, 8], strides = [1, 1, 1, 1]} : vector<8x8x2x8xf32> to vector<8x8x1x8xf32>
    %19 = vector.shape_cast %18 : vector<8x8x1x8xf32> to vector<8x8x8xf32>
    %20 = vector.extract_strided_slice %17 {offsets = [0, 0, 1, 0], sizes = [8, 8, 1, 8], strides = [1, 1, 1, 1]} : vector<8x8x2x8xf32> to vector<8x8x1x8xf32>
    %21 = vector.shape_cast %20 : vector<8x8x1x8xf32> to vector<8x8x8xf32>
    %22 = arith.maximumf %19, %21 : vector<8x8x8xf32>
    %23 = vector.shape_cast %22 : vector<8x8x8xf32> to vector<1x8x8x8xf32>
    %c0_15 = arith.constant 0 : index
    %c0_16 = arith.constant 0 : index
    %c0_17 = arith.constant 0 : index
    %c0_18 = arith.constant 0 : index
    %24 = vector.load %arg6[%c0_15, %c0_16, %c0_17, %c0_18] : memref<1x8x8x8xf32, #tpu.memory_space<vmem>>, vector<1x8x8x8xf32>
    tpu.vector_store %arg6[%c0_15, %c0_16, %c0_17, %c0_18], %23 {strides = array<i32>} : memref<1x8x8x8xf32, #tpu.memory_space<vmem>>, vector<1x8x8x8xf32>,
    return
  }
  func.func @transform_0(%arg0: i32, %arg1: i32) -> (i32, i32, i32, i32) {
    %c0_i32 = arith.constant 0 : i32
    %c0_i32_0 = arith.constant 0 : i32
    %c0_i32_1 = arith.constant 0 : i32
    return %arg0, %arg1, %c0_i32, %c0_i32_0 : i32, i32, i32, i32
  }
  func.func @transform_1(%arg0: i32, %arg1: i32) -> (i32, i32, i32, i32) {
    %c0_i32 = arith.constant 0 : i32
    %c0_i32_0 = arith.constant 0 : i32
    %c0_i32_1 = arith.constant 0 : i32
    %c0_i32_2 = arith.constant 0 : i32
    %c0_i32_3 = arith.constant 0 : i32
    return %c0_i32, %c0_i32_0, %c0_i32_1, %c0_i32_2 : i32, i32, i32, i32
  }
  func.func @transform_2(%arg0: i32, %arg1: i32) -> (i32, i32, i32, i32) {
    %c0_i32 = arith.constant 0 : i32
    %c0_i32_0 = arith.constant 0 : i32
    %c0_i32_1 = arith.constant 0 : i32
    %c0_i32_2 = arith.constant 0 : i32
    %c0_i32_3 = arith.constant 0 : i32
    return %c0_i32, %c0_i32_0, %c0_i32_1, %c0_i32_2 : i32, i32, i32, i32
  }
  func.func @transform_3(%arg0: i32, %arg1: i32) -> (i32, i32, i32, i32) {
    %c0_i32 = arith.constant 0 : i32
    %c0_i32_0 = arith.constant 0 : i32
    %c0_i32_1 = arith.constant 0 : i32
    return %arg0, %arg1, %c0_i32, %c0_i32_0 : i32, i32, i32, i32
  }
  func.func @transform_4(%arg0: i32, %arg1: i32) -> (i32, i32, i32, i32) {
    %c0_i32 = arith.constant 0 : i32
    %c0_i32_0 = arith.constant 0 : i32
    %c0_i32_1 = arith.constant 0 : i32
    return %arg0, %arg1, %c0_i32, %c0_i32_0 : i32, i32, i32, i32
  }
}

module attributes {stable_mosaic.version = 11 : i64} {
  func.func @kernel(%arg0: i32, %arg1: i32, %arg2: memref<1x1x16x8xbf16, #tpu.memory_space<vmem>>, %arg3: memref<1x16x16x8xbf16, #tpu.memory_space<vmem>>, %arg4: memref<1x1x16x8xbf16, #tpu.memory_space<vmem>>, %arg5: memref<3x24x8xbf16, #tpu.memory_space<vmem>>, %arg6: memref<1x1x1x8xf32, #tpu.memory_space<vmem>>, %arg7: memref<1x1x1x8xf32, #tpu.memory_space<vmem>>, %arg8: memref<1x16x16x8xbf16, #tpu.memory_space<vmem>>, %arg9: memref<1x1x2x8xf32, #tpu.memory_space<vmem>>, %arg10: memref<18x16x24xbf16, #tpu.memory_space<vmem>>, %arg11: memref<256x8xf32, #tpu.memory_space<vmem>>) attributes {dimension_semantics = [#tpu.dimension_semantics<parallel>, #tpu.dimension_semantics<parallel>], iteration_bounds = array<i64: 2, 1>, scalar_prefetch = 0 : i64, scratch_operands = 2 : i64, tpu.core_type = #tpu.core_type<tc>, window_params = [{transform_indices = @transform_0, window_bounds = array<i64: 1, 1, 16, 8>}, {transform_indices = @transform_1, window_bounds = array<i64: 1, 16, 16, 8>}, {transform_indices = @transform_2, window_bounds = array<i64: 1, 1, 16, 8>}, {pipeline_mode = #tpu.pipeline_mode<synchronous>, transform_indices = @transform_3, window_bounds = array<i64: 3, 24, 8>}, {pipeline_mode = #tpu.pipeline_mode<synchronous>, transform_indices = @transform_4, window_bounds = array<i64: 1, 1, 1, 8>}, {pipeline_mode = #tpu.pipeline_mode<synchronous>, transform_indices = @transform_5, window_bounds = array<i64: 1, 1, 1, 8>}, {transform_indices = @transform_6, window_bounds = array<i64: 1, 16, 16, 8>}, {transform_indices = @transform_7, window_bounds = array<i64: 1, 1, 2, 8>}]} {
    %c0 = arith.constant 0 : index
    %c0_0 = arith.constant 0 : index
    %c0_1 = arith.constant 0 : index
    %c0_2 = arith.constant 0 : index
    %0 = vector.load %arg2[%c0, %c0_0, %c0_1, %c0_2] : memref<1x1x16x8xbf16, #tpu.memory_space<vmem>>, vector<1x1x16x8xbf16>
    %1 = vector.shape_cast %0 : vector<1x1x16x8xbf16> to vector<1x16x8xbf16>
    %2 = arith.extf %1 : vector<1x16x8xbf16> to vector<1x16x8xf32>
    %c0_3 = arith.constant 0 : index
    %c0_4 = arith.constant 0 : index
    %c0_5 = arith.constant 0 : index
    %c0_6 = arith.constant 0 : index
    %3 = vector.load %arg6[%c0_3, %c0_4, %c0_5, %c0_6] : memref<1x1x1x8xf32, #tpu.memory_space<vmem>>, vector<1x1x1x8xf32>
    %4 = vector.shape_cast %3 : vector<1x1x1x8xf32> to vector<1x8xf32>
    %5 = vector.shape_cast %4 : vector<1x8xf32> to vector<1x1x8xf32>
    %6 = vector.broadcast %5 : vector<1x1x8xf32> to vector<1x16x8xf32>
    %7 = arith.mulf %2, %6 : vector<1x16x8xf32>
    %c0_7 = arith.constant 0 : index
    %c0_8 = arith.constant 0 : index
    %c0_9 = arith.constant 0 : index
    %c0_10 = arith.constant 0 : index
    %8 = vector.load %arg7[%c0_7, %c0_8, %c0_9, %c0_10] : memref<1x1x1x8xf32, #tpu.memory_space<vmem>>, vector<1x1x1x8xf32>
    %9 = vector.shape_cast %8 : vector<1x1x1x8xf32> to vector<1x8xf32>
    %10 = vector.shape_cast %9 : vector<1x8xf32> to vector<1x1x8xf32>
    %11 = vector.broadcast %10 : vector<1x1x8xf32> to vector<1x16x8xf32>
    %12 = arith.addf %7, %11 : vector<1x16x8xf32>
    %cst = arith.constant 0.000000e+00 : f32
    %13 = vector.broadcast %cst : f32 to vector<1x16x8xf32>
    %14 = arith.maximumf %12, %13 : vector<1x16x8xf32>
    %15 = arith.truncf %14 : vector<1x16x8xf32> to vector<1x16x8xbf16>
    %c0_i32 = arith.constant 0 : i32
    %16 = arith.cmpi eq, %arg1, %c0_i32 : i32
    %cst_11 = arith.constant 0.000000e+00 : bf16
    %17 = vector.broadcast %cst_11 : bf16 to vector<1x16x8xbf16>
    %18 = arith.select %16, %17, %15 : vector<1x16x8xbf16>
    %c0_12 = arith.constant 0 : index
    %c0_13 = arith.constant 0 : index
    %c0_14 = arith.constant 0 : index
    %c0_15 = arith.constant 0 : index
    %19 = vector.load %arg4[%c0_12, %c0_13, %c0_14, %c0_15] : memref<1x1x16x8xbf16, #tpu.memory_space<vmem>>, vector<1x1x16x8xbf16>
    %20 = vector.shape_cast %19 : vector<1x1x16x8xbf16> to vector<1x16x8xbf16>
    %21 = arith.extf %20 : vector<1x16x8xbf16> to vector<1x16x8xf32>
    %c0_16 = arith.constant 0 : index
    %c0_17 = arith.constant 0 : index
    %c0_18 = arith.constant 0 : index
    %c0_19 = arith.constant 0 : index
    %22 = vector.load %arg6[%c0_16, %c0_17, %c0_18, %c0_19] : memref<1x1x1x8xf32, #tpu.memory_space<vmem>>, vector<1x1x1x8xf32>
    %23 = vector.shape_cast %22 : vector<1x1x1x8xf32> to vector<1x8xf32>
    %24 = vector.shape_cast %23 : vector<1x8xf32> to vector<1x1x8xf32>
    %25 = vector.broadcast %24 : vector<1x1x8xf32> to vector<1x16x8xf32>
    %26 = arith.mulf %21, %25 : vector<1x16x8xf32>
    %c0_20 = arith.constant 0 : index
    %c0_21 = arith.constant 0 : index
    %c0_22 = arith.constant 0 : index
    %c0_23 = arith.constant 0 : index
    %27 = vector.load %arg7[%c0_20, %c0_21, %c0_22, %c0_23] : memref<1x1x1x8xf32, #tpu.memory_space<vmem>>, vector<1x1x1x8xf32>
    %28 = vector.shape_cast %27 : vector<1x1x1x8xf32> to vector<1x8xf32>
    %29 = vector.shape_cast %28 : vector<1x8xf32> to vector<1x1x8xf32>
    %30 = vector.broadcast %29 : vector<1x1x8xf32> to vector<1x16x8xf32>
    %31 = arith.addf %26, %30 : vector<1x16x8xf32>
    %cst_24 = arith.constant 0.000000e+00 : f32
    %32 = vector.broadcast %cst_24 : f32 to vector<1x16x8xf32>
    %33 = arith.maximumf %31, %32 : vector<1x16x8xf32>
    %34 = arith.truncf %33 : vector<1x16x8xf32> to vector<1x16x8xbf16>
    %c0_i32_25 = arith.constant 0 : i32
    %35 = arith.cmpi eq, %arg1, %c0_i32_25 : i32
    %cst_26 = arith.constant 0.000000e+00 : bf16
    %36 = vector.broadcast %cst_26 : bf16 to vector<1x16x8xbf16>
    %37 = arith.select %35, %36, %34 : vector<1x16x8xbf16>
    %c0_27 = arith.constant 0 : index
    %c0_28 = arith.constant 0 : index
    %c0_29 = arith.constant 0 : index
    %c0_30 = arith.constant 0 : index
    %38 = vector.load %arg3[%c0_27, %c0_28, %c0_29, %c0_30] : memref<1x16x16x8xbf16, #tpu.memory_space<vmem>>, vector<1x16x16x8xbf16>
    %39 = vector.shape_cast %38 : vector<1x16x16x8xbf16> to vector<16x16x8xbf16>
    %40 = arith.extf %39 : vector<16x16x8xbf16> to vector<16x16x8xf32>
    %c0_31 = arith.constant 0 : index
    %c0_32 = arith.constant 0 : index
    %c0_33 = arith.constant 0 : index
    %c0_34 = arith.constant 0 : index
    %41 = vector.load %arg6[%c0_31, %c0_32, %c0_33, %c0_34] : memref<1x1x1x8xf32, #tpu.memory_space<vmem>>, vector<1x1x1x8xf32>
    %42 = vector.shape_cast %41 : vector<1x1x1x8xf32> to vector<1x8xf32>
    %43 = vector.shape_cast %42 : vector<1x8xf32> to vector<1x1x8xf32>
    %44 = vector.broadcast %43 : vector<1x1x8xf32> to vector<16x16x8xf32>
    %45 = arith.mulf %40, %44 : vector<16x16x8xf32>
    %c0_35 = arith.constant 0 : index
    %c0_36 = arith.constant 0 : index
    %c0_37 = arith.constant 0 : index
    %c0_38 = arith.constant 0 : index
    %46 = vector.load %arg7[%c0_35, %c0_36, %c0_37, %c0_38] : memref<1x1x1x8xf32, #tpu.memory_space<vmem>>, vector<1x1x1x8xf32>
    %47 = vector.shape_cast %46 : vector<1x1x1x8xf32> to vector<1x8xf32>
    %48 = vector.shape_cast %47 : vector<1x8xf32> to vector<1x1x8xf32>
    %49 = vector.broadcast %48 : vector<1x1x8xf32> to vector<16x16x8xf32>
    %50 = arith.addf %45, %49 : vector<16x16x8xf32>
    %cst_39 = arith.constant 0.000000e+00 : f32
    %51 = vector.broadcast %cst_39 : f32 to vector<16x16x8xf32>
    %52 = arith.maximumf %50, %51 : vector<16x16x8xf32>
    %53 = arith.truncf %52 : vector<16x16x8xf32> to vector<16x16x8xbf16>
    %54 = tpu.concatenate %18, %53, %37 in 0 : vector<1x16x8xbf16>, vector<16x16x8xbf16>, vector<1x16x8xbf16> -> vector<18x16x8xbf16>
    %cst_40 = arith.constant 0.000000e+00 : bf16
    %55 = vector.broadcast %cst_40 : bf16 to vector<18x1x8xbf16>
    %56 = vector.extract_strided_slice %54 {offsets = [0, 0, 0], sizes = [18, 15, 8], strides = [1, 1, 1]} : vector<18x16x8xbf16> to vector<18x15x8xbf16>
    %57 = tpu.concatenate %55, %56 in 1 : vector<18x1x8xbf16>, vector<18x15x8xbf16> -> vector<18x16x8xbf16>
    %58 = vector.extract_strided_slice %54 {offsets = [0, 1, 0], sizes = [18, 15, 8], strides = [1, 1, 1]} : vector<18x16x8xbf16> to vector<18x15x8xbf16>
    %59 = tpu.concatenate %58, %55 in 1 : vector<18x15x8xbf16>, vector<18x1x8xbf16> -> vector<18x16x8xbf16>
    %60 = tpu.concatenate %57, %54, %59 in 2 : vector<18x16x8xbf16>, vector<18x16x8xbf16>, vector<18x16x8xbf16> -> vector<18x16x24xbf16>
    %c0_41 = arith.constant 0 : index
    %c0_42 = arith.constant 0 : index
    %c0_43 = arith.constant 0 : index
    %61 = vector.load %arg10[%c0_41, %c0_42, %c0_43] : memref<18x16x24xbf16, #tpu.memory_space<vmem>>, vector<18x16x24xbf16>
    tpu.vector_store %arg10[%c0_41, %c0_42, %c0_43], %60 {strides = array<i32>} : memref<18x16x24xbf16, #tpu.memory_space<vmem>>, vector<18x16x24xbf16>,
    %c0_44 = arith.constant 0 : index
    %c0_45 = arith.constant 0 : index
    %c0_46 = arith.constant 0 : index
    %62 = vector.load %arg10[%c0_44, %c0_45, %c0_46] : memref<18x16x24xbf16, #tpu.memory_space<vmem>>, vector<16x16x24xbf16>
    %63 = vector.shape_cast %62 : vector<16x16x24xbf16> to vector<256x24xbf16>
    %c0_47 = arith.constant 0 : index
    %c0_48 = arith.constant 0 : index
    %c0_49 = arith.constant 0 : index
    %64 = vector.load %arg5[%c0_47, %c0_48, %c0_49] : memref<3x24x8xbf16, #tpu.memory_space<vmem>>, vector<1x24x8xbf16>
    %65 = vector.shape_cast %64 : vector<1x24x8xbf16> to vector<24x8xbf16>
    %cst_50 = arith.constant dense<0.000000e+00> : vector<256x8xf32>
    %66 = tpu.matmul %63, %65, %cst_50 {dimension_numbers = #tpu.dot_dimension_numbers<[1], [0], [0], [1], [0, 0, 1, 1], [], []>} : vector<256x24xbf16>, vector<24x8xbf16>, vector<256x8xf32> -> vector<256x8xf32>
    %c0_51 = arith.constant 0 : index
    %c0_52 = arith.constant 0 : index
    %67 = vector.load %arg11[%c0_51, %c0_52] : memref<256x8xf32, #tpu.memory_space<vmem>>, vector<256x8xf32>
    tpu.vector_store %arg11[%c0_51, %c0_52], %66 {strides = array<i32>} : memref<256x8xf32, #tpu.memory_space<vmem>>, vector<256x8xf32>,
    %c1 = arith.constant 1 : index
    %c0_53 = arith.constant 0 : index
    %c0_54 = arith.constant 0 : index
    %68 = vector.load %arg10[%c1, %c0_53, %c0_54] : memref<18x16x24xbf16, #tpu.memory_space<vmem>>, vector<16x16x24xbf16>
    %69 = vector.shape_cast %68 : vector<16x16x24xbf16> to vector<256x24xbf16>
    %c1_55 = arith.constant 1 : index
    %c0_56 = arith.constant 0 : index
    %c0_57 = arith.constant 0 : index
    %70 = vector.load %arg5[%c1_55, %c0_56, %c0_57] : memref<3x24x8xbf16, #tpu.memory_space<vmem>>, vector<1x24x8xbf16>
    %71 = vector.shape_cast %70 : vector<1x24x8xbf16> to vector<24x8xbf16>
    %cst_58 = arith.constant dense<0.000000e+00> : vector<256x8xf32>
    %72 = tpu.matmul %69, %71, %cst_58 {dimension_numbers = #tpu.dot_dimension_numbers<[1], [0], [0], [1], [0, 0, 1, 1], [], []>} : vector<256x24xbf16>, vector<24x8xbf16>, vector<256x8xf32> -> vector<256x8xf32>
    %c0_59 = arith.constant 0 : index
    %c0_60 = arith.constant 0 : index
    %73 = vector.load %arg11[%c0_59, %c0_60] : memref<256x8xf32, #tpu.memory_space<vmem>>, vector<256x8xf32>
    %74 = arith.addf %73, %72 : vector<256x8xf32>
    %c0_61 = arith.constant 0 : index
    %c0_62 = arith.constant 0 : index
    %75 = vector.load %arg11[%c0_61, %c0_62] : memref<256x8xf32, #tpu.memory_space<vmem>>, vector<256x8xf32>
    tpu.vector_store %arg11[%c0_61, %c0_62], %74 {strides = array<i32>} : memref<256x8xf32, #tpu.memory_space<vmem>>, vector<256x8xf32>,
    %c2 = arith.constant 2 : index
    %c0_63 = arith.constant 0 : index
    %c0_64 = arith.constant 0 : index
    %76 = vector.load %arg10[%c2, %c0_63, %c0_64] : memref<18x16x24xbf16, #tpu.memory_space<vmem>>, vector<16x16x24xbf16>
    %77 = vector.shape_cast %76 : vector<16x16x24xbf16> to vector<256x24xbf16>
    %c2_65 = arith.constant 2 : index
    %c0_66 = arith.constant 0 : index
    %c0_67 = arith.constant 0 : index
    %78 = vector.load %arg5[%c2_65, %c0_66, %c0_67] : memref<3x24x8xbf16, #tpu.memory_space<vmem>>, vector<1x24x8xbf16>
    %79 = vector.shape_cast %78 : vector<1x24x8xbf16> to vector<24x8xbf16>
    %cst_68 = arith.constant dense<0.000000e+00> : vector<256x8xf32>
    %80 = tpu.matmul %77, %79, %cst_68 {dimension_numbers = #tpu.dot_dimension_numbers<[1], [0], [0], [1], [0, 0, 1, 1], [], []>} : vector<256x24xbf16>, vector<24x8xbf16>, vector<256x8xf32> -> vector<256x8xf32>
    %c0_69 = arith.constant 0 : index
    %c0_70 = arith.constant 0 : index
    %81 = vector.load %arg11[%c0_69, %c0_70] : memref<256x8xf32, #tpu.memory_space<vmem>>, vector<256x8xf32>
    %82 = arith.addf %81, %80 : vector<256x8xf32>
    %c0_71 = arith.constant 0 : index
    %c0_72 = arith.constant 0 : index
    %83 = vector.load %arg11[%c0_71, %c0_72] : memref<256x8xf32, #tpu.memory_space<vmem>>, vector<256x8xf32>
    tpu.vector_store %arg11[%c0_71, %c0_72], %82 {strides = array<i32>} : memref<256x8xf32, #tpu.memory_space<vmem>>, vector<256x8xf32>,
    %c0_73 = arith.constant 0 : index
    %c0_74 = arith.constant 0 : index
    %84 = vector.load %arg11[%c0_73, %c0_74] : memref<256x8xf32, #tpu.memory_space<vmem>>, vector<256x8xf32>
    %85 = vector.shape_cast %84 : vector<256x8xf32> to vector<1x16x16x8xf32>
    %86 = arith.truncf %85 : vector<1x16x16x8xf32> to vector<1x16x16x8xbf16>
    %c0_75 = arith.constant 0 : index
    %c0_76 = arith.constant 0 : index
    %c0_77 = arith.constant 0 : index
    %c0_78 = arith.constant 0 : index
    %87 = vector.load %arg8[%c0_75, %c0_76, %c0_77, %c0_78] : memref<1x16x16x8xbf16, #tpu.memory_space<vmem>>, vector<1x16x16x8xbf16>
    tpu.vector_store %arg8[%c0_75, %c0_76, %c0_77, %c0_78], %86 {strides = array<i32>} : memref<1x16x16x8xbf16, #tpu.memory_space<vmem>>, vector<1x16x16x8xbf16>,
    %cst_79 = arith.constant dense<0.000000e+00> : vector<8xf32>
    %88 = vector.multi_reduction <add>, %84, %cst_79 [0] : vector<256x8xf32> to vector<8xf32>
    %89 = vector.shape_cast %88 : vector<8xf32> to vector<1x8xf32>
    %90 = arith.mulf %84, %84 : vector<256x8xf32>
    %cst_80 = arith.constant dense<0.000000e+00> : vector<8xf32>
    %91 = vector.multi_reduction <add>, %90, %cst_80 [0] : vector<256x8xf32> to vector<8xf32>
    %92 = vector.shape_cast %91 : vector<8xf32> to vector<1x8xf32>
    %93 = tpu.concatenate %89, %92 in 0 : vector<1x8xf32>, vector<1x8xf32> -> vector<2x8xf32>
    %94 = vector.shape_cast %93 : vector<2x8xf32> to vector<1x1x2x8xf32>
    %c0_81 = arith.constant 0 : index
    %c0_82 = arith.constant 0 : index
    %c0_83 = arith.constant 0 : index
    %c0_84 = arith.constant 0 : index
    %95 = vector.load %arg9[%c0_81, %c0_82, %c0_83, %c0_84] : memref<1x1x2x8xf32, #tpu.memory_space<vmem>>, vector<1x1x2x8xf32>
    tpu.vector_store %arg9[%c0_81, %c0_82, %c0_83, %c0_84], %94 {strides = array<i32>} : memref<1x1x2x8xf32, #tpu.memory_space<vmem>>, vector<1x1x2x8xf32>,
    return
  }
  func.func @transform_0(%arg0: i32, %arg1: i32) -> (i32, i32, i32, i32) {
    %c16_i32 = arith.constant 16 : i32
    %0 = arith.muli %arg1, %c16_i32 : i32
    %c1_i32 = arith.constant 1 : i32
    %1 = arith.subi %0, %c1_i32 : i32
    %c0_i32 = arith.constant 0 : i32
    %2 = arith.maxsi %1, %c0_i32 : i32
    %c0_i32_0 = arith.constant 0 : i32
    %c0_i32_1 = arith.constant 0 : i32
    %c0_i32_2 = arith.constant 0 : i32
    return %arg0, %2, %c0_i32_0, %c0_i32_1 : i32, i32, i32, i32
  }
  func.func @transform_1(%arg0: i32, %arg1: i32) -> (i32, i32, i32, i32) {
    %c0_i32 = arith.constant 0 : i32
    %c0_i32_0 = arith.constant 0 : i32
    %c0_i32_1 = arith.constant 0 : i32
    return %arg0, %arg1, %c0_i32, %c0_i32_0 : i32, i32, i32, i32
  }
  func.func @transform_2(%arg0: i32, %arg1: i32) -> (i32, i32, i32, i32) {
    %c1_i32 = arith.constant 1 : i32
    %0 = arith.addi %arg1, %c1_i32 : i32
    %c16_i32 = arith.constant 16 : i32
    %1 = arith.muli %0, %c16_i32 : i32
    %c15_i32 = arith.constant 15 : i32
    %2 = arith.minsi %1, %c15_i32 : i32
    %c0_i32 = arith.constant 0 : i32
    %c0_i32_0 = arith.constant 0 : i32
    %c0_i32_1 = arith.constant 0 : i32
    return %arg0, %2, %c0_i32, %c0_i32_0 : i32, i32, i32, i32
  }
  func.func @transform_3(%arg0: i32, %arg1: i32) -> (i32, i32, i32) {
    %c0_i32 = arith.constant 0 : i32
    %c0_i32_0 = arith.constant 0 : i32
    %c0_i32_1 = arith.constant 0 : i32
    %c0_i32_2 = arith.constant 0 : i32
    return %c0_i32, %c0_i32_0, %c0_i32_1 : i32, i32, i32
  }
  func.func @transform_4(%arg0: i32, %arg1: i32) -> (i32, i32, i32, i32) {
    %c0_i32 = arith.constant 0 : i32
    %c0_i32_0 = arith.constant 0 : i32
    %c0_i32_1 = arith.constant 0 : i32
    %c0_i32_2 = arith.constant 0 : i32
    %c0_i32_3 = arith.constant 0 : i32
    return %c0_i32, %c0_i32_0, %c0_i32_1, %c0_i32_2 : i32, i32, i32, i32
  }
  func.func @transform_5(%arg0: i32, %arg1: i32) -> (i32, i32, i32, i32) {
    %c0_i32 = arith.constant 0 : i32
    %c0_i32_0 = arith.constant 0 : i32
    %c0_i32_1 = arith.constant 0 : i32
    %c0_i32_2 = arith.constant 0 : i32
    %c0_i32_3 = arith.constant 0 : i32
    return %c0_i32, %c0_i32_0, %c0_i32_1, %c0_i32_2 : i32, i32, i32, i32
  }
  func.func @transform_6(%arg0: i32, %arg1: i32) -> (i32, i32, i32, i32) {
    %c0_i32 = arith.constant 0 : i32
    %c0_i32_0 = arith.constant 0 : i32
    %c0_i32_1 = arith.constant 0 : i32
    return %arg0, %arg1, %c0_i32, %c0_i32_0 : i32, i32, i32, i32
  }
  func.func @transform_7(%arg0: i32, %arg1: i32) -> (i32, i32, i32, i32) {
    %c0_i32 = arith.constant 0 : i32
    %c0_i32_0 = arith.constant 0 : i32
    %c0_i32_1 = arith.constant 0 : i32
    return %arg0, %arg1, %c0_i32, %c0_i32_0 : i32, i32, i32, i32
  }
}

</mosaic_0001>

<llo_original>
// kernel: down_block_forward.5
$region0: #{down_block_forward.5}
  #allocation0 [shape = 'u32[]', space=smem, size = 0x4, offset = 0x4, fixed_abs, tag = 'smem constant byte address 0x4 - core index']
  #allocation1 [shape = 'u32[144,128]{1,0:T(1,128)}', space=vmem, size = 0x12000, scoped, tag = 'internal scratch']
  %s0 = inlined_call_operand.vmem [shape: bf16[2,16,16,8], index: 0, kind: input, shape index: {}]
  %s1 = inlined_call_operand.vmem [shape: f32[1,1,1,8], index: 1, kind: input, shape index: {}]
  %s2 = inlined_call_operand.vmem [shape: f32[1,1,1,8], index: 2, kind: input, shape index: {}]
  %s3 = inlined_call_operand.vmem [shape: f32[2,16,16,8], index: 3, kind: output, shape index: {0}]
  %s4 = inlined_call_operand.vmem [shape: f32[2,8,8,8], index: 4, kind: output, shape index: {1}]
  %5 = xla_tuple %s3, %s4
  %s6 = sld [smem:[#allocation0]]
  $region53: #{down_block_forward.5} parent=0
    _
  %s8 = ssub.s32 1, %s6
  %s9 = scalar_select 0, %s8, %s6
  loop: start=0, step=1, limit=4
  $region2: #{down_block_forward.5} parent=0 // loop_pre_header
    _
  $region3: #{down_block_forward.5} parent=0 // loop_header
    %s11 = sphi 0, %s15
    %p12 = scmp.ge.s32.totalorder %s11, 4
    %s18 = sphi 0, %s30
    %s19 = sphi 0, %s26
    %s20 = sphi 0, %s18
    %s21 = sphi 0, %s19
    %s22 = sphi 0, %s20
    %s23 = sphi 0, %s21
    %s35 = sphi 0, %s37
    %s38 = sphi 0, %s35
    %s39 = sphi 0, %s38
    %s55 = sphi 0, %s39
    %s59 = sphi 0, %s59
    %s61 = sphi 0, %s59
    %s62 = sphi 0, %s61
    %s76 = sphi 0, %s62
    %s80 = sphi 0, %s80
    %s82 = sphi 0, %s80
    %s83 = sphi 0, %s82
    %s97 = sphi 0, %s83
    %s105 = sphi 0, %s107
    %s108 = sphi 0, %s105
    %s109 = sphi 0, %s108
    %s125 = sphi 0, %s109
    %s133 = sphi 0, %s135
    %s136 = sphi 0, %s133
    %s137 = sphi 0, %s136
    %s153 = sphi 0, %s137
  $region4: #{down_block_forward.5} parent=0 // loop_header_branch
    %14 = sbr.rel (%p12) target = $region8
  $region5: #{down_block_forward.5} parent=0 // loop_body
    %s16 = ssub.s32 %s11, 1
    %s17 = ssub.s32 %s11, 2
    %s24 = sadd.s32 1, %s19
    %p25 = scmp.ge.s32.totalorder %s24, 1
    %s26 = scalar_select %p25, 0, %s24
    %s27 = sadd.s32 1, %s18
    %s28 = scalar_select %p25, %s27, %s18
    %p29 = scmp.ge.s32.totalorder %s28, 2
    %s30 = scalar_select %p29, 0, %s28
    %s31 = ssub.s32 %s18, %s30
    %s32 = ssub.s32 %s19, %s26
    %s33 = sor.u32 %s31, %s32
    %p34 = scmp.eq.s32.totalorder %s33, 0
    %s36 = sadd.s32 %s35, 1
    %s37 = scalar_select %p34, %s35, %s36
    %p40 = pneg %p34
    %p41 = scmp.eq.s32.totalorder %s11, 1
    %p42 = por %p40, %p41
    %p43 = scmp.ne.s32.totalorder %s35, %s38
    %p44 = scmp.eq.s32.totalorder %s11, 0
    %p45 = por %p43, %p44
    %p46 = scmp.ne.s32.totalorder %s35, %s38
    %p47 = scmp.eq.s32.totalorder %s16, 1
    %p48 = por %p46, %p47
    %p49 = scmp.ne.s32.totalorder %s38, %s39
    %p50 = scmp.eq.s32.totalorder %s16, 0
    %p51 = por %p49, %p50
    %p52 = scmp.ne.s32.totalorder %s38, %s39
    %p53 = scmp.eq.s32.totalorder %s17, 1
    %p54 = por %p52, %p53
    %p56 = scmp.ne.s32.totalorder %s39, %s55
    %p57 = scmp.eq.s32.totalorder %s17, 0
    %p58 = por %p56, %p57
    %s60 = sadd.s32 %s59, 1
    %p63 = scmp.eq.s32.totalorder %s11, 1
    %p64 = scmp.ne.s32.totalorder %s59, %s61
    %p65 = scmp.eq.s32.totalorder %s11, 0
    %p66 = por %p64, %p65
    %p67 = scmp.ne.s32.totalorder %s59, %s61
    %p68 = scmp.eq.s32.totalorder %s16, 1
    %p69 = por %p67, %p68
    %p70 = scmp.ne.s32.totalorder %s61, %s62
    %p71 = scmp.eq.s32.totalorder %s16, 0
    %p72 = por %p70, %p71
    %p73 = scmp.ne.s32.totalorder %s61, %s62
    %p74 = scmp.eq.s32.totalorder %s17, 1
    %p75 = por %p73, %p74
    %p77 = scmp.ne.s32.totalorder %s62, %s76
    %p78 = scmp.eq.s32.totalorder %s17, 0
    %p79 = por %p77, %p78
    %s81 = sadd.s32 %s80, 1
    %p84 = scmp.eq.s32.totalorder %s11, 1
    %p85 = scmp.ne.s32.totalorder %s80, %s82
    %p86 = scmp.eq.s32.totalorder %s11, 0
    %p87 = por %p85, %p86
    %p88 = scmp.ne.s32.totalorder %s80, %s82
    %p89 = scmp.eq.s32.totalorder %s16, 1
    %p90 = por %p88, %p89
    %p91 = scmp.ne.s32.totalorder %s82, %s83
    %p92 = scmp.eq.s32.totalorder %s16, 0
    %p93 = por %p91, %p92
    %p94 = scmp.ne.s32.totalorder %s82, %s83
    %p95 = scmp.eq.s32.totalorder %s17, 1
    %p96 = por %p94, %p95
    %p98 = scmp.ne.s32.totalorder %s83, %s97
    %p99 = scmp.eq.s32.totalorder %s17, 0
    %p100 = por %p98, %p99
    %s101 = ssub.s32 %s18, %s30
    %s102 = ssub.s32 %s19, %s26
    %s103 = sor.u32 %s101, %s102
    %p104 = scmp.eq.s32.totalorder %s103, 0
    %s106 = sadd.s32 %s105, 1
    %s107 = scalar_select %p104, %s105, %s106
    %p110 = pneg %p104
    %p111 = scmp.eq.s32.totalorder %s11, 1
    %p112 = por %p110, %p111
    %p113 = scmp.ne.s32.totalorder %s105, %s108
    %p114 = scmp.eq.s32.totalorder %s11, 0
    %p115 = por %p113, %p114
    %p116 = scmp.ne.s32.totalorder %s105, %s108
    %p117 = scmp.eq.s32.totalorder %s16, 1
    %p118 = por %p116, %p117
    %p119 = scmp.ne.s32.totalorder %s108, %s109
    %p120 = scmp.eq.s32.totalorder %s16, 0
    %p121 = por %p119, %p120
    %p122 = scmp.ne.s32.totalorder %s108, %s109
    %p123 = scmp.eq.s32.totalorder %s17, 1
    %p124 = por %p122, %p123
    %p126 = scmp.ne.s32.totalorder %s109, %s125
    %p127 = scmp.eq.s32.totalorder %s17, 0
    %p128 = por %p126, %p127
    %s129 = ssub.s32 %s18, %s30
    %s130 = ssub.s32 %s19, %s26
    %s131 = sor.u32 %s129, %s130
    %p132 = scmp.eq.s32.totalorder %s131, 0
    %s134 = sadd.s32 %s133, 1
    %s135 = scalar_select %p132, %s133, %s134
    %p138 = pneg %p132
    %p139 = scmp.eq.s32.totalorder %s11, 1
    %p140 = por %p138, %p139
    %p141 = scmp.ne.s32.totalorder %s133, %s136
    %p142 = scmp.eq.s32.totalorder %s11, 0
    %p143 = por %p141, %p142
    %p144 = scmp.ne.s32.totalorder %s133, %s136
    %p145 = scmp.eq.s32.totalorder %s16, 1
    %p146 = por %p144, %p145
    %p147 = scmp.ne.s32.totalorder %s136, %s137
    %p148 = scmp.eq.s32.totalorder %s16, 0
    %p149 = por %p147, %p148
    %p150 = scmp.ne.s32.totalorder %s136, %s137
    %p151 = scmp.eq.s32.totalorder %s17, 1
    %p152 = por %p150, %p151
    %p154 = scmp.ne.s32.totalorder %s137, %s153
    %p155 = scmp.eq.s32.totalorder %s17, 0
    %p156 = por %p154, %p155
    %p157 = scmp.le.s32.totalorder 1, %s11
    %p158 = scmp.lt.s32.totalorder %s11, 3
    %p159 = pnand %p157, %p158
    %p160 = pneg %p159
    // Predicated region
    $region9: #{down_block_forward.5} parent=5 // pred_check
      _
    $region10: #{down_block_forward.5} parent=5 // pred_check_branch
      %162 = sbr.rel (%p159) target = $region12
    $region11: #{down_block_forward.5} parent=5 // pred_region
      %s163 = ssub.s32 %s11, 1
      // Predicated region
      $region13: #{down_block_forward.5} parent=11 // pred_check
        %p164 = pneg %p72
      $region14: #{down_block_forward.5} parent=11 // pred_check_branch
        %166 = sbr.rel (%p164) target = $region16
      $region15: #{down_block_forward.5} parent=11 // pred_region
        _
      $region16: #{down_block_forward.5} parent=11 // pred_fallthru
        _
      // Predicated region
      $region17: #{down_block_forward.5} parent=11 // pred_check
        %p167 = pneg %p93
      $region18: #{down_block_forward.5} parent=11 // pred_check_branch
        %169 = sbr.rel (%p167) target = $region20
      $region19: #{down_block_forward.5} parent=11 // pred_region
        _
      $region20: #{down_block_forward.5} parent=11 // pred_fallthru
        _
    $region12: #{down_block_forward.5} parent=5 // pred_fallthru
      _
    %p170 = scmp.lt.s32.totalorder %s11, 2
    // Predicated region
    $region21: #{down_block_forward.5} parent=5 // pred_check
      %p171 = pneg %p170
    $region22: #{down_block_forward.5} parent=5 // pred_check_branch
      %173 = sbr.rel (%p171) target = $region24
    $region23: #{down_block_forward.5} parent=5 // pred_region
      // Predicated region
      $region25: #{down_block_forward.5} parent=23 // pred_check
        %p174 = pneg %p45
      $region26: #{down_block_forward.5} parent=23 // pred_check_branch
        %176 = sbr.rel (%p174) target = $region28
      $region27: #{down_block_forward.5} parent=23 // pred_region
        %s177 = smul.u32 16, %s19
        %p178 = scmp.lt.s32.totalorder %s18, 1
        %s179 = scalar_select %p178, %s18, 1
        %p180 = scmp.lt.s32.totalorder %s177, 15
        %s181 = scalar_select %p180, %s177, 15
        %s182 = smul.addr %s181, 2
        %s183 = smul.addr %s179, 32
        %s184 = sadd.s32 %s182, %s183
        %s185 = smul.addr %s184, 4
        %s186 = scalar_lea.vmem %s0, %s185
        %s187 = smul.u32 16, %s19
      $region28: #{down_block_forward.5} parent=23 // pred_fallthru
        _
    $region24: #{down_block_forward.5} parent=5 // pred_fallthru
      _
    %p188 = scmp.le.s32.totalorder 1, %s11
    %p189 = scmp.lt.s32.totalorder %s11, 3
    %p190 = pnand %p188, %p189
    %p191 = pneg %p190
    // Predicated region
    $region29: #{down_block_forward.5} parent=5 // pred_check
      _
    $region30: #{down_block_forward.5} parent=5 // pred_check_branch
      %193 = sbr.rel (%p190) target = $region32
    $region31: #{down_block_forward.5} parent=5 // pred_region
      %s194 = ssub.s32 %s11, 1
      %s195 = smul.u32 16, %s21
      %p196 = scmp.lt.s32.totalorder %s20, 1
      %s197 = scalar_select %p196, %s20, 1
      %p198 = scmp.lt.s32.totalorder %s195, 15
      %s199 = scalar_select %p198, %s195, 15
      %s200 = smul.addr %s199, 2
      %s201 = smul.addr %s197, 32
      %s202 = sadd.s32 %s200, %s201
      %s203 = smul.addr %s202, 4
      %s204 = scalar_lea.vmem %s0, %s203
      %p205 = pneg %p51
      %p206 = pneg %p48
      %p207 = pneg %p72
      %p208 = pneg %p69
      %p209 = pneg %p93
      %p210 = pneg %p90
      %p211 = pneg %p121
      %p212 = pneg %p118
      %s213 = smul.u32 16, %s21
      %p214 = scmp.lt.s32.totalorder %s20, 1
      %s215 = scalar_select %p214, %s20, 1
      %p216 = scmp.lt.s32.totalorder %s213, 15
      %s217 = scalar_select %p216, %s213, 15
      %s218 = smul.addr %s217, 2
      %s219 = smul.addr %s215, 32
      %s220 = sadd.s32 %s218, %s219
      %s221 = smul.addr %s220, 8
      %s222 = scalar_lea.vmem %s3, %s221
      %p223 = pneg %p149
      %p224 = pneg %p146
      %s225 = smul.u32 8, %s21
      %p226 = scmp.lt.s32.totalorder %s20, 1
      %s227 = scalar_select %p226, %s20, 1
      %p228 = scmp.lt.s32.totalorder %s225, 7
      %s229 = scalar_select %p228, %s225, 7
      %s230 = smul.addr %s227, 8
      %s231 = sadd.s32 %s229, %s230
      %s232 = smul.addr %s231, 8
      %s233 = scalar_lea.vmem %s4, %s232
      %s234 = smul.u32 16, %s21
      %p235 = scmp.lt.s32.totalorder %s20, 1
      %s236 = scalar_select %p235, %s20, 1
      %p237 = scmp.lt.s32.totalorder %s234, 15
      %s238 = scalar_select %p237, %s234, 15
      %s239 = smul.addr %s238, 2
      %s240 = smul.addr %s236, 32
      %s241 = sadd.s32 %s239, %s240
      %s242 = smul.addr %s241, 4
      %s243 = scalar_lea.vmem %s0, %s242
      %s244 = smul.u32 16, %s21
      %s245 = smul.u32 16, %s21
      %p246 = scmp.lt.s32.totalorder %s20, 1
      %s247 = scalar_select %p246, %s20, 1
      %p248 = scmp.lt.s32.totalorder %s245, 15
      %s249 = scalar_select %p248, %s245, 15
      %s250 = smul.addr %s249, 2
      %s251 = smul.addr %s247, 32
      %s252 = sadd.s32 %s250, %s251
      %s253 = smul.addr %s252, 8
      %s254 = scalar_lea.vmem %s3, %s253
      %s255 = smul.u32 16, %s21
      %s256 = smul.u32 8, %s21
      %p257 = scmp.lt.s32.totalorder %s20, 1
      %s258 = scalar_select %p257, %s20, 1
      %p259 = scmp.lt.s32.totalorder %s256, 7
      %s260 = scalar_select %p259, %s256, 7
      %s261 = smul.addr %s258, 8
      %s262 = sadd.s32 %s260, %s261
      %s263 = smul.addr %s262, 8
      %s264 = scalar_lea.vmem %s4, %s263
      %s265 = smul.u32 8, %s21
      %v266 = vld [vmem:[%s243] sm:$0xf]
      %v267 = vld [vmem:[%s243 + $0x4] sm:$0xf]
      %v268 = vld [vmem:[%s243 + $0x8] sm:$0xf]
      %v269 = vld [vmem:[%s243 + $0xc] sm:$0xf]
      %v270 = vld [vmem:[%s243 + $0x10] sm:$0xf]
      %v271 = vld [vmem:[%s243 + $0x14] sm:$0xf]
      %v272 = vld [vmem:[%s243 + $0x18] sm:$0xf]
      %v273 = vld [vmem:[%s243 + $0x1c] sm:$0xf]
      %v274 = vld [vmem:[%s243 + $0x20] sm:$0xf]
      %v275 = vld [vmem:[%s243 + $0x24] sm:$0xf]
      %v276 = vld [vmem:[%s243 + $0x28] sm:$0xf]
      %v277 = vld [vmem:[%s243 + $0x2c] sm:$0xf]
      %v278 = vld [vmem:[%s243 + $0x30] sm:$0xf]
      %v279 = vld [vmem:[%s243 + $0x34] sm:$0xf]
      %v280 = vld [vmem:[%s243 + $0x38] sm:$0xf]
      %v281 = vld [vmem:[%s243 + $0x3c] sm:$0xf]
      %v282 = vld [vmem:[%s243 + $0x40] sm:$0xf]
      %v283 = vld [vmem:[%s243 + $0x44] sm:$0xf]
      %v284 = vld [vmem:[%s243 + $0x48] sm:$0xf]
      %v285 = vld [vmem:[%s243 + $0x4c] sm:$0xf]
      %v286 = vld [vmem:[%s243 + $0x50] sm:$0xf]
      %v287 = vld [vmem:[%s243 + $0x54] sm:$0xf]
      %v288 = vld [vmem:[%s243 + $0x58] sm:$0xf]
      %v289 = vld [vmem:[%s243 + $0x5c] sm:$0xf]
      %v290 = vld [vmem:[%s243 + $0x60] sm:$0xf]
      %v291 = vld [vmem:[%s243 + $0x64] sm:$0xf]
      %v292 = vld [vmem:[%s243 + $0x68] sm:$0xf]
      %v293 = vld [vmem:[%s243 + $0x6c] sm:$0xf]
      %v294 = vld [vmem:[%s243 + $0x70] sm:$0xf]
      %v295 = vld [vmem:[%s243 + $0x74] sm:$0xf]
      %v296 = vld [vmem:[%s243 + $0x78] sm:$0xf]
      %v297 = vld [vmem:[%s243 + $0x7c] sm:$0xf]
      %v298 = vunpack.c.l.bf16 %v266
      %v299 = vunpack.c.l.bf16 %v267
      %v300 = vunpack.c.l.bf16 %v268
      %v301 = vunpack.c.l.bf16 %v269
      %v302 = vunpack.c.l.bf16 %v270
      %v303 = vunpack.c.l.bf16 %v271
      %v304 = vunpack.c.l.bf16 %v272
      %v305 = vunpack.c.l.bf16 %v273
      %v306 = vunpack.c.l.bf16 %v274
      %v307 = vunpack.c.l.bf16 %v275
      %v308 = vunpack.c.l.bf16 %v276
      %v309 = vunpack.c.l.bf16 %v277
      %v310 = vunpack.c.l.bf16 %v278
      %v311 = vunpack.c.l.bf16 %v279
      %v312 = vunpack.c.l.bf16 %v280
      %v313 = vunpack.c.l.bf16 %v281
      %v314 = vunpack.c.l.bf16 %v282
      %v315 = vunpack.c.l.bf16 %v283
      %v316 = vunpack.c.l.bf16 %v284
      %v317 = vunpack.c.l.bf16 %v285
      %v318 = vunpack.c.l.bf16 %v286
      %v319 = vunpack.c.l.bf16 %v287
      %v320 = vunpack.c.l.bf16 %v288
      %v321 = vunpack.c.l.bf16 %v289
      %v322 = vunpack.c.l.bf16 %v290
      %v323 = vunpack.c.l.bf16 %v291
      %v324 = vunpack.c.l.bf16 %v292
      %v325 = vunpack.c.l.bf16 %v293
      %v326 = vunpack.c.l.bf16 %v294
      %v327 = vunpack.c.l.bf16 %v295
      %v328 = vunpack.c.l.bf16 %v296
      %v329 = vunpack.c.l.bf16 %v297
      %v330 = vld [vmem:[%s1] sm:$0x1]
      %v332 = vlaneseq
      %v333 = vshrl.u32 %v332, 7
      %v334 = vsub.s32 0, %v333
      %v335 = vrot.slane %v330, %v334
      %v337 = vmul.f32 %v298, %v335
      %v338 = vmul.f32 %v299, %v335
      %v339 = vmul.f32 %v300, %v335
      %v340 = vmul.f32 %v301, %v335
      %v341 = vmul.f32 %v302, %v335
      %v342 = vmul.f32 %v303, %v335
      %v343 = vmul.f32 %v304, %v335
      %v344 = vmul.f32 %v305, %v335
      %v345 = vmul.f32 %v306, %v335
      %v346 = vmul.f32 %v307, %v335
      %v347 = vmul.f32 %v308, %v335
      %v348 = vmul.f32 %v309, %v335
      %v349 = vmul.f32 %v310, %v335
      %v350 = vmul.f32 %v311, %v335
      %v351 = vmul.f32 %v312, %v335
      %v352 = vmul.f32 %v313, %v335
      %v353 = vmul.f32 %v314, %v335
      %v354 = vmul.f32 %v315, %v335
      %v355 = vmul.f32 %v316, %v335
      %v356 = vmul.f32 %v317, %v335
      %v357 = vmul.f32 %v318, %v335
      %v358 = vmul.f32 %v319, %v335
      %v359 = vmul.f32 %v320, %v335
      %v360 = vmul.f32 %v321, %v335
      %v361 = vmul.f32 %v322, %v335
      %v362 = vmul.f32 %v323, %v335
      %v363 = vmul.f32 %v324, %v335
      %v364 = vmul.f32 %v325, %v335
      %v365 = vmul.f32 %v326, %v335
      %v366 = vmul.f32 %v327, %v335
      %v367 = vmul.f32 %v328, %v335
      %v368 = vmul.f32 %v329, %v335
      %v369 = vld [vmem:[%s2] sm:$0x1]
      %v371 = vlaneseq
      %v372 = vshrl.u32 %v371, 7
      %v373 = vsub.s32 0, %v372
      %v374 = vrot.slane %v369, %v373
      %v376 = vadd.f32 %v337, %v374
      %v377 = vadd.f32 %v338, %v374
      %v378 = vadd.f32 %v339, %v374
      %v379 = vadd.f32 %v340, %v374
      %v380 = vadd.f32 %v341, %v374
      %v381 = vadd.f32 %v342, %v374
      %v382 = vadd.f32 %v343, %v374
      %v383 = vadd.f32 %v344, %v374
      %v384 = vadd.f32 %v345, %v374
      %v385 = vadd.f32 %v346, %v374
      %v386 = vadd.f32 %v347, %v374
      %v387 = vadd.f32 %v348, %v374
      %v388 = vadd.f32 %v349, %v374
      %v389 = vadd.f32 %v350, %v374
      %v390 = vadd.f32 %v351, %v374
      %v391 = vadd.f32 %v352, %v374
      %v392 = vadd.f32 %v353, %v374
      %v393 = vadd.f32 %v354, %v374
      %v394 = vadd.f32 %v355, %v374
      %v395 = vadd.f32 %v356, %v374
      %v396 = vadd.f32 %v357, %v374
      %v397 = vadd.f32 %v358, %v374
      %v398 = vadd.f32 %v359, %v374
      %v399 = vadd.f32 %v360, %v374
      %v400 = vadd.f32 %v361, %v374
      %v401 = vadd.f32 %v362, %v374
      %v402 = vadd.f32 %v363, %v374
      %v403 = vadd.f32 %v364, %v374
      %v404 = vadd.f32 %v365, %v374
      %v405 = vadd.f32 %v366, %v374
      %v406 = vadd.f32 %v367, %v374
      %v407 = vadd.f32 %v368, %v374
      %v408 = vmax.f32 %v376, 0.0
      %v409 = vmax.f32 %v377, 0.0
      %v410 = vmax.f32 %v378, 0.0
      %v411 = vmax.f32 %v379, 0.0
      %v412 = vmax.f32 %v380, 0.0
      %v413 = vmax.f32 %v381, 0.0
      %v414 = vmax.f32 %v382, 0.0
      %v415 = vmax.f32 %v383, 0.0
      %v416 = vmax.f32 %v384, 0.0
      %v417 = vmax.f32 %v385, 0.0
      %v418 = vmax.f32 %v386, 0.0
      %v419 = vmax.f32 %v387, 0.0
      %v420 = vmax.f32 %v388, 0.0
      %v421 = vmax.f32 %v389, 0.0
      %v422 = vmax.f32 %v390, 0.0
      %v423 = vmax.f32 %v391, 0.0
      %v424 = vmax.f32 %v392, 0.0
      %v425 = vmax.f32 %v393, 0.0
      %v426 = vmax.f32 %v394, 0.0
      %v427 = vmax.f32 %v395, 0.0
      %v428 = vmax.f32 %v396, 0.0
      %v429 = vmax.f32 %v397, 0.0
      %v430 = vmax.f32 %v398, 0.0
      %v431 = vmax.f32 %v399, 0.0
      %v432 = vmax.f32 %v400, 0.0
      %v433 = vmax.f32 %v401, 0.0
      %v434 = vmax.f32 %v402, 0.0
      %v435 = vmax.f32 %v403, 0.0
      %v436 = vmax.f32 %v404, 0.0
      %v437 = vmax.f32 %v405, 0.0
      %v438 = vmax.f32 %v406, 0.0
      %v439 = vmax.f32 %v407, 0.0
      %vm440 = vcmask 64512
      %441 = vst.msk [vmem:[%s254] sm:$0xff] %vm440, %v408
      %442 = vst.msk [vmem:[%s254 + $0x8] sm:$0xff] %vm440, %v409
      %443 = vst.msk [vmem:[%s254 + $0x10] sm:$0xff] %vm440, %v410
      %444 = vst.msk [vmem:[%s254 + $0x18] sm:$0xff] %vm440, %v411
      %445 = vst.msk [vmem:[%s254 + $0x20] sm:$0xff] %vm440, %v412
      %446 = vst.msk [vmem:[%s254 + $0x28] sm:$0xff] %vm440, %v413
      %447 = vst.msk [vmem:[%s254 + $0x30] sm:$0xff] %vm440, %v414
      %448 = vst.msk [vmem:[%s254 + $0x38] sm:$0xff] %vm440, %v415
      %449 = vst.msk [vmem:[%s254 + $0x40] sm:$0xff] %vm440, %v416
      %450 = vst.msk [vmem:[%s254 + $0x48] sm:$0xff] %vm440, %v417
      %451 = vst.msk [vmem:[%s254 + $0x50] sm:$0xff] %vm440, %v418
      %452 = vst.msk [vmem:[%s254 + $0x58] sm:$0xff] %vm440, %v419
      %453 = vst.msk [vmem:[%s254 + $0x60] sm:$0xff] %vm440, %v420
      %454 = vst.msk [vmem:[%s254 + $0x68] sm:$0xff] %vm440, %v421
      %455 = vst.msk [vmem:[%s254 + $0x70] sm:$0xff] %vm440, %v422
      %456 = vst.msk [vmem:[%s254 + $0x78] sm:$0xff] %vm440, %v423
      %457 = vst.msk [vmem:[%s254 + $0x80] sm:$0xff] %vm440, %v424
      %458 = vst.msk [vmem:[%s254 + $0x88] sm:$0xff] %vm440, %v425
      %459 = vst.msk [vmem:[%s254 + $0x90] sm:$0xff] %vm440, %v426
      %460 = vst.msk [vmem:[%s254 + $0x98] sm:$0xff] %vm440, %v427
      %461 = vst.msk [vmem:[%s254 + $0xa0] sm:$0xff] %vm440, %v428
      %462 = vst.msk [vmem:[%s254 + $0xa8] sm:$0xff] %vm440, %v429
      %463 = vst.msk [vmem:[%s254 + $0xb0] sm:$0xff] %vm440, %v430
      %464 = vst.msk [vmem:[%s254 + $0xb8] sm:$0xff] %vm440, %v431
      %465 = vst.msk [vmem:[%s254 + $0xc0] sm:$0xff] %vm440, %v432
      %466 = vst.msk [vmem:[%s254 + $0xc8] sm:$0xff] %vm440, %v433
      %467 = vst.msk [vmem:[%s254 + $0xd0] sm:$0xff] %vm440, %v434
      %468 = vst.msk [vmem:[%s254 + $0xd8] sm:$0xff] %vm440, %v435
      %469 = vst.msk [vmem:[%s254 + $0xe0] sm:$0xff] %vm440, %v436
      %470 = vst.msk [vmem:[%s254 + $0xe8] sm:$0xff] %vm440, %v437
      %471 = vst.msk [vmem:[%s254 + $0xf0] sm:$0xff] %vm440, %v438
      %472 = vst.msk [vmem:[%s254 + $0xf8] sm:$0xff] %vm440, %v439
      %v473 = vmax.f32 %v408, %v410
      %v474 = vmax.f32 %v409, %v411
      %v475 = vmax.f32 %v412, %v414
      %v476 = vmax.f32 %v413, %v415
      %v477 = vmax.f32 %v416, %v418
      %v478 = vmax.f32 %v417, %v419
      %v479 = vmax.f32 %v420, %v422
      %v480 = vmax.f32 %v421, %v423
      %v481 = vmax.f32 %v424, %v426
      %v482 = vmax.f32 %v425, %v427
      %v483 = vmax.f32 %v428, %v430
      %v484 = vmax.f32 %v429, %v431
      %v485 = vmax.f32 %v432, %v434
      %v486 = vmax.f32 %v433, %v435
      %v487 = vmax.f32 %v436, %v438
      %v488 = vmax.f32 %v437, %v439
      %v505 = vcombine.high %v473, %v473
      %v507 = vunpack.c.l.s4 1983009808
      %v508 = vunpack.c.0.s8 %v507
      %v509 = vlaneseq
      %v510 = vshrl.u32 %v509, 7
      %v511 = vsub.s32 %v508, %v510
      %v512 = vrot.slane %v473, %v511
      %v514 = vunpack.c.l.s4 1983009808
      %v515 = vunpack.c.0.s8 %v514
      %v516 = vlaneseq
      %v517 = vshrl.u32 %v516, 7
      %v518 = vsub.s32 %v515, %v517
      %v519 = vrot.slane %v505, %v518
      %v520 = vcombine.high %v512, %v512
      %v521 = vcombine.high %v519, %v519
      %v522 = vcombine.high %v474, %v474
      %v524 = vunpack.c.l.s4 1983009808
      %v525 = vunpack.c.0.s8 %v524
      %v526 = vlaneseq
      %v527 = vshrl.u32 %v526, 7
      %v528 = vsub.s32 %v525, %v527
      %v529 = vrot.slane %v474, %v528
      %v531 = vunpack.c.l.s4 1983009808
      %v532 = vunpack.c.0.s8 %v531
      %v533 = vlaneseq
      %v534 = vshrl.u32 %v533, 7
      %v535 = vsub.s32 %v532, %v534
      %v536 = vrot.slane %v522, %v535
      %v537 = vcombine.high %v529, %v529
      %v538 = vcombine.high %v536, %v536
      %v539 = vcombine.high %v475, %v475
      %v541 = vunpack.c.l.s4 1983009808
      %v542 = vunpack.c.0.s8 %v541
      %v543 = vlaneseq
      %v544 = vshrl.u32 %v543, 7
      %v545 = vsub.s32 %v542, %v544
      %v546 = vrot.slane %v475, %v545
      %v548 = vunpack.c.l.s4 1983009808
      %v549 = vunpack.c.0.s8 %v548
      %v550 = vlaneseq
      %v551 = vshrl.u32 %v550, 7
      %v552 = vsub.s32 %v549, %v551
      %v553 = vrot.slane %v539, %v552
      %v554 = vcombine.high %v546, %v546
      %v555 = vcombine.high %v553, %v553
      %v556 = vcombine.high %v476, %v476
      %v558 = vunpack.c.l.s4 1983009808
      %v559 = vunpack.c.0.s8 %v558
      %v560 = vlaneseq
      %v561 = vshrl.u32 %v560, 7
      %v562 = vsub.s32 %v559, %v561
      %v563 = vrot.slane %v476, %v562
      %v565 = vunpack.c.l.s4 1983009808
      %v566 = vunpack.c.0.s8 %v565
      %v567 = vlaneseq
      %v568 = vshrl.u32 %v567, 7
      %v569 = vsub.s32 %v566, %v568
      %v570 = vrot.slane %v556, %v569
      %v571 = vcombine.high %v563, %v563
      %v572 = vcombine.high %v570, %v570
      %v573 = vcombine.high %v477, %v477
      %v575 = vunpack.c.l.s4 1983009808
      %v576 = vunpack.c.0.s8 %v575
      %v577 = vlaneseq
      %v578 = vshrl.u32 %v577, 7
      %v579 = vsub.s32 %v576, %v578
      %v580 = vrot.slane %v477, %v579
      %v582 = vunpack.c.l.s4 1983009808
      %v583 = vunpack.c.0.s8 %v582
      %v584 = vlaneseq
      %v585 = vshrl.u32 %v584, 7
      %v586 = vsub.s32 %v583, %v585
      %v587 = vrot.slane %v573, %v586
      %v588 = vcombine.high %v580, %v580
      %v589 = vcombine.high %v587, %v587
      %v590 = vcombine.high %v478, %v478
      %v592 = vunpack.c.l.s4 1983009808
      %v593 = vunpack.c.0.s8 %v592
      %v594 = vlaneseq
      %v595 = vshrl.u32 %v594, 7
      %v596 = vsub.s32 %v593, %v595
      %v597 = vrot.slane %v478, %v596
      %v599 = vunpack.c.l.s4 1983009808
      %v600 = vunpack.c.0.s8 %v599
      %v601 = vlaneseq
      %v602 = vshrl.u32 %v601, 7
      %v603 = vsub.s32 %v600, %v602
      %v604 = vrot.slane %v590, %v603
      %v605 = vcombine.high %v597, %v597
      %v606 = vcombine.high %v604, %v604
      %v607 = vcombine.high %v479, %v479
      %v609 = vunpack.c.l.s4 1983009808
      %v610 = vunpack.c.0.s8 %v609
      %v611 = vlaneseq
      %v612 = vshrl.u32 %v611, 7
      %v613 = vsub.s32 %v610, %v612
      %v614 = vrot.slane %v479, %v613
      %v616 = vunpack.c.l.s4 1983009808
      %v617 = vunpack.c.0.s8 %v616
      %v618 = vlaneseq
      %v619 = vshrl.u32 %v618, 7
      %v620 = vsub.s32 %v617, %v619
      %v621 = vrot.slane %v607, %v620
      %v622 = vcombine.high %v614, %v614
      %v623 = vcombine.high %v621, %v621
      %v624 = vcombine.high %v480, %v480
      %v626 = vunpack.c.l.s4 1983009808
      %v627 = vunpack.c.0.s8 %v626
      %v628 = vlaneseq
      %v629 = vshrl.u32 %v628, 7
      %v630 = vsub.s32 %v627, %v629
      %v631 = vrot.slane %v480, %v630
      %v633 = vunpack.c.l.s4 1983009808
      %v634 = vunpack.c.0.s8 %v633
      %v635 = vlaneseq
      %v636 = vshrl.u32 %v635, 7
      %v637 = vsub.s32 %v634, %v636
      %v638 = vrot.slane %v624, %v637
      %v639 = vcombine.high %v631, %v631
      %v640 = vcombine.high %v638, %v638
      %v641 = vcombine.high %v481, %v481
      %v643 = vunpack.c.l.s4 1983009808
      %v644 = vunpack.c.0.s8 %v643
      %v645 = vlaneseq
      %v646 = vshrl.u32 %v645, 7
      %v647 = vsub.s32 %v644, %v646
      %v648 = vrot.slane %v481, %v647
      %v650 = vunpack.c.l.s4 1983009808
      %v651 = vunpack.c.0.s8 %v650
      %v652 = vlaneseq
      %v653 = vshrl.u32 %v652, 7
      %v654 = vsub.s32 %v651, %v653
      %v655 = vrot.slane %v641, %v654
      %v656 = vcombine.high %v648, %v648
      %v657 = vcombine.high %v655, %v655
      %v658 = vcombine.high %v482, %v482
      %v660 = vunpack.c.l.s4 1983009808
      %v661 = vunpack.c.0.s8 %v660
      %v662 = vlaneseq
      %v663 = vshrl.u32 %v662, 7
      %v664 = vsub.s32 %v661, %v663
      %v665 = vrot.slane %v482, %v664
      %v667 = vunpack.c.l.s4 1983009808
      %v668 = vunpack.c.0.s8 %v667
      %v669 = vlaneseq
      %v670 = vshrl.u32 %v669, 7
      %v671 = vsub.s32 %v668, %v670
      %v672 = vrot.slane %v658, %v671
      %v673 = vcombine.high %v665, %v665
      %v674 = vcombine.high %v672, %v672
      %v675 = vcombine.high %v483, %v483
      %v677 = vunpack.c.l.s4 1983009808
      %v678 = vunpack.c.0.s8 %v677
      %v679 = vlaneseq
      %v680 = vshrl.u32 %v679, 7
      %v681 = vsub.s32 %v678, %v680
      %v682 = vrot.slane %v483, %v681
      %v684 = vunpack.c.l.s4 1983009808
      %v685 = vunpack.c.0.s8 %v684
      %v686 = vlaneseq
      %v687 = vshrl.u32 %v686, 7
      %v688 = vsub.s32 %v685, %v687
      %v689 = vrot.slane %v675, %v688
      %v690 = vcombine.high %v682, %v682
      %v691 = vcombine.high %v689, %v689
      %v692 = vcombine.high %v484, %v484
      %v694 = vunpack.c.l.s4 1983009808
      %v695 = vunpack.c.0.s8 %v694
      %v696 = vlaneseq
      %v697 = vshrl.u32 %v696, 7
      %v698 = vsub.s32 %v695, %v697
      %v699 = vrot.slane %v484, %v698
      %v701 = vunpack.c.l.s4 1983009808
      %v702 = vunpack.c.0.s8 %v701
      %v703 = vlaneseq
      %v704 = vshrl.u32 %v703, 7
      %v705 = vsub.s32 %v702, %v704
      %v706 = vrot.slane %v692, %v705
      %v707 = vcombine.high %v699, %v699
      %v708 = vcombine.high %v706, %v706
      %v709 = vcombine.high %v485, %v485
      %v711 = vunpack.c.l.s4 1983009808
      %v712 = vunpack.c.0.s8 %v711
      %v713 = vlaneseq
      %v714 = vshrl.u32 %v713, 7
      %v715 = vsub.s32 %v712, %v714
      %v716 = vrot.slane %v485, %v715
      %v718 = vunpack.c.l.s4 1983009808
      %v719 = vunpack.c.0.s8 %v718
      %v720 = vlaneseq
      %v721 = vshrl.u32 %v720, 7
      %v722 = vsub.s32 %v719, %v721
      %v723 = vrot.slane %v709, %v722
      %v724 = vcombine.high %v716, %v716
      %v725 = vcombine.high %v723, %v723
      %v726 = vcombine.high %v486, %v486
      %v728 = vunpack.c.l.s4 1983009808
      %v729 = vunpack.c.0.s8 %v728
      %v730 = vlaneseq
      %v731 = vshrl.u32 %v730, 7
      %v732 = vsub.s32 %v729, %v731
      %v733 = vrot.slane %v486, %v732
      %v735 = vunpack.c.l.s4 1983009808
      %v736 = vunpack.c.0.s8 %v735
      %v737 = vlaneseq
      %v738 = vshrl.u32 %v737, 7
      %v739 = vsub.s32 %v736, %v738
      %v740 = vrot.slane %v726, %v739
      %v741 = vcombine.high %v733, %v733
      %v742 = vcombine.high %v740, %v740
      %v743 = vcombine.high %v487, %v487
      %v745 = vunpack.c.l.s4 1983009808
      %v746 = vunpack.c.0.s8 %v745
      %v747 = vlaneseq
      %v748 = vshrl.u32 %v747, 7
      %v749 = vsub.s32 %v746, %v748
      %v750 = vrot.slane %v487, %v749
      %v752 = vunpack.c.l.s4 1983009808
      %v753 = vunpack.c.0.s8 %v752
      %v754 = vlaneseq
      %v755 = vshrl.u32 %v754, 7
      %v756 = vsub.s32 %v753, %v755
      %v757 = vrot.slane %v743, %v756
      %v758 = vcombine.high %v750, %v750
      %v759 = vcombine.high %v757, %v757
      %v760 = vcombine.high %v488, %v488
      %v762 = vunpack.c.l.s4 1983009808
      %v763 = vunpack.c.0.s8 %v762
      %v764 = vlaneseq
      %v765 = vshrl.u32 %v764, 7
      %v766 = vsub.s32 %v763, %v765
      %v767 = vrot.slane %v488, %v766
      %v769 = vunpack.c.l.s4 1983009808
      %v770 = vunpack.c.0.s8 %v769
      %v771 = vlaneseq
      %v772 = vshrl.u32 %v771, 7
      %v773 = vsub.s32 %v770, %v772
      %v774 = vrot.slane %v760, %v773
      %v775 = vcombine.high %v767, %v767
      %v776 = vcombine.high %v774, %v774
      %v841 = vrot.slane %v512, 7
      %v842 = vrot.slane %v841, 2
      %v843 = vrot.slane %v520, 7
      %v844 = vrot.slane %v843, 2
      %v845 = vrot.slane %v519, 7
      %v846 = vrot.slane %v845, 2
      %v847 = vrot.slane %v521, 7
      %v848 = vrot.slane %v847, 2
      %v849 = vrot.slane %v529, 7
      %v850 = vrot.slane %v849, 2
      %v851 = vrot.slane %v537, 7
      %v852 = vrot.slane %v851, 2
      %v853 = vrot.slane %v536, 7
      %v854 = vrot.slane %v853, 2
      %v855 = vrot.slane %v538, 7
      %v856 = vrot.slane %v855, 2
      %v857 = vrot.slane %v546, 7
      %v858 = vrot.slane %v857, 2
      %v859 = vrot.slane %v554, 7
      %v860 = vrot.slane %v859, 2
      %v861 = vrot.slane %v553, 7
      %v862 = vrot.slane %v861, 2
      %v863 = vrot.slane %v555, 7
      %v864 = vrot.slane %v863, 2
      %v865 = vrot.slane %v563, 7
      %v866 = vrot.slane %v865, 2
      %v867 = vrot.slane %v571, 7
      %v868 = vrot.slane %v867, 2
      %v869 = vrot.slane %v570, 7
      %v870 = vrot.slane %v869, 2
      %v871 = vrot.slane %v572, 7
      %v872 = vrot.slane %v871, 2
      %v873 = vrot.slane %v580, 7
      %v874 = vrot.slane %v873, 2
      %v875 = vrot.slane %v588, 7
      %v876 = vrot.slane %v875, 2
      %v877 = vrot.slane %v587, 7
      %v878 = vrot.slane %v877, 2
      %v879 = vrot.slane %v589, 7
      %v880 = vrot.slane %v879, 2
      %v881 = vrot.slane %v597, 7
      %v882 = vrot.slane %v881, 2
      %v883 = vrot.slane %v605, 7
      %v884 = vrot.slane %v883, 2
      %v885 = vrot.slane %v604, 7
      %v886 = vrot.slane %v885, 2
      %v887 = vrot.slane %v606, 7
      %v888 = vrot.slane %v887, 2
      %v889 = vrot.slane %v614, 7
      %v890 = vrot.slane %v889, 2
      %v891 = vrot.slane %v622, 7
      %v892 = vrot.slane %v891, 2
      %v893 = vrot.slane %v621, 7
      %v894 = vrot.slane %v893, 2
      %v895 = vrot.slane %v623, 7
      %v896 = vrot.slane %v895, 2
      %v897 = vrot.slane %v631, 7
      %v898 = vrot.slane %v897, 2
      %v899 = vrot.slane %v639, 7
      %v900 = vrot.slane %v899, 2
      %v901 = vrot.slane %v638, 7
      %v902 = vrot.slane %v901, 2
      %v903 = vrot.slane %v640, 7
      %v904 = vrot.slane %v903, 2
      %v905 = vrot.slane %v648, 7
      %v906 = vrot.slane %v905, 2
      %v907 = vrot.slane %v656, 7
      %v908 = vrot.slane %v907, 2
      %v909 = vrot.slane %v655, 7
      %v910 = vrot.slane %v909, 2
      %v911 = vrot.slane %v657, 7
      %v912 = vrot.slane %v911, 2
      %v913 = vrot.slane %v665, 7
      %v914 = vrot.slane %v913, 2
      %v915 = vrot.slane %v673, 7
      %v916 = vrot.slane %v915, 2
      %v917 = vrot.slane %v672, 7
      %v918 = vrot.slane %v917, 2
      %v919 = vrot.slane %v674, 7
      %v920 = vrot.slane %v919, 2
      %v921 = vrot.slane %v682, 7
      %v922 = vrot.slane %v921, 2
      %v923 = vrot.slane %v690, 7
      %v924 = vrot.slane %v923, 2
      %v925 = vrot.slane %v689, 7
      %v926 = vrot.slane %v925, 2
      %v927 = vrot.slane %v691, 7
      %v928 = vrot.slane %v927, 2
      %v929 = vrot.slane %v699, 7
      %v930 = vrot.slane %v929, 2
      %v931 = vrot.slane %v707, 7
      %v932 = vrot.slane %v931, 2
      %v933 = vrot.slane %v706, 7
      %v934 = vrot.slane %v933, 2
      %v935 = vrot.slane %v708, 7
      %v936 = vrot.slane %v935, 2
      %v937 = vrot.slane %v716, 7
      %v938 = vrot.slane %v937, 2
      %v939 = vrot.slane %v724, 7
      %v940 = vrot.slane %v939, 2
      %v941 = vrot.slane %v723, 7
      %v942 = vrot.slane %v941, 2
      %v943 = vrot.slane %v725, 7
      %v944 = vrot.slane %v943, 2
      %v945 = vrot.slane %v733, 7
      %v946 = vrot.slane %v945, 2
      %v947 = vrot.slane %v741, 7
      %v948 = vrot.slane %v947, 2
      %v949 = vrot.slane %v740, 7
      %v950 = vrot.slane %v949, 2
      %v951 = vrot.slane %v742, 7
      %v952 = vrot.slane %v951, 2
      %v953 = vrot.slane %v750, 7
      %v954 = vrot.slane %v953, 2
      %v955 = vrot.slane %v758, 7
      %v956 = vrot.slane %v955, 2
      %v957 = vrot.slane %v757, 7
      %v958 = vrot.slane %v957, 2
      %v959 = vrot.slane %v759, 7
      %v960 = vrot.slane %v959, 2
      %v961 = vrot.slane %v767, 7
      %v962 = vrot.slane %v961, 2
      %v963 = vrot.slane %v775, 7
      %v964 = vrot.slane %v963, 2
      %v965 = vrot.slane %v774, 7
      %v966 = vrot.slane %v965, 2
      %v967 = vrot.slane %v776, 7
      %v968 = vrot.slane %v967, 2
      %v1033 = vmax.f32 %v512, %v842
      %v1034 = vmax.f32 %v520, %v844
      %v1035 = vmax.f32 %v519, %v846
      %v1036 = vmax.f32 %v521, %v848
      %v1037 = vmax.f32 %v529, %v850
      %v1038 = vmax.f32 %v537, %v852
      %v1039 = vmax.f32 %v536, %v854
      %v1040 = vmax.f32 %v538, %v856
      %v1041 = vmax.f32 %v546, %v858
      %v1042 = vmax.f32 %v554, %v860
      %v1043 = vmax.f32 %v553, %v862
      %v1044 = vmax.f32 %v555, %v864
      %v1045 = vmax.f32 %v563, %v866
      %v1046 = vmax.f32 %v571, %v868
      %v1047 = vmax.f32 %v570, %v870
      %v1048 = vmax.f32 %v572, %v872
      %v1049 = vmax.f32 %v580, %v874
      %v1050 = vmax.f32 %v588, %v876
      %v1051 = vmax.f32 %v587, %v878
      %v1052 = vmax.f32 %v589, %v880
      %v1053 = vmax.f32 %v597, %v882
      %v1054 = vmax.f32 %v605, %v884
      %v1055 = vmax.f32 %v604, %v886
      %v1056 = vmax.f32 %v606, %v888
      %v1057 = vmax.f32 %v614, %v890
      %v1058 = vmax.f32 %v622, %v892
      %v1059 = vmax.f32 %v621, %v894
      %v1060 = vmax.f32 %v623, %v896
      %v1061 = vmax.f32 %v631, %v898
      %v1062 = vmax.f32 %v639, %v900
      %v1063 = vmax.f32 %v638, %v902
      %v1064 = vmax.f32 %v640, %v904
      %v1065 = vmax.f32 %v648, %v906
      %v1066 = vmax.f32 %v656, %v908
      %v1067 = vmax.f32 %v655, %v910
      %v1068 = vmax.f32 %v657, %v912
      %v1069 = vmax.f32 %v665, %v914
      %v1070 = vmax.f32 %v673, %v916
      %v1071 = vmax.f32 %v672, %v918
      %v1072 = vmax.f32 %v674, %v920
      %v1073 = vmax.f32 %v682, %v922
      %v1074 = vmax.f32 %v690, %v924
      %v1075 = vmax.f32 %v689, %v926
      %v1076 = vmax.f32 %v691, %v928
      %v1077 = vmax.f32 %v699, %v930
      %v1078 = vmax.f32 %v707, %v932
      %v1079 = vmax.f32 %v706, %v934
      %v1080 = vmax.f32 %v708, %v936
      %v1081 = vmax.f32 %v716, %v938
      %v1082 = vmax.f32 %v724, %v940
      %v1083 = vmax.f32 %v723, %v942
      %v1084 = vmax.f32 %v725, %v944
      %v1085 = vmax.f32 %v733, %v946
      %v1086 = vmax.f32 %v741, %v948
      %v1087 = vmax.f32 %v740, %v950
      %v1088 = vmax.f32 %v742, %v952
      %v1089 = vmax.f32 %v750, %v954
      %v1090 = vmax.f32 %v758, %v956
      %v1091 = vmax.f32 %v757, %v958
      %v1092 = vmax.f32 %v759, %v960
      %v1093 = vmax.f32 %v767, %v962
      %v1094 = vmax.f32 %v775, %v964
      %v1095 = vmax.f32 %v774, %v966
      %v1096 = vmax.f32 %v776, %v968
      %v1161 = vlaneseq
      %v1162 = vshrl.u32 %v1161, 7
      %v1163 = vsub.s32 0, %v1162
      %v1164 = vrot.slane %v1033, %v1163
      %v1165 = vlaneseq
      %v1166 = vshrl.u32 %v1165, 7
      %v1167 = vsub.s32 0, %v1166
      %v1168 = vrot.slane %v1034, %v1167
      %v1169 = vlaneseq
      %v1170 = vshrl.u32 %v1169, 7
      %v1171 = vsub.s32 0, %v1170
      %v1172 = vrot.slane %v1035, %v1171
      %v1173 = vlaneseq
      %v1174 = vshrl.u32 %v1173, 7
      %v1175 = vsub.s32 0, %v1174
      %v1176 = vrot.slane %v1036, %v1175
      %v1177 = vlaneseq
      %v1178 = vshrl.u32 %v1177, 7
      %v1179 = vsub.s32 0, %v1178
      %v1180 = vrot.slane %v1037, %v1179
      %v1181 = vlaneseq
      %v1182 = vshrl.u32 %v1181, 7
      %v1183 = vsub.s32 0, %v1182
      %v1184 = vrot.slane %v1038, %v1183
      %v1185 = vlaneseq
      %v1186 = vshrl.u32 %v1185, 7
      %v1187 = vsub.s32 0, %v1186
      %v1188 = vrot.slane %v1039, %v1187
      %v1189 = vlaneseq
      %v1190 = vshrl.u32 %v1189, 7
      %v1191 = vsub.s32 0, %v1190
      %v1192 = vrot.slane %v1040, %v1191
      %v1193 = vlaneseq
      %v1194 = vshrl.u32 %v1193, 7
      %v1195 = vsub.s32 0, %v1194
      %v1196 = vrot.slane %v1041, %v1195
      %v1197 = vlaneseq
      %v1198 = vshrl.u32 %v1197, 7
      %v1199 = vsub.s32 0, %v1198
      %v1200 = vrot.slane %v1042, %v1199
      %v1201 = vlaneseq
      %v1202 = vshrl.u32 %v1201, 7
      %v1203 = vsub.s32 0, %v1202
      %v1204 = vrot.slane %v1043, %v1203
      %v1205 = vlaneseq
      %v1206 = vshrl.u32 %v1205, 7
      %v1207 = vsub.s32 0, %v1206
      %v1208 = vrot.slane %v1044, %v1207
      %v1209 = vlaneseq
      %v1210 = vshrl.u32 %v1209, 7
      %v1211 = vsub.s32 0, %v1210
      %v1212 = vrot.slane %v1045, %v1211
      %v1213 = vlaneseq
      %v1214 = vshrl.u32 %v1213, 7
      %v1215 = vsub.s32 0, %v1214
      %v1216 = vrot.slane %v1046, %v1215
      %v1217 = vlaneseq
      %v1218 = vshrl.u32 %v1217, 7
      %v1219 = vsub.s32 0, %v1218
      %v1220 = vrot.slane %v1047, %v1219
      %v1221 = vlaneseq
      %v1222 = vshrl.u32 %v1221, 7
      %v1223 = vsub.s32 0, %v1222
      %v1224 = vrot.slane %v1048, %v1223
      %v1225 = vlaneseq
      %v1226 = vshrl.u32 %v1225, 7
      %v1227 = vsub.s32 0, %v1226
      %v1228 = vrot.slane %v1049, %v1227
      %v1229 = vlaneseq
      %v1230 = vshrl.u32 %v1229, 7
      %v1231 = vsub.s32 0, %v1230
      %v1232 = vrot.slane %v1050, %v1231
      %v1233 = vlaneseq
      %v1234 = vshrl.u32 %v1233, 7
      %v1235 = vsub.s32 0, %v1234
      %v1236 = vrot.slane %v1051, %v1235
      %v1237 = vlaneseq
      %v1238 = vshrl.u32 %v1237, 7
      %v1239 = vsub.s32 0, %v1238
      %v1240 = vrot.slane %v1052, %v1239
      %v1241 = vlaneseq
      %v1242 = vshrl.u32 %v1241, 7
      %v1243 = vsub.s32 0, %v1242
      %v1244 = vrot.slane %v1053, %v1243
      %v1245 = vlaneseq
      %v1246 = vshrl.u32 %v1245, 7
      %v1247 = vsub.s32 0, %v1246
      %v1248 = vrot.slane %v1054, %v1247
      %v1249 = vlaneseq
      %v1250 = vshrl.u32 %v1249, 7
      %v1251 = vsub.s32 0, %v1250
      %v1252 = vrot.slane %v1055, %v1251
      %v1253 = vlaneseq
      %v1254 = vshrl.u32 %v1253, 7
      %v1255 = vsub.s32 0, %v1254
      %v1256 = vrot.slane %v1056, %v1255
      %v1257 = vlaneseq
      %v1258 = vshrl.u32 %v1257, 7
      %v1259 = vsub.s32 0, %v1258
      %v1260 = vrot.slane %v1057, %v1259
      %v1261 = vlaneseq
      %v1262 = vshrl.u32 %v1261, 7
      %v1263 = vsub.s32 0, %v1262
      %v1264 = vrot.slane %v1058, %v1263
      %v1265 = vlaneseq
      %v1266 = vshrl.u32 %v1265, 7
      %v1267 = vsub.s32 0, %v1266
      %v1268 = vrot.slane %v1059, %v1267
      %v1269 = vlaneseq
      %v1270 = vshrl.u32 %v1269, 7
      %v1271 = vsub.s32 0, %v1270
      %v1272 = vrot.slane %v1060, %v1271
      %v1273 = vlaneseq
      %v1274 = vshrl.u32 %v1273, 7
      %v1275 = vsub.s32 0, %v1274
      %v1276 = vrot.slane %v1061, %v1275
      %v1277 = vlaneseq
      %v1278 = vshrl.u32 %v1277, 7
      %v1279 = vsub.s32 0, %v1278
      %v1280 = vrot.slane %v1062, %v1279
      %v1281 = vlaneseq
      %v1282 = vshrl.u32 %v1281, 7
      %v1283 = vsub.s32 0, %v1282
      %v1284 = vrot.slane %v1063, %v1283
      %v1285 = vlaneseq
      %v1286 = vshrl.u32 %v1285, 7
      %v1287 = vsub.s32 0, %v1286
      %v1288 = vrot.slane %v1064, %v1287
      %v1289 = vlaneseq
      %v1290 = vshrl.u32 %v1289, 7
      %v1291 = vsub.s32 0, %v1290
      %v1292 = vrot.slane %v1065, %v1291
      %v1293 = vlaneseq
      %v1294 = vshrl.u32 %v1293, 7
      %v1295 = vsub.s32 0, %v1294
      %v1296 = vrot.slane %v1066, %v1295
      %v1297 = vlaneseq
      %v1298 = vshrl.u32 %v1297, 7
      %v1299 = vsub.s32 0, %v1298
      %v1300 = vrot.slane %v1067, %v1299
      %v1301 = vlaneseq
      %v1302 = vshrl.u32 %v1301, 7
      %v1303 = vsub.s32 0, %v1302
      %v1304 = vrot.slane %v1068, %v1303
      %v1305 = vlaneseq
      %v1306 = vshrl.u32 %v1305, 7
      %v1307 = vsub.s32 0, %v1306
      %v1308 = vrot.slane %v1069, %v1307
      %v1309 = vlaneseq
      %v1310 = vshrl.u32 %v1309, 7
      %v1311 = vsub.s32 0, %v1310
      %v1312 = vrot.slane %v1070, %v1311
      %v1313 = vlaneseq
      %v1314 = vshrl.u32 %v1313, 7
      %v1315 = vsub.s32 0, %v1314
      %v1316 = vrot.slane %v1071, %v1315
      %v1317 = vlaneseq
      %v1318 = vshrl.u32 %v1317, 7
      %v1319 = vsub.s32 0, %v1318
      %v1320 = vrot.slane %v1072, %v1319
      %v1321 = vlaneseq
      %v1322 = vshrl.u32 %v1321, 7
      %v1323 = vsub.s32 0, %v1322
      %v1324 = vrot.slane %v1073, %v1323
      %v1325 = vlaneseq
      %v1326 = vshrl.u32 %v1325, 7
      %v1327 = vsub.s32 0, %v1326
      %v1328 = vrot.slane %v1074, %v1327
      %v1329 = vlaneseq
      %v1330 = vshrl.u32 %v1329, 7
      %v1331 = vsub.s32 0, %v1330
      %v1332 = vrot.slane %v1075, %v1331
      %v1333 = vlaneseq
      %v1334 = vshrl.u32 %v1333, 7
      %v1335 = vsub.s32 0, %v1334
      %v1336 = vrot.slane %v1076, %v1335
      %v1337 = vlaneseq
      %v1338 = vshrl.u32 %v1337, 7
      %v1339 = vsub.s32 0, %v1338
      %v1340 = vrot.slane %v1077, %v1339
      %v1341 = vlaneseq
      %v1342 = vshrl.u32 %v1341, 7
      %v1343 = vsub.s32 0, %v1342
      %v1344 = vrot.slane %v1078, %v1343
      %v1345 = vlaneseq
      %v1346 = vshrl.u32 %v1345, 7
      %v1347 = vsub.s32 0, %v1346
      %v1348 = vrot.slane %v1079, %v1347
      %v1349 = vlaneseq
      %v1350 = vshrl.u32 %v1349, 7
      %v1351 = vsub.s32 0, %v1350
      %v1352 = vrot.slane %v1080, %v1351
      %v1353 = vlaneseq
      %v1354 = vshrl.u32 %v1353, 7
      %v1355 = vsub.s32 0, %v1354
      %v1356 = vrot.slane %v1081, %v1355
      %v1357 = vlaneseq
      %v1358 = vshrl.u32 %v1357, 7
      %v1359 = vsub.s32 0, %v1358
      %v1360 = vrot.slane %v1082, %v1359
      %v1361 = vlaneseq
      %v1362 = vshrl.u32 %v1361, 7
      %v1363 = vsub.s32 0, %v1362
      %v1364 = vrot.slane %v1083, %v1363
      %v1365 = vlaneseq
      %v1366 = vshrl.u32 %v1365, 7
      %v1367 = vsub.s32 0, %v1366
      %v1368 = vrot.slane %v1084, %v1367
      %v1369 = vlaneseq
      %v1370 = vshrl.u32 %v1369, 7
      %v1371 = vsub.s32 0, %v1370
      %v1372 = vrot.slane %v1085, %v1371
      %v1373 = vlaneseq
      %v1374 = vshrl.u32 %v1373, 7
      %v1375 = vsub.s32 0, %v1374
      %v1376 = vrot.slane %v1086, %v1375
      %v1377 = vlaneseq
      %v1378 = vshrl.u32 %v1377, 7
      %v1379 = vsub.s32 0, %v1378
      %v1380 = vrot.slane %v1087, %v1379
      %v1381 = vlaneseq
      %v1382 = vshrl.u32 %v1381, 7
      %v1383 = vsub.s32 0, %v1382
      %v1384 = vrot.slane %v1088, %v1383
      %v1385 = vlaneseq
      %v1386 = vshrl.u32 %v1385, 7
      %v1387 = vsub.s32 0, %v1386
      %v1388 = vrot.slane %v1089, %v1387
      %v1389 = vlaneseq
      %v1390 = vshrl.u32 %v1389, 7
      %v1391 = vsub.s32 0, %v1390
      %v1392 = vrot.slane %v1090, %v1391
      %v1393 = vlaneseq
      %v1394 = vshrl.u32 %v1393, 7
      %v1395 = vsub.s32 0, %v1394
      %v1396 = vrot.slane %v1091, %v1395
      %v1397 = vlaneseq
      %v1398 = vshrl.u32 %v1397, 7
      %v1399 = vsub.s32 0, %v1398
      %v1400 = vrot.slane %v1092, %v1399
      %v1401 = vlaneseq
      %v1402 = vshrl.u32 %v1401, 7
      %v1403 = vsub.s32 0, %v1402
      %v1404 = vrot.slane %v1093, %v1403
      %v1405 = vlaneseq
      %v1406 = vshrl.u32 %v1405, 7
      %v1407 = vsub.s32 0, %v1406
      %v1408 = vrot.slane %v1094, %v1407
      %v1409 = vlaneseq
      %v1410 = vshrl.u32 %v1409, 7
      %v1411 = vsub.s32 0, %v1410
      %v1412 = vrot.slane %v1095, %v1411
      %v1413 = vlaneseq
      %v1414 = vshrl.u32 %v1413, 7
      %v1415 = vsub.s32 0, %v1414
      %v1416 = vrot.slane %v1096, %v1415
      %vm1417 = vcmask 1041409
      %v1418 = vsel %vm1417, %v1168, %v1164
      %vm1419 = vcmask 1042434
      %v1420 = vsel %vm1419, %v1172, %v1418
      %vm1421 = vcmask 1043459
      %v1422 = vsel %vm1421, %v1176, %v1420
      %vm1423 = vcmask 1044484
      %v1424 = vsel %vm1423, %v1180, %v1422
      %vm1425 = vcmask 1045509
      %v1426 = vsel %vm1425, %v1184, %v1424
      %vm1427 = vcmask 1046534
      %v1428 = vsel %vm1427, %v1188, %v1426
      %vm1429 = vcmask 1047559
      %v1430 = vsel %vm1429, %v1192, %v1428
      %v1431 = vsel %vm1417, %v1200, %v1196
      %v1432 = vsel %vm1419, %v1204, %v1431
      %v1433 = vsel %vm1421, %v1208, %v1432
      %v1434 = vsel %vm1423, %v1212, %v1433
      %v1435 = vsel %vm1425, %v1216, %v1434
      %v1436 = vsel %vm1427, %v1220, %v1435
      %v1437 = vsel %vm1429, %v1224, %v1436
      %v1438 = vsel %vm1417, %v1232, %v1228
      %v1439 = vsel %vm1419, %v1236, %v1438
      %v1440 = vsel %vm1421, %v1240, %v1439
      %v1441 = vsel %vm1423, %v1244, %v1440
      %v1442 = vsel %vm1425, %v1248, %v1441
      %v1443 = vsel %vm1427, %v1252, %v1442
      %v1444 = vsel %vm1429, %v1256, %v1443
      %v1445 = vsel %vm1417, %v1264, %v1260
      %v1446 = vsel %vm1419, %v1268, %v1445
      %v1447 = vsel %vm1421, %v1272, %v1446
      %v1448 = vsel %vm1423, %v1276, %v1447
      %v1449 = vsel %vm1425, %v1280, %v1448
      %v1450 = vsel %vm1427, %v1284, %v1449
      %v1451 = vsel %vm1429, %v1288, %v1450
      %v1452 = vsel %vm1417, %v1296, %v1292
      %v1453 = vsel %vm1419, %v1300, %v1452
      %v1454 = vsel %vm1421, %v1304, %v1453
      %v1455 = vsel %vm1423, %v1308, %v1454
      %v1456 = vsel %vm1425, %v1312, %v1455
      %v1457 = vsel %vm1427, %v1316, %v1456
      %v1458 = vsel %vm1429, %v1320, %v1457
      %v1459 = vsel %vm1417, %v1328, %v1324
      %v1460 = vsel %vm1419, %v1332, %v1459
      %v1461 = vsel %vm1421, %v1336, %v1460
      %v1462 = vsel %vm1423, %v1340, %v1461
      %v1463 = vsel %vm1425, %v1344, %v1462
      %v1464 = vsel %vm1427, %v1348, %v1463
      %v1465 = vsel %vm1429, %v1352, %v1464
      %v1466 = vsel %vm1417, %v1360, %v1356
      %v1467 = vsel %vm1419, %v1364, %v1466
      %v1468 = vsel %vm1421, %v1368, %v1467
      %v1469 = vsel %vm1423, %v1372, %v1468
      %v1470 = vsel %vm1425, %v1376, %v1469
      %v1471 = vsel %vm1427, %v1380, %v1470
      %v1472 = vsel %vm1429, %v1384, %v1471
      %v1473 = vsel %vm1417, %v1392, %v1388
      %v1474 = vsel %vm1419, %v1396, %v1473
      %v1475 = vsel %vm1421, %v1400, %v1474
      %v1476 = vsel %vm1423, %v1404, %v1475
      %v1477 = vsel %vm1425, %v1408, %v1476
      %v1478 = vsel %vm1427, %v1412, %v1477
      %v1479 = vsel %vm1429, %v1416, %v1478
      %1488 = vst.msk [vmem:[%s264] sm:$0xff] %vm440, %v1430
      %1489 = vst.msk [vmem:[%s264 + $0x8] sm:$0xff] %vm440, %v1437
      %1490 = vst.msk [vmem:[%s264 + $0x10] sm:$0xff] %vm440, %v1444
      %1491 = vst.msk [vmem:[%s264 + $0x18] sm:$0xff] %vm440, %v1451
      %1492 = vst.msk [vmem:[%s264 + $0x20] sm:$0xff] %vm440, %v1458
      %1493 = vst.msk [vmem:[%s264 + $0x28] sm:$0xff] %vm440, %v1465
      %1494 = vst.msk [vmem:[%s264 + $0x30] sm:$0xff] %vm440, %v1472
      %1495 = vst.msk [vmem:[%s264 + $0x38] sm:$0xff] %vm440, %v1479
      %s1496 = smul.u32 16, %s21
      %p1497 = scmp.lt.s32.totalorder %s20, 1
      %s1498 = scalar_select %p1497, %s20, 1
      %p1499 = scmp.lt.s32.totalorder %s1496, 15
      %s1500 = scalar_select %p1499, %s1496, 15
      %s1501 = smul.addr %s1500, 2
      %s1502 = smul.addr %s1498, 32
      %s1503 = sadd.s32 %s1501, %s1502
      %s1504 = smul.addr %s1503, 8
      %s1505 = scalar_lea.vmem %s3, %s1504
      %s1506 = smul.u32 8, %s21
      %p1507 = scmp.lt.s32.totalorder %s20, 1
      %s1508 = scalar_select %p1507, %s20, 1
      %p1509 = scmp.lt.s32.totalorder %s1506, 7
      %s1510 = scalar_select %p1509, %s1506, 7
      %s1511 = smul.addr %s1508, 8
      %s1512 = sadd.s32 %s1510, %s1511
      %s1513 = smul.addr %s1512, 8
      %s1514 = scalar_lea.vmem %s4, %s1513
      // Predicated region
      $region33: #{down_block_forward.5} parent=31 // pred_check
        %p1515 = pneg %p118
      $region34: #{down_block_forward.5} parent=31 // pred_check_branch
        %1517 = sbr.rel (%p1515) target = $region36
      $region35: #{down_block_forward.5} parent=31 // pred_region
        %s1518 = smul.u32 16, %s21
      $region36: #{down_block_forward.5} parent=31 // pred_fallthru
        _
      // Predicated region
      $region37: #{down_block_forward.5} parent=31 // pred_check
        %p1519 = pneg %p146
      $region38: #{down_block_forward.5} parent=31 // pred_check_branch
        %1521 = sbr.rel (%p1519) target = $region40
      $region39: #{down_block_forward.5} parent=31 // pred_region
        %s1522 = smul.u32 8, %s21
      $region40: #{down_block_forward.5} parent=31 // pred_fallthru
        _
    $region32: #{down_block_forward.5} parent=5 // pred_fallthru
      _
    %p1523 = scmp.le.s32.totalorder 2, %s11
    // Predicated region
    $region41: #{down_block_forward.5} parent=5 // pred_check
      %p1524 = pneg %p1523
    $region42: #{down_block_forward.5} parent=5 // pred_check_branch
      %1526 = sbr.rel (%p1524) target = $region44
    $region43: #{down_block_forward.5} parent=5 // pred_region
      %s1527 = ssub.s32 %s11, 2
      // Predicated region
      $region45: #{down_block_forward.5} parent=43 // pred_check
        %p1528 = pneg %p124
      $region46: #{down_block_forward.5} parent=43 // pred_check_branch
        %1530 = sbr.rel (%p1528) target = $region48
      $region47: #{down_block_forward.5} parent=43 // pred_region
        %s1531 = smul.u32 16, %s23
        %p1532 = scmp.lt.s32.totalorder %s22, 1
        %s1533 = scalar_select %p1532, %s22, 1
        %p1534 = scmp.lt.s32.totalorder %s1531, 15
        %s1535 = scalar_select %p1534, %s1531, 15
        %s1536 = smul.addr %s1535, 2
        %s1537 = smul.addr %s1533, 32
        %s1538 = sadd.s32 %s1536, %s1537
        %s1539 = smul.addr %s1538, 8
        %s1540 = scalar_lea.vmem %s3, %s1539
      $region48: #{down_block_forward.5} parent=43 // pred_fallthru
        _
      // Predicated region
      $region49: #{down_block_forward.5} parent=43 // pred_check
        %p1541 = pneg %p152
      $region50: #{down_block_forward.5} parent=43 // pred_check_branch
        %1543 = sbr.rel (%p1541) target = $region52
      $region51: #{down_block_forward.5} parent=43 // pred_region
        %s1544 = smul.u32 8, %s23
        %p1545 = scmp.lt.s32.totalorder %s22, 1
        %s1546 = scalar_select %p1545, %s22, 1
        %p1547 = scmp.lt.s32.totalorder %s1544, 7
        %s1548 = scalar_select %p1547, %s1544, 7
        %s1549 = smul.addr %s1546, 8
        %s1550 = sadd.s32 %s1548, %s1549
        %s1551 = smul.addr %s1550, 8
        %s1552 = scalar_lea.vmem %s4, %s1551
      $region52: #{down_block_forward.5} parent=43 // pred_fallthru
        _
    $region44: #{down_block_forward.5} parent=5 // pred_fallthru
      _
  $region6: #{down_block_forward.5} parent=0 // loop_footer
    %s15 = sadd.s32 1, %s11
  $region7: #{down_block_forward.5} parent=0 // loop_footer_branch
    %10 = sbr.rel target = $region3
  $region8: #{down_block_forward.5} parent=0 // loop_exit
    _

// kernel: down_block_forward.3
$region0: #{down_block_forward.3}
  #allocation0 [shape = 'u32[]', space=smem, size = 0x4, offset = 0x4, fixed_abs, tag = 'smem constant byte address 0x4 - core index']
  #allocation1 [shape = 'u32[144,128]{1,0:T(1,128)}', space=vmem, size = 0x12000, scoped, tag = 'internal scratch']
  #allocation2 [shape = 'bf16[18,16,24]{2,1,0:T(16,128)(2,1)}', space=vmem, size = 0x12000, scoped, tag = 'scratch operand']
  #allocation3 [shape = 'f32[256,8]{1,0:T(8,128)}', space=vmem, size = 0x20000, scoped, tag = 'scratch operand']
  %s0 = inlined_call_operand.vmem [shape: bf16[2,16,16,8], index: 0, kind: input, shape index: {}, may-alias: {0,1,2}]
  %s1 = inlined_call_operand.vmem [shape: bf16[2,16,16,8], index: 1, kind: input, shape index: {}, may-alias: {0,1,2}]
  %s2 = inlined_call_operand.vmem [shape: bf16[2,16,16,8], index: 2, kind: input, shape index: {}, may-alias: {0,1,2}]
  %s3 = inlined_call_operand.vmem [shape: bf16[3,24,8], index: 3, kind: input, shape index: {}]
  %s4 = inlined_call_operand.vmem [shape: bf16[2,16,16,8], index: 4, kind: output, shape index: {0}]
  %s5 = inlined_call_operand.vmem [shape: f32[2,1,2,8], index: 5, kind: output, shape index: {1}]
  %6 = xla_tuple %s4, %s5
  %s7 = sld [smem:[#allocation0]]
  $region57: #{down_block_forward.3} parent=0
    _
  %s9 = ssub.s32 1, %s7
  %s10 = scalar_select 0, %s9, %s7
  loop: start=0, step=1, limit=4
  $region2: #{down_block_forward.3} parent=0 // loop_pre_header
    _
  $region3: #{down_block_forward.3} parent=0 // loop_header
    %s12 = sphi 0, %s16
    %p13 = scmp.ge.s32.totalorder %s12, 4
    %s19 = sphi 0, %s31
    %s20 = sphi 0, %s27
    %s21 = sphi 0, %s19
    %s22 = sphi 0, %s20
    %s23 = sphi 0, %s21
    %s24 = sphi 0, %s22
    %s44 = sphi 0, %s46
    %s47 = sphi 0, %s44
    %s48 = sphi 0, %s47
    %s64 = sphi 0, %s48
    %s72 = sphi 0, %s74
    %s75 = sphi 0, %s72
    %s76 = sphi 0, %s75
    %s92 = sphi 0, %s76
    %s108 = sphi 0, %s110
    %s111 = sphi 0, %s108
    %s112 = sphi 0, %s111
    %s128 = sphi 0, %s112
    %s132 = sphi 0, %s132
    %s134 = sphi 0, %s132
    %s135 = sphi 0, %s134
    %s149 = sphi 0, %s135
    %s157 = sphi 0, %s159
    %s160 = sphi 0, %s157
    %s161 = sphi 0, %s160
    %s177 = sphi 0, %s161
    %s185 = sphi 0, %s187
    %s188 = sphi 0, %s185
    %s189 = sphi 0, %s188
    %s205 = sphi 0, %s189
  $region4: #{down_block_forward.3} parent=0 // loop_header_branch
    %15 = sbr.rel (%p13) target = $region8
  $region5: #{down_block_forward.3} parent=0 // loop_body
    %s17 = ssub.s32 %s12, 1
    %s18 = ssub.s32 %s12, 2
    %s25 = sadd.s32 1, %s20
    %p26 = scmp.ge.s32.totalorder %s25, 1
    %s27 = scalar_select %p26, 0, %s25
    %s28 = sadd.s32 1, %s19
    %s29 = scalar_select %p26, %s28, %s19
    %p30 = scmp.ge.s32.totalorder %s29, 2
    %s31 = scalar_select %p30, 0, %s29
    %s32 = smul.u32 %s20, 16
    %s33 = ssub.s32 %s32, 1
    %p34 = scmp.gt.s32.totalorder %s33, 0
    %s35 = scalar_select %p34, %s33, 0
    %s36 = smul.u32 %s27, 16
    %s37 = ssub.s32 %s36, 1
    %p38 = scmp.gt.s32.totalorder %s37, 0
    %s39 = scalar_select %p38, %s37, 0
    %s40 = ssub.s32 %s19, %s31
    %s41 = ssub.s32 %s35, %s39
    %s42 = sor.u32 %s40, %s41
    %p43 = scmp.eq.s32.totalorder %s42, 0
    %s45 = sadd.s32 %s44, 1
    %s46 = scalar_select %p43, %s44, %s45
    %p49 = pneg %p43
    %p50 = scmp.eq.s32.totalorder %s12, 1
    %p51 = por %p49, %p50
    %p52 = scmp.ne.s32.totalorder %s44, %s47
    %p53 = scmp.eq.s32.totalorder %s12, 0
    %p54 = por %p52, %p53
    %p55 = scmp.ne.s32.totalorder %s44, %s47
    %p56 = scmp.eq.s32.totalorder %s17, 1
    %p57 = por %p55, %p56
    %p58 = scmp.ne.s32.totalorder %s47, %s48
    %p59 = scmp.eq.s32.totalorder %s17, 0
    %p60 = por %p58, %p59
    %p61 = scmp.ne.s32.totalorder %s47, %s48
    %p62 = scmp.eq.s32.totalorder %s18, 1
    %p63 = por %p61, %p62
    %p65 = scmp.ne.s32.totalorder %s48, %s64
    %p66 = scmp.eq.s32.totalorder %s18, 0
    %p67 = por %p65, %p66
    %s68 = ssub.s32 %s19, %s31
    %s69 = ssub.s32 %s20, %s27
    %s70 = sor.u32 %s68, %s69
    %p71 = scmp.eq.s32.totalorder %s70, 0
    %s73 = sadd.s32 %s72, 1
    %s74 = scalar_select %p71, %s72, %s73
    %p77 = pneg %p71
    %p78 = scmp.eq.s32.totalorder %s12, 1
    %p79 = por %p77, %p78
    %p80 = scmp.ne.s32.totalorder %s72, %s75
    %p81 = scmp.eq.s32.totalorder %s12, 0
    %p82 = por %p80, %p81
    %p83 = scmp.ne.s32.totalorder %s72, %s75
    %p84 = scmp.eq.s32.totalorder %s17, 1
    %p85 = por %p83, %p84
    %p86 = scmp.ne.s32.totalorder %s75, %s76
    %p87 = scmp.eq.s32.totalorder %s17, 0
    %p88 = por %p86, %p87
    %p89 = scmp.ne.s32.totalorder %s75, %s76
    %p90 = scmp.eq.s32.totalorder %s18, 1
    %p91 = por %p89, %p90
    %p93 = scmp.ne.s32.totalorder %s76, %s92
    %p94 = scmp.eq.s32.totalorder %s18, 0
    %p95 = por %p93, %p94
    %s96 = sadd.s32 %s20, 1
    %s97 = smul.u32 %s96, 16
    %p98 = scmp.lt.s32.totalorder %s97, 15
    %s99 = scalar_select %p98, %s97, 15
    %s100 = sadd.s32 %s27, 1
    %s101 = smul.u32 %s100, 16
    %p102 = scmp.lt.s32.totalorder %s101, 15
    %s103 = scalar_select %p102, %s101, 15
    %s104 = ssub.s32 %s19, %s31
    %s105 = ssub.s32 %s99, %s103
    %s106 = sor.u32 %s104, %s105
    %p107 = scmp.eq.s32.totalorder %s106, 0
    %s109 = sadd.s32 %s108, 1
    %s110 = scalar_select %p107, %s108, %s109
    %p113 = pneg %p107
    %p114 = scmp.eq.s32.totalorder %s12, 1
    %p115 = por %p113, %p114
    %p116 = scmp.ne.s32.totalorder %s108, %s111
    %p117 = scmp.eq.s32.totalorder %s12, 0
    %p118 = por %p116, %p117
    %p119 = scmp.ne.s32.totalorder %s108, %s111
    %p120 = scmp.eq.s32.totalorder %s17, 1
    %p121 = por %p119, %p120
    %p122 = scmp.ne.s32.totalorder %s111, %s112
    %p123 = scmp.eq.s32.totalorder %s17, 0
    %p124 = por %p122, %p123
    %p125 = scmp.ne.s32.totalorder %s111, %s112
    %p126 = scmp.eq.s32.totalorder %s18, 1
    %p127 = por %p125, %p126
    %p129 = scmp.ne.s32.totalorder %s112, %s128
    %p130 = scmp.eq.s32.totalorder %s18, 0
    %p131 = por %p129, %p130
    %s133 = sadd.s32 %s132, 1
    %p136 = scmp.eq.s32.totalorder %s12, 1
    %p137 = scmp.ne.s32.totalorder %s132, %s134
    %p138 = scmp.eq.s32.totalorder %s12, 0
    %p139 = por %p137, %p138
    %p140 = scmp.ne.s32.totalorder %s132, %s134
    %p141 = scmp.eq.s32.totalorder %s17, 1
    %p142 = por %p140, %p141
    %p143 = scmp.ne.s32.totalorder %s134, %s135
    %p144 = scmp.eq.s32.totalorder %s17, 0
    %p145 = por %p143, %p144
    %p146 = scmp.ne.s32.totalorder %s134, %s135
    %p147 = scmp.eq.s32.totalorder %s18, 1
    %p148 = por %p146, %p147
    %p150 = scmp.ne.s32.totalorder %s135, %s149
    %p151 = scmp.eq.s32.totalorder %s18, 0
    %p152 = por %p150, %p151
    %s153 = ssub.s32 %s19, %s31
    %s154 = ssub.s32 %s20, %s27
    %s155 = sor.u32 %s153, %s154
    %p156 = scmp.eq.s32.totalorder %s155, 0
    %s158 = sadd.s32 %s157, 1
    %s159 = scalar_select %p156, %s157, %s158
    %p162 = pneg %p156
    %p163 = scmp.eq.s32.totalorder %s12, 1
    %p164 = por %p162, %p163
    %p165 = scmp.ne.s32.totalorder %s157, %s160
    %p166 = scmp.eq.s32.totalorder %s12, 0
    %p167 = por %p165, %p166
    %p168 = scmp.ne.s32.totalorder %s157, %s160
    %p169 = scmp.eq.s32.totalorder %s17, 1
    %p170 = por %p168, %p169
    %p171 = scmp.ne.s32.totalorder %s160, %s161
    %p172 = scmp.eq.s32.totalorder %s17, 0
    %p173 = por %p171, %p172
    %p174 = scmp.ne.s32.totalorder %s160, %s161
    %p175 = scmp.eq.s32.totalorder %s18, 1
    %p176 = por %p174, %p175
    %p178 = scmp.ne.s32.totalorder %s161, %s177
    %p179 = scmp.eq.s32.totalorder %s18, 0
    %p180 = por %p178, %p179
    %s181 = ssub.s32 %s19, %s31
    %s182 = ssub.s32 %s20, %s27
    %s183 = sor.u32 %s181, %s182
    %p184 = scmp.eq.s32.totalorder %s183, 0
    %s186 = sadd.s32 %s185, 1
    %s187 = scalar_select %p184, %s185, %s186
    %p190 = pneg %p184
    %p191 = scmp.eq.s32.totalorder %s12, 1
    %p192 = por %p190, %p191
    %p193 = scmp.ne.s32.totalorder %s185, %s188
    %p194 = scmp.eq.s32.totalorder %s12, 0
    %p195 = por %p193, %p194
    %p196 = scmp.ne.s32.totalorder %s185, %s188
    %p197 = scmp.eq.s32.totalorder %s17, 1
    %p198 = por %p196, %p197
    %p199 = scmp.ne.s32.totalorder %s188, %s189
    %p200 = scmp.eq.s32.totalorder %s17, 0
    %p201 = por %p199, %p200
    %p202 = scmp.ne.s32.totalorder %s188, %s189
    %p203 = scmp.eq.s32.totalorder %s18, 1
    %p204 = por %p202, %p203
    %p206 = scmp.ne.s32.totalorder %s189, %s205
    %p207 = scmp.eq.s32.totalorder %s18, 0
    %p208 = por %p206, %p207
    %p209 = scmp.le.s32.totalorder 1, %s12
    %p210 = scmp.lt.s32.totalorder %s12, 3
    %p211 = pnand %p209, %p210
    %p212 = pneg %p211
    // Predicated region
    $region9: #{down_block_forward.3} parent=5 // pred_check
      _
    $region10: #{down_block_forward.3} parent=5 // pred_check_branch
      %214 = sbr.rel (%p211) target = $region12
    $region11: #{down_block_forward.3} parent=5 // pred_region
      %s215 = ssub.s32 %s12, 1
      // Predicated region
      $region13: #{down_block_forward.3} parent=11 // pred_check
        %p216 = pneg %p145
      $region14: #{down_block_forward.3} parent=11 // pred_check_branch
        %218 = sbr.rel (%p216) target = $region16
      $region15: #{down_block_forward.3} parent=11 // pred_region
        _
      $region16: #{down_block_forward.3} parent=11 // pred_fallthru
        _
    $region12: #{down_block_forward.3} parent=5 // pred_fallthru
      _
    %p219 = scmp.lt.s32.totalorder %s12, 2
    // Predicated region
    $region17: #{down_block_forward.3} parent=5 // pred_check
      %p220 = pneg %p219
    $region18: #{down_block_forward.3} parent=5 // pred_check_branch
      %222 = sbr.rel (%p220) target = $region20
    $region19: #{down_block_forward.3} parent=5 // pred_region
      // Predicated region
      $region21: #{down_block_forward.3} parent=19 // pred_check
        %p223 = pneg %p54
      $region22: #{down_block_forward.3} parent=19 // pred_check_branch
        %225 = sbr.rel (%p223) target = $region24
      $region23: #{down_block_forward.3} parent=19 // pred_region
        %s226 = smul.u32 %s20, 16
        %s227 = ssub.s32 %s226, 1
        %p228 = scmp.gt.s32.totalorder %s227, 0
        %s229 = scalar_select %p228, %s227, 0
        %p230 = scmp.lt.s32.totalorder %s19, 1
        %s231 = scalar_select %p230, %s19, 1
        %p232 = scmp.lt.s32.totalorder %s229, 15
        %s233 = scalar_select %p232, %s229, 15
        %s234 = smul.addr %s233, 2
        %s235 = smul.addr %s231, 32
        %s236 = sadd.s32 %s234, %s235
        %s237 = smul.addr %s236, 4
        %s238 = scalar_lea.vmem %s0, %s237
        %s239 = smul.u32 %s20, 16
        %s240 = ssub.s32 %s239, 1
        %p241 = scmp.gt.s32.totalorder %s240, 0
        %s242 = scalar_select %p241, %s240, 0
      $region24: #{down_block_forward.3} parent=19 // pred_fallthru
        _
      // Predicated region
      $region25: #{down_block_forward.3} parent=19 // pred_check
        %p243 = pneg %p82
      $region26: #{down_block_forward.3} parent=19 // pred_check_branch
        %245 = sbr.rel (%p243) target = $region28
      $region27: #{down_block_forward.3} parent=19 // pred_region
        %s246 = smul.u32 16, %s20
        %p247 = scmp.lt.s32.totalorder %s19, 1
        %s248 = scalar_select %p247, %s19, 1
        %p249 = scmp.lt.s32.totalorder %s246, 15
        %s250 = scalar_select %p249, %s246, 15
        %s251 = smul.addr %s250, 2
        %s252 = smul.addr %s248, 32
        %s253 = sadd.s32 %s251, %s252
        %s254 = smul.addr %s253, 4
        %s255 = scalar_lea.vmem %s1, %s254
        %s256 = smul.u32 16, %s20
      $region28: #{down_block_forward.3} parent=19 // pred_fallthru
        _
      // Predicated region
      $region29: #{down_block_forward.3} parent=19 // pred_check
        %p257 = pneg %p118
      $region30: #{down_block_forward.3} parent=19 // pred_check_branch
        %259 = sbr.rel (%p257) target = $region32
      $region31: #{down_block_forward.3} parent=19 // pred_region
        %s260 = sadd.s32 %s20, 1
        %s261 = smul.u32 %s260, 16
        %p262 = scmp.lt.s32.totalorder %s261, 15
        %s263 = scalar_select %p262, %s261, 15
        %p264 = scmp.lt.s32.totalorder %s19, 1
        %s265 = scalar_select %p264, %s19, 1
        %p266 = scmp.lt.s32.totalorder %s263, 15
        %s267 = scalar_select %p266, %s263, 15
        %s268 = smul.addr %s267, 2
        %s269 = smul.addr %s265, 32
        %s270 = sadd.s32 %s268, %s269
        %s271 = smul.addr %s270, 4
        %s272 = scalar_lea.vmem %s2, %s271
        %s273 = sadd.s32 %s20, 1
        %s274 = smul.u32 %s273, 16
        %p275 = scmp.lt.s32.totalorder %s274, 15
        %s276 = scalar_select %p275, %s274, 15
      $region32: #{down_block_forward.3} parent=19 // pred_fallthru
        _
    $region20: #{down_block_forward.3} parent=5 // pred_fallthru
      _
    %p277 = scmp.le.s32.totalorder 1, %s12
    %p278 = scmp.lt.s32.totalorder %s12, 3
    %p279 = pnand %p277, %p278
    %p280 = pneg %p279
    // Predicated region
    $region33: #{down_block_forward.3} parent=5 // pred_check
      _
    $region34: #{down_block_forward.3} parent=5 // pred_check_branch
      %282 = sbr.rel (%p279) target = $region36
    $region35: #{down_block_forward.3} parent=5 // pred_region
      %s283 = ssub.s32 %s12, 1
      %s284 = smul.u32 %s22, 16
      %s285 = ssub.s32 %s284, 1
      %p286 = scmp.gt.s32.totalorder %s285, 0
      %s287 = scalar_select %p286, %s285, 0
      %p288 = scmp.lt.s32.totalorder %s21, 1
      %s289 = scalar_select %p288, %s21, 1
      %p290 = scmp.lt.s32.totalorder %s287, 15
      %s291 = scalar_select %p290, %s287, 15
      %s292 = smul.addr %s291, 2
      %s293 = smul.addr %s289, 32
      %s294 = sadd.s32 %s292, %s293
      %s295 = smul.addr %s294, 4
      %s296 = scalar_lea.vmem %s0, %s295
      %p297 = pneg %p60
      %p298 = pneg %p57
      %s299 = smul.u32 16, %s22
      %p300 = scmp.lt.s32.totalorder %s21, 1
      %s301 = scalar_select %p300, %s21, 1
      %p302 = scmp.lt.s32.totalorder %s299, 15
      %s303 = scalar_select %p302, %s299, 15
      %s304 = smul.addr %s303, 2
      %s305 = smul.addr %s301, 32
      %s306 = sadd.s32 %s304, %s305
      %s307 = smul.addr %s306, 4
      %s308 = scalar_lea.vmem %s1, %s307
      %p309 = pneg %p88
      %p310 = pneg %p85
      %s311 = sadd.s32 %s22, 1
      %s312 = smul.u32 %s311, 16
      %p313 = scmp.lt.s32.totalorder %s312, 15
      %s314 = scalar_select %p313, %s312, 15
      %p315 = scmp.lt.s32.totalorder %s21, 1
      %s316 = scalar_select %p315, %s21, 1
      %p317 = scmp.lt.s32.totalorder %s314, 15
      %s318 = scalar_select %p317, %s314, 15
      %s319 = smul.addr %s318, 2
      %s320 = smul.addr %s316, 32
      %s321 = sadd.s32 %s319, %s320
      %s322 = smul.addr %s321, 4
      %s323 = scalar_lea.vmem %s2, %s322
      %p324 = pneg %p124
      %p325 = pneg %p121
      %p326 = pneg %p145
      %p327 = pneg %p142
      %p328 = pneg %p173
      %p329 = pneg %p170
      %s330 = smul.u32 16, %s22
      %p331 = scmp.lt.s32.totalorder %s21, 1
      %s332 = scalar_select %p331, %s21, 1
      %p333 = scmp.lt.s32.totalorder %s330, 15
      %s334 = scalar_select %p333, %s330, 15
      %s335 = smul.addr %s334, 2
      %s336 = smul.addr %s332, 32
      %s337 = sadd.s32 %s335, %s336
      %s338 = smul.addr %s337, 4
      %s339 = scalar_lea.vmem %s4, %s338
      %p340 = pneg %p201
      %p341 = pneg %p198
      %p342 = scmp.lt.s32.totalorder %s21, 1
      %s343 = scalar_select %p342, %s21, 1
      %p344 = scmp.lt.s32.totalorder %s22, 0
      %s345 = scalar_select %p344, %s22, 0
      %s346 = sadd.s32 %s345, %s343
      %s347 = smul.addr %s346, 2
      %s348 = scalar_lea.vmem %s5, %s347
      %s349 = smul.u32 %s22, 16
      %s350 = ssub.s32 %s349, 1
      %p351 = scmp.gt.s32.totalorder %s350, 0
      %s352 = scalar_select %p351, %s350, 0
      %p353 = scmp.lt.s32.totalorder %s21, 1
      %s354 = scalar_select %p353, %s21, 1
      %p355 = scmp.lt.s32.totalorder %s352, 15
      %s356 = scalar_select %p355, %s352, 15
      %s357 = smul.addr %s356, 2
      %s358 = smul.addr %s354, 32
      %s359 = sadd.s32 %s357, %s358
      %s360 = smul.addr %s359, 4
      %s361 = scalar_lea.vmem %s0, %s360
      %s362 = smul.u32 %s22, 16
      %s363 = ssub.s32 %s362, 1
      %p364 = scmp.gt.s32.totalorder %s363, 0
      %s365 = scalar_select %p364, %s363, 0
      %s366 = smul.u32 16, %s22
      %p367 = scmp.lt.s32.totalorder %s21, 1
      %s368 = scalar_select %p367, %s21, 1
      %p369 = scmp.lt.s32.totalorder %s366, 15
      %s370 = scalar_select %p369, %s366, 15
      %s371 = smul.addr %s370, 2
      %s372 = smul.addr %s368, 32
      %s373 = sadd.s32 %s371, %s372
      %s374 = smul.addr %s373, 4
      %s375 = scalar_lea.vmem %s1, %s374
      %s376 = smul.u32 16, %s22
      %s377 = sadd.s32 %s22, 1
      %s378 = smul.u32 %s377, 16
      %p379 = scmp.lt.s32.totalorder %s378, 15
      %s380 = scalar_select %p379, %s378, 15
      %p381 = scmp.lt.s32.totalorder %s21, 1
      %s382 = scalar_select %p381, %s21, 1
      %p383 = scmp.lt.s32.totalorder %s380, 15
      %s384 = scalar_select %p383, %s380, 15
      %s385 = smul.addr %s384, 2
      %s386 = smul.addr %s382, 32
      %s387 = sadd.s32 %s385, %s386
      %s388 = smul.addr %s387, 4
      %s389 = scalar_lea.vmem %s2, %s388
      %s390 = sadd.s32 %s22, 1
      %s391 = smul.u32 %s390, 16
      %p392 = scmp.lt.s32.totalorder %s391, 15
      %s393 = scalar_select %p392, %s391, 15
      %s394 = smul.u32 16, %s22
      %p395 = scmp.lt.s32.totalorder %s21, 1
      %s396 = scalar_select %p395, %s21, 1
      %p397 = scmp.lt.s32.totalorder %s394, 15
      %s398 = scalar_select %p397, %s394, 15
      %s399 = smul.addr %s398, 2
      %s400 = smul.addr %s396, 32
      %s401 = sadd.s32 %s399, %s400
      %s402 = smul.addr %s401, 4
      %s403 = scalar_lea.vmem %s4, %s402
      %s404 = smul.u32 16, %s22
      %p405 = scmp.lt.s32.totalorder %s21, 1
      %s406 = scalar_select %p405, %s21, 1
      %p407 = scmp.lt.s32.totalorder %s22, 0
      %s408 = scalar_select %p407, %s22, 0
      %s409 = sadd.s32 %s408, %s406
      %s410 = smul.addr %s409, 2
      %s411 = scalar_lea.vmem %s5, %s410
      %v413 = vld [vmem:[%s361] sm:$0xf]
      %v414 = vld [vmem:[%s361 + $0x4] sm:$0xf]
      %p415 = scmp.eq.s32.totalorder %s22, 0
      %s416 = scalar_select %p415, 1, 0
      %v417 = vstv %s416
      %vm418 = vcmp.eq.s32.totalorder %v417, 1
      %v419 = vsel %vm418, 0, %v413
      %v420 = vsel %vm418, 0, %v414
      %v421 = vld [vmem:[%s389] sm:$0xf]
      %v422 = vld [vmem:[%s389 + $0x4] sm:$0xf]
      %v423 = vsel %vm418, 0, %v421
      %v424 = vsel %vm418, 0, %v422
      %v425 = vld [vmem:[%s375] sm:$0xf]
      %v426 = vld [vmem:[%s375 + $0x4] sm:$0xf]
      %v427 = vld [vmem:[%s375 + $0x8] sm:$0xf]
      %v428 = vld [vmem:[%s375 + $0xc] sm:$0xf]
      %v429 = vld [vmem:[%s375 + $0x10] sm:$0xf]
      %v430 = vld [vmem:[%s375 + $0x14] sm:$0xf]
      %v431 = vld [vmem:[%s375 + $0x18] sm:$0xf]
      %v432 = vld [vmem:[%s375 + $0x1c] sm:$0xf]
      %v433 = vld [vmem:[%s375 + $0x20] sm:$0xf]
      %v434 = vld [vmem:[%s375 + $0x24] sm:$0xf]
      %v435 = vld [vmem:[%s375 + $0x28] sm:$0xf]
      %v436 = vld [vmem:[%s375 + $0x2c] sm:$0xf]
      %v437 = vld [vmem:[%s375 + $0x30] sm:$0xf]
      %v438 = vld [vmem:[%s375 + $0x34] sm:$0xf]
      %v439 = vld [vmem:[%s375 + $0x38] sm:$0xf]
      %v440 = vld [vmem:[%s375 + $0x3c] sm:$0xf]
      %v441 = vld [vmem:[%s375 + $0x40] sm:$0xf]
      %v442 = vld [vmem:[%s375 + $0x44] sm:$0xf]
      %v443 = vld [vmem:[%s375 + $0x48] sm:$0xf]
      %v444 = vld [vmem:[%s375 + $0x4c] sm:$0xf]
      %v445 = vld [vmem:[%s375 + $0x50] sm:$0xf]
      %v446 = vld [vmem:[%s375 + $0x54] sm:$0xf]
      %v447 = vld [vmem:[%s375 + $0x58] sm:$0xf]
      %v448 = vld [vmem:[%s375 + $0x5c] sm:$0xf]
      %v449 = vld [vmem:[%s375 + $0x60] sm:$0xf]
      %v450 = vld [vmem:[%s375 + $0x64] sm:$0xf]
      %v451 = vld [vmem:[%s375 + $0x68] sm:$0xf]
      %v452 = vld [vmem:[%s375 + $0x6c] sm:$0xf]
      %v453 = vld [vmem:[%s375 + $0x70] sm:$0xf]
      %v454 = vld [vmem:[%s375 + $0x74] sm:$0xf]
      %v455 = vld [vmem:[%s375 + $0x78] sm:$0xf]
      %v456 = vld [vmem:[%s375 + $0x7c] sm:$0xf]
      %v493 = vunpack.c.l.b16 %v419
      %v494 = vunpack.c.l.b16 %v420
      %v495 = vunpack.c.l.b16 %v425
      %v496 = vunpack.c.l.b16 %v426
      %v497 = vunpack.c.l.b16 %v427
      %v498 = vunpack.c.l.b16 %v428
      %v499 = vunpack.c.l.b16 %v429
      %v500 = vunpack.c.l.b16 %v430
      %v501 = vunpack.c.l.b16 %v431
      %v502 = vunpack.c.l.b16 %v432
      %v503 = vunpack.c.l.b16 %v433
      %v504 = vunpack.c.l.b16 %v434
      %v505 = vunpack.c.l.b16 %v435
      %v506 = vunpack.c.l.b16 %v436
      %v507 = vunpack.c.l.b16 %v437
      %v508 = vunpack.c.l.b16 %v438
      %v509 = vunpack.c.l.b16 %v439
      %v510 = vunpack.c.l.b16 %v440
      %v511 = vunpack.c.l.b16 %v441
      %v512 = vunpack.c.l.b16 %v442
      %v513 = vunpack.c.l.b16 %v443
      %v514 = vunpack.c.l.b16 %v444
      %v515 = vunpack.c.l.b16 %v445
      %v516 = vunpack.c.l.b16 %v446
      %v517 = vunpack.c.l.b16 %v447
      %v518 = vunpack.c.l.b16 %v448
      %v519 = vunpack.c.l.b16 %v449
      %v520 = vunpack.c.l.b16 %v450
      %v521 = vunpack.c.l.b16 %v451
      %v522 = vunpack.c.l.b16 %v452
      %v523 = vunpack.c.l.b16 %v453
      %v524 = vunpack.c.l.b16 %v454
      %v525 = vunpack.c.l.b16 %v455
      %v526 = vunpack.c.l.b16 %v456
      %v527 = vunpack.c.l.b16 %v423
      %v528 = vunpack.c.l.b16 %v424
      %v529 = vpack.c.b16 %v494, %v493
      %v530 = vpack.c.b16 %v496, %v495
      %v531 = vpack.c.b16 %v498, %v497
      %v532 = vpack.c.b16 %v500, %v499
      %v533 = vpack.c.b16 %v502, %v501
      %v534 = vpack.c.b16 %v504, %v503
      %v535 = vpack.c.b16 %v506, %v505
      %v536 = vpack.c.b16 %v508, %v507
      %v537 = vpack.c.b16 %v510, %v509
      %v538 = vpack.c.b16 %v512, %v511
      %v539 = vpack.c.b16 %v514, %v513
      %v540 = vpack.c.b16 %v516, %v515
      %v541 = vpack.c.b16 %v518, %v517
      %v542 = vpack.c.b16 %v520, %v519
      %v543 = vpack.c.b16 %v522, %v521
      %v544 = vpack.c.b16 %v524, %v523
      %v545 = vpack.c.b16 %v526, %v525
      %v546 = vpack.c.b16 %v528, %v527
      %v548 = vshrl.u32 %v529, 16
      %v550 = vrot.slane %v548, 7
      %v551 = vshll.u32 %v529, 16
      %v553 = vor.u32 %v550, %v551
      %v555 = vshrl.u32 %v530, 16
      %v557 = vrot.slane %v555, 7
      %v558 = vshll.u32 %v530, 16
      %v560 = vor.u32 %v557, %v558
      %v562 = vshrl.u32 %v531, 16
      %v564 = vrot.slane %v562, 7
      %v565 = vshll.u32 %v531, 16
      %v567 = vor.u32 %v564, %v565
      %v569 = vshrl.u32 %v532, 16
      %v571 = vrot.slane %v569, 7
      %v572 = vshll.u32 %v532, 16
      %v574 = vor.u32 %v571, %v572
      %v576 = vshrl.u32 %v533, 16
      %v578 = vrot.slane %v576, 7
      %v579 = vshll.u32 %v533, 16
      %v581 = vor.u32 %v578, %v579
      %v583 = vshrl.u32 %v534, 16
      %v585 = vrot.slane %v583, 7
      %v586 = vshll.u32 %v534, 16
      %v588 = vor.u32 %v585, %v586
      %v590 = vshrl.u32 %v535, 16
      %v592 = vrot.slane %v590, 7
      %v593 = vshll.u32 %v535, 16
      %v595 = vor.u32 %v592, %v593
      %v597 = vshrl.u32 %v536, 16
      %v599 = vrot.slane %v597, 7
      %v600 = vshll.u32 %v536, 16
      %v602 = vor.u32 %v599, %v600
      %v604 = vshrl.u32 %v537, 16
      %v606 = vrot.slane %v604, 7
      %v607 = vshll.u32 %v537, 16
      %v609 = vor.u32 %v606, %v607
      %v611 = vshrl.u32 %v538, 16
      %v613 = vrot.slane %v611, 7
      %v614 = vshll.u32 %v538, 16
      %v616 = vor.u32 %v613, %v614
      %v618 = vshrl.u32 %v539, 16
      %v620 = vrot.slane %v618, 7
      %v621 = vshll.u32 %v539, 16
      %v623 = vor.u32 %v620, %v621
      %v625 = vshrl.u32 %v540, 16
      %v627 = vrot.slane %v625, 7
      %v628 = vshll.u32 %v540, 16
      %v630 = vor.u32 %v627, %v628
      %v632 = vshrl.u32 %v541, 16
      %v634 = vrot.slane %v632, 7
      %v635 = vshll.u32 %v541, 16
      %v637 = vor.u32 %v634, %v635
      %v639 = vshrl.u32 %v542, 16
      %v641 = vrot.slane %v639, 7
      %v642 = vshll.u32 %v542, 16
      %v644 = vor.u32 %v641, %v642
      %v646 = vshrl.u32 %v543, 16
      %v648 = vrot.slane %v646, 7
      %v649 = vshll.u32 %v543, 16
      %v651 = vor.u32 %v648, %v649
      %v653 = vshrl.u32 %v544, 16
      %v655 = vrot.slane %v653, 7
      %v656 = vshll.u32 %v544, 16
      %v658 = vor.u32 %v655, %v656
      %v660 = vshrl.u32 %v545, 16
      %v662 = vrot.slane %v660, 7
      %v663 = vshll.u32 %v545, 16
      %v665 = vor.u32 %v662, %v663
      %v667 = vshrl.u32 %v546, 16
      %v669 = vrot.slane %v667, 7
      %v670 = vshll.u32 %v546, 16
      %v672 = vor.u32 %v669, %v670
      %vm691 = vcmask 1040384
      %vm692 = vsmask.f32 256
      %vm693 = vmand %vm691, %vm692
      %v694 = vsel %vm693, 0, %v553
      %v695 = vsel %vm693, 0, %v560
      %v696 = vsel %vm693, 0, %v567
      %v697 = vsel %vm693, 0, %v574
      %v698 = vsel %vm693, 0, %v581
      %v699 = vsel %vm693, 0, %v588
      %v700 = vsel %vm693, 0, %v595
      %v701 = vsel %vm693, 0, %v602
      %v702 = vsel %vm693, 0, %v609
      %v703 = vsel %vm693, 0, %v616
      %v704 = vsel %vm693, 0, %v623
      %v705 = vsel %vm693, 0, %v630
      %v706 = vsel %vm693, 0, %v637
      %v707 = vsel %vm693, 0, %v644
      %v708 = vsel %vm693, 0, %v651
      %v709 = vsel %vm693, 0, %v658
      %v710 = vsel %vm693, 0, %v665
      %v711 = vsel %vm693, 0, %v672
      %v712 = vrot.slane %v551, 1
      %v713 = vor.u32 %v548, %v712
      %v714 = vrot.slane %v558, 1
      %v715 = vor.u32 %v555, %v714
      %v716 = vrot.slane %v565, 1
      %v717 = vor.u32 %v562, %v716
      %v718 = vrot.slane %v572, 1
      %v719 = vor.u32 %v569, %v718
      %v720 = vrot.slane %v579, 1
      %v721 = vor.u32 %v576, %v720
      %v722 = vrot.slane %v586, 1
      %v723 = vor.u32 %v583, %v722
      %v724 = vrot.slane %v593, 1
      %v725 = vor.u32 %v590, %v724
      %v726 = vrot.slane %v600, 1
      %v727 = vor.u32 %v597, %v726
      %v728 = vrot.slane %v607, 1
      %v729 = vor.u32 %v604, %v728
      %v730 = vrot.slane %v614, 1
      %v731 = vor.u32 %v611, %v730
      %v732 = vrot.slane %v621, 1
      %v733 = vor.u32 %v618, %v732
      %v734 = vrot.slane %v628, 1
      %v735 = vor.u32 %v625, %v734
      %v736 = vrot.slane %v635, 1
      %v737 = vor.u32 %v632, %v736
      %v738 = vrot.slane %v642, 1
      %v739 = vor.u32 %v639, %v738
      %v740 = vrot.slane %v649, 1
      %v741 = vor.u32 %v646, %v740
      %v742 = vrot.slane %v656, 1
      %v743 = vor.u32 %v653, %v742
      %v744 = vrot.slane %v663, 1
      %v745 = vor.u32 %v660, %v744
      %v746 = vrot.slane %v670, 1
      %v747 = vor.u32 %v667, %v746
      %vm766 = vcmask 1047552
      %vm767 = vsmask.f32 7424
      %vm768 = vmand %vm766, %vm767
      %v769 = vsel %vm768, %v713, 0
      %v770 = vsel %vm768, %v715, 0
      %v771 = vsel %vm768, %v717, 0
      %v772 = vsel %vm768, %v719, 0
      %v773 = vsel %vm768, %v721, 0
      %v774 = vsel %vm768, %v723, 0
      %v775 = vsel %vm768, %v725, 0
      %v776 = vsel %vm768, %v727, 0
      %v777 = vsel %vm768, %v729, 0
      %v778 = vsel %vm768, %v731, 0
      %v779 = vsel %vm768, %v733, 0
      %v780 = vsel %vm768, %v735, 0
      %v781 = vsel %vm768, %v737, 0
      %v782 = vsel %vm768, %v739, 0
      %v783 = vsel %vm768, %v741, 0
      %v784 = vsel %vm768, %v743, 0
      %v785 = vsel %vm768, %v745, 0
      %v786 = vsel %vm768, %v747, 0
      %787 = vrot.lane.b32.xlu0 %v529, 8
      %v788 = vpop.permute.xlu0 %787
      %789 = vrot.lane.b32.xlu0 %v530, 8
      %v790 = vpop.permute.xlu0 %789
      %791 = vrot.lane.b32.xlu0 %v531, 8
      %v792 = vpop.permute.xlu0 %791
      %793 = vrot.lane.b32.xlu0 %v532, 8
      %v794 = vpop.permute.xlu0 %793
      %795 = vrot.lane.b32.xlu0 %v533, 8
      %v796 = vpop.permute.xlu0 %795
      %797 = vrot.lane.b32.xlu0 %v534, 8
      %v798 = vpop.permute.xlu0 %797
      %799 = vrot.lane.b32.xlu0 %v535, 8
      %v800 = vpop.permute.xlu0 %799
      %801 = vrot.lane.b32.xlu0 %v536, 8
      %v802 = vpop.permute.xlu0 %801
      %803 = vrot.lane.b32.xlu0 %v537, 8
      %v804 = vpop.permute.xlu0 %803
      %805 = vrot.lane.b32.xlu0 %v538, 8
      %v806 = vpop.permute.xlu0 %805
      %807 = vrot.lane.b32.xlu0 %v539, 8
      %v808 = vpop.permute.xlu0 %807
      %809 = vrot.lane.b32.xlu0 %v540, 8
      %v810 = vpop.permute.xlu0 %809
      %811 = vrot.lane.b32.xlu0 %v541, 8
      %v812 = vpop.permute.xlu0 %811
      %813 = vrot.lane.b32.xlu0 %v542, 8
      %v814 = vpop.permute.xlu0 %813
      %815 = vrot.lane.b32.xlu0 %v543, 8
      %v816 = vpop.permute.xlu0 %815
      %817 = vrot.lane.b32.xlu0 %v544, 8
      %v818 = vpop.permute.xlu0 %817
      %819 = vrot.lane.b32.xlu0 %v545, 8
      %v820 = vpop.permute.xlu0 %819
      %821 = vrot.lane.b32.xlu0 %v546, 8
      %v822 = vpop.permute.xlu0 %821
      %841 = vrot.lane.b32.xlu0 %v769, 16
      %v842 = vpop.permute.xlu0 %841
      %843 = vrot.lane.b32.xlu0 %v770, 16
      %v844 = vpop.permute.xlu0 %843
      %845 = vrot.lane.b32.xlu0 %v771, 16
      %v846 = vpop.permute.xlu0 %845
      %847 = vrot.lane.b32.xlu0 %v772, 16
      %v848 = vpop.permute.xlu0 %847
      %849 = vrot.lane.b32.xlu0 %v773, 16
      %v850 = vpop.permute.xlu0 %849
      %851 = vrot.lane.b32.xlu0 %v774, 16
      %v852 = vpop.permute.xlu0 %851
      %853 = vrot.lane.b32.xlu0 %v775, 16
      %v854 = vpop.permute.xlu0 %853
      %855 = vrot.lane.b32.xlu0 %v776, 16
      %v856 = vpop.permute.xlu0 %855
      %857 = vrot.lane.b32.xlu0 %v777, 16
      %v858 = vpop.permute.xlu0 %857
      %859 = vrot.lane.b32.xlu0 %v778, 16
      %v860 = vpop.permute.xlu0 %859
      %861 = vrot.lane.b32.xlu0 %v779, 16
      %v862 = vpop.permute.xlu0 %861
      %863 = vrot.lane.b32.xlu0 %v780, 16
      %v864 = vpop.permute.xlu0 %863
      %865 = vrot.lane.b32.xlu0 %v781, 16
      %v866 = vpop.permute.xlu0 %865
      %867 = vrot.lane.b32.xlu0 %v782, 16
      %v868 = vpop.permute.xlu0 %867
      %869 = vrot.lane.b32.xlu0 %v783, 16
      %v870 = vpop.permute.xlu0 %869
      %871 = vrot.lane.b32.xlu0 %v784, 16
      %v872 = vpop.permute.xlu0 %871
      %873 = vrot.lane.b32.xlu0 %v785, 16
      %v874 = vpop.permute.xlu0 %873
      %875 = vrot.lane.b32.xlu0 %v786, 16
      %v876 = vpop.permute.xlu0 %875
      %vm877 = vcmask 64512
      %v880 = vsel %vm877, %v694, %v788
      %v883 = vsel %vm877, %v695, %v790
      %v886 = vsel %vm877, %v696, %v792
      %v889 = vsel %vm877, %v697, %v794
      %v892 = vsel %vm877, %v698, %v796
      %v895 = vsel %vm877, %v699, %v798
      %v898 = vsel %vm877, %v700, %v800
      %v901 = vsel %vm877, %v701, %v802
      %v904 = vsel %vm877, %v702, %v804
      %v907 = vsel %vm877, %v703, %v806
      %v910 = vsel %vm877, %v704, %v808
      %v913 = vsel %vm877, %v705, %v810
      %v916 = vsel %vm877, %v706, %v812
      %v919 = vsel %vm877, %v707, %v814
      %v922 = vsel %vm877, %v708, %v816
      %v925 = vsel %vm877, %v709, %v818
      %v928 = vsel %vm877, %v710, %v820
      %v931 = vsel %vm877, %v711, %v822
      %vm932 = vcmask 130048
      %v934 = vsel %vm932, %v880, %v842
      %v937 = vsel %vm932, %v883, %v844
      %v940 = vsel %vm932, %v886, %v846
      %v943 = vsel %vm932, %v889, %v848
      %v946 = vsel %vm932, %v892, %v850
      %v949 = vsel %vm932, %v895, %v852
      %v952 = vsel %vm932, %v898, %v854
      %v955 = vsel %vm932, %v901, %v856
      %v958 = vsel %vm932, %v904, %v858
      %v961 = vsel %vm932, %v907, %v860
      %v964 = vsel %vm932, %v910, %v862
      %v967 = vsel %vm932, %v913, %v864
      %v970 = vsel %vm932, %v916, %v866
      %v973 = vsel %vm932, %v919, %v868
      %v976 = vsel %vm932, %v922, %v870
      %v979 = vsel %vm932, %v925, %v872
      %v982 = vsel %vm932, %v928, %v874
      %v985 = vsel %vm932, %v931, %v876
      %vm987 = vcmask 195584
      %988 = vst.msk [vmem:[#allocation2] sm:$0xff] %vm987, %v934
      %989 = vst.msk [vmem:[#allocation2 + $0x8] sm:$0xff] %vm987, %v937
      %990 = vst.msk [vmem:[#allocation2 + $0x10] sm:$0xff] %vm987, %v940
      %991 = vst.msk [vmem:[#allocation2 + $0x18] sm:$0xff] %vm987, %v943
      %992 = vst.msk [vmem:[#allocation2 + $0x20] sm:$0xff] %vm987, %v946
      %993 = vst.msk [vmem:[#allocation2 + $0x28] sm:$0xff] %vm987, %v949
      %994 = vst.msk [vmem:[#allocation2 + $0x30] sm:$0xff] %vm987, %v952
      %995 = vst.msk [vmem:[#allocation2 + $0x38] sm:$0xff] %vm987, %v955
      %996 = vst.msk [vmem:[#allocation2 + $0x40] sm:$0xff] %vm987, %v958
      %997 = vst.msk [vmem:[#allocation2 + $0x48] sm:$0xff] %vm987, %v961
      %998 = vst.msk [vmem:[#allocation2 + $0x50] sm:$0xff] %vm987, %v964
      %999 = vst.msk [vmem:[#allocation2 + $0x58] sm:$0xff] %vm987, %v967
      %1000 = vst.msk [vmem:[#allocation2 + $0x60] sm:$0xff] %vm987, %v970
      %1001 = vst.msk [vmem:[#allocation2 + $0x68] sm:$0xff] %vm987, %v973
      %1002 = vst.msk [vmem:[#allocation2 + $0x70] sm:$0xff] %vm987, %v976
      %1003 = vst.msk [vmem:[#allocation2 + $0x78] sm:$0xff] %vm987, %v979
      %1004 = vst.msk [vmem:[#allocation2 + $0x80] sm:$0xff] %vm987, %v982
      %1005 = vst.msk [vmem:[#allocation2 + $0x88] sm:$0xff] %vm987, %v985
      %v1006 = vld [vmem:[#allocation2] sm:$0xff]
      %v1007 = vld [vmem:[#allocation2 + $0x8] sm:$0xff]
      %v1008 = vld [vmem:[#allocation2 + $0x10] sm:$0xff]
      %v1009 = vld [vmem:[#allocation2 + $0x18] sm:$0xff]
      %v1010 = vld [vmem:[#allocation2 + $0x20] sm:$0xff]
      %v1011 = vld [vmem:[#allocation2 + $0x28] sm:$0xff]
      %v1012 = vld [vmem:[#allocation2 + $0x30] sm:$0xff]
      %v1013 = vld [vmem:[#allocation2 + $0x38] sm:$0xff]
      %v1014 = vld [vmem:[#allocation2 + $0x40] sm:$0xff]
      %v1015 = vld [vmem:[#allocation2 + $0x48] sm:$0xff]
      %v1016 = vld [vmem:[#allocation2 + $0x50] sm:$0xff]
      %v1017 = vld [vmem:[#allocation2 + $0x58] sm:$0xff]
      %v1018 = vld [vmem:[#allocation2 + $0x60] sm:$0xff]
      %v1019 = vld [vmem:[#allocation2 + $0x68] sm:$0xff]
      %v1020 = vld [vmem:[#allocation2 + $0x70] sm:$0xff]
      %v1021 = vld [vmem:[#allocation2 + $0x78] sm:$0xff]
      %v1022 = vld [vmem:[%s3] sm:$0xf]
      %v1023 = vld [vmem:[%s3 + $0x4] sm:$0xf]
      %v1024 = vld [vmem:[%s3 + $0x8] sm:$0xf]
      %v1028 = vunpack.c.l.b16 %v1022
      %v1029 = vunpack.c.l.b16 %v1023
      %v1030 = vunpack.c.l.b16 %v1024
      %v1031 = vpack.c.b16 %v1029, %v1028
      %v1032 = vpack.c.b16 %v1030, %v1030
      %v1035 = vsel %vm987, %v1006, 0
      %v1038 = vsel %vm987, %v1007, 0
      %v1041 = vsel %vm987, %v1008, 0
      %v1044 = vsel %vm987, %v1009, 0
      %v1047 = vsel %vm987, %v1010, 0
      %v1050 = vsel %vm987, %v1011, 0
      %v1053 = vsel %vm987, %v1012, 0
      %v1056 = vsel %vm987, %v1013, 0
      %v1059 = vsel %vm987, %v1014, 0
      %v1062 = vsel %vm987, %v1015, 0
      %v1065 = vsel %vm987, %v1016, 0
      %v1068 = vsel %vm987, %v1017, 0
      %v1071 = vsel %vm987, %v1018, 0
      %v1074 = vsel %vm987, %v1019, 0
      %v1077 = vsel %vm987, %v1020, 0
      %v1080 = vsel %vm987, %v1021, 0
      %vm1082 = vcmask 1043456
      %v1084 = vsel %vm1082, %v1032, 0
      %1086 = vmatprep.subr.bf16.mxu0 0
      %1087 = vmatpush1.bf16.msra.mxu0 %v1031
      %1088 = vmatprep.subr.bf16.mxu0 0
      %1089 = vmatpush1.bf16.msra.mxu0 %v1084
      %1090 = vmatprep.subr.bf16.mxu0 0
      %1091 = vmatpush1.bf16.msra.mxu0 0
      %1092 = vmatprep.subr.bf16.mxu0 0
      %1093 = vmatpush1.bf16.msra.mxu0 0
      %1094 = vmatprep.subr.bf16.mxu0 0
      %1095 = vmatpush1.bf16.msra.mxu0 0
      %1096 = vmatprep.subr.bf16.mxu0 0
      %1097 = vmatpush1.bf16.msra.mxu0 0
      %1098 = vmatprep.subr.bf16.mxu0 0
      %1099 = vmatpush1.bf16.msra.mxu0 0
      %1100 = vmatprep.subr.bf16.mxu0 0
      %1101 = vmatpush1.bf16.msra.mxu0 0
      %1102 = vmatprep.subr.bf16.mxu0 0
      %1103 = vmatpush1.bf16.msra.mxu0 0
      %1104 = vmatprep.subr.bf16.mxu0 0
      %1105 = vmatpush1.bf16.msra.mxu0 0
      %1106 = vmatprep.subr.bf16.mxu0 0
      %1107 = vmatpush1.bf16.msra.mxu0 0
      %1108 = vmatprep.subr.bf16.mxu0 0
      %1109 = vmatpush1.bf16.msra.mxu0 0
      %1110 = vmatprep.subr.bf16.mxu0 0
      %1111 = vmatpush1.bf16.msra.mxu0 0
      %1112 = vmatprep.subr.bf16.mxu0 0
      %1113 = vmatpush1.bf16.msra.mxu0 0
      %1114 = vmatprep.subr.bf16.mxu0 0
      %1115 = vmatpush1.bf16.msra.mxu0 0
      %1116 = vmatprep.subr.bf16.mxu0 0
      %1117 = vmatpush1.bf16.msra.mxu0 0
      %1118 = vmatprep.mubr.bf16.mxu0 0
      %1119 = vmatmul.mubr.bf16.gmra.mrb[0].mxu0 %v1035
      %v1120 = vpop.f32.mrb[0].mxu0
      %v1121 = vadd.f32 0.0, %v1120
      %v1122 = vpop.f32.mrb[0].mxu0
      %v1123 = vpop.f32.mrb[0].mxu0
      %v1124 = vadd.f32 0.0, %v1123
      %v1125 = vpop.f32.mrb[0].mxu0
      %1126 = vmatprep.mubr.bf16.mxu0 0
      %1127 = vmatmul.mubr.bf16.gmra.mrb[0].mxu0 %v1038
      %v1128 = vpop.f32.mrb[0].mxu0
      %v1129 = vadd.f32 0.0, %v1128
      %v1130 = vpop.f32.mrb[0].mxu0
      %v1131 = vpop.f32.mrb[0].mxu0
      %v1132 = vadd.f32 0.0, %v1131
      %v1133 = vpop.f32.mrb[0].mxu0
      %1134 = vmatprep.mubr.bf16.mxu0 0
      %1135 = vmatmul.mubr.bf16.gmra.mrb[0].mxu0 %v1041
      %v1136 = vpop.f32.mrb[0].mxu0
      %v1137 = vadd.f32 0.0, %v1136
      %v1138 = vpop.f32.mrb[0].mxu0
      %v1139 = vpop.f32.mrb[0].mxu0
      %v1140 = vadd.f32 0.0, %v1139
      %v1141 = vpop.f32.mrb[0].mxu0
      %1142 = vmatprep.mubr.bf16.mxu0 0
      %1143 = vmatmul.mubr.bf16.gmra.mrb[0].mxu0 %v1044
      %v1144 = vpop.f32.mrb[0].mxu0
      %v1145 = vadd.f32 0.0, %v1144
      %v1146 = vpop.f32.mrb[0].mxu0
      %v1147 = vpop.f32.mrb[0].mxu0
      %v1148 = vadd.f32 0.0, %v1147
      %v1149 = vpop.f32.mrb[0].mxu0
      %1150 = vmatprep.mubr.bf16.mxu0 0
      %1151 = vmatmul.mubr.bf16.gmra.mrb[0].mxu0 %v1047
      %v1152 = vpop.f32.mrb[0].mxu0
      %v1153 = vadd.f32 0.0, %v1152
      %v1154 = vpop.f32.mrb[0].mxu0
      %v1155 = vpop.f32.mrb[0].mxu0
      %v1156 = vadd.f32 0.0, %v1155
      %v1157 = vpop.f32.mrb[0].mxu0
      %1158 = vmatprep.mubr.bf16.mxu0 0
      %1159 = vmatmul.mubr.bf16.gmra.mrb[0].mxu0 %v1050
      %v1160 = vpop.f32.mrb[0].mxu0
      %v1161 = vadd.f32 0.0, %v1160
      %v1162 = vpop.f32.mrb[0].mxu0
      %v1163 = vpop.f32.mrb[0].mxu0
      %v1164 = vadd.f32 0.0, %v1163
      %v1165 = vpop.f32.mrb[0].mxu0
      %1166 = vmatprep.mubr.bf16.mxu0 0
      %1167 = vmatmul.mubr.bf16.gmra.mrb[0].mxu0 %v1053
      %v1168 = vpop.f32.mrb[0].mxu0
      %v1169 = vadd.f32 0.0, %v1168
      %v1170 = vpop.f32.mrb[0].mxu0
      %v1171 = vpop.f32.mrb[0].mxu0
      %v1172 = vadd.f32 0.0, %v1171
      %v1173 = vpop.f32.mrb[0].mxu0
      %1174 = vmatprep.mubr.bf16.mxu0 0
      %1175 = vmatmul.mubr.bf16.gmra.mrb[0].mxu0 %v1056
      %v1176 = vpop.f32.mrb[0].mxu0
      %v1177 = vadd.f32 0.0, %v1176
      %v1178 = vpop.f32.mrb[0].mxu0
      %v1179 = vpop.f32.mrb[0].mxu0
      %v1180 = vadd.f32 0.0, %v1179
      %v1181 = vpop.f32.mrb[0].mxu0
      %1182 = vmatprep.mubr.bf16.mxu0 0
      %1183 = vmatmul.mubr.bf16.gmra.mrb[0].mxu0 %v1059
      %v1184 = vpop.f32.mrb[0].mxu0
      %v1185 = vadd.f32 0.0, %v1184
      %v1186 = vpop.f32.mrb[0].mxu0
      %v1187 = vpop.f32.mrb[0].mxu0
      %v1188 = vadd.f32 0.0, %v1187
      %v1189 = vpop.f32.mrb[0].mxu0
      %1190 = vmatprep.mubr.bf16.mxu0 0
      %1191 = vmatmul.mubr.bf16.gmra.mrb[0].mxu0 %v1062
      %v1192 = vpop.f32.mrb[0].mxu0
      %v1193 = vadd.f32 0.0, %v1192
      %v1194 = vpop.f32.mrb[0].mxu0
      %v1195 = vpop.f32.mrb[0].mxu0
      %v1196 = vadd.f32 0.0, %v1195
      %v1197 = vpop.f32.mrb[0].mxu0
      %1198 = vmatprep.mubr.bf16.mxu0 0
      %1199 = vmatmul.mubr.bf16.gmra.mrb[0].mxu0 %v1065
      %v1200 = vpop.f32.mrb[0].mxu0
      %v1201 = vadd.f32 0.0, %v1200
      %v1202 = vpop.f32.mrb[0].mxu0
      %v1203 = vpop.f32.mrb[0].mxu0
      %v1204 = vadd.f32 0.0, %v1203
      %v1205 = vpop.f32.mrb[0].mxu0
      %1206 = vmatprep.mubr.bf16.mxu0 0
      %1207 = vmatmul.mubr.bf16.gmra.mrb[0].mxu0 %v1068
      %v1208 = vpop.f32.mrb[0].mxu0
      %v1209 = vadd.f32 0.0, %v1208
      %v1210 = vpop.f32.mrb[0].mxu0
      %v1211 = vpop.f32.mrb[0].mxu0
      %v1212 = vadd.f32 0.0, %v1211
      %v1213 = vpop.f32.mrb[0].mxu0
      %1214 = vmatprep.mubr.bf16.mxu0 0
      %1215 = vmatmul.mubr.bf16.gmra.mrb[0].mxu0 %v1071
      %v1216 = vpop.f32.mrb[0].mxu0
      %v1217 = vadd.f32 0.0, %v1216
      %v1218 = vpop.f32.mrb[0].mxu0
      %v1219 = vpop.f32.mrb[0].mxu0
      %v1220 = vadd.f32 0.0, %v1219
      %v1221 = vpop.f32.mrb[0].mxu0
      %1222 = vmatprep.mubr.bf16.mxu0 0
      %1223 = vmatmul.mubr.bf16.gmra.mrb[0].mxu0 %v1074
      %v1224 = vpop.f32.mrb[0].mxu0
      %v1225 = vadd.f32 0.0, %v1224
      %v1226 = vpop.f32.mrb[0].mxu0
      %v1227 = vpop.f32.mrb[0].mxu0
      %v1228 = vadd.f32 0.0, %v1227
      %v1229 = vpop.f32.mrb[0].mxu0
      %1230 = vmatprep.mubr.bf16.mxu0 0
      %1231 = vmatmul.mubr.bf16.gmra.mrb[0].mxu0 %v1077
      %v1232 = vpop.f32.mrb[0].mxu0
      %v1233 = vadd.f32 0.0, %v1232
      %v1234 = vpop.f32.mrb[0].mxu0
      %v1235 = vpop.f32.mrb[0].mxu0
      %v1236 = vadd.f32 0.0, %v1235
      %v1237 = vpop.f32.mrb[0].mxu0
      %1238 = vmatprep.mubr.bf16.mxu0 0
      %1239 = vmatmul.mubr.bf16.gmra.mrb[0].mxu0 %v1080
      %v1240 = vpop.f32.mrb[0].mxu0
      %v1241 = vadd.f32 0.0, %v1240
      %v1242 = vpop.f32.mrb[0].mxu0
      %v1243 = vpop.f32.mrb[0].mxu0
      %v1244 = vadd.f32 0.0, %v1243
      %v1245 = vpop.f32.mrb[0].mxu0
      %1246 = vdwg.mxu0
      %1247 = vst.msk [vmem:[#allocation3] sm:$0xff] %vm877, %v1121
      %1248 = vst.msk [vmem:[#allocation3 + $0x8] sm:$0xff] %vm877, %v1124
      %1249 = vst.msk [vmem:[#allocation3 + $0x10] sm:$0xff] %vm877, %v1129
      %1250 = vst.msk [vmem:[#allocation3 + $0x18] sm:$0xff] %vm877, %v1132
      %1251 = vst.msk [vmem:[#allocation3 + $0x20] sm:$0xff] %vm877, %v1137
      %1252 = vst.msk [vmem:[#allocation3 + $0x28] sm:$0xff] %vm877, %v1140
      %1253 = vst.msk [vmem:[#allocation3 + $0x30] sm:$0xff] %vm877, %v1145
      %1254 = vst.msk [vmem:[#allocation3 + $0x38] sm:$0xff] %vm877, %v1148
      %1255 = vst.msk [vmem:[#allocation3 + $0x40] sm:$0xff] %vm877, %v1153
      %1256 = vst.msk [vmem:[#allocation3 + $0x48] sm:$0xff] %vm877, %v1156
      %1257 = vst.msk [vmem:[#allocation3 + $0x50] sm:$0xff] %vm877, %v1161
      %1258 = vst.msk [vmem:[#allocation3 + $0x58] sm:$0xff] %vm877, %v1164
      %1259 = vst.msk [vmem:[#allocation3 + $0x60] sm:$0xff] %vm877, %v1169
      %1260 = vst.msk [vmem:[#allocation3 + $0x68] sm:$0xff] %vm877, %v1172
      %1261 = vst.msk [vmem:[#allocation3 + $0x70] sm:$0xff] %vm877, %v1177
      %1262 = vst.msk [vmem:[#allocation3 + $0x78] sm:$0xff] %vm877, %v1180
      %1263 = vst.msk [vmem:[#allocation3 + $0x80] sm:$0xff] %vm877, %v1185
      %1264 = vst.msk [vmem:[#allocation3 + $0x88] sm:$0xff] %vm877, %v1188
      %1265 = vst.msk [vmem:[#allocation3 + $0x90] sm:$0xff] %vm877, %v1193
      %1266 = vst.msk [vmem:[#allocation3 + $0x98] sm:$0xff] %vm877, %v1196
      %1267 = vst.msk [vmem:[#allocation3 + $0xa0] sm:$0xff] %vm877, %v1201
      %1268 = vst.msk [vmem:[#allocation3 + $0xa8] sm:$0xff] %vm877, %v1204
      %1269 = vst.msk [vmem:[#allocation3 + $0xb0] sm:$0xff] %vm877, %v1209
      %1270 = vst.msk [vmem:[#allocation3 + $0xb8] sm:$0xff] %vm877, %v1212
      %1271 = vst.msk [vmem:[#allocation3 + $0xc0] sm:$0xff] %vm877, %v1217
      %1272 = vst.msk [vmem:[#allocation3 + $0xc8] sm:$0xff] %vm877, %v1220
      %1273 = vst.msk [vmem:[#allocation3 + $0xd0] sm:$0xff] %vm877, %v1225
      %1274 = vst.msk [vmem:[#allocation3 + $0xd8] sm:$0xff] %vm877, %v1228
      %1275 = vst.msk [vmem:[#allocation3 + $0xe0] sm:$0xff] %vm877, %v1233
      %1276 = vst.msk [vmem:[#allocation3 + $0xe8] sm:$0xff] %vm877, %v1236
      %1277 = vst.msk [vmem:[#allocation3 + $0xf0] sm:$0xff] %vm877, %v1241
      %1278 = vst.msk [vmem:[#allocation3 + $0xf8] sm:$0xff] %vm877, %v1244
      %s1279 = scalar_lea.vmem [#allocation2], 8
      %v1280 = vld [vmem:[%s1279] sm:$0xff]
      %v1281 = vld [vmem:[%s1279 + $0x8] sm:$0xff]
      %v1282 = vld [vmem:[%s1279 + $0x10] sm:$0xff]
      %v1283 = vld [vmem:[%s1279 + $0x18] sm:$0xff]
      %v1284 = vld [vmem:[%s1279 + $0x20] sm:$0xff]
      %v1285 = vld [vmem:[%s1279 + $0x28] sm:$0xff]
      %v1286 = vld [vmem:[%s1279 + $0x30] sm:$0xff]
      %v1287 = vld [vmem:[%s1279 + $0x38] sm:$0xff]
      %v1288 = vld [vmem:[%s1279 + $0x40] sm:$0xff]
      %v1289 = vld [vmem:[%s1279 + $0x48] sm:$0xff]
      %v1290 = vld [vmem:[%s1279 + $0x50] sm:$0xff]
      %v1291 = vld [vmem:[%s1279 + $0x58] sm:$0xff]
      %v1292 = vld [vmem:[%s1279 + $0x60] sm:$0xff]
      %v1293 = vld [vmem:[%s1279 + $0x68] sm:$0xff]
      %v1294 = vld [vmem:[%s1279 + $0x70] sm:$0xff]
      %v1295 = vld [vmem:[%s1279 + $0x78] sm:$0xff]
      %s1296 = scalar_lea.vmem %s3, 12
      %v1297 = vld [vmem:[%s1296] sm:$0xf]
      %v1298 = vld [vmem:[%s1296 + $0x4] sm:$0xf]
      %v1299 = vld [vmem:[%s1296 + $0x8] sm:$0xf]
      %v1303 = vunpack.c.l.b16 %v1297
      %v1304 = vunpack.c.l.b16 %v1298
      %v1305 = vunpack.c.l.b16 %v1299
      %v1306 = vpack.c.b16 %v1304, %v1303
      %v1307 = vpack.c.b16 %v1305, %v1305
      %v1310 = vsel %vm987, %v1280, 0
      %v1313 = vsel %vm987, %v1281, 0
      %v1316 = vsel %vm987, %v1282, 0
      %v1319 = vsel %vm987, %v1283, 0
      %v1322 = vsel %vm987, %v1284, 0
      %v1325 = vsel %vm987, %v1285, 0
      %v1328 = vsel %vm987, %v1286, 0
      %v1331 = vsel %vm987, %v1287, 0
      %v1334 = vsel %vm987, %v1288, 0
      %v1337 = vsel %vm987, %v1289, 0
      %v1340 = vsel %vm987, %v1290, 0
      %v1343 = vsel %vm987, %v1291, 0
      %v1346 = vsel %vm987, %v1292, 0
      %v1349 = vsel %vm987, %v1293, 0
      %v1352 = vsel %vm987, %v1294, 0
      %v1355 = vsel %vm987, %v1295, 0
      %v1358 = vsel %vm1082, %v1307, 0
      %1360 = vmatprep.subr.bf16.mxu0 0
      %1361 = vmatpush1.bf16.msra.mxu0 %v1306
      %1362 = vmatprep.subr.bf16.mxu0 0
      %1363 = vmatpush1.bf16.msra.mxu0 %v1358
      %1364 = vmatprep.subr.bf16.mxu0 0
      %1365 = vmatpush1.bf16.msra.mxu0 0
      %1366 = vmatprep.subr.bf16.mxu0 0
      %1367 = vmatpush1.bf16.msra.mxu0 0
      %1368 = vmatprep.subr.bf16.mxu0 0
      %1369 = vmatpush1.bf16.msra.mxu0 0
      %1370 = vmatprep.subr.bf16.mxu0 0
      %1371 = vmatpush1.bf16.msra.mxu0 0
      %1372 = vmatprep.subr.bf16.mxu0 0
      %1373 = vmatpush1.bf16.msra.mxu0 0
      %1374 = vmatprep.subr.bf16.mxu0 0
      %1375 = vmatpush1.bf16.msra.mxu0 0
      %1376 = vmatprep.subr.bf16.mxu0 0
      %1377 = vmatpush1.bf16.msra.mxu0 0
      %1378 = vmatprep.subr.bf16.mxu0 0
      %1379 = vmatpush1.bf16.msra.mxu0 0
      %1380 = vmatprep.subr.bf16.mxu0 0
      %1381 = vmatpush1.bf16.msra.mxu0 0
      %1382 = vmatprep.subr.bf16.mxu0 0
      %1383 = vmatpush1.bf16.msra.mxu0 0
      %1384 = vmatprep.subr.bf16.mxu0 0
      %1385 = vmatpush1.bf16.msra.mxu0 0
      %1386 = vmatprep.subr.bf16.mxu0 0
      %1387 = vmatpush1.bf16.msra.mxu0 0
      %1388 = vmatprep.subr.bf16.mxu0 0
      %1389 = vmatpush1.bf16.msra.mxu0 0
      %1390 = vmatprep.subr.bf16.mxu0 0
      %1391 = vmatpush1.bf16.msra.mxu0 0
      %1392 = vmatprep.mubr.bf16.mxu0 0
      %1393 = vmatmul.mubr.bf16.gmra.mrb[0].mxu0 %v1310
      %v1394 = vpop.f32.mrb[0].mxu0
      %v1395 = vadd.f32 0.0, %v1394
      %v1396 = vpop.f32.mrb[0].mxu0
      %v1397 = vpop.f32.mrb[0].mxu0
      %v1398 = vadd.f32 0.0, %v1397
      %v1399 = vpop.f32.mrb[0].mxu0
      %1400 = vmatprep.mubr.bf16.mxu0 0
      %1401 = vmatmul.mubr.bf16.gmra.mrb[0].mxu0 %v1313
      %v1402 = vpop.f32.mrb[0].mxu0
      %v1403 = vadd.f32 0.0, %v1402
      %v1404 = vpop.f32.mrb[0].mxu0
      %v1405 = vpop.f32.mrb[0].mxu0
      %v1406 = vadd.f32 0.0, %v1405
      %v1407 = vpop.f32.mrb[0].mxu0
      %1408 = vmatprep.mubr.bf16.mxu0 0
      %1409 = vmatmul.mubr.bf16.gmra.mrb[0].mxu0 %v1316
      %v1410 = vpop.f32.mrb[0].mxu0
      %v1411 = vadd.f32 0.0, %v1410
      %v1412 = vpop.f32.mrb[0].mxu0
      %v1413 = vpop.f32.mrb[0].mxu0
      %v1414 = vadd.f32 0.0, %v1413
      %v1415 = vpop.f32.mrb[0].mxu0
      %1416 = vmatprep.mubr.bf16.mxu0 0
      %1417 = vmatmul.mubr.bf16.gmra.mrb[0].mxu0 %v1319
      %v1418 = vpop.f32.mrb[0].mxu0
      %v1419 = vadd.f32 0.0, %v1418
      %v1420 = vpop.f32.mrb[0].mxu0
      %v1421 = vpop.f32.mrb[0].mxu0
      %v1422 = vadd.f32 0.0, %v1421
      %v1423 = vpop.f32.mrb[0].mxu0
      %1424 = vmatprep.mubr.bf16.mxu0 0
      %1425 = vmatmul.mubr.bf16.gmra.mrb[0].mxu0 %v1322
      %v1426 = vpop.f32.mrb[0].mxu0
      %v1427 = vadd.f32 0.0, %v1426
      %v1428 = vpop.f32.mrb[0].mxu0
      %v1429 = vpop.f32.mrb[0].mxu0
      %v1430 = vadd.f32 0.0, %v1429
      %v1431 = vpop.f32.mrb[0].mxu0
      %1432 = vmatprep.mubr.bf16.mxu0 0
      %1433 = vmatmul.mubr.bf16.gmra.mrb[0].mxu0 %v1325
      %v1434 = vpop.f32.mrb[0].mxu0
      %v1435 = vadd.f32 0.0, %v1434
      %v1436 = vpop.f32.mrb[0].mxu0
      %v1437 = vpop.f32.mrb[0].mxu0
      %v1438 = vadd.f32 0.0, %v1437
      %v1439 = vpop.f32.mrb[0].mxu0
      %1440 = vmatprep.mubr.bf16.mxu0 0
      %1441 = vmatmul.mubr.bf16.gmra.mrb[0].mxu0 %v1328
      %v1442 = vpop.f32.mrb[0].mxu0
      %v1443 = vadd.f32 0.0, %v1442
      %v1444 = vpop.f32.mrb[0].mxu0
      %v1445 = vpop.f32.mrb[0].mxu0
      %v1446 = vadd.f32 0.0, %v1445
      %v1447 = vpop.f32.mrb[0].mxu0
      %1448 = vmatprep.mubr.bf16.mxu0 0
      %1449 = vmatmul.mubr.bf16.gmra.mrb[0].mxu0 %v1331
      %v1450 = vpop.f32.mrb[0].mxu0
      %v1451 = vadd.f32 0.0, %v1450
      %v1452 = vpop.f32.mrb[0].mxu0
      %v1453 = vpop.f32.mrb[0].mxu0
      %v1454 = vadd.f32 0.0, %v1453
      %v1455 = vpop.f32.mrb[0].mxu0
      %1456 = vmatprep.mubr.bf16.mxu0 0
      %1457 = vmatmul.mubr.bf16.gmra.mrb[0].mxu0 %v1334
      %v1458 = vpop.f32.mrb[0].mxu0
      %v1459 = vadd.f32 0.0, %v1458
      %v1460 = vpop.f32.mrb[0].mxu0
      %v1461 = vpop.f32.mrb[0].mxu0
      %v1462 = vadd.f32 0.0, %v1461
      %v1463 = vpop.f32.mrb[0].mxu0
      %1464 = vmatprep.mubr.bf16.mxu0 0
      %1465 = vmatmul.mubr.bf16.gmra.mrb[0].mxu0 %v1337
      %v1466 = vpop.f32.mrb[0].mxu0
      %v1467 = vadd.f32 0.0, %v1466
      %v1468 = vpop.f32.mrb[0].mxu0
      %v1469 = vpop.f32.mrb[0].mxu0
      %v1470 = vadd.f32 0.0, %v1469
      %v1471 = vpop.f32.mrb[0].mxu0
      %1472 = vmatprep.mubr.bf16.mxu0 0
      %1473 = vmatmul.mubr.bf16.gmra.mrb[0].mxu0 %v1340
      %v1474 = vpop.f32.mrb[0].mxu0
      %v1475 = vadd.f32 0.0, %v1474
      %v1476 = vpop.f32.mrb[0].mxu0
      %v1477 = vpop.f32.mrb[0].mxu0
      %v1478 = vadd.f32 0.0, %v1477
      %v1479 = vpop.f32.mrb[0].mxu0
      %1480 = vmatprep.mubr.bf16.mxu0 0
      %1481 = vmatmul.mubr.bf16.gmra.mrb[0].mxu0 %v1343
      %v1482 = vpop.f32.mrb[0].mxu0
      %v1483 = vadd.f32 0.0, %v1482
      %v1484 = vpop.f32.mrb[0].mxu0
      %v1485 = vpop.f32.mrb[0].mxu0
      %v1486 = vadd.f32 0.0, %v1485
      %v1487 = vpop.f32.mrb[0].mxu0
      %1488 = vmatprep.mubr.bf16.mxu0 0
      %1489 = vmatmul.mubr.bf16.gmra.mrb[0].mxu0 %v1346
      %v1490 = vpop.f32.mrb[0].mxu0
      %v1491 = vadd.f32 0.0, %v1490
      %v1492 = vpop.f32.mrb[0].mxu0
      %v1493 = vpop.f32.mrb[0].mxu0
      %v1494 = vadd.f32 0.0, %v1493
      %v1495 = vpop.f32.mrb[0].mxu0
      %1496 = vmatprep.mubr.bf16.mxu0 0
      %1497 = vmatmul.mubr.bf16.gmra.mrb[0].mxu0 %v1349
      %v1498 = vpop.f32.mrb[0].mxu0
      %v1499 = vadd.f32 0.0, %v1498
      %v1500 = vpop.f32.mrb[0].mxu0
      %v1501 = vpop.f32.mrb[0].mxu0
      %v1502 = vadd.f32 0.0, %v1501
      %v1503 = vpop.f32.mrb[0].mxu0
      %1504 = vmatprep.mubr.bf16.mxu0 0
      %1505 = vmatmul.mubr.bf16.gmra.mrb[0].mxu0 %v1352
      %v1506 = vpop.f32.mrb[0].mxu0
      %v1507 = vadd.f32 0.0, %v1506
      %v1508 = vpop.f32.mrb[0].mxu0
      %v1509 = vpop.f32.mrb[0].mxu0
      %v1510 = vadd.f32 0.0, %v1509
      %v1511 = vpop.f32.mrb[0].mxu0
      %1512 = vmatprep.mubr.bf16.mxu0 0
      %1513 = vmatmul.mubr.bf16.gmra.mrb[0].mxu0 %v1355
      %v1514 = vpop.f32.mrb[0].mxu0
      %v1515 = vadd.f32 0.0, %v1514
      %v1516 = vpop.f32.mrb[0].mxu0
      %v1517 = vpop.f32.mrb[0].mxu0
      %v1518 = vadd.f32 0.0, %v1517
      %v1519 = vpop.f32.mrb[0].mxu0
      %1520 = vdwg.mxu0
      %v1521 = vld [vmem:[#allocation3] sm:$0xff]
      %v1522 = vld [vmem:[#allocation3 + $0x8] sm:$0xff]
      %v1523 = vld [vmem:[#allocation3 + $0x10] sm:$0xff]
      %v1524 = vld [vmem:[#allocation3 + $0x18] sm:$0xff]
      %v1525 = vld [vmem:[#allocation3 + $0x20] sm:$0xff]
      %v1526 = vld [vmem:[#allocation3 + $0x28] sm:$0xff]
      %v1527 = vld [vmem:[#allocation3 + $0x30] sm:$0xff]
      %v1528 = vld [vmem:[#allocation3 + $0x38] sm:$0xff]
      %v1529 = vld [vmem:[#allocation3 + $0x40] sm:$0xff]
      %v1530 = vld [vmem:[#allocation3 + $0x48] sm:$0xff]
      %v1531 = vld [vmem:[#allocation3 + $0x50] sm:$0xff]
      %v1532 = vld [vmem:[#allocation3 + $0x58] sm:$0xff]
      %v1533 = vld [vmem:[#allocation3 + $0x60] sm:$0xff]
      %v1534 = vld [vmem:[#allocation3 + $0x68] sm:$0xff]
      %v1535 = vld [vmem:[#allocation3 + $0x70] sm:$0xff]
      %v1536 = vld [vmem:[#allocation3 + $0x78] sm:$0xff]
      %v1537 = vld [vmem:[#allocation3 + $0x80] sm:$0xff]
      %v1538 = vld [vmem:[#allocation3 + $0x88] sm:$0xff]
      %v1539 = vld [vmem:[#allocation3 + $0x90] sm:$0xff]
      %v1540 = vld [vmem:[#allocation3 + $0x98] sm:$0xff]
      %v1541 = vld [vmem:[#allocation3 + $0xa0] sm:$0xff]
      %v1542 = vld [vmem:[#allocation3 + $0xa8] sm:$0xff]
      %v1543 = vld [vmem:[#allocation3 + $0xb0] sm:$0xff]
      %v1544 = vld [vmem:[#allocation3 + $0xb8] sm:$0xff]
      %v1545 = vld [vmem:[#allocation3 + $0xc0] sm:$0xff]
      %v1546 = vld [vmem:[#allocation3 + $0xc8] sm:$0xff]
      %v1547 = vld [vmem:[#allocation3 + $0xd0] sm:$0xff]
      %v1548 = vld [vmem:[#allocation3 + $0xd8] sm:$0xff]
      %v1549 = vld [vmem:[#allocation3 + $0xe0] sm:$0xff]
      %v1550 = vld [vmem:[#allocation3 + $0xe8] sm:$0xff]
      %v1551 = vld [vmem:[#allocation3 + $0xf0] sm:$0xff]
      %v1552 = vld [vmem:[#allocation3 + $0xf8] sm:$0xff]
      %v1553 = vadd.f32 %v1521, %v1395
      %v1554 = vadd.f32 %v1522, %v1398
      %v1555 = vadd.f32 %v1523, %v1403
      %v1556 = vadd.f32 %v1524, %v1406
      %v1557 = vadd.f32 %v1525, %v1411
      %v1558 = vadd.f32 %v1526, %v1414
      %v1559 = vadd.f32 %v1527, %v1419
      %v1560 = vadd.f32 %v1528, %v1422
      %v1561 = vadd.f32 %v1529, %v1427
      %v1562 = vadd.f32 %v1530, %v1430
      %v1563 = vadd.f32 %v1531, %v1435
      %v1564 = vadd.f32 %v1532, %v1438
      %v1565 = vadd.f32 %v1533, %v1443
      %v1566 = vadd.f32 %v1534, %v1446
      %v1567 = vadd.f32 %v1535, %v1451
      %v1568 = vadd.f32 %v1536, %v1454
      %v1569 = vadd.f32 %v1537, %v1459
      %v1570 = vadd.f32 %v1538, %v1462
      %v1571 = vadd.f32 %v1539, %v1467
      %v1572 = vadd.f32 %v1540, %v1470
      %v1573 = vadd.f32 %v1541, %v1475
      %v1574 = vadd.f32 %v1542, %v1478
      %v1575 = vadd.f32 %v1543, %v1483
      %v1576 = vadd.f32 %v1544, %v1486
      %v1577 = vadd.f32 %v1545, %v1491
      %v1578 = vadd.f32 %v1546, %v1494
      %v1579 = vadd.f32 %v1547, %v1499
      %v1580 = vadd.f32 %v1548, %v1502
      %v1581 = vadd.f32 %v1549, %v1507
      %v1582 = vadd.f32 %v1550, %v1510
      %v1583 = vadd.f32 %v1551, %v1515
      %v1584 = vadd.f32 %v1552, %v1518
      %1585 = vst.msk [vmem:[#allocation3] sm:$0xff] %vm877, %v1553
      %1586 = vst.msk [vmem:[#allocation3 + $0x8] sm:$0xff] %vm877, %v1554
      %1587 = vst.msk [vmem:[#allocation3 + $0x10] sm:$0xff] %vm877, %v1555
      %1588 = vst.msk [vmem:[#allocation3 + $0x18] sm:$0xff] %vm877, %v1556
      %1589 = vst.msk [vmem:[#allocation3 + $0x20] sm:$0xff] %vm877, %v1557
      %1590 = vst.msk [vmem:[#allocation3 + $0x28] sm:$0xff] %vm877, %v1558
      %1591 = vst.msk [vmem:[#allocation3 + $0x30] sm:$0xff] %vm877, %v1559
      %1592 = vst.msk [vmem:[#allocation3 + $0x38] sm:$0xff] %vm877, %v1560
      %1593 = vst.msk [vmem:[#allocation3 + $0x40] sm:$0xff] %vm877, %v1561
      %1594 = vst.msk [vmem:[#allocation3 + $0x48] sm:$0xff] %vm877, %v1562
      %1595 = vst.msk [vmem:[#allocation3 + $0x50] sm:$0xff] %vm877, %v1563
      %1596 = vst.msk [vmem:[#allocation3 + $0x58] sm:$0xff] %vm877, %v1564
      %1597 = vst.msk [vmem:[#allocation3 + $0x60] sm:$0xff] %vm877, %v1565
      %1598 = vst.msk [vmem:[#allocation3 + $0x68] sm:$0xff] %vm877, %v1566
      %1599 = vst.msk [vmem:[#allocation3 + $0x70] sm:$0xff] %vm877, %v1567
      %1600 = vst.msk [vmem:[#allocation3 + $0x78] sm:$0xff] %vm877, %v1568
      %1601 = vst.msk [vmem:[#allocation3 + $0x80] sm:$0xff] %vm877, %v1569
      %1602 = vst.msk [vmem:[#allocation3 + $0x88] sm:$0xff] %vm877, %v1570
      %1603 = vst.msk [vmem:[#allocation3 + $0x90] sm:$0xff] %vm877, %v1571
      %1604 = vst.msk [vmem:[#allocation3 + $0x98] sm:$0xff] %vm877, %v1572
      %1605 = vst.msk [vmem:[#allocation3 + $0xa0] sm:$0xff] %vm877, %v1573
      %1606 = vst.msk [vmem:[#allocation3 + $0xa8] sm:$0xff] %vm877, %v1574
      %1607 = vst.msk [vmem:[#allocation3 + $0xb0] sm:$0xff] %vm877, %v1575
      %1608 = vst.msk [vmem:[#allocation3 + $0xb8] sm:$0xff] %vm877, %v1576
      %1609 = vst.msk [vmem:[#allocation3 + $0xc0] sm:$0xff] %vm877, %v1577
      %1610 = vst.msk [vmem:[#allocation3 + $0xc8] sm:$0xff] %vm877, %v1578
      %1611 = vst.msk [vmem:[#allocation3 + $0xd0] sm:$0xff] %vm877, %v1579
      %1612 = vst.msk [vmem:[#allocation3 + $0xd8] sm:$0xff] %vm877, %v1580
      %1613 = vst.msk [vmem:[#allocation3 + $0xe0] sm:$0xff] %vm877, %v1581
      %1614 = vst.msk [vmem:[#allocation3 + $0xe8] sm:$0xff] %vm877, %v1582
      %1615 = vst.msk [vmem:[#allocation3 + $0xf0] sm:$0xff] %vm877, %v1583
      %1616 = vst.msk [vmem:[#allocation3 + $0xf8] sm:$0xff] %vm877, %v1584
      %s1617 = scalar_lea.vmem [#allocation2], 16
      %v1618 = vld [vmem:[%s1617] sm:$0xff]
      %v1619 = vld [vmem:[%s1617 + $0x8] sm:$0xff]
      %v1620 = vld [vmem:[%s1617 + $0x10] sm:$0xff]
      %v1621 = vld [vmem:[%s1617 + $0x18] sm:$0xff]
      %v1622 = vld [vmem:[%s1617 + $0x20] sm:$0xff]
      %v1623 = vld [vmem:[%s1617 + $0x28] sm:$0xff]
      %v1624 = vld [vmem:[%s1617 + $0x30] sm:$0xff]
      %v1625 = vld [vmem:[%s1617 + $0x38] sm:$0xff]
      %v1626 = vld [vmem:[%s1617 + $0x40] sm:$0xff]
      %v1627 = vld [vmem:[%s1617 + $0x48] sm:$0xff]
      %v1628 = vld [vmem:[%s1617 + $0x50] sm:$0xff]
      %v1629 = vld [vmem:[%s1617 + $0x58] sm:$0xff]
      %v1630 = vld [vmem:[%s1617 + $0x60] sm:$0xff]
      %v1631 = vld [vmem:[%s1617 + $0x68] sm:$0xff]
      %v1632 = vld [vmem:[%s1617 + $0x70] sm:$0xff]
      %v1633 = vld [vmem:[%s1617 + $0x78] sm:$0xff]
      %s1634 = scalar_lea.vmem %s3, 24
      %v1635 = vld [vmem:[%s1634] sm:$0xf]
      %v1636 = vld [vmem:[%s1634 + $0x4] sm:$0xf]
      %v1637 = vld [vmem:[%s1634 + $0x8] sm:$0xf]
      %v1641 = vunpack.c.l.b16 %v1635
      %v1642 = vunpack.c.l.b16 %v1636
      %v1643 = vunpack.c.l.b16 %v1637
      %v1644 = vpack.c.b16 %v1642, %v1641
      %v1645 = vpack.c.b16 %v1643, %v1643
      %v1648 = vsel %vm987, %v1618, 0
      %v1651 = vsel %vm987, %v1619, 0
      %v1654 = vsel %vm987, %v1620, 0
      %v1657 = vsel %vm987, %v1621, 0
      %v1660 = vsel %vm987, %v1622, 0
      %v1663 = vsel %vm987, %v1623, 0
      %v1666 = vsel %vm987, %v1624, 0
      %v1669 = vsel %vm987, %v1625, 0
      %v1672 = vsel %vm987, %v1626, 0
      %v1675 = vsel %vm987, %v1627, 0
      %v1678 = vsel %vm987, %v1628, 0
      %v1681 = vsel %vm987, %v1629, 0
      %v1684 = vsel %vm987, %v1630, 0
      %v1687 = vsel %vm987, %v1631, 0
      %v1690 = vsel %vm987, %v1632, 0
      %v1693 = vsel %vm987, %v1633, 0
      %v1696 = vsel %vm1082, %v1645, 0
      %1698 = vmatprep.subr.bf16.mxu0 0
      %1699 = vmatpush1.bf16.msra.mxu0 %v1644
      %1700 = vmatprep.subr.bf16.mxu0 0
      %1701 = vmatpush1.bf16.msra.mxu0 %v1696
      %1702 = vmatprep.subr.bf16.mxu0 0
      %1703 = vmatpush1.bf16.msra.mxu0 0
      %1704 = vmatprep.subr.bf16.mxu0 0
      %1705 = vmatpush1.bf16.msra.mxu0 0
      %1706 = vmatprep.subr.bf16.mxu0 0
      %1707 = vmatpush1.bf16.msra.mxu0 0
      %1708 = vmatprep.subr.bf16.mxu0 0
      %1709 = vmatpush1.bf16.msra.mxu0 0
      %1710 = vmatprep.subr.bf16.mxu0 0
      %1711 = vmatpush1.bf16.msra.mxu0 0
      %1712 = vmatprep.subr.bf16.mxu0 0
      %1713 = vmatpush1.bf16.msra.mxu0 0
      %1714 = vmatprep.subr.bf16.mxu0 0
      %1715 = vmatpush1.bf16.msra.mxu0 0
      %1716 = vmatprep.subr.bf16.mxu0 0
      %1717 = vmatpush1.bf16.msra.mxu0 0
      %1718 = vmatprep.subr.bf16.mxu0 0
      %1719 = vmatpush1.bf16.msra.mxu0 0
      %1720 = vmatprep.subr.bf16.mxu0 0
      %1721 = vmatpush1.bf16.msra.mxu0 0
      %1722 = vmatprep.subr.bf16.mxu0 0
      %1723 = vmatpush1.bf16.msra.mxu0 0
      %1724 = vmatprep.subr.bf16.mxu0 0
      %1725 = vmatpush1.bf16.msra.mxu0 0
      %1726 = vmatprep.subr.bf16.mxu0 0
      %1727 = vmatpush1.bf16.msra.mxu0 0
      %1728 = vmatprep.subr.bf16.mxu0 0
      %1729 = vmatpush1.bf16.msra.mxu0 0
      %1730 = vmatprep.mubr.bf16.mxu0 0
      %1731 = vmatmul.mubr.bf16.gmra.mrb[0].mxu0 %v1648
      %v1732 = vpop.f32.mrb[0].mxu0
      %v1733 = vadd.f32 0.0, %v1732
      %v1734 = vpop.f32.mrb[0].mxu0
      %v1735 = vpop.f32.mrb[0].mxu0
      %v1736 = vadd.f32 0.0, %v1735
      %v1737 = vpop.f32.mrb[0].mxu0
      %1738 = vmatprep.mubr.bf16.mxu0 0
      %1739 = vmatmul.mubr.bf16.gmra.mrb[0].mxu0 %v1651
      %v1740 = vpop.f32.mrb[0].mxu0
      %v1741 = vadd.f32 0.0, %v1740
      %v1742 = vpop.f32.mrb[0].mxu0
      %v1743 = vpop.f32.mrb[0].mxu0
      %v1744 = vadd.f32 0.0, %v1743
      %v1745 = vpop.f32.mrb[0].mxu0
      %1746 = vmatprep.mubr.bf16.mxu0 0
      %1747 = vmatmul.mubr.bf16.gmra.mrb[0].mxu0 %v1654
      %v1748 = vpop.f32.mrb[0].mxu0
      %v1749 = vadd.f32 0.0, %v1748
      %v1750 = vpop.f32.mrb[0].mxu0
      %v1751 = vpop.f32.mrb[0].mxu0
      %v1752 = vadd.f32 0.0, %v1751
      %v1753 = vpop.f32.mrb[0].mxu0
      %1754 = vmatprep.mubr.bf16.mxu0 0
      %1755 = vmatmul.mubr.bf16.gmra.mrb[0].mxu0 %v1657
      %v1756 = vpop.f32.mrb[0].mxu0
      %v1757 = vadd.f32 0.0, %v1756
      %v1758 = vpop.f32.mrb[0].mxu0
      %v1759 = vpop.f32.mrb[0].mxu0
      %v1760 = vadd.f32 0.0, %v1759
      %v1761 = vpop.f32.mrb[0].mxu0
      %1762 = vmatprep.mubr.bf16.mxu0 0
      %1763 = vmatmul.mubr.bf16.gmra.mrb[0].mxu0 %v1660
      %v1764 = vpop.f32.mrb[0].mxu0
      %v1765 = vadd.f32 0.0, %v1764
      %v1766 = vpop.f32.mrb[0].mxu0
      %v1767 = vpop.f32.mrb[0].mxu0
      %v1768 = vadd.f32 0.0, %v1767
      %v1769 = vpop.f32.mrb[0].mxu0
      %1770 = vmatprep.mubr.bf16.mxu0 0
      %1771 = vmatmul.mubr.bf16.gmra.mrb[0].mxu0 %v1663
      %v1772 = vpop.f32.mrb[0].mxu0
      %v1773 = vadd.f32 0.0, %v1772
      %v1774 = vpop.f32.mrb[0].mxu0
      %v1775 = vpop.f32.mrb[0].mxu0
      %v1776 = vadd.f32 0.0, %v1775
      %v1777 = vpop.f32.mrb[0].mxu0
      %1778 = vmatprep.mubr.bf16.mxu0 0
      %1779 = vmatmul.mubr.bf16.gmra.mrb[0].mxu0 %v1666
      %v1780 = vpop.f32.mrb[0].mxu0
      %v1781 = vadd.f32 0.0, %v1780
      %v1782 = vpop.f32.mrb[0].mxu0
      %v1783 = vpop.f32.mrb[0].mxu0
      %v1784 = vadd.f32 0.0, %v1783
      %v1785 = vpop.f32.mrb[0].mxu0
      %1786 = vmatprep.mubr.bf16.mxu0 0
      %1787 = vmatmul.mubr.bf16.gmra.mrb[0].mxu0 %v1669
      %v1788 = vpop.f32.mrb[0].mxu0
      %v1789 = vadd.f32 0.0, %v1788
      %v1790 = vpop.f32.mrb[0].mxu0
      %v1791 = vpop.f32.mrb[0].mxu0
      %v1792 = vadd.f32 0.0, %v1791
      %v1793 = vpop.f32.mrb[0].mxu0
      %1794 = vmatprep.mubr.bf16.mxu0 0
      %1795 = vmatmul.mubr.bf16.gmra.mrb[0].mxu0 %v1672
      %v1796 = vpop.f32.mrb[0].mxu0
      %v1797 = vadd.f32 0.0, %v1796
      %v1798 = vpop.f32.mrb[0].mxu0
      %v1799 = vpop.f32.mrb[0].mxu0
      %v1800 = vadd.f32 0.0, %v1799
      %v1801 = vpop.f32.mrb[0].mxu0
      %1802 = vmatprep.mubr.bf16.mxu0 0
      %1803 = vmatmul.mubr.bf16.gmra.mrb[0].mxu0 %v1675
      %v1804 = vpop.f32.mrb[0].mxu0
      %v1805 = vadd.f32 0.0, %v1804
      %v1806 = vpop.f32.mrb[0].mxu0
      %v1807 = vpop.f32.mrb[0].mxu0
      %v1808 = vadd.f32 0.0, %v1807
      %v1809 = vpop.f32.mrb[0].mxu0
      %1810 = vmatprep.mubr.bf16.mxu0 0
      %1811 = vmatmul.mubr.bf16.gmra.mrb[0].mxu0 %v1678
      %v1812 = vpop.f32.mrb[0].mxu0
      %v1813 = vadd.f32 0.0, %v1812
      %v1814 = vpop.f32.mrb[0].mxu0
      %v1815 = vpop.f32.mrb[0].mxu0
      %v1816 = vadd.f32 0.0, %v1815
      %v1817 = vpop.f32.mrb[0].mxu0
      %1818 = vmatprep.mubr.bf16.mxu0 0
      %1819 = vmatmul.mubr.bf16.gmra.mrb[0].mxu0 %v1681
      %v1820 = vpop.f32.mrb[0].mxu0
      %v1821 = vadd.f32 0.0, %v1820
      %v1822 = vpop.f32.mrb[0].mxu0
      %v1823 = vpop.f32.mrb[0].mxu0
      %v1824 = vadd.f32 0.0, %v1823
      %v1825 = vpop.f32.mrb[0].mxu0
      %1826 = vmatprep.mubr.bf16.mxu0 0
      %1827 = vmatmul.mubr.bf16.gmra.mrb[0].mxu0 %v1684
      %v1828 = vpop.f32.mrb[0].mxu0
      %v1829 = vadd.f32 0.0, %v1828
      %v1830 = vpop.f32.mrb[0].mxu0
      %v1831 = vpop.f32.mrb[0].mxu0
      %v1832 = vadd.f32 0.0, %v1831
      %v1833 = vpop.f32.mrb[0].mxu0
      %1834 = vmatprep.mubr.bf16.mxu0 0
      %1835 = vmatmul.mubr.bf16.gmra.mrb[0].mxu0 %v1687
      %v1836 = vpop.f32.mrb[0].mxu0
      %v1837 = vadd.f32 0.0, %v1836
      %v1838 = vpop.f32.mrb[0].mxu0
      %v1839 = vpop.f32.mrb[0].mxu0
      %v1840 = vadd.f32 0.0, %v1839
      %v1841 = vpop.f32.mrb[0].mxu0
      %1842 = vmatprep.mubr.bf16.mxu0 0
      %1843 = vmatmul.mubr.bf16.gmra.mrb[0].mxu0 %v1690
      %v1844 = vpop.f32.mrb[0].mxu0
      %v1845 = vadd.f32 0.0, %v1844
      %v1846 = vpop.f32.mrb[0].mxu0
      %v1847 = vpop.f32.mrb[0].mxu0
      %v1848 = vadd.f32 0.0, %v1847
      %v1849 = vpop.f32.mrb[0].mxu0
      %1850 = vmatprep.mubr.bf16.mxu0 0
      %1851 = vmatmul.mubr.bf16.gmra.mrb[0].mxu0 %v1693
      %v1852 = vpop.f32.mrb[0].mxu0
      %v1853 = vadd.f32 0.0, %v1852
      %v1854 = vpop.f32.mrb[0].mxu0
      %v1855 = vpop.f32.mrb[0].mxu0
      %v1856 = vadd.f32 0.0, %v1855
      %v1857 = vpop.f32.mrb[0].mxu0
      %1858 = vdwg.mxu0
      %v1859 = vld [vmem:[#allocation3] sm:$0xff]
      %v1860 = vld [vmem:[#allocation3 + $0x8] sm:$0xff]
      %v1861 = vld [vmem:[#allocation3 + $0x10] sm:$0xff]
      %v1862 = vld [vmem:[#allocation3 + $0x18] sm:$0xff]
      %v1863 = vld [vmem:[#allocation3 + $0x20] sm:$0xff]
      %v1864 = vld [vmem:[#allocation3 + $0x28] sm:$0xff]
      %v1865 = vld [vmem:[#allocation3 + $0x30] sm:$0xff]
      %v1866 = vld [vmem:[#allocation3 + $0x38] sm:$0xff]
      %v1867 = vld [vmem:[#allocation3 + $0x40] sm:$0xff]
      %v1868 = vld [vmem:[#allocation3 + $0x48] sm:$0xff]
      %v1869 = vld [vmem:[#allocation3 + $0x50] sm:$0xff]
      %v1870 = vld [vmem:[#allocation3 + $0x58] sm:$0xff]
      %v1871 = vld [vmem:[#allocation3 + $0x60] sm:$0xff]
      %v1872 = vld [vmem:[#allocation3 + $0x68] sm:$0xff]
      %v1873 = vld [vmem:[#allocation3 + $0x70] sm:$0xff]
      %v1874 = vld [vmem:[#allocation3 + $0x78] sm:$0xff]
      %v1875 = vld [vmem:[#allocation3 + $0x80] sm:$0xff]
      %v1876 = vld [vmem:[#allocation3 + $0x88] sm:$0xff]
      %v1877 = vld [vmem:[#allocation3 + $0x90] sm:$0xff]
      %v1878 = vld [vmem:[#allocation3 + $0x98] sm:$0xff]
      %v1879 = vld [vmem:[#allocation3 + $0xa0] sm:$0xff]
      %v1880 = vld [vmem:[#allocation3 + $0xa8] sm:$0xff]
      %v1881 = vld [vmem:[#allocation3 + $0xb0] sm:$0xff]
      %v1882 = vld [vmem:[#allocation3 + $0xb8] sm:$0xff]
      %v1883 = vld [vmem:[#allocation3 + $0xc0] sm:$0xff]
      %v1884 = vld [vmem:[#allocation3 + $0xc8] sm:$0xff]
      %v1885 = vld [vmem:[#allocation3 + $0xd0] sm:$0xff]
      %v1886 = vld [vmem:[#allocation3 + $0xd8] sm:$0xff]
      %v1887 = vld [vmem:[#allocation3 + $0xe0] sm:$0xff]
      %v1888 = vld [vmem:[#allocation3 + $0xe8] sm:$0xff]
      %v1889 = vld [vmem:[#allocation3 + $0xf0] sm:$0xff]
      %v1890 = vld [vmem:[#allocation3 + $0xf8] sm:$0xff]
      %v1891 = vadd.f32 %v1859, %v1733
      %v1892 = vadd.f32 %v1860, %v1736
      %v1893 = vadd.f32 %v1861, %v1741
      %v1894 = vadd.f32 %v1862, %v1744
      %v1895 = vadd.f32 %v1863, %v1749
      %v1896 = vadd.f32 %v1864, %v1752
      %v1897 = vadd.f32 %v1865, %v1757
      %v1898 = vadd.f32 %v1866, %v1760
      %v1899 = vadd.f32 %v1867, %v1765
      %v1900 = vadd.f32 %v1868, %v1768
      %v1901 = vadd.f32 %v1869, %v1773
      %v1902 = vadd.f32 %v1870, %v1776
      %v1903 = vadd.f32 %v1871, %v1781
      %v1904 = vadd.f32 %v1872, %v1784
      %v1905 = vadd.f32 %v1873, %v1789
      %v1906 = vadd.f32 %v1874, %v1792
      %v1907 = vadd.f32 %v1875, %v1797
      %v1908 = vadd.f32 %v1876, %v1800
      %v1909 = vadd.f32 %v1877, %v1805
      %v1910 = vadd.f32 %v1878, %v1808
      %v1911 = vadd.f32 %v1879, %v1813
      %v1912 = vadd.f32 %v1880, %v1816
      %v1913 = vadd.f32 %v1881, %v1821
      %v1914 = vadd.f32 %v1882, %v1824
      %v1915 = vadd.f32 %v1883, %v1829
      %v1916 = vadd.f32 %v1884, %v1832
      %v1917 = vadd.f32 %v1885, %v1837
      %v1918 = vadd.f32 %v1886, %v1840
      %v1919 = vadd.f32 %v1887, %v1845
      %v1920 = vadd.f32 %v1888, %v1848
      %v1921 = vadd.f32 %v1889, %v1853
      %v1922 = vadd.f32 %v1890, %v1856
      %1923 = vst.msk [vmem:[#allocation3] sm:$0xff] %vm877, %v1891
      %1924 = vst.msk [vmem:[#allocation3 + $0x8] sm:$0xff] %vm877, %v1892
      %1925 = vst.msk [vmem:[#allocation3 + $0x10] sm:$0xff] %vm877, %v1893
      %1926 = vst.msk [vmem:[#allocation3 + $0x18] sm:$0xff] %vm877, %v1894
      %1927 = vst.msk [vmem:[#allocation3 + $0x20] sm:$0xff] %vm877, %v1895
      %1928 = vst.msk [vmem:[#allocation3 + $0x28] sm:$0xff] %vm877, %v1896
      %1929 = vst.msk [vmem:[#allocation3 + $0x30] sm:$0xff] %vm877, %v1897
      %1930 = vst.msk [vmem:[#allocation3 + $0x38] sm:$0xff] %vm877, %v1898
      %1931 = vst.msk [vmem:[#allocation3 + $0x40] sm:$0xff] %vm877, %v1899
      %1932 = vst.msk [vmem:[#allocation3 + $0x48] sm:$0xff] %vm877, %v1900
      %1933 = vst.msk [vmem:[#allocation3 + $0x50] sm:$0xff] %vm877, %v1901
      %1934 = vst.msk [vmem:[#allocation3 + $0x58] sm:$0xff] %vm877, %v1902
      %1935 = vst.msk [vmem:[#allocation3 + $0x60] sm:$0xff] %vm877, %v1903
      %1936 = vst.msk [vmem:[#allocation3 + $0x68] sm:$0xff] %vm877, %v1904
      %1937 = vst.msk [vmem:[#allocation3 + $0x70] sm:$0xff] %vm877, %v1905
      %1938 = vst.msk [vmem:[#allocation3 + $0x78] sm:$0xff] %vm877, %v1906
      %1939 = vst.msk [vmem:[#allocation3 + $0x80] sm:$0xff] %vm877, %v1907
      %1940 = vst.msk [vmem:[#allocation3 + $0x88] sm:$0xff] %vm877, %v1908
      %1941 = vst.msk [vmem:[#allocation3 + $0x90] sm:$0xff] %vm877, %v1909
      %1942 = vst.msk [vmem:[#allocation3 + $0x98] sm:$0xff] %vm877, %v1910
      %1943 = vst.msk [vmem:[#allocation3 + $0xa0] sm:$0xff] %vm877, %v1911
      %1944 = vst.msk [vmem:[#allocation3 + $0xa8] sm:$0xff] %vm877, %v1912
      %1945 = vst.msk [vmem:[#allocation3 + $0xb0] sm:$0xff] %vm877, %v1913
      %1946 = vst.msk [vmem:[#allocation3 + $0xb8] sm:$0xff] %vm877, %v1914
      %1947 = vst.msk [vmem:[#allocation3 + $0xc0] sm:$0xff] %vm877, %v1915
      %1948 = vst.msk [vmem:[#allocation3 + $0xc8] sm:$0xff] %vm877, %v1916
      %1949 = vst.msk [vmem:[#allocation3 + $0xd0] sm:$0xff] %vm877, %v1917
      %1950 = vst.msk [vmem:[#allocation3 + $0xd8] sm:$0xff] %vm877, %v1918
      %1951 = vst.msk [vmem:[#allocation3 + $0xe0] sm:$0xff] %vm877, %v1919
      %1952 = vst.msk [vmem:[#allocation3 + $0xe8] sm:$0xff] %vm877, %v1920
      %1953 = vst.msk [vmem:[#allocation3 + $0xf0] sm:$0xff] %vm877, %v1921
      %1954 = vst.msk [vmem:[#allocation3 + $0xf8] sm:$0xff] %vm877, %v1922
      %v1955 = vld [vmem:[#allocation3] sm:$0xff]
      %v1956 = vld [vmem:[#allocation3 + $0x8] sm:$0xff]
      %v1957 = vld [vmem:[#allocation3 + $0x10] sm:$0xff]
      %v1958 = vld [vmem:[#allocation3 + $0x18] sm:$0xff]
      %v1959 = vld [vmem:[#allocation3 + $0x20] sm:$0xff]
      %v1960 = vld [vmem:[#allocation3 + $0x28] sm:$0xff]
      %v1961 = vld [vmem:[#allocation3 + $0x30] sm:$0xff]
      %v1962 = vld [vmem:[#allocation3 + $0x38] sm:$0xff]
      %v1963 = vld [vmem:[#allocation3 + $0x40] sm:$0xff]
      %v1964 = vld [vmem:[#allocation3 + $0x48] sm:$0xff]
      %v1965 = vld [vmem:[#allocation3 + $0x50] sm:$0xff]
      %v1966 = vld [vmem:[#allocation3 + $0x58] sm:$0xff]
      %v1967 = vld [vmem:[#allocation3 + $0x60] sm:$0xff]
      %v1968 = vld [vmem:[#allocation3 + $0x68] sm:$0xff]
      %v1969 = vld [vmem:[#allocation3 + $0x70] sm:$0xff]
      %v1970 = vld [vmem:[#allocation3 + $0x78] sm:$0xff]
      %v1971 = vld [vmem:[#allocation3 + $0x80] sm:$0xff]
      %v1972 = vld [vmem:[#allocation3 + $0x88] sm:$0xff]
      %v1973 = vld [vmem:[#allocation3 + $0x90] sm:$0xff]
      %v1974 = vld [vmem:[#allocation3 + $0x98] sm:$0xff]
      %v1975 = vld [vmem:[#allocation3 + $0xa0] sm:$0xff]
      %v1976 = vld [vmem:[#allocation3 + $0xa8] sm:$0xff]
      %v1977 = vld [vmem:[#allocation3 + $0xb0] sm:$0xff]
      %v1978 = vld [vmem:[#allocation3 + $0xb8] sm:$0xff]
      %v1979 = vld [vmem:[#allocation3 + $0xc0] sm:$0xff]
      %v1980 = vld [vmem:[#allocation3 + $0xc8] sm:$0xff]
      %v1981 = vld [vmem:[#allocation3 + $0xd0] sm:$0xff]
      %v1982 = vld [vmem:[#allocation3 + $0xd8] sm:$0xff]
      %v1983 = vld [vmem:[#allocation3 + $0xe0] sm:$0xff]
      %v1984 = vld [vmem:[#allocation3 + $0xe8] sm:$0xff]
      %v1985 = vld [vmem:[#allocation3 + $0xf0] sm:$0xff]
      %v1986 = vld [vmem:[#allocation3 + $0xf8] sm:$0xff]
      %v1987 = vpack.c.bf16 %v1956, %v1955
      %v1988 = vpack.c.bf16 %v1958, %v1957
      %v1989 = vpack.c.bf16 %v1960, %v1959
      %v1990 = vpack.c.bf16 %v1962, %v1961
      %v1991 = vpack.c.bf16 %v1964, %v1963
      %v1992 = vpack.c.bf16 %v1966, %v1965
      %v1993 = vpack.c.bf16 %v1968, %v1967
      %v1994 = vpack.c.bf16 %v1970, %v1969
      %v1995 = vpack.c.bf16 %v1972, %v1971
      %v1996 = vpack.c.bf16 %v1974, %v1973
      %v1997 = vpack.c.bf16 %v1976, %v1975
      %v1998 = vpack.c.bf16 %v1978, %v1977
      %v1999 = vpack.c.bf16 %v1980, %v1979
      %v2000 = vpack.c.bf16 %v1982, %v1981
      %v2001 = vpack.c.bf16 %v1984, %v1983
      %v2002 = vpack.c.bf16 %v1986, %v1985
      %v2019 = vunpack.c.l.b16 %v1987
      %v2020 = vunpack.c.h.b16 %v1987
      %v2021 = vunpack.c.l.b16 %v1988
      %v2022 = vunpack.c.h.b16 %v1988
      %v2023 = vunpack.c.l.b16 %v1989
      %v2024 = vunpack.c.h.b16 %v1989
      %v2025 = vunpack.c.l.b16 %v1990
      %v2026 = vunpack.c.h.b16 %v1990
      %v2027 = vunpack.c.l.b16 %v1991
      %v2028 = vunpack.c.h.b16 %v1991
      %v2029 = vunpack.c.l.b16 %v1992
      %v2030 = vunpack.c.h.b16 %v1992
      %v2031 = vunpack.c.l.b16 %v1993
      %v2032 = vunpack.c.h.b16 %v1993
      %v2033 = vunpack.c.l.b16 %v1994
      %v2034 = vunpack.c.h.b16 %v1994
      %v2035 = vunpack.c.l.b16 %v1995
      %v2036 = vunpack.c.h.b16 %v1995
      %v2037 = vunpack.c.l.b16 %v1996
      %v2038 = vunpack.c.h.b16 %v1996
      %v2039 = vunpack.c.l.b16 %v1997
      %v2040 = vunpack.c.h.b16 %v1997
      %v2041 = vunpack.c.l.b16 %v1998
      %v2042 = vunpack.c.h.b16 %v1998
      %v2043 = vunpack.c.l.b16 %v1999
      %v2044 = vunpack.c.h.b16 %v1999
      %v2045 = vunpack.c.l.b16 %v2000
      %v2046 = vunpack.c.h.b16 %v2000
      %v2047 = vunpack.c.l.b16 %v2001
      %v2048 = vunpack.c.h.b16 %v2001
      %v2049 = vunpack.c.l.b16 %v2002
      %v2050 = vunpack.c.h.b16 %v2002
      %v2051 = vpack.c.b16 %v2019, %v2019
      %v2052 = vpack.c.b16 %v2020, %v2020
      %v2053 = vpack.c.b16 %v2021, %v2021
      %v2054 = vpack.c.b16 %v2022, %v2022
      %v2055 = vpack.c.b16 %v2023, %v2023
      %v2056 = vpack.c.b16 %v2024, %v2024
      %v2057 = vpack.c.b16 %v2025, %v2025
      %v2058 = vpack.c.b16 %v2026, %v2026
      %v2059 = vpack.c.b16 %v2027, %v2027
      %v2060 = vpack.c.b16 %v2028, %v2028
      %v2061 = vpack.c.b16 %v2029, %v2029
      %v2062 = vpack.c.b16 %v2030, %v2030
      %v2063 = vpack.c.b16 %v2031, %v2031
      %v2064 = vpack.c.b16 %v2032, %v2032
      %v2065 = vpack.c.b16 %v2033, %v2033
      %v2066 = vpack.c.b16 %v2034, %v2034
      %v2067 = vpack.c.b16 %v2035, %v2035
      %v2068 = vpack.c.b16 %v2036, %v2036
      %v2069 = vpack.c.b16 %v2037, %v2037
      %v2070 = vpack.c.b16 %v2038, %v2038
      %v2071 = vpack.c.b16 %v2039, %v2039
      %v2072 = vpack.c.b16 %v2040, %v2040
      %v2073 = vpack.c.b16 %v2041, %v2041
      %v2074 = vpack.c.b16 %v2042, %v2042
      %v2075 = vpack.c.b16 %v2043, %v2043
      %v2076 = vpack.c.b16 %v2044, %v2044
      %v2077 = vpack.c.b16 %v2045, %v2045
      %v2078 = vpack.c.b16 %v2046, %v2046
      %v2079 = vpack.c.b16 %v2047, %v2047
      %v2080 = vpack.c.b16 %v2048, %v2048
      %v2081 = vpack.c.b16 %v2049, %v2049
      %v2082 = vpack.c.b16 %v2050, %v2050
      %vm2115 = vcmask 60416
      %2116 = vst.msk [vmem:[%s403] sm:$0xf] %vm2115, %v2051
      %2117 = vst.msk [vmem:[%s403 + $0x4] sm:$0xf] %vm2115, %v2052
      %2118 = vst.msk [vmem:[%s403 + $0x8] sm:$0xf] %vm2115, %v2053
      %2119 = vst.msk [vmem:[%s403 + $0xc] sm:$0xf] %vm2115, %v2054
      %2120 = vst.msk [vmem:[%s403 + $0x10] sm:$0xf] %vm2115, %v2055
      %2121 = vst.msk [vmem:[%s403 + $0x14] sm:$0xf] %vm2115, %v2056
      %2122 = vst.msk [vmem:[%s403 + $0x18] sm:$0xf] %vm2115, %v2057
      %2123 = vst.msk [vmem:[%s403 + $0x1c] sm:$0xf] %vm2115, %v2058
      %2124 = vst.msk [vmem:[%s403 + $0x20] sm:$0xf] %vm2115, %v2059
      %2125 = vst.msk [vmem:[%s403 + $0x24] sm:$0xf] %vm2115, %v2060
      %2126 = vst.msk [vmem:[%s403 + $0x28] sm:$0xf] %vm2115, %v2061
      %2127 = vst.msk [vmem:[%s403 + $0x2c] sm:$0xf] %vm2115, %v2062
      %2128 = vst.msk [vmem:[%s403 + $0x30] sm:$0xf] %vm2115, %v2063
      %2129 = vst.msk [vmem:[%s403 + $0x34] sm:$0xf] %vm2115, %v2064
      %2130 = vst.msk [vmem:[%s403 + $0x38] sm:$0xf] %vm2115, %v2065
      %2131 = vst.msk [vmem:[%s403 + $0x3c] sm:$0xf] %vm2115, %v2066
      %2132 = vst.msk [vmem:[%s403 + $0x40] sm:$0xf] %vm2115, %v2067
      %2133 = vst.msk [vmem:[%s403 + $0x44] sm:$0xf] %vm2115, %v2068
      %2134 = vst.msk [vmem:[%s403 + $0x48] sm:$0xf] %vm2115, %v2069
      %2135 = vst.msk [vmem:[%s403 + $0x4c] sm:$0xf] %vm2115, %v2070
      %2136 = vst.msk [vmem:[%s403 + $0x50] sm:$0xf] %vm2115, %v2071
      %2137 = vst.msk [vmem:[%s403 + $0x54] sm:$0xf] %vm2115, %v2072
      %2138 = vst.msk [vmem:[%s403 + $0x58] sm:$0xf] %vm2115, %v2073
      %2139 = vst.msk [vmem:[%s403 + $0x5c] sm:$0xf] %vm2115, %v2074
      %2140 = vst.msk [vmem:[%s403 + $0x60] sm:$0xf] %vm2115, %v2075
      %2141 = vst.msk [vmem:[%s403 + $0x64] sm:$0xf] %vm2115, %v2076
      %2142 = vst.msk [vmem:[%s403 + $0x68] sm:$0xf] %vm2115, %v2077
      %2143 = vst.msk [vmem:[%s403 + $0x6c] sm:$0xf] %vm2115, %v2078
      %2144 = vst.msk [vmem:[%s403 + $0x70] sm:$0xf] %vm2115, %v2079
      %2145 = vst.msk [vmem:[%s403 + $0x74] sm:$0xf] %vm2115, %v2080
      %2146 = vst.msk [vmem:[%s403 + $0x78] sm:$0xf] %vm2115, %v2081
      %2147 = vst.msk [vmem:[%s403 + $0x7c] sm:$0xf] %vm2115, %v2082
      %v2148 = vsel %vm877, %v1955, 0.0
      %v2149 = vsel %vm877, %v1956, 0.0
      %v2150 = vadd.f32 %v2148, %v2149
      %v2151 = vsel %vm877, %v1957, 0.0
      %v2152 = vadd.f32 %v2150, %v2151
      %v2153 = vsel %vm877, %v1958, 0.0
      %v2154 = vadd.f32 %v2152, %v2153
      %v2155 = vsel %vm877, %v1959, 0.0
      %v2156 = vadd.f32 %v2154, %v2155
      %v2157 = vsel %vm877, %v1960, 0.0
      %v2158 = vadd.f32 %v2156, %v2157
      %v2159 = vsel %vm877, %v1961, 0.0
      %v2160 = vadd.f32 %v2158, %v2159
      %v2161 = vsel %vm877, %v1962, 0.0
      %v2162 = vadd.f32 %v2160, %v2161
      %v2163 = vsel %vm877, %v1963, 0.0
      %v2164 = vadd.f32 %v2162, %v2163
      %v2165 = vsel %vm877, %v1964, 0.0
      %v2166 = vadd.f32 %v2164, %v2165
      %v2167 = vsel %vm877, %v1965, 0.0
      %v2168 = vadd.f32 %v2166, %v2167
      %v2169 = vsel %vm877, %v1966, 0.0
      %v2170 = vadd.f32 %v2168, %v2169
      %v2171 = vsel %vm877, %v1967, 0.0
      %v2172 = vadd.f32 %v2170, %v2171
      %v2173 = vsel %vm877, %v1968, 0.0
      %v2174 = vadd.f32 %v2172, %v2173
      %v2175 = vsel %vm877, %v1969, 0.0
      %v2176 = vadd.f32 %v2174, %v2175
      %v2177 = vsel %vm877, %v1970, 0.0
      %v2178 = vadd.f32 %v2176, %v2177
      %v2179 = vsel %vm877, %v1971, 0.0
      %v2180 = vadd.f32 %v2178, %v2179
      %v2181 = vsel %vm877, %v1972, 0.0
      %v2182 = vadd.f32 %v2180, %v2181
      %v2183 = vsel %vm877, %v1973, 0.0
      %v2184 = vadd.f32 %v2182, %v2183
      %v2185 = vsel %vm877, %v1974, 0.0
      %v2186 = vadd.f32 %v2184, %v2185
      %v2187 = vsel %vm877, %v1975, 0.0
      %v2188 = vadd.f32 %v2186, %v2187
      %v2189 = vsel %vm877, %v1976, 0.0
      %v2190 = vadd.f32 %v2188, %v2189
      %v2191 = vsel %vm877, %v1977, 0.0
      %v2192 = vadd.f32 %v2190, %v2191
      %v2193 = vsel %vm877, %v1978, 0.0
      %v2194 = vadd.f32 %v2192, %v2193
      %v2195 = vsel %vm877, %v1979, 0.0
      %v2196 = vadd.f32 %v2194, %v2195
      %v2197 = vsel %vm877, %v1980, 0.0
      %v2198 = vadd.f32 %v2196, %v2197
      %v2199 = vsel %vm877, %v1981, 0.0
      %v2200 = vadd.f32 %v2198, %v2199
      %v2201 = vsel %vm877, %v1982, 0.0
      %v2202 = vadd.f32 %v2200, %v2201
      %v2203 = vsel %vm877, %v1983, 0.0
      %v2204 = vadd.f32 %v2202, %v2203
      %v2205 = vsel %vm877, %v1984, 0.0
      %v2206 = vadd.f32 %v2204, %v2205
      %v2207 = vsel %vm877, %v1985, 0.0
      %v2208 = vadd.f32 %v2206, %v2207
      %v2209 = vsel %vm877, %v1986, 0.0
      %v2210 = vadd.f32 %v2208, %v2209
      %v2211 = vrot.slane %v2210, 4
      %v2212 = vadd.f32 %v2210, %v2211
      %v2213 = vrot.slane %v2212, 2
      %v2214 = vadd.f32 %v2212, %v2213
      %v2215 = vrot.slane %v2214, 1
      %v2216 = vadd.f32 %v2214, %v2215
      %v2217 = vmul.f32 %v1955, %v1955
      %v2218 = vmul.f32 %v1956, %v1956
      %v2219 = vmul.f32 %v1957, %v1957
      %v2220 = vmul.f32 %v1958, %v1958
      %v2221 = vmul.f32 %v1959, %v1959
      %v2222 = vmul.f32 %v1960, %v1960
      %v2223 = vmul.f32 %v1961, %v1961
      %v2224 = vmul.f32 %v1962, %v1962
      %v2225 = vmul.f32 %v1963, %v1963
      %v2226 = vmul.f32 %v1964, %v1964
      %v2227 = vmul.f32 %v1965, %v1965
      %v2228 = vmul.f32 %v1966, %v1966
      %v2229 = vmul.f32 %v1967, %v1967
      %v2230 = vmul.f32 %v1968, %v1968
      %v2231 = vmul.f32 %v1969, %v1969
      %v2232 = vmul.f32 %v1970, %v1970
      %v2233 = vmul.f32 %v1971, %v1971
      %v2234 = vmul.f32 %v1972, %v1972
      %v2235 = vmul.f32 %v1973, %v1973
      %v2236 = vmul.f32 %v1974, %v1974
      %v2237 = vmul.f32 %v1975, %v1975
      %v2238 = vmul.f32 %v1976, %v1976
      %v2239 = vmul.f32 %v1977, %v1977
      %v2240 = vmul.f32 %v1978, %v1978
      %v2241 = vmul.f32 %v1979, %v1979
      %v2242 = vmul.f32 %v1980, %v1980
      %v2243 = vmul.f32 %v1981, %v1981
      %v2244 = vmul.f32 %v1982, %v1982
      %v2245 = vmul.f32 %v1983, %v1983
      %v2246 = vmul.f32 %v1984, %v1984
      %v2247 = vmul.f32 %v1985, %v1985
      %v2248 = vmul.f32 %v1986, %v1986
      %v2249 = vsel %vm877, %v2217, 0.0
      %v2250 = vsel %vm877, %v2218, 0.0
      %v2251 = vadd.f32 %v2249, %v2250
      %v2252 = vsel %vm877, %v2219, 0.0
      %v2253 = vadd.f32 %v2251, %v2252
      %v2254 = vsel %vm877, %v2220, 0.0
      %v2255 = vadd.f32 %v2253, %v2254
      %v2256 = vsel %vm877, %v2221, 0.0
      %v2257 = vadd.f32 %v2255, %v2256
      %v2258 = vsel %vm877, %v2222, 0.0
      %v2259 = vadd.f32 %v2257, %v2258
      %v2260 = vsel %vm877, %v2223, 0.0
      %v2261 = vadd.f32 %v2259, %v2260
      %v2262 = vsel %vm877, %v2224, 0.0
      %v2263 = vadd.f32 %v2261, %v2262
      %v2264 = vsel %vm877, %v2225, 0.0
      %v2265 = vadd.f32 %v2263, %v2264
      %v2266 = vsel %vm877, %v2226, 0.0
      %v2267 = vadd.f32 %v2265, %v2266
      %v2268 = vsel %vm877, %v2227, 0.0
      %v2269 = vadd.f32 %v2267, %v2268
      %v2270 = vsel %vm877, %v2228, 0.0
      %v2271 = vadd.f32 %v2269, %v2270
      %v2272 = vsel %vm877, %v2229, 0.0
      %v2273 = vadd.f32 %v2271, %v2272
      %v2274 = vsel %vm877, %v2230, 0.0
      %v2275 = vadd.f32 %v2273, %v2274
      %v2276 = vsel %vm877, %v2231, 0.0
      %v2277 = vadd.f32 %v2275, %v2276
      %v2278 = vsel %vm877, %v2232, 0.0
      %v2279 = vadd.f32 %v2277, %v2278
      %v2280 = vsel %vm877, %v2233, 0.0
      %v2281 = vadd.f32 %v2279, %v2280
      %v2282 = vsel %vm877, %v2234, 0.0
      %v2283 = vadd.f32 %v2281, %v2282
      %v2284 = vsel %vm877, %v2235, 0.0
      %v2285 = vadd.f32 %v2283, %v2284
      %v2286 = vsel %vm877, %v2236, 0.0
      %v2287 = vadd.f32 %v2285, %v2286
      %v2288 = vsel %vm877, %v2237, 0.0
      %v2289 = vadd.f32 %v2287, %v2288
      %v2290 = vsel %vm877, %v2238, 0.0
      %v2291 = vadd.f32 %v2289, %v2290
      %v2292 = vsel %vm877, %v2239, 0.0
      %v2293 = vadd.f32 %v2291, %v2292
      %v2294 = vsel %vm877, %v2240, 0.0
      %v2295 = vadd.f32 %v2293, %v2294
      %v2296 = vsel %vm877, %v2241, 0.0
      %v2297 = vadd.f32 %v2295, %v2296
      %v2298 = vsel %vm877, %v2242, 0.0
      %v2299 = vadd.f32 %v2297, %v2298
      %v2300 = vsel %vm877, %v2243, 0.0
      %v2301 = vadd.f32 %v2299, %v2300
      %v2302 = vsel %vm877, %v2244, 0.0
      %v2303 = vadd.f32 %v2301, %v2302
      %v2304 = vsel %vm877, %v2245, 0.0
      %v2305 = vadd.f32 %v2303, %v2304
      %v2306 = vsel %vm877, %v2246, 0.0
      %v2307 = vadd.f32 %v2305, %v2306
      %v2308 = vsel %vm877, %v2247, 0.0
      %v2309 = vadd.f32 %v2307, %v2308
      %v2310 = vsel %vm877, %v2248, 0.0
      %v2311 = vadd.f32 %v2309, %v2310
      %v2312 = vrot.slane %v2311, 4
      %v2313 = vadd.f32 %v2311, %v2312
      %v2314 = vrot.slane %v2313, 2
      %v2315 = vadd.f32 %v2313, %v2314
      %v2316 = vrot.slane %v2315, 1
      %v2317 = vadd.f32 %v2315, %v2316
      %vm2318 = vcmask 1040384
      %v2319 = vsel %vm2318, %v2216, %v2317
      %vm2320 = vcmask 58368
      %2321 = vst.msk [vmem:[%s411] sm:$0x3] %vm2320, %v2319
      %s2322 = smul.u32 16, %s22
      %p2323 = scmp.lt.s32.totalorder %s21, 1
      %s2324 = scalar_select %p2323, %s21, 1
      %p2325 = scmp.lt.s32.totalorder %s2322, 15
      %s2326 = scalar_select %p2325, %s2322, 15
      %s2327 = smul.addr %s2326, 2
      %s2328 = smul.addr %s2324, 32
      %s2329 = sadd.s32 %s2327, %s2328
      %s2330 = smul.addr %s2329, 4
      %s2331 = scalar_lea.vmem %s4, %s2330
      %p2332 = scmp.lt.s32.totalorder %s21, 1
      %s2333 = scalar_select %p2332, %s21, 1
      %p2334 = scmp.lt.s32.totalorder %s22, 0
      %s2335 = scalar_select %p2334, %s22, 0
      %s2336 = sadd.s32 %s2335, %s2333
      %s2337 = smul.addr %s2336, 2
      %s2338 = scalar_lea.vmem %s5, %s2337
      // Predicated region
      $region37: #{down_block_forward.3} parent=35 // pred_check
        %p2339 = pneg %p170
      $region38: #{down_block_forward.3} parent=35 // pred_check_branch
        %2341 = sbr.rel (%p2339) target = $region40
      $region39: #{down_block_forward.3} parent=35 // pred_region
        %s2342 = smul.u32 16, %s22
      $region40: #{down_block_forward.3} parent=35 // pred_fallthru
        _
      // Predicated region
      $region41: #{down_block_forward.3} parent=35 // pred_check
        %p2343 = pneg %p198
      $region42: #{down_block_forward.3} parent=35 // pred_check_branch
        %2345 = sbr.rel (%p2343) target = $region44
      $region43: #{down_block_forward.3} parent=35 // pred_region
        _
      $region44: #{down_block_forward.3} parent=35 // pred_fallthru
        _
    $region36: #{down_block_forward.3} parent=5 // pred_fallthru
      _
    %p2346 = scmp.le.s32.totalorder 2, %s12
    // Predicated region
    $region45: #{down_block_forward.3} parent=5 // pred_check
      %p2347 = pneg %p2346
    $region46: #{down_block_forward.3} parent=5 // pred_check_branch
      %2349 = sbr.rel (%p2347) target = $region48
    $region47: #{down_block_forward.3} parent=5 // pred_region
      %s2350 = ssub.s32 %s12, 2
      // Predicated region
      $region49: #{down_block_forward.3} parent=47 // pred_check
        %p2351 = pneg %p176
      $region50: #{down_block_forward.3} parent=47 // pred_check_branch
        %2353 = sbr.rel (%p2351) target = $region52
      $region51: #{down_block_forward.3} parent=47 // pred_region
        %s2354 = smul.u32 16, %s24
        %p2355 = scmp.lt.s32.totalorder %s23, 1
        %s2356 = scalar_select %p2355, %s23, 1
        %p2357 = scmp.lt.s32.totalorder %s2354, 15
        %s2358 = scalar_select %p2357, %s2354, 15
        %s2359 = smul.addr %s2358, 2
        %s2360 = smul.addr %s2356, 32
        %s2361 = sadd.s32 %s2359, %s2360
        %s2362 = smul.addr %s2361, 4
        %s2363 = scalar_lea.vmem %s4, %s2362
      $region52: #{down_block_forward.3} parent=47 // pred_fallthru
        _
      // Predicated region
      $region53: #{down_block_forward.3} parent=47 // pred_check
        %p2364 = pneg %p204
      $region54: #{down_block_forward.3} parent=47 // pred_check_branch
        %2366 = sbr.rel (%p2364) target = $region56
      $region55: #{down_block_forward.3} parent=47 // pred_region
        %p2367 = scmp.lt.s32.totalorder %s23, 1
        %s2368 = scalar_select %p2367, %s23, 1
        %p2369 = scmp.lt.s32.totalorder %s24, 0
        %s2370 = scalar_select %p2369, %s24, 0
        %s2371 = sadd.s32 %s2370, %s2368
        %s2372 = smul.addr %s2371, 2
        %s2373 = scalar_lea.vmem %s5, %s2372
      $region56: #{down_block_forward.3} parent=47 // pred_fallthru
        _
    $region48: #{down_block_forward.3} parent=5 // pred_fallthru
      _
  $region6: #{down_block_forward.3} parent=0 // loop_footer
    %s16 = sadd.s32 1, %s12
  $region7: #{down_block_forward.3} parent=0 // loop_footer_branch
    %11 = sbr.rel target = $region3
  $region8: #{down_block_forward.3} parent=0 // loop_exit
    _

// kernel: down_block_forward.4
$region0: #{down_block_forward.4}
  #allocation0 [shape = 'u32[]', space=smem, size = 0x4, offset = 0x4, fixed_abs, tag = 'smem constant byte address 0x4 - core index']
  #allocation1 [shape = 'u32[144,128]{1,0:T(1,128)}', space=vmem, size = 0x12000, scoped, tag = 'internal scratch']
  #allocation2 [shape = 'bf16[18,16,24]{2,1,0:T(16,128)(2,1)}', space=vmem, size = 0x12000, scoped, tag = 'scratch operand']
  #allocation3 [shape = 'f32[256,8]{1,0:T(8,128)}', space=vmem, size = 0x20000, scoped, tag = 'scratch operand']
  %s0 = inlined_call_operand.vmem [shape: bf16[2,16,16,8], index: 0, kind: input, shape index: {}, may-alias: {0,1,2}]
  %s1 = inlined_call_operand.vmem [shape: bf16[2,16,16,8], index: 1, kind: input, shape index: {}, may-alias: {0,1,2}]
  %s2 = inlined_call_operand.vmem [shape: bf16[2,16,16,8], index: 2, kind: input, shape index: {}, may-alias: {0,1,2}]
  %s3 = inlined_call_operand.vmem [shape: bf16[3,24,8], index: 3, kind: input, shape index: {}]
  %s4 = inlined_call_operand.vmem [shape: f32[1,1,1,8], index: 4, kind: input, shape index: {}]
  %s5 = inlined_call_operand.vmem [shape: f32[1,1,1,8], index: 5, kind: input, shape index: {}]
  %s6 = inlined_call_operand.vmem [shape: bf16[2,16,16,8], index: 6, kind: output, shape index: {0}]
  %s7 = inlined_call_operand.vmem [shape: f32[2,1,2,8], index: 7, kind: output, shape index: {1}]
  %8 = xla_tuple %s6, %s7
  %s9 = sld [smem:[#allocation0]]
  $region65: #{down_block_forward.4} parent=0
    _
  %s11 = ssub.s32 1, %s9
  %s12 = scalar_select 0, %s11, %s9
  loop: start=0, step=1, limit=4
  $region2: #{down_block_forward.4} parent=0 // loop_pre_header
    _
  $region3: #{down_block_forward.4} parent=0 // loop_header
    %s14 = sphi 0, %s18
    %p15 = scmp.ge.s32.totalorder %s14, 4
    %s21 = sphi 0, %s33
    %s22 = sphi 0, %s29
    %s23 = sphi 0, %s21
    %s24 = sphi 0, %s22
    %s25 = sphi 0, %s23
    %s26 = sphi 0, %s24
    %s46 = sphi 0, %s48
    %s49 = sphi 0, %s46
    %s50 = sphi 0, %s49
    %s66 = sphi 0, %s50
    %s74 = sphi 0, %s76
    %s77 = sphi 0, %s74
    %s78 = sphi 0, %s77
    %s94 = sphi 0, %s78
    %s110 = sphi 0, %s112
    %s113 = sphi 0, %s110
    %s114 = sphi 0, %s113
    %s130 = sphi 0, %s114
    %s134 = sphi 0, %s134
    %s136 = sphi 0, %s134
    %s137 = sphi 0, %s136
    %s151 = sphi 0, %s137
    %s155 = sphi 0, %s155
    %s157 = sphi 0, %s155
    %s158 = sphi 0, %s157
    %s172 = sphi 0, %s158
    %s176 = sphi 0, %s176
    %s178 = sphi 0, %s176
    %s179 = sphi 0, %s178
    %s193 = sphi 0, %s179
    %s201 = sphi 0, %s203
    %s204 = sphi 0, %s201
    %s205 = sphi 0, %s204
    %s221 = sphi 0, %s205
    %s229 = sphi 0, %s231
    %s232 = sphi 0, %s229
    %s233 = sphi 0, %s232
    %s249 = sphi 0, %s233
  $region4: #{down_block_forward.4} parent=0 // loop_header_branch
    %17 = sbr.rel (%p15) target = $region8
  $region5: #{down_block_forward.4} parent=0 // loop_body
    %s19 = ssub.s32 %s14, 1
    %s20 = ssub.s32 %s14, 2
    %s27 = sadd.s32 1, %s22
    %p28 = scmp.ge.s32.totalorder %s27, 1
    %s29 = scalar_select %p28, 0, %s27
    %s30 = sadd.s32 1, %s21
    %s31 = scalar_select %p28, %s30, %s21
    %p32 = scmp.ge.s32.totalorder %s31, 2
    %s33 = scalar_select %p32, 0, %s31
    %s34 = smul.u32 %s22, 16
    %s35 = ssub.s32 %s34, 1
    %p36 = scmp.gt.s32.totalorder %s35, 0
    %s37 = scalar_select %p36, %s35, 0
    %s38 = smul.u32 %s29, 16
    %s39 = ssub.s32 %s38, 1
    %p40 = scmp.gt.s32.totalorder %s39, 0
    %s41 = scalar_select %p40, %s39, 0
    %s42 = ssub.s32 %s21, %s33
    %s43 = ssub.s32 %s37, %s41
    %s44 = sor.u32 %s42, %s43
    %p45 = scmp.eq.s32.totalorder %s44, 0
    %s47 = sadd.s32 %s46, 1
    %s48 = scalar_select %p45, %s46, %s47
    %p51 = pneg %p45
    %p52 = scmp.eq.s32.totalorder %s14, 1
    %p53 = por %p51, %p52
    %p54 = scmp.ne.s32.totalorder %s46, %s49
    %p55 = scmp.eq.s32.totalorder %s14, 0
    %p56 = por %p54, %p55
    %p57 = scmp.ne.s32.totalorder %s46, %s49
    %p58 = scmp.eq.s32.totalorder %s19, 1
    %p59 = por %p57, %p58
    %p60 = scmp.ne.s32.totalorder %s49, %s50
    %p61 = scmp.eq.s32.totalorder %s19, 0
    %p62 = por %p60, %p61
    %p63 = scmp.ne.s32.totalorder %s49, %s50
    %p64 = scmp.eq.s32.totalorder %s20, 1
    %p65 = por %p63, %p64
    %p67 = scmp.ne.s32.totalorder %s50, %s66
    %p68 = scmp.eq.s32.totalorder %s20, 0
    %p69 = por %p67, %p68
    %s70 = ssub.s32 %s21, %s33
    %s71 = ssub.s32 %s22, %s29
    %s72 = sor.u32 %s70, %s71
    %p73 = scmp.eq.s32.totalorder %s72, 0
    %s75 = sadd.s32 %s74, 1
    %s76 = scalar_select %p73, %s74, %s75
    %p79 = pneg %p73
    %p80 = scmp.eq.s32.totalorder %s14, 1
    %p81 = por %p79, %p80
    %p82 = scmp.ne.s32.totalorder %s74, %s77
    %p83 = scmp.eq.s32.totalorder %s14, 0
    %p84 = por %p82, %p83
    %p85 = scmp.ne.s32.totalorder %s74, %s77
    %p86 = scmp.eq.s32.totalorder %s19, 1
    %p87 = por %p85, %p86
    %p88 = scmp.ne.s32.totalorder %s77, %s78
    %p89 = scmp.eq.s32.totalorder %s19, 0
    %p90 = por %p88, %p89
    %p91 = scmp.ne.s32.totalorder %s77, %s78
    %p92 = scmp.eq.s32.totalorder %s20, 1
    %p93 = por %p91, %p92
    %p95 = scmp.ne.s32.totalorder %s78, %s94
    %p96 = scmp.eq.s32.totalorder %s20, 0
    %p97 = por %p95, %p96
    %s98 = sadd.s32 %s22, 1
    %s99 = smul.u32 %s98, 16
    %p100 = scmp.lt.s32.totalorder %s99, 15
    %s101 = scalar_select %p100, %s99, 15
    %s102 = sadd.s32 %s29, 1
    %s103 = smul.u32 %s102, 16
    %p104 = scmp.lt.s32.totalorder %s103, 15
    %s105 = scalar_select %p104, %s103, 15
    %s106 = ssub.s32 %s21, %s33
    %s107 = ssub.s32 %s101, %s105
    %s108 = sor.u32 %s106, %s107
    %p109 = scmp.eq.s32.totalorder %s108, 0
    %s111 = sadd.s32 %s110, 1
    %s112 = scalar_select %p109, %s110, %s111
    %p115 = pneg %p109
    %p116 = scmp.eq.s32.totalorder %s14, 1
    %p117 = por %p115, %p116
    %p118 = scmp.ne.s32.totalorder %s110, %s113
    %p119 = scmp.eq.s32.totalorder %s14, 0
    %p120 = por %p118, %p119
    %p121 = scmp.ne.s32.totalorder %s110, %s113
    %p122 = scmp.eq.s32.totalorder %s19, 1
    %p123 = por %p121, %p122
    %p124 = scmp.ne.s32.totalorder %s113, %s114
    %p125 = scmp.eq.s32.totalorder %s19, 0
    %p126 = por %p124, %p125
    %p127 = scmp.ne.s32.totalorder %s113, %s114
    %p128 = scmp.eq.s32.totalorder %s20, 1
    %p129 = por %p127, %p128
    %p131 = scmp.ne.s32.totalorder %s114, %s130
    %p132 = scmp.eq.s32.totalorder %s20, 0
    %p133 = por %p131, %p132
    %s135 = sadd.s32 %s134, 1
    %p138 = scmp.eq.s32.totalorder %s14, 1
    %p139 = scmp.ne.s32.totalorder %s134, %s136
    %p140 = scmp.eq.s32.totalorder %s14, 0
    %p141 = por %p139, %p140
    %p142 = scmp.ne.s32.totalorder %s134, %s136
    %p143 = scmp.eq.s32.totalorder %s19, 1
    %p144 = por %p142, %p143
    %p145 = scmp.ne.s32.totalorder %s136, %s137
    %p146 = scmp.eq.s32.totalorder %s19, 0
    %p147 = por %p145, %p146
    %p148 = scmp.ne.s32.totalorder %s136, %s137
    %p149 = scmp.eq.s32.totalorder %s20, 1
    %p150 = por %p148, %p149
    %p152 = scmp.ne.s32.totalorder %s137, %s151
    %p153 = scmp.eq.s32.totalorder %s20, 0
    %p154 = por %p152, %p153
    %s156 = sadd.s32 %s155, 1
    %p159 = scmp.eq.s32.totalorder %s14, 1
    %p160 = scmp.ne.s32.totalorder %s155, %s157
    %p161 = scmp.eq.s32.totalorder %s14, 0
    %p162 = por %p160, %p161
    %p163 = scmp.ne.s32.totalorder %s155, %s157
    %p164 = scmp.eq.s32.totalorder %s19, 1
    %p165 = por %p163, %p164
    %p166 = scmp.ne.s32.totalorder %s157, %s158
    %p167 = scmp.eq.s32.totalorder %s19, 0
    %p168 = por %p166, %p167
    %p169 = scmp.ne.s32.totalorder %s157, %s158
    %p170 = scmp.eq.s32.totalorder %s20, 1
    %p171 = por %p169, %p170
    %p173 = scmp.ne.s32.totalorder %s158, %s172
    %p174 = scmp.eq.s32.totalorder %s20, 0
    %p175 = por %p173, %p174
    %s177 = sadd.s32 %s176, 1
    %p180 = scmp.eq.s32.totalorder %s14, 1
    %p181 = scmp.ne.s32.totalorder %s176, %s178
    %p182 = scmp.eq.s32.totalorder %s14, 0
    %p183 = por %p181, %p182
    %p184 = scmp.ne.s32.totalorder %s176, %s178
    %p185 = scmp.eq.s32.totalorder %s19, 1
    %p186 = por %p184, %p185
    %p187 = scmp.ne.s32.totalorder %s178, %s179
    %p188 = scmp.eq.s32.totalorder %s19, 0
    %p189 = por %p187, %p188
    %p190 = scmp.ne.s32.totalorder %s178, %s179
    %p191 = scmp.eq.s32.totalorder %s20, 1
    %p192 = por %p190, %p191
    %p194 = scmp.ne.s32.totalorder %s179, %s193
    %p195 = scmp.eq.s32.totalorder %s20, 0
    %p196 = por %p194, %p195
    %s197 = ssub.s32 %s21, %s33
    %s198 = ssub.s32 %s22, %s29
    %s199 = sor.u32 %s197, %s198
    %p200 = scmp.eq.s32.totalorder %s199, 0
    %s202 = sadd.s32 %s201, 1
    %s203 = scalar_select %p200, %s201, %s202
    %p206 = pneg %p200
    %p207 = scmp.eq.s32.totalorder %s14, 1
    %p208 = por %p206, %p207
    %p209 = scmp.ne.s32.totalorder %s201, %s204
    %p210 = scmp.eq.s32.totalorder %s14, 0
    %p211 = por %p209, %p210
    %p212 = scmp.ne.s32.totalorder %s201, %s204
    %p213 = scmp.eq.s32.totalorder %s19, 1
    %p214 = por %p212, %p213
    %p215 = scmp.ne.s32.totalorder %s204, %s205
    %p216 = scmp.eq.s32.totalorder %s19, 0
    %p217 = por %p215, %p216
    %p218 = scmp.ne.s32.totalorder %s204, %s205
    %p219 = scmp.eq.s32.totalorder %s20, 1
    %p220 = por %p218, %p219
    %p222 = scmp.ne.s32.totalorder %s205, %s221
    %p223 = scmp.eq.s32.totalorder %s20, 0
    %p224 = por %p222, %p223
    %s225 = ssub.s32 %s21, %s33
    %s226 = ssub.s32 %s22, %s29
    %s227 = sor.u32 %s225, %s226
    %p228 = scmp.eq.s32.totalorder %s227, 0
    %s230 = sadd.s32 %s229, 1
    %s231 = scalar_select %p228, %s229, %s230
    %p234 = pneg %p228
    %p235 = scmp.eq.s32.totalorder %s14, 1
    %p236 = por %p234, %p235
    %p237 = scmp.ne.s32.totalorder %s229, %s232
    %p238 = scmp.eq.s32.totalorder %s14, 0
    %p239 = por %p237, %p238
    %p240 = scmp.ne.s32.totalorder %s229, %s232
    %p241 = scmp.eq.s32.totalorder %s19, 1
    %p242 = por %p240, %p241
    %p243 = scmp.ne.s32.totalorder %s232, %s233
    %p244 = scmp.eq.s32.totalorder %s19, 0
    %p245 = por %p243, %p244
    %p246 = scmp.ne.s32.totalorder %s232, %s233
    %p247 = scmp.eq.s32.totalorder %s20, 1
    %p248 = por %p246, %p247
    %p250 = scmp.ne.s32.totalorder %s233, %s249
    %p251 = scmp.eq.s32.totalorder %s20, 0
    %p252 = por %p250, %p251
    %p253 = scmp.le.s32.totalorder 1, %s14
    %p254 = scmp.lt.s32.totalorder %s14, 3
    %p255 = pnand %p253, %p254
    %p256 = pneg %p255
    // Predicated region
    $region9: #{down_block_forward.4} parent=5 // pred_check
      _
    $region10: #{down_block_forward.4} parent=5 // pred_check_branch
      %258 = sbr.rel (%p255) target = $region12
    $region11: #{down_block_forward.4} parent=5 // pred_region
      %s259 = ssub.s32 %s14, 1
      // Predicated region
      $region13: #{down_block_forward.4} parent=11 // pred_check
        %p260 = pneg %p147
      $region14: #{down_block_forward.4} parent=11 // pred_check_branch
        %262 = sbr.rel (%p260) target = $region16
      $region15: #{down_block_forward.4} parent=11 // pred_region
        _
      $region16: #{down_block_forward.4} parent=11 // pred_fallthru
        _
      // Predicated region
      $region17: #{down_block_forward.4} parent=11 // pred_check
        %p263 = pneg %p168
      $region18: #{down_block_forward.4} parent=11 // pred_check_branch
        %265 = sbr.rel (%p263) target = $region20
      $region19: #{down_block_forward.4} parent=11 // pred_region
        _
      $region20: #{down_block_forward.4} parent=11 // pred_fallthru
        _
      // Predicated region
      $region21: #{down_block_forward.4} parent=11 // pred_check
        %p266 = pneg %p189
      $region22: #{down_block_forward.4} parent=11 // pred_check_branch
        %268 = sbr.rel (%p266) target = $region24
      $region23: #{down_block_forward.4} parent=11 // pred_region
        _
      $region24: #{down_block_forward.4} parent=11 // pred_fallthru
        _
    $region12: #{down_block_forward.4} parent=5 // pred_fallthru
      _
    %p269 = scmp.lt.s32.totalorder %s14, 2
    // Predicated region
    $region25: #{down_block_forward.4} parent=5 // pred_check
      %p270 = pneg %p269
    $region26: #{down_block_forward.4} parent=5 // pred_check_branch
      %272 = sbr.rel (%p270) target = $region28
    $region27: #{down_block_forward.4} parent=5 // pred_region
      // Predicated region
      $region29: #{down_block_forward.4} parent=27 // pred_check
        %p273 = pneg %p56
      $region30: #{down_block_forward.4} parent=27 // pred_check_branch
        %275 = sbr.rel (%p273) target = $region32
      $region31: #{down_block_forward.4} parent=27 // pred_region
        %s276 = smul.u32 %s22, 16
        %s277 = ssub.s32 %s276, 1
        %p278 = scmp.gt.s32.totalorder %s277, 0
        %s279 = scalar_select %p278, %s277, 0
        %p280 = scmp.lt.s32.totalorder %s21, 1
        %s281 = scalar_select %p280, %s21, 1
        %p282 = scmp.lt.s32.totalorder %s279, 15
        %s283 = scalar_select %p282, %s279, 15
        %s284 = smul.addr %s283, 2
        %s285 = smul.addr %s281, 32
        %s286 = sadd.s32 %s284, %s285
        %s287 = smul.addr %s286, 4
        %s288 = scalar_lea.vmem %s0, %s287
        %s289 = smul.u32 %s22, 16
        %s290 = ssub.s32 %s289, 1
        %p291 = scmp.gt.s32.totalorder %s290, 0
        %s292 = scalar_select %p291, %s290, 0
      $region32: #{down_block_forward.4} parent=27 // pred_fallthru
        _
      // Predicated region
      $region33: #{down_block_forward.4} parent=27 // pred_check
        %p293 = pneg %p84
      $region34: #{down_block_forward.4} parent=27 // pred_check_branch
        %295 = sbr.rel (%p293) target = $region36
      $region35: #{down_block_forward.4} parent=27 // pred_region
        %s296 = smul.u32 16, %s22
        %p297 = scmp.lt.s32.totalorder %s21, 1
        %s298 = scalar_select %p297, %s21, 1
        %p299 = scmp.lt.s32.totalorder %s296, 15
        %s300 = scalar_select %p299, %s296, 15
        %s301 = smul.addr %s300, 2
        %s302 = smul.addr %s298, 32
        %s303 = sadd.s32 %s301, %s302
        %s304 = smul.addr %s303, 4
        %s305 = scalar_lea.vmem %s1, %s304
        %s306 = smul.u32 16, %s22
      $region36: #{down_block_forward.4} parent=27 // pred_fallthru
        _
      // Predicated region
      $region37: #{down_block_forward.4} parent=27 // pred_check
        %p307 = pneg %p120
      $region38: #{down_block_forward.4} parent=27 // pred_check_branch
        %309 = sbr.rel (%p307) target = $region40
      $region39: #{down_block_forward.4} parent=27 // pred_region
        %s310 = sadd.s32 %s22, 1
        %s311 = smul.u32 %s310, 16
        %p312 = scmp.lt.s32.totalorder %s311, 15
        %s313 = scalar_select %p312, %s311, 15
        %p314 = scmp.lt.s32.totalorder %s21, 1
        %s315 = scalar_select %p314, %s21, 1
        %p316 = scmp.lt.s32.totalorder %s313, 15
        %s317 = scalar_select %p316, %s313, 15
        %s318 = smul.addr %s317, 2
        %s319 = smul.addr %s315, 32
        %s320 = sadd.s32 %s318, %s319
        %s321 = smul.addr %s320, 4
        %s322 = scalar_lea.vmem %s2, %s321
        %s323 = sadd.s32 %s22, 1
        %s324 = smul.u32 %s323, 16
        %p325 = scmp.lt.s32.totalorder %s324, 15
        %s326 = scalar_select %p325, %s324, 15
      $region40: #{down_block_forward.4} parent=27 // pred_fallthru
        _
    $region28: #{down_block_forward.4} parent=5 // pred_fallthru
      _
    %p327 = scmp.le.s32.totalorder 1, %s14
    %p328 = scmp.lt.s32.totalorder %s14, 3
    %p329 = pnand %p327, %p328
    %p330 = pneg %p329
    // Predicated region
    $region41: #{down_block_forward.4} parent=5 // pred_check
      _
    $region42: #{down_block_forward.4} parent=5 // pred_check_branch
      %332 = sbr.rel (%p329) target = $region44
    $region43: #{down_block_forward.4} parent=5 // pred_region
      %s333 = ssub.s32 %s14, 1
      %s334 = smul.u32 %s24, 16
      %s335 = ssub.s32 %s334, 1
      %p336 = scmp.gt.s32.totalorder %s335, 0
      %s337 = scalar_select %p336, %s335, 0
      %p338 = scmp.lt.s32.totalorder %s23, 1
      %s339 = scalar_select %p338, %s23, 1
      %p340 = scmp.lt.s32.totalorder %s337, 15
      %s341 = scalar_select %p340, %s337, 15
      %s342 = smul.addr %s341, 2
      %s343 = smul.addr %s339, 32
      %s344 = sadd.s32 %s342, %s343
      %s345 = smul.addr %s344, 4
      %s346 = scalar_lea.vmem %s0, %s345
      %p347 = pneg %p62
      %p348 = pneg %p59
      %s349 = smul.u32 16, %s24
      %p350 = scmp.lt.s32.totalorder %s23, 1
      %s351 = scalar_select %p350, %s23, 1
      %p352 = scmp.lt.s32.totalorder %s349, 15
      %s353 = scalar_select %p352, %s349, 15
      %s354 = smul.addr %s353, 2
      %s355 = smul.addr %s351, 32
      %s356 = sadd.s32 %s354, %s355
      %s357 = smul.addr %s356, 4
      %s358 = scalar_lea.vmem %s1, %s357
      %p359 = pneg %p90
      %p360 = pneg %p87
      %s361 = sadd.s32 %s24, 1
      %s362 = smul.u32 %s361, 16
      %p363 = scmp.lt.s32.totalorder %s362, 15
      %s364 = scalar_select %p363, %s362, 15
      %p365 = scmp.lt.s32.totalorder %s23, 1
      %s366 = scalar_select %p365, %s23, 1
      %p367 = scmp.lt.s32.totalorder %s364, 15
      %s368 = scalar_select %p367, %s364, 15
      %s369 = smul.addr %s368, 2
      %s370 = smul.addr %s366, 32
      %s371 = sadd.s32 %s369, %s370
      %s372 = smul.addr %s371, 4
      %s373 = scalar_lea.vmem %s2, %s372
      %p374 = pneg %p126
      %p375 = pneg %p123
      %p376 = pneg %p147
      %p377 = pneg %p144
      %p378 = pneg %p168
      %p379 = pneg %p165
      %p380 = pneg %p189
      %p381 = pneg %p186
      %p382 = pneg %p217
      %p383 = pneg %p214
      %s384 = smul.u32 16, %s24
      %p385 = scmp.lt.s32.totalorder %s23, 1
      %s386 = scalar_select %p385, %s23, 1
      %p387 = scmp.lt.s32.totalorder %s384, 15
      %s388 = scalar_select %p387, %s384, 15
      %s389 = smul.addr %s388, 2
      %s390 = smul.addr %s386, 32
      %s391 = sadd.s32 %s389, %s390
      %s392 = smul.addr %s391, 4
      %s393 = scalar_lea.vmem %s6, %s392
      %p394 = pneg %p245
      %p395 = pneg %p242
      %p396 = scmp.lt.s32.totalorder %s23, 1
      %s397 = scalar_select %p396, %s23, 1
      %p398 = scmp.lt.s32.totalorder %s24, 0
      %s399 = scalar_select %p398, %s24, 0
      %s400 = sadd.s32 %s399, %s397
      %s401 = smul.addr %s400, 2
      %s402 = scalar_lea.vmem %s7, %s401
      %s403 = smul.u32 %s24, 16
      %s404 = ssub.s32 %s403, 1
      %p405 = scmp.gt.s32.totalorder %s404, 0
      %s406 = scalar_select %p405, %s404, 0
      %p407 = scmp.lt.s32.totalorder %s23, 1
      %s408 = scalar_select %p407, %s23, 1
      %p409 = scmp.lt.s32.totalorder %s406, 15
      %s410 = scalar_select %p409, %s406, 15
      %s411 = smul.addr %s410, 2
      %s412 = smul.addr %s408, 32
      %s413 = sadd.s32 %s411, %s412
      %s414 = smul.addr %s413, 4
      %s415 = scalar_lea.vmem %s0, %s414
      %s416 = smul.u32 %s24, 16
      %s417 = ssub.s32 %s416, 1
      %p418 = scmp.gt.s32.totalorder %s417, 0
      %s419 = scalar_select %p418, %s417, 0
      %s420 = smul.u32 16, %s24
      %p421 = scmp.lt.s32.totalorder %s23, 1
      %s422 = scalar_select %p421, %s23, 1
      %p423 = scmp.lt.s32.totalorder %s420, 15
      %s424 = scalar_select %p423, %s420, 15
      %s425 = smul.addr %s424, 2
      %s426 = smul.addr %s422, 32
      %s427 = sadd.s32 %s425, %s426
      %s428 = smul.addr %s427, 4
      %s429 = scalar_lea.vmem %s1, %s428
      %s430 = smul.u32 16, %s24
      %s431 = sadd.s32 %s24, 1
      %s432 = smul.u32 %s431, 16
      %p433 = scmp.lt.s32.totalorder %s432, 15
      %s434 = scalar_select %p433, %s432, 15
      %p435 = scmp.lt.s32.totalorder %s23, 1
      %s436 = scalar_select %p435, %s23, 1
      %p437 = scmp.lt.s32.totalorder %s434, 15
      %s438 = scalar_select %p437, %s434, 15
      %s439 = smul.addr %s438, 2
      %s440 = smul.addr %s436, 32
      %s441 = sadd.s32 %s439, %s440
      %s442 = smul.addr %s441, 4
      %s443 = scalar_lea.vmem %s2, %s442
      %s444 = sadd.s32 %s24, 1
      %s445 = smul.u32 %s444, 16
      %p446 = scmp.lt.s32.totalorder %s445, 15
      %s447 = scalar_select %p446, %s445, 15
      %s448 = smul.u32 16, %s24
      %p449 = scmp.lt.s32.totalorder %s23, 1
      %s450 = scalar_select %p449, %s23, 1
      %p451 = scmp.lt.s32.totalorder %s448, 15
      %s452 = scalar_select %p451, %s448, 15
      %s453 = smul.addr %s452, 2
      %s454 = smul.addr %s450, 32
      %s455 = sadd.s32 %s453, %s454
      %s456 = smul.addr %s455, 4
      %s457 = scalar_lea.vmem %s6, %s456
      %s458 = smul.u32 16, %s24
      %p459 = scmp.lt.s32.totalorder %s23, 1
      %s460 = scalar_select %p459, %s23, 1
      %p461 = scmp.lt.s32.totalorder %s24, 0
      %s462 = scalar_select %p461, %s24, 0
      %s463 = sadd.s32 %s462, %s460
      %s464 = smul.addr %s463, 2
      %s465 = scalar_lea.vmem %s7, %s464
      %v467 = vld [vmem:[%s415] sm:$0xf]
      %v468 = vld [vmem:[%s415 + $0x4] sm:$0xf]
      %v469 = vunpack.c.l.bf16 %v467
      %v470 = vunpack.c.l.bf16 %v468
      %v471 = vld [vmem:[%s4] sm:$0x1]
      %v473 = vlaneseq
      %v474 = vshrl.u32 %v473, 7
      %v475 = vsub.s32 0, %v474
      %v476 = vrot.slane %v471, %v475
      %v478 = vmul.f32 %v469, %v476
      %v479 = vmul.f32 %v470, %v476
      %v480 = vld [vmem:[%s5] sm:$0x1]
      %v482 = vlaneseq
      %v483 = vshrl.u32 %v482, 7
      %v484 = vsub.s32 0, %v483
      %v485 = vrot.slane %v480, %v484
      %v487 = vadd.f32 %v478, %v485
      %v488 = vadd.f32 %v479, %v485
      %v489 = vmax.f32 %v487, 0.0
      %v490 = vmax.f32 %v488, 0.0
      %v491 = vpack.c.bf16 %v490, %v489
      %p492 = scmp.eq.s32.totalorder %s24, 0
      %s493 = scalar_select %p492, 1, 0
      %v494 = vstv %s493
      %vm495 = vcmp.eq.s32.totalorder %v494, 1
      %v496 = vsel %vm495, 0, %v491
      %v497 = vld [vmem:[%s443] sm:$0xf]
      %v498 = vld [vmem:[%s443 + $0x4] sm:$0xf]
      %v499 = vunpack.c.l.bf16 %v497
      %v500 = vunpack.c.l.bf16 %v498
      %v501 = vmul.f32 %v499, %v476
      %v502 = vmul.f32 %v500, %v476
      %v503 = vadd.f32 %v501, %v485
      %v504 = vadd.f32 %v502, %v485
      %v505 = vmax.f32 %v503, 0.0
      %v506 = vmax.f32 %v504, 0.0
      %v507 = vpack.c.bf16 %v506, %v505
      %v508 = vsel %vm495, 0, %v507
      %v509 = vld [vmem:[%s429] sm:$0xf]
      %v510 = vld [vmem:[%s429 + $0x4] sm:$0xf]
      %v511 = vld [vmem:[%s429 + $0x8] sm:$0xf]
      %v512 = vld [vmem:[%s429 + $0xc] sm:$0xf]
      %v513 = vld [vmem:[%s429 + $0x10] sm:$0xf]
      %v514 = vld [vmem:[%s429 + $0x14] sm:$0xf]
      %v515 = vld [vmem:[%s429 + $0x18] sm:$0xf]
      %v516 = vld [vmem:[%s429 + $0x1c] sm:$0xf]
      %v517 = vld [vmem:[%s429 + $0x20] sm:$0xf]
      %v518 = vld [vmem:[%s429 + $0x24] sm:$0xf]
      %v519 = vld [vmem:[%s429 + $0x28] sm:$0xf]
      %v520 = vld [vmem:[%s429 + $0x2c] sm:$0xf]
      %v521 = vld [vmem:[%s429 + $0x30] sm:$0xf]
      %v522 = vld [vmem:[%s429 + $0x34] sm:$0xf]
      %v523 = vld [vmem:[%s429 + $0x38] sm:$0xf]
      %v524 = vld [vmem:[%s429 + $0x3c] sm:$0xf]
      %v525 = vld [vmem:[%s429 + $0x40] sm:$0xf]
      %v526 = vld [vmem:[%s429 + $0x44] sm:$0xf]
      %v527 = vld [vmem:[%s429 + $0x48] sm:$0xf]
      %v528 = vld [vmem:[%s429 + $0x4c] sm:$0xf]
      %v529 = vld [vmem:[%s429 + $0x50] sm:$0xf]
      %v530 = vld [vmem:[%s429 + $0x54] sm:$0xf]
      %v531 = vld [vmem:[%s429 + $0x58] sm:$0xf]
      %v532 = vld [vmem:[%s429 + $0x5c] sm:$0xf]
      %v533 = vld [vmem:[%s429 + $0x60] sm:$0xf]
      %v534 = vld [vmem:[%s429 + $0x64] sm:$0xf]
      %v535 = vld [vmem:[%s429 + $0x68] sm:$0xf]
      %v536 = vld [vmem:[%s429 + $0x6c] sm:$0xf]
      %v537 = vld [vmem:[%s429 + $0x70] sm:$0xf]
      %v538 = vld [vmem:[%s429 + $0x74] sm:$0xf]
      %v539 = vld [vmem:[%s429 + $0x78] sm:$0xf]
      %v540 = vld [vmem:[%s429 + $0x7c] sm:$0xf]
      %v541 = vunpack.c.l.bf16 %v509
      %v542 = vunpack.c.l.bf16 %v510
      %v543 = vunpack.c.l.bf16 %v511
      %v544 = vunpack.c.l.bf16 %v512
      %v545 = vunpack.c.l.bf16 %v513
      %v546 = vunpack.c.l.bf16 %v514
      %v547 = vunpack.c.l.bf16 %v515
      %v548 = vunpack.c.l.bf16 %v516
      %v549 = vunpack.c.l.bf16 %v517
      %v550 = vunpack.c.l.bf16 %v518
      %v551 = vunpack.c.l.bf16 %v519
      %v552 = vunpack.c.l.bf16 %v520
      %v553 = vunpack.c.l.bf16 %v521
      %v554 = vunpack.c.l.bf16 %v522
      %v555 = vunpack.c.l.bf16 %v523
      %v556 = vunpack.c.l.bf16 %v524
      %v557 = vunpack.c.l.bf16 %v525
      %v558 = vunpack.c.l.bf16 %v526
      %v559 = vunpack.c.l.bf16 %v527
      %v560 = vunpack.c.l.bf16 %v528
      %v561 = vunpack.c.l.bf16 %v529
      %v562 = vunpack.c.l.bf16 %v530
      %v563 = vunpack.c.l.bf16 %v531
      %v564 = vunpack.c.l.bf16 %v532
      %v565 = vunpack.c.l.bf16 %v533
      %v566 = vunpack.c.l.bf16 %v534
      %v567 = vunpack.c.l.bf16 %v535
      %v568 = vunpack.c.l.bf16 %v536
      %v569 = vunpack.c.l.bf16 %v537
      %v570 = vunpack.c.l.bf16 %v538
      %v571 = vunpack.c.l.bf16 %v539
      %v572 = vunpack.c.l.bf16 %v540
      %v573 = vmul.f32 %v541, %v476
      %v574 = vmul.f32 %v542, %v476
      %v575 = vmul.f32 %v543, %v476
      %v576 = vmul.f32 %v544, %v476
      %v577 = vmul.f32 %v545, %v476
      %v578 = vmul.f32 %v546, %v476
      %v579 = vmul.f32 %v547, %v476
      %v580 = vmul.f32 %v548, %v476
      %v581 = vmul.f32 %v549, %v476
      %v582 = vmul.f32 %v550, %v476
      %v583 = vmul.f32 %v551, %v476
      %v584 = vmul.f32 %v552, %v476
      %v585 = vmul.f32 %v553, %v476
      %v586 = vmul.f32 %v554, %v476
      %v587 = vmul.f32 %v555, %v476
      %v588 = vmul.f32 %v556, %v476
      %v589 = vmul.f32 %v557, %v476
      %v590 = vmul.f32 %v558, %v476
      %v591 = vmul.f32 %v559, %v476
      %v592 = vmul.f32 %v560, %v476
      %v593 = vmul.f32 %v561, %v476
      %v594 = vmul.f32 %v562, %v476
      %v595 = vmul.f32 %v563, %v476
      %v596 = vmul.f32 %v564, %v476
      %v597 = vmul.f32 %v565, %v476
      %v598 = vmul.f32 %v566, %v476
      %v599 = vmul.f32 %v567, %v476
      %v600 = vmul.f32 %v568, %v476
      %v601 = vmul.f32 %v569, %v476
      %v602 = vmul.f32 %v570, %v476
      %v603 = vmul.f32 %v571, %v476
      %v604 = vmul.f32 %v572, %v476
      %v605 = vadd.f32 %v573, %v485
      %v606 = vadd.f32 %v574, %v485
      %v607 = vadd.f32 %v575, %v485
      %v608 = vadd.f32 %v576, %v485
      %v609 = vadd.f32 %v577, %v485
      %v610 = vadd.f32 %v578, %v485
      %v611 = vadd.f32 %v579, %v485
      %v612 = vadd.f32 %v580, %v485
      %v613 = vadd.f32 %v581, %v485
      %v614 = vadd.f32 %v582, %v485
      %v615 = vadd.f32 %v583, %v485
      %v616 = vadd.f32 %v584, %v485
      %v617 = vadd.f32 %v585, %v485
      %v618 = vadd.f32 %v586, %v485
      %v619 = vadd.f32 %v587, %v485
      %v620 = vadd.f32 %v588, %v485
      %v621 = vadd.f32 %v589, %v485
      %v622 = vadd.f32 %v590, %v485
      %v623 = vadd.f32 %v591, %v485
      %v624 = vadd.f32 %v592, %v485
      %v625 = vadd.f32 %v593, %v485
      %v626 = vadd.f32 %v594, %v485
      %v627 = vadd.f32 %v595, %v485
      %v628 = vadd.f32 %v596, %v485
      %v629 = vadd.f32 %v597, %v485
      %v630 = vadd.f32 %v598, %v485
      %v631 = vadd.f32 %v599, %v485
      %v632 = vadd.f32 %v600, %v485
      %v633 = vadd.f32 %v601, %v485
      %v634 = vadd.f32 %v602, %v485
      %v635 = vadd.f32 %v603, %v485
      %v636 = vadd.f32 %v604, %v485
      %v637 = vmax.f32 %v605, 0.0
      %v638 = vmax.f32 %v606, 0.0
      %v639 = vmax.f32 %v607, 0.0
      %v640 = vmax.f32 %v608, 0.0
      %v641 = vmax.f32 %v609, 0.0
      %v642 = vmax.f32 %v610, 0.0
      %v643 = vmax.f32 %v611, 0.0
      %v644 = vmax.f32 %v612, 0.0
      %v645 = vmax.f32 %v613, 0.0
      %v646 = vmax.f32 %v614, 0.0
      %v647 = vmax.f32 %v615, 0.0
      %v648 = vmax.f32 %v616, 0.0
      %v649 = vmax.f32 %v617, 0.0
      %v650 = vmax.f32 %v618, 0.0
      %v651 = vmax.f32 %v619, 0.0
      %v652 = vmax.f32 %v620, 0.0
      %v653 = vmax.f32 %v621, 0.0
      %v654 = vmax.f32 %v622, 0.0
      %v655 = vmax.f32 %v623, 0.0
      %v656 = vmax.f32 %v624, 0.0
      %v657 = vmax.f32 %v625, 0.0
      %v658 = vmax.f32 %v626, 0.0
      %v659 = vmax.f32 %v627, 0.0
      %v660 = vmax.f32 %v628, 0.0
      %v661 = vmax.f32 %v629, 0.0
      %v662 = vmax.f32 %v630, 0.0
      %v663 = vmax.f32 %v631, 0.0
      %v664 = vmax.f32 %v632, 0.0
      %v665 = vmax.f32 %v633, 0.0
      %v666 = vmax.f32 %v634, 0.0
      %v667 = vmax.f32 %v635, 0.0
      %v668 = vmax.f32 %v636, 0.0
      %v669 = vpack.c.bf16 %v638, %v637
      %v670 = vpack.c.bf16 %v640, %v639
      %v671 = vpack.c.bf16 %v642, %v641
      %v672 = vpack.c.bf16 %v644, %v643
      %v673 = vpack.c.bf16 %v646, %v645
      %v674 = vpack.c.bf16 %v648, %v647
      %v675 = vpack.c.bf16 %v650, %v649
      %v676 = vpack.c.bf16 %v652, %v651
      %v677 = vpack.c.bf16 %v654, %v653
      %v678 = vpack.c.bf16 %v656, %v655
      %v679 = vpack.c.bf16 %v658, %v657
      %v680 = vpack.c.bf16 %v660, %v659
      %v681 = vpack.c.bf16 %v662, %v661
      %v682 = vpack.c.bf16 %v664, %v663
      %v683 = vpack.c.bf16 %v666, %v665
      %v684 = vpack.c.bf16 %v668, %v667
      %v686 = vshrl.u32 %v496, 16
      %v688 = vrot.slane %v686, 7
      %v689 = vshll.u32 %v496, 16
      %v691 = vor.u32 %v688, %v689
      %v693 = vshrl.u32 %v669, 16
      %v695 = vrot.slane %v693, 7
      %v696 = vshll.u32 %v669, 16
      %v698 = vor.u32 %v695, %v696
      %v700 = vshrl.u32 %v670, 16
      %v702 = vrot.slane %v700, 7
      %v703 = vshll.u32 %v670, 16
      %v705 = vor.u32 %v702, %v703
      %v707 = vshrl.u32 %v671, 16
      %v709 = vrot.slane %v707, 7
      %v710 = vshll.u32 %v671, 16
      %v712 = vor.u32 %v709, %v710
      %v714 = vshrl.u32 %v672, 16
      %v716 = vrot.slane %v714, 7
      %v717 = vshll.u32 %v672, 16
      %v719 = vor.u32 %v716, %v717
      %v721 = vshrl.u32 %v673, 16
      %v723 = vrot.slane %v721, 7
      %v724 = vshll.u32 %v673, 16
      %v726 = vor.u32 %v723, %v724
      %v728 = vshrl.u32 %v674, 16
      %v730 = vrot.slane %v728, 7
      %v731 = vshll.u32 %v674, 16
      %v733 = vor.u32 %v730, %v731
      %v735 = vshrl.u32 %v675, 16
      %v737 = vrot.slane %v735, 7
      %v738 = vshll.u32 %v675, 16
      %v740 = vor.u32 %v737, %v738
      %v742 = vshrl.u32 %v676, 16
      %v744 = vrot.slane %v742, 7
      %v745 = vshll.u32 %v676, 16
      %v747 = vor.u32 %v744, %v745
      %v749 = vshrl.u32 %v677, 16
      %v751 = vrot.slane %v749, 7
      %v752 = vshll.u32 %v677, 16
      %v754 = vor.u32 %v751, %v752
      %v756 = vshrl.u32 %v678, 16
      %v758 = vrot.slane %v756, 7
      %v759 = vshll.u32 %v678, 16
      %v761 = vor.u32 %v758, %v759
      %v763 = vshrl.u32 %v679, 16
      %v765 = vrot.slane %v763, 7
      %v766 = vshll.u32 %v679, 16
      %v768 = vor.u32 %v765, %v766
      %v770 = vshrl.u32 %v680, 16
      %v772 = vrot.slane %v770, 7
      %v773 = vshll.u32 %v680, 16
      %v775 = vor.u32 %v772, %v773
      %v777 = vshrl.u32 %v681, 16
      %v779 = vrot.slane %v777, 7
      %v780 = vshll.u32 %v681, 16
      %v782 = vor.u32 %v779, %v780
      %v784 = vshrl.u32 %v682, 16
      %v786 = vrot.slane %v784, 7
      %v787 = vshll.u32 %v682, 16
      %v789 = vor.u32 %v786, %v787
      %v791 = vshrl.u32 %v683, 16
      %v793 = vrot.slane %v791, 7
      %v794 = vshll.u32 %v683, 16
      %v796 = vor.u32 %v793, %v794
      %v798 = vshrl.u32 %v684, 16
      %v800 = vrot.slane %v798, 7
      %v801 = vshll.u32 %v684, 16
      %v803 = vor.u32 %v800, %v801
      %v805 = vshrl.u32 %v508, 16
      %v807 = vrot.slane %v805, 7
      %v808 = vshll.u32 %v508, 16
      %v810 = vor.u32 %v807, %v808
      %vm829 = vcmask 1040384
      %vm830 = vsmask.f32 256
      %vm831 = vmand %vm829, %vm830
      %v832 = vsel %vm831, 0, %v691
      %v833 = vsel %vm831, 0, %v698
      %v834 = vsel %vm831, 0, %v705
      %v835 = vsel %vm831, 0, %v712
      %v836 = vsel %vm831, 0, %v719
      %v837 = vsel %vm831, 0, %v726
      %v838 = vsel %vm831, 0, %v733
      %v839 = vsel %vm831, 0, %v740
      %v840 = vsel %vm831, 0, %v747
      %v841 = vsel %vm831, 0, %v754
      %v842 = vsel %vm831, 0, %v761
      %v843 = vsel %vm831, 0, %v768
      %v844 = vsel %vm831, 0, %v775
      %v845 = vsel %vm831, 0, %v782
      %v846 = vsel %vm831, 0, %v789
      %v847 = vsel %vm831, 0, %v796
      %v848 = vsel %vm831, 0, %v803
      %v849 = vsel %vm831, 0, %v810
      %v850 = vrot.slane %v689, 1
      %v851 = vor.u32 %v686, %v850
      %v852 = vrot.slane %v696, 1
      %v853 = vor.u32 %v693, %v852
      %v854 = vrot.slane %v703, 1
      %v855 = vor.u32 %v700, %v854
      %v856 = vrot.slane %v710, 1
      %v857 = vor.u32 %v707, %v856
      %v858 = vrot.slane %v717, 1
      %v859 = vor.u32 %v714, %v858
      %v860 = vrot.slane %v724, 1
      %v861 = vor.u32 %v721, %v860
      %v862 = vrot.slane %v731, 1
      %v863 = vor.u32 %v728, %v862
      %v864 = vrot.slane %v738, 1
      %v865 = vor.u32 %v735, %v864
      %v866 = vrot.slane %v745, 1
      %v867 = vor.u32 %v742, %v866
      %v868 = vrot.slane %v752, 1
      %v869 = vor.u32 %v749, %v868
      %v870 = vrot.slane %v759, 1
      %v871 = vor.u32 %v756, %v870
      %v872 = vrot.slane %v766, 1
      %v873 = vor.u32 %v763, %v872
      %v874 = vrot.slane %v773, 1
      %v875 = vor.u32 %v770, %v874
      %v876 = vrot.slane %v780, 1
      %v877 = vor.u32 %v777, %v876
      %v878 = vrot.slane %v787, 1
      %v879 = vor.u32 %v784, %v878
      %v880 = vrot.slane %v794, 1
      %v881 = vor.u32 %v791, %v880
      %v882 = vrot.slane %v801, 1
      %v883 = vor.u32 %v798, %v882
      %v884 = vrot.slane %v808, 1
      %v885 = vor.u32 %v805, %v884
      %vm904 = vcmask 1047552
      %vm905 = vsmask.f32 7424
      %vm906 = vmand %vm904, %vm905
      %v907 = vsel %vm906, %v851, 0
      %v908 = vsel %vm906, %v853, 0
      %v909 = vsel %vm906, %v855, 0
      %v910 = vsel %vm906, %v857, 0
      %v911 = vsel %vm906, %v859, 0
      %v912 = vsel %vm906, %v861, 0
      %v913 = vsel %vm906, %v863, 0
      %v914 = vsel %vm906, %v865, 0
      %v915 = vsel %vm906, %v867, 0
      %v916 = vsel %vm906, %v869, 0
      %v917 = vsel %vm906, %v871, 0
      %v918 = vsel %vm906, %v873, 0
      %v919 = vsel %vm906, %v875, 0
      %v920 = vsel %vm906, %v877, 0
      %v921 = vsel %vm906, %v879, 0
      %v922 = vsel %vm906, %v881, 0
      %v923 = vsel %vm906, %v883, 0
      %v924 = vsel %vm906, %v885, 0
      %943 = vrot.lane.b32.xlu0 %v496, 8
      %v944 = vpop.permute.xlu0 %943
      %945 = vrot.lane.b32.xlu0 %v669, 8
      %v946 = vpop.permute.xlu0 %945
      %947 = vrot.lane.b32.xlu0 %v670, 8
      %v948 = vpop.permute.xlu0 %947
      %949 = vrot.lane.b32.xlu0 %v671, 8
      %v950 = vpop.permute.xlu0 %949
      %951 = vrot.lane.b32.xlu0 %v672, 8
      %v952 = vpop.permute.xlu0 %951
      %953 = vrot.lane.b32.xlu0 %v673, 8
      %v954 = vpop.permute.xlu0 %953
      %955 = vrot.lane.b32.xlu0 %v674, 8
      %v956 = vpop.permute.xlu0 %955
      %957 = vrot.lane.b32.xlu0 %v675, 8
      %v958 = vpop.permute.xlu0 %957
      %959 = vrot.lane.b32.xlu0 %v676, 8
      %v960 = vpop.permute.xlu0 %959
      %961 = vrot.lane.b32.xlu0 %v677, 8
      %v962 = vpop.permute.xlu0 %961
      %963 = vrot.lane.b32.xlu0 %v678, 8
      %v964 = vpop.permute.xlu0 %963
      %965 = vrot.lane.b32.xlu0 %v679, 8
      %v966 = vpop.permute.xlu0 %965
      %967 = vrot.lane.b32.xlu0 %v680, 8
      %v968 = vpop.permute.xlu0 %967
      %969 = vrot.lane.b32.xlu0 %v681, 8
      %v970 = vpop.permute.xlu0 %969
      %971 = vrot.lane.b32.xlu0 %v682, 8
      %v972 = vpop.permute.xlu0 %971
      %973 = vrot.lane.b32.xlu0 %v683, 8
      %v974 = vpop.permute.xlu0 %973
      %975 = vrot.lane.b32.xlu0 %v684, 8
      %v976 = vpop.permute.xlu0 %975
      %977 = vrot.lane.b32.xlu0 %v508, 8
      %v978 = vpop.permute.xlu0 %977
      %997 = vrot.lane.b32.xlu0 %v907, 16
      %v998 = vpop.permute.xlu0 %997
      %999 = vrot.lane.b32.xlu0 %v908, 16
      %v1000 = vpop.permute.xlu0 %999
      %1001 = vrot.lane.b32.xlu0 %v909, 16
      %v1002 = vpop.permute.xlu0 %1001
      %1003 = vrot.lane.b32.xlu0 %v910, 16
      %v1004 = vpop.permute.xlu0 %1003
      %1005 = vrot.lane.b32.xlu0 %v911, 16
      %v1006 = vpop.permute.xlu0 %1005
      %1007 = vrot.lane.b32.xlu0 %v912, 16
      %v1008 = vpop.permute.xlu0 %1007
      %1009 = vrot.lane.b32.xlu0 %v913, 16
      %v1010 = vpop.permute.xlu0 %1009
      %1011 = vrot.lane.b32.xlu0 %v914, 16
      %v1012 = vpop.permute.xlu0 %1011
      %1013 = vrot.lane.b32.xlu0 %v915, 16
      %v1014 = vpop.permute.xlu0 %1013
      %1015 = vrot.lane.b32.xlu0 %v916, 16
      %v1016 = vpop.permute.xlu0 %1015
      %1017 = vrot.lane.b32.xlu0 %v917, 16
      %v1018 = vpop.permute.xlu0 %1017
      %1019 = vrot.lane.b32.xlu0 %v918, 16
      %v1020 = vpop.permute.xlu0 %1019
      %1021 = vrot.lane.b32.xlu0 %v919, 16
      %v1022 = vpop.permute.xlu0 %1021
      %1023 = vrot.lane.b32.xlu0 %v920, 16
      %v1024 = vpop.permute.xlu0 %1023
      %1025 = vrot.lane.b32.xlu0 %v921, 16
      %v1026 = vpop.permute.xlu0 %1025
      %1027 = vrot.lane.b32.xlu0 %v922, 16
      %v1028 = vpop.permute.xlu0 %1027
      %1029 = vrot.lane.b32.xlu0 %v923, 16
      %v1030 = vpop.permute.xlu0 %1029
      %1031 = vrot.lane.b32.xlu0 %v924, 16
      %v1032 = vpop.permute.xlu0 %1031
      %vm1033 = vcmask 64512
      %v1036 = vsel %vm1033, %v832, %v944
      %v1039 = vsel %vm1033, %v833, %v946
      %v1042 = vsel %vm1033, %v834, %v948
      %v1045 = vsel %vm1033, %v835, %v950
      %v1048 = vsel %vm1033, %v836, %v952
      %v1051 = vsel %vm1033, %v837, %v954
      %v1054 = vsel %vm1033, %v838, %v956
      %v1057 = vsel %vm1033, %v839, %v958
      %v1060 = vsel %vm1033, %v840, %v960
      %v1063 = vsel %vm1033, %v841, %v962
      %v1066 = vsel %vm1033, %v842, %v964
      %v1069 = vsel %vm1033, %v843, %v966
      %v1072 = vsel %vm1033, %v844, %v968
      %v1075 = vsel %vm1033, %v845, %v970
      %v1078 = vsel %vm1033, %v846, %v972
      %v1081 = vsel %vm1033, %v847, %v974
      %v1084 = vsel %vm1033, %v848, %v976
      %v1087 = vsel %vm1033, %v849, %v978
      %vm1088 = vcmask 130048
      %v1090 = vsel %vm1088, %v1036, %v998
      %v1093 = vsel %vm1088, %v1039, %v1000
      %v1096 = vsel %vm1088, %v1042, %v1002
      %v1099 = vsel %vm1088, %v1045, %v1004
      %v1102 = vsel %vm1088, %v1048, %v1006
      %v1105 = vsel %vm1088, %v1051, %v1008
      %v1108 = vsel %vm1088, %v1054, %v1010
      %v1111 = vsel %vm1088, %v1057, %v1012
      %v1114 = vsel %vm1088, %v1060, %v1014
      %v1117 = vsel %vm1088, %v1063, %v1016
      %v1120 = vsel %vm1088, %v1066, %v1018
      %v1123 = vsel %vm1088, %v1069, %v1020
      %v1126 = vsel %vm1088, %v1072, %v1022
      %v1129 = vsel %vm1088, %v1075, %v1024
      %v1132 = vsel %vm1088, %v1078, %v1026
      %v1135 = vsel %vm1088, %v1081, %v1028
      %v1138 = vsel %vm1088, %v1084, %v1030
      %v1141 = vsel %vm1088, %v1087, %v1032
      %vm1143 = vcmask 195584
      %1144 = vst.msk [vmem:[#allocation2] sm:$0xff] %vm1143, %v1090
      %1145 = vst.msk [vmem:[#allocation2 + $0x8] sm:$0xff] %vm1143, %v1093
      %1146 = vst.msk [vmem:[#allocation2 + $0x10] sm:$0xff] %vm1143, %v1096
      %1147 = vst.msk [vmem:[#allocation2 + $0x18] sm:$0xff] %vm1143, %v1099
      %1148 = vst.msk [vmem:[#allocation2 + $0x20] sm:$0xff] %vm1143, %v1102
      %1149 = vst.msk [vmem:[#allocation2 + $0x28] sm:$0xff] %vm1143, %v1105
      %1150 = vst.msk [vmem:[#allocation2 + $0x30] sm:$0xff] %vm1143, %v1108
      %1151 = vst.msk [vmem:[#allocation2 + $0x38] sm:$0xff] %vm1143, %v1111
      %1152 = vst.msk [vmem:[#allocation2 + $0x40] sm:$0xff] %vm1143, %v1114
      %1153 = vst.msk [vmem:[#allocation2 + $0x48] sm:$0xff] %vm1143, %v1117
      %1154 = vst.msk [vmem:[#allocation2 + $0x50] sm:$0xff] %vm1143, %v1120
      %1155 = vst.msk [vmem:[#allocation2 + $0x58] sm:$0xff] %vm1143, %v1123
      %1156 = vst.msk [vmem:[#allocation2 + $0x60] sm:$0xff] %vm1143, %v1126
      %1157 = vst.msk [vmem:[#allocation2 + $0x68] sm:$0xff] %vm1143, %v1129
      %1158 = vst.msk [vmem:[#allocation2 + $0x70] sm:$0xff] %vm1143, %v1132
      %1159 = vst.msk [vmem:[#allocation2 + $0x78] sm:$0xff] %vm1143, %v1135
      %1160 = vst.msk [vmem:[#allocation2 + $0x80] sm:$0xff] %vm1143, %v1138
      %1161 = vst.msk [vmem:[#allocation2 + $0x88] sm:$0xff] %vm1143, %v1141
      %v1162 = vld [vmem:[#allocation2] sm:$0xff]
      %v1163 = vld [vmem:[#allocation2 + $0x8] sm:$0xff]
      %v1164 = vld [vmem:[#allocation2 + $0x10] sm:$0xff]
      %v1165 = vld [vmem:[#allocation2 + $0x18] sm:$0xff]
      %v1166 = vld [vmem:[#allocation2 + $0x20] sm:$0xff]
      %v1167 = vld [vmem:[#allocation2 + $0x28] sm:$0xff]
      %v1168 = vld [vmem:[#allocation2 + $0x30] sm:$0xff]
      %v1169 = vld [vmem:[#allocation2 + $0x38] sm:$0xff]
      %v1170 = vld [vmem:[#allocation2 + $0x40] sm:$0xff]
      %v1171 = vld [vmem:[#allocation2 + $0x48] sm:$0xff]
      %v1172 = vld [vmem:[#allocation2 + $0x50] sm:$0xff]
      %v1173 = vld [vmem:[#allocation2 + $0x58] sm:$0xff]
      %v1174 = vld [vmem:[#allocation2 + $0x60] sm:$0xff]
      %v1175 = vld [vmem:[#allocation2 + $0x68] sm:$0xff]
      %v1176 = vld [vmem:[#allocation2 + $0x70] sm:$0xff]
      %v1177 = vld [vmem:[#allocation2 + $0x78] sm:$0xff]
      %v1178 = vld [vmem:[%s3] sm:$0xf]
      %v1179 = vld [vmem:[%s3 + $0x4] sm:$0xf]
      %v1180 = vld [vmem:[%s3 + $0x8] sm:$0xf]
      %v1184 = vunpack.c.l.b16 %v1178
      %v1185 = vunpack.c.l.b16 %v1179
      %v1186 = vunpack.c.l.b16 %v1180
      %v1187 = vpack.c.b16 %v1185, %v1184
      %v1188 = vpack.c.b16 %v1186, %v1186
      %v1191 = vsel %vm1143, %v1162, 0
      %v1194 = vsel %vm1143, %v1163, 0
      %v1197 = vsel %vm1143, %v1164, 0
      %v1200 = vsel %vm1143, %v1165, 0
      %v1203 = vsel %vm1143, %v1166, 0
      %v1206 = vsel %vm1143, %v1167, 0
      %v1209 = vsel %vm1143, %v1168, 0
      %v1212 = vsel %vm1143, %v1169, 0
      %v1215 = vsel %vm1143, %v1170, 0
      %v1218 = vsel %vm1143, %v1171, 0
      %v1221 = vsel %vm1143, %v1172, 0
      %v1224 = vsel %vm1143, %v1173, 0
      %v1227 = vsel %vm1143, %v1174, 0
      %v1230 = vsel %vm1143, %v1175, 0
      %v1233 = vsel %vm1143, %v1176, 0
      %v1236 = vsel %vm1143, %v1177, 0
      %vm1238 = vcmask 1043456
      %v1240 = vsel %vm1238, %v1188, 0
      %1242 = vmatprep.subr.bf16.mxu0 0
      %1243 = vmatpush1.bf16.msra.mxu0 %v1187
      %1244 = vmatprep.subr.bf16.mxu0 0
      %1245 = vmatpush1.bf16.msra.mxu0 %v1240
      %1246 = vmatprep.subr.bf16.mxu0 0
      %1247 = vmatpush1.bf16.msra.mxu0 0
      %1248 = vmatprep.subr.bf16.mxu0 0
      %1249 = vmatpush1.bf16.msra.mxu0 0
      %1250 = vmatprep.subr.bf16.mxu0 0
      %1251 = vmatpush1.bf16.msra.mxu0 0
      %1252 = vmatprep.subr.bf16.mxu0 0
      %1253 = vmatpush1.bf16.msra.mxu0 0
      %1254 = vmatprep.subr.bf16.mxu0 0
      %1255 = vmatpush1.bf16.msra.mxu0 0
      %1256 = vmatprep.subr.bf16.mxu0 0
      %1257 = vmatpush1.bf16.msra.mxu0 0
      %1258 = vmatprep.subr.bf16.mxu0 0
      %1259 = vmatpush1.bf16.msra.mxu0 0
      %1260 = vmatprep.subr.bf16.mxu0 0
      %1261 = vmatpush1.bf16.msra.mxu0 0
      %1262 = vmatprep.subr.bf16.mxu0 0
      %1263 = vmatpush1.bf16.msra.mxu0 0
      %1264 = vmatprep.subr.bf16.mxu0 0
      %1265 = vmatpush1.bf16.msra.mxu0 0
      %1266 = vmatprep.subr.bf16.mxu0 0
      %1267 = vmatpush1.bf16.msra.mxu0 0
      %1268 = vmatprep.subr.bf16.mxu0 0
      %1269 = vmatpush1.bf16.msra.mxu0 0
      %1270 = vmatprep.subr.bf16.mxu0 0
      %1271 = vmatpush1.bf16.msra.mxu0 0
      %1272 = vmatprep.subr.bf16.mxu0 0
      %1273 = vmatpush1.bf16.msra.mxu0 0
      %1274 = vmatprep.mubr.bf16.mxu0 0
      %1275 = vmatmul.mubr.bf16.gmra.mrb[0].mxu0 %v1191
      %v1276 = vpop.f32.mrb[0].mxu0
      %v1277 = vadd.f32 0.0, %v1276
      %v1278 = vpop.f32.mrb[0].mxu0
      %v1279 = vpop.f32.mrb[0].mxu0
      %v1280 = vadd.f32 0.0, %v1279
      %v1281 = vpop.f32.mrb[0].mxu0
      %1282 = vmatprep.mubr.bf16.mxu0 0
      %1283 = vmatmul.mubr.bf16.gmra.mrb[0].mxu0 %v1194
      %v1284 = vpop.f32.mrb[0].mxu0
      %v1285 = vadd.f32 0.0, %v1284
      %v1286 = vpop.f32.mrb[0].mxu0
      %v1287 = vpop.f32.mrb[0].mxu0
      %v1288 = vadd.f32 0.0, %v1287
      %v1289 = vpop.f32.mrb[0].mxu0
      %1290 = vmatprep.mubr.bf16.mxu0 0
      %1291 = vmatmul.mubr.bf16.gmra.mrb[0].mxu0 %v1197
      %v1292 = vpop.f32.mrb[0].mxu0
      %v1293 = vadd.f32 0.0, %v1292
      %v1294 = vpop.f32.mrb[0].mxu0
      %v1295 = vpop.f32.mrb[0].mxu0
      %v1296 = vadd.f32 0.0, %v1295
      %v1297 = vpop.f32.mrb[0].mxu0
      %1298 = vmatprep.mubr.bf16.mxu0 0
      %1299 = vmatmul.mubr.bf16.gmra.mrb[0].mxu0 %v1200
      %v1300 = vpop.f32.mrb[0].mxu0
      %v1301 = vadd.f32 0.0, %v1300
      %v1302 = vpop.f32.mrb[0].mxu0
      %v1303 = vpop.f32.mrb[0].mxu0
      %v1304 = vadd.f32 0.0, %v1303
      %v1305 = vpop.f32.mrb[0].mxu0
      %1306 = vmatprep.mubr.bf16.mxu0 0
      %1307 = vmatmul.mubr.bf16.gmra.mrb[0].mxu0 %v1203
      %v1308 = vpop.f32.mrb[0].mxu0
      %v1309 = vadd.f32 0.0, %v1308
      %v1310 = vpop.f32.mrb[0].mxu0
      %v1311 = vpop.f32.mrb[0].mxu0
      %v1312 = vadd.f32 0.0, %v1311
      %v1313 = vpop.f32.mrb[0].mxu0
      %1314 = vmatprep.mubr.bf16.mxu0 0
      %1315 = vmatmul.mubr.bf16.gmra.mrb[0].mxu0 %v1206
      %v1316 = vpop.f32.mrb[0].mxu0
      %v1317 = vadd.f32 0.0, %v1316
      %v1318 = vpop.f32.mrb[0].mxu0
      %v1319 = vpop.f32.mrb[0].mxu0
      %v1320 = vadd.f32 0.0, %v1319
      %v1321 = vpop.f32.mrb[0].mxu0
      %1322 = vmatprep.mubr.bf16.mxu0 0
      %1323 = vmatmul.mubr.bf16.gmra.mrb[0].mxu0 %v1209
      %v1324 = vpop.f32.mrb[0].mxu0
      %v1325 = vadd.f32 0.0, %v1324
      %v1326 = vpop.f32.mrb[0].mxu0
      %v1327 = vpop.f32.mrb[0].mxu0
      %v1328 = vadd.f32 0.0, %v1327
      %v1329 = vpop.f32.mrb[0].mxu0
      %1330 = vmatprep.mubr.bf16.mxu0 0
      %1331 = vmatmul.mubr.bf16.gmra.mrb[0].mxu0 %v1212
      %v1332 = vpop.f32.mrb[0].mxu0
      %v1333 = vadd.f32 0.0, %v1332
      %v1334 = vpop.f32.mrb[0].mxu0
      %v1335 = vpop.f32.mrb[0].mxu0
      %v1336 = vadd.f32 0.0, %v1335
      %v1337 = vpop.f32.mrb[0].mxu0
      %1338 = vmatprep.mubr.bf16.mxu0 0
      %1339 = vmatmul.mubr.bf16.gmra.mrb[0].mxu0 %v1215
      %v1340 = vpop.f32.mrb[0].mxu0
      %v1341 = vadd.f32 0.0, %v1340
      %v1342 = vpop.f32.mrb[0].mxu0
      %v1343 = vpop.f32.mrb[0].mxu0
      %v1344 = vadd.f32 0.0, %v1343
      %v1345 = vpop.f32.mrb[0].mxu0
      %1346 = vmatprep.mubr.bf16.mxu0 0
      %1347 = vmatmul.mubr.bf16.gmra.mrb[0].mxu0 %v1218
      %v1348 = vpop.f32.mrb[0].mxu0
      %v1349 = vadd.f32 0.0, %v1348
      %v1350 = vpop.f32.mrb[0].mxu0
      %v1351 = vpop.f32.mrb[0].mxu0
      %v1352 = vadd.f32 0.0, %v1351
      %v1353 = vpop.f32.mrb[0].mxu0
      %1354 = vmatprep.mubr.bf16.mxu0 0
      %1355 = vmatmul.mubr.bf16.gmra.mrb[0].mxu0 %v1221
      %v1356 = vpop.f32.mrb[0].mxu0
      %v1357 = vadd.f32 0.0, %v1356
      %v1358 = vpop.f32.mrb[0].mxu0
      %v1359 = vpop.f32.mrb[0].mxu0
      %v1360 = vadd.f32 0.0, %v1359
      %v1361 = vpop.f32.mrb[0].mxu0
      %1362 = vmatprep.mubr.bf16.mxu0 0
      %1363 = vmatmul.mubr.bf16.gmra.mrb[0].mxu0 %v1224
      %v1364 = vpop.f32.mrb[0].mxu0
      %v1365 = vadd.f32 0.0, %v1364
      %v1366 = vpop.f32.mrb[0].mxu0
      %v1367 = vpop.f32.mrb[0].mxu0
      %v1368 = vadd.f32 0.0, %v1367
      %v1369 = vpop.f32.mrb[0].mxu0
      %1370 = vmatprep.mubr.bf16.mxu0 0
      %1371 = vmatmul.mubr.bf16.gmra.mrb[0].mxu0 %v1227
      %v1372 = vpop.f32.mrb[0].mxu0
      %v1373 = vadd.f32 0.0, %v1372
      %v1374 = vpop.f32.mrb[0].mxu0
      %v1375 = vpop.f32.mrb[0].mxu0
      %v1376 = vadd.f32 0.0, %v1375
      %v1377 = vpop.f32.mrb[0].mxu0
      %1378 = vmatprep.mubr.bf16.mxu0 0
      %1379 = vmatmul.mubr.bf16.gmra.mrb[0].mxu0 %v1230
      %v1380 = vpop.f32.mrb[0].mxu0
      %v1381 = vadd.f32 0.0, %v1380
      %v1382 = vpop.f32.mrb[0].mxu0
      %v1383 = vpop.f32.mrb[0].mxu0
      %v1384 = vadd.f32 0.0, %v1383
      %v1385 = vpop.f32.mrb[0].mxu0
      %1386 = vmatprep.mubr.bf16.mxu0 0
      %1387 = vmatmul.mubr.bf16.gmra.mrb[0].mxu0 %v1233
      %v1388 = vpop.f32.mrb[0].mxu0
      %v1389 = vadd.f32 0.0, %v1388
      %v1390 = vpop.f32.mrb[0].mxu0
      %v1391 = vpop.f32.mrb[0].mxu0
      %v1392 = vadd.f32 0.0, %v1391
      %v1393 = vpop.f32.mrb[0].mxu0
      %1394 = vmatprep.mubr.bf16.mxu0 0
      %1395 = vmatmul.mubr.bf16.gmra.mrb[0].mxu0 %v1236
      %v1396 = vpop.f32.mrb[0].mxu0
      %v1397 = vadd.f32 0.0, %v1396
      %v1398 = vpop.f32.mrb[0].mxu0
      %v1399 = vpop.f32.mrb[0].mxu0
      %v1400 = vadd.f32 0.0, %v1399
      %v1401 = vpop.f32.mrb[0].mxu0
      %1402 = vdwg.mxu0
      %1403 = vst.msk [vmem:[#allocation3] sm:$0xff] %vm1033, %v1277
      %1404 = vst.msk [vmem:[#allocation3 + $0x8] sm:$0xff] %vm1033, %v1280
      %1405 = vst.msk [vmem:[#allocation3 + $0x10] sm:$0xff] %vm1033, %v1285
      %1406 = vst.msk [vmem:[#allocation3 + $0x18] sm:$0xff] %vm1033, %v1288
      %1407 = vst.msk [vmem:[#allocation3 + $0x20] sm:$0xff] %vm1033, %v1293
      %1408 = vst.msk [vmem:[#allocation3 + $0x28] sm:$0xff] %vm1033, %v1296
      %1409 = vst.msk [vmem:[#allocation3 + $0x30] sm:$0xff] %vm1033, %v1301
      %1410 = vst.msk [vmem:[#allocation3 + $0x38] sm:$0xff] %vm1033, %v1304
      %1411 = vst.msk [vmem:[#allocation3 + $0x40] sm:$0xff] %vm1033, %v1309
      %1412 = vst.msk [vmem:[#allocation3 + $0x48] sm:$0xff] %vm1033, %v1312
      %1413 = vst.msk [vmem:[#allocation3 + $0x50] sm:$0xff] %vm1033, %v1317
      %1414 = vst.msk [vmem:[#allocation3 + $0x58] sm:$0xff] %vm1033, %v1320
      %1415 = vst.msk [vmem:[#allocation3 + $0x60] sm:$0xff] %vm1033, %v1325
      %1416 = vst.msk [vmem:[#allocation3 + $0x68] sm:$0xff] %vm1033, %v1328
      %1417 = vst.msk [vmem:[#allocation3 + $0x70] sm:$0xff] %vm1033, %v1333
      %1418 = vst.msk [vmem:[#allocation3 + $0x78] sm:$0xff] %vm1033, %v1336
      %1419 = vst.msk [vmem:[#allocation3 + $0x80] sm:$0xff] %vm1033, %v1341
      %1420 = vst.msk [vmem:[#allocation3 + $0x88] sm:$0xff] %vm1033, %v1344
      %1421 = vst.msk [vmem:[#allocation3 + $0x90] sm:$0xff] %vm1033, %v1349
      %1422 = vst.msk [vmem:[#allocation3 + $0x98] sm:$0xff] %vm1033, %v1352
      %1423 = vst.msk [vmem:[#allocation3 + $0xa0] sm:$0xff] %vm1033, %v1357
      %1424 = vst.msk [vmem:[#allocation3 + $0xa8] sm:$0xff] %vm1033, %v1360
      %1425 = vst.msk [vmem:[#allocation3 + $0xb0] sm:$0xff] %vm1033, %v1365
      %1426 = vst.msk [vmem:[#allocation3 + $0xb8] sm:$0xff] %vm1033, %v1368
      %1427 = vst.msk [vmem:[#allocation3 + $0xc0] sm:$0xff] %vm1033, %v1373
      %1428 = vst.msk [vmem:[#allocation3 + $0xc8] sm:$0xff] %vm1033, %v1376
      %1429 = vst.msk [vmem:[#allocation3 + $0xd0] sm:$0xff] %vm1033, %v1381
      %1430 = vst.msk [vmem:[#allocation3 + $0xd8] sm:$0xff] %vm1033, %v1384
      %1431 = vst.msk [vmem:[#allocation3 + $0xe0] sm:$0xff] %vm1033, %v1389
      %1432 = vst.msk [vmem:[#allocation3 + $0xe8] sm:$0xff] %vm1033, %v1392
      %1433 = vst.msk [vmem:[#allocation3 + $0xf0] sm:$0xff] %vm1033, %v1397
      %1434 = vst.msk [vmem:[#allocation3 + $0xf8] sm:$0xff] %vm1033, %v1400
      %s1435 = scalar_lea.vmem [#allocation2], 8
      %v1436 = vld [vmem:[%s1435] sm:$0xff]
      %v1437 = vld [vmem:[%s1435 + $0x8] sm:$0xff]
      %v1438 = vld [vmem:[%s1435 + $0x10] sm:$0xff]
      %v1439 = vld [vmem:[%s1435 + $0x18] sm:$0xff]
      %v1440 = vld [vmem:[%s1435 + $0x20] sm:$0xff]
      %v1441 = vld [vmem:[%s1435 + $0x28] sm:$0xff]
      %v1442 = vld [vmem:[%s1435 + $0x30] sm:$0xff]
      %v1443 = vld [vmem:[%s1435 + $0x38] sm:$0xff]
      %v1444 = vld [vmem:[%s1435 + $0x40] sm:$0xff]
      %v1445 = vld [vmem:[%s1435 + $0x48] sm:$0xff]
      %v1446 = vld [vmem:[%s1435 + $0x50] sm:$0xff]
      %v1447 = vld [vmem:[%s1435 + $0x58] sm:$0xff]
      %v1448 = vld [vmem:[%s1435 + $0x60] sm:$0xff]
      %v1449 = vld [vmem:[%s1435 + $0x68] sm:$0xff]
      %v1450 = vld [vmem:[%s1435 + $0x70] sm:$0xff]
      %v1451 = vld [vmem:[%s1435 + $0x78] sm:$0xff]
      %s1452 = scalar_lea.vmem %s3, 12
      %v1453 = vld [vmem:[%s1452] sm:$0xf]
      %v1454 = vld [vmem:[%s1452 + $0x4] sm:$0xf]
      %v1455 = vld [vmem:[%s1452 + $0x8] sm:$0xf]
      %v1459 = vunpack.c.l.b16 %v1453
      %v1460 = vunpack.c.l.b16 %v1454
      %v1461 = vunpack.c.l.b16 %v1455
      %v1462 = vpack.c.b16 %v1460, %v1459
      %v1463 = vpack.c.b16 %v1461, %v1461
      %v1466 = vsel %vm1143, %v1436, 0
      %v1469 = vsel %vm1143, %v1437, 0
      %v1472 = vsel %vm1143, %v1438, 0
      %v1475 = vsel %vm1143, %v1439, 0
      %v1478 = vsel %vm1143, %v1440, 0
      %v1481 = vsel %vm1143, %v1441, 0
      %v1484 = vsel %vm1143, %v1442, 0
      %v1487 = vsel %vm1143, %v1443, 0
      %v1490 = vsel %vm1143, %v1444, 0
      %v1493 = vsel %vm1143, %v1445, 0
      %v1496 = vsel %vm1143, %v1446, 0
      %v1499 = vsel %vm1143, %v1447, 0
      %v1502 = vsel %vm1143, %v1448, 0
      %v1505 = vsel %vm1143, %v1449, 0
      %v1508 = vsel %vm1143, %v1450, 0
      %v1511 = vsel %vm1143, %v1451, 0
      %v1514 = vsel %vm1238, %v1463, 0
      %1516 = vmatprep.subr.bf16.mxu0 0
      %1517 = vmatpush1.bf16.msra.mxu0 %v1462
      %1518 = vmatprep.subr.bf16.mxu0 0
      %1519 = vmatpush1.bf16.msra.mxu0 %v1514
      %1520 = vmatprep.subr.bf16.mxu0 0
      %1521 = vmatpush1.bf16.msra.mxu0 0
      %1522 = vmatprep.subr.bf16.mxu0 0
      %1523 = vmatpush1.bf16.msra.mxu0 0
      %1524 = vmatprep.subr.bf16.mxu0 0
      %1525 = vmatpush1.bf16.msra.mxu0 0
      %1526 = vmatprep.subr.bf16.mxu0 0
      %1527 = vmatpush1.bf16.msra.mxu0 0
      %1528 = vmatprep.subr.bf16.mxu0 0
      %1529 = vmatpush1.bf16.msra.mxu0 0
      %1530 = vmatprep.subr.bf16.mxu0 0
      %1531 = vmatpush1.bf16.msra.mxu0 0
      %1532 = vmatprep.subr.bf16.mxu0 0
      %1533 = vmatpush1.bf16.msra.mxu0 0
      %1534 = vmatprep.subr.bf16.mxu0 0
      %1535 = vmatpush1.bf16.msra.mxu0 0
      %1536 = vmatprep.subr.bf16.mxu0 0
      %1537 = vmatpush1.bf16.msra.mxu0 0
      %1538 = vmatprep.subr.bf16.mxu0 0
      %1539 = vmatpush1.bf16.msra.mxu0 0
      %1540 = vmatprep.subr.bf16.mxu0 0
      %1541 = vmatpush1.bf16.msra.mxu0 0
      %1542 = vmatprep.subr.bf16.mxu0 0
      %1543 = vmatpush1.bf16.msra.mxu0 0
      %1544 = vmatprep.subr.bf16.mxu0 0
      %1545 = vmatpush1.bf16.msra.mxu0 0
      %1546 = vmatprep.subr.bf16.mxu0 0
      %1547 = vmatpush1.bf16.msra.mxu0 0
      %1548 = vmatprep.mubr.bf16.mxu0 0
      %1549 = vmatmul.mubr.bf16.gmra.mrb[0].mxu0 %v1466
      %v1550 = vpop.f32.mrb[0].mxu0
      %v1551 = vadd.f32 0.0, %v1550
      %v1552 = vpop.f32.mrb[0].mxu0
      %v1553 = vpop.f32.mrb[0].mxu0
      %v1554 = vadd.f32 0.0, %v1553
      %v1555 = vpop.f32.mrb[0].mxu0
      %1556 = vmatprep.mubr.bf16.mxu0 0
      %1557 = vmatmul.mubr.bf16.gmra.mrb[0].mxu0 %v1469
      %v1558 = vpop.f32.mrb[0].mxu0
      %v1559 = vadd.f32 0.0, %v1558
      %v1560 = vpop.f32.mrb[0].mxu0
      %v1561 = vpop.f32.mrb[0].mxu0
      %v1562 = vadd.f32 0.0, %v1561
      %v1563 = vpop.f32.mrb[0].mxu0
      %1564 = vmatprep.mubr.bf16.mxu0 0
      %1565 = vmatmul.mubr.bf16.gmra.mrb[0].mxu0 %v1472
      %v1566 = vpop.f32.mrb[0].mxu0
      %v1567 = vadd.f32 0.0, %v1566
      %v1568 = vpop.f32.mrb[0].mxu0
      %v1569 = vpop.f32.mrb[0].mxu0
      %v1570 = vadd.f32 0.0, %v1569
      %v1571 = vpop.f32.mrb[0].mxu0
      %1572 = vmatprep.mubr.bf16.mxu0 0
      %1573 = vmatmul.mubr.bf16.gmra.mrb[0].mxu0 %v1475
      %v1574 = vpop.f32.mrb[0].mxu0
      %v1575 = vadd.f32 0.0, %v1574
      %v1576 = vpop.f32.mrb[0].mxu0
      %v1577 = vpop.f32.mrb[0].mxu0
      %v1578 = vadd.f32 0.0, %v1577
      %v1579 = vpop.f32.mrb[0].mxu0
      %1580 = vmatprep.mubr.bf16.mxu0 0
      %1581 = vmatmul.mubr.bf16.gmra.mrb[0].mxu0 %v1478
      %v1582 = vpop.f32.mrb[0].mxu0
      %v1583 = vadd.f32 0.0, %v1582
      %v1584 = vpop.f32.mrb[0].mxu0
      %v1585 = vpop.f32.mrb[0].mxu0
      %v1586 = vadd.f32 0.0, %v1585
      %v1587 = vpop.f32.mrb[0].mxu0
      %1588 = vmatprep.mubr.bf16.mxu0 0
      %1589 = vmatmul.mubr.bf16.gmra.mrb[0].mxu0 %v1481
      %v1590 = vpop.f32.mrb[0].mxu0
      %v1591 = vadd.f32 0.0, %v1590
      %v1592 = vpop.f32.mrb[0].mxu0
      %v1593 = vpop.f32.mrb[0].mxu0
      %v1594 = vadd.f32 0.0, %v1593
      %v1595 = vpop.f32.mrb[0].mxu0
      %1596 = vmatprep.mubr.bf16.mxu0 0
      %1597 = vmatmul.mubr.bf16.gmra.mrb[0].mxu0 %v1484
      %v1598 = vpop.f32.mrb[0].mxu0
      %v1599 = vadd.f32 0.0, %v1598
      %v1600 = vpop.f32.mrb[0].mxu0
      %v1601 = vpop.f32.mrb[0].mxu0
      %v1602 = vadd.f32 0.0, %v1601
      %v1603 = vpop.f32.mrb[0].mxu0
      %1604 = vmatprep.mubr.bf16.mxu0 0
      %1605 = vmatmul.mubr.bf16.gmra.mrb[0].mxu0 %v1487
      %v1606 = vpop.f32.mrb[0].mxu0
      %v1607 = vadd.f32 0.0, %v1606
      %v1608 = vpop.f32.mrb[0].mxu0
      %v1609 = vpop.f32.mrb[0].mxu0
      %v1610 = vadd.f32 0.0, %v1609
      %v1611 = vpop.f32.mrb[0].mxu0
      %1612 = vmatprep.mubr.bf16.mxu0 0
      %1613 = vmatmul.mubr.bf16.gmra.mrb[0].mxu0 %v1490
      %v1614 = vpop.f32.mrb[0].mxu0
      %v1615 = vadd.f32 0.0, %v1614
      %v1616 = vpop.f32.mrb[0].mxu0
      %v1617 = vpop.f32.mrb[0].mxu0
      %v1618 = vadd.f32 0.0, %v1617
      %v1619 = vpop.f32.mrb[0].mxu0
      %1620 = vmatprep.mubr.bf16.mxu0 0
      %1621 = vmatmul.mubr.bf16.gmra.mrb[0].mxu0 %v1493
      %v1622 = vpop.f32.mrb[0].mxu0
      %v1623 = vadd.f32 0.0, %v1622
      %v1624 = vpop.f32.mrb[0].mxu0
      %v1625 = vpop.f32.mrb[0].mxu0
      %v1626 = vadd.f32 0.0, %v1625
      %v1627 = vpop.f32.mrb[0].mxu0
      %1628 = vmatprep.mubr.bf16.mxu0 0
      %1629 = vmatmul.mubr.bf16.gmra.mrb[0].mxu0 %v1496
      %v1630 = vpop.f32.mrb[0].mxu0
      %v1631 = vadd.f32 0.0, %v1630
      %v1632 = vpop.f32.mrb[0].mxu0
      %v1633 = vpop.f32.mrb[0].mxu0
      %v1634 = vadd.f32 0.0, %v1633
      %v1635 = vpop.f32.mrb[0].mxu0
      %1636 = vmatprep.mubr.bf16.mxu0 0
      %1637 = vmatmul.mubr.bf16.gmra.mrb[0].mxu0 %v1499
      %v1638 = vpop.f32.mrb[0].mxu0
      %v1639 = vadd.f32 0.0, %v1638
      %v1640 = vpop.f32.mrb[0].mxu0
      %v1641 = vpop.f32.mrb[0].mxu0
      %v1642 = vadd.f32 0.0, %v1641
      %v1643 = vpop.f32.mrb[0].mxu0
      %1644 = vmatprep.mubr.bf16.mxu0 0
      %1645 = vmatmul.mubr.bf16.gmra.mrb[0].mxu0 %v1502
      %v1646 = vpop.f32.mrb[0].mxu0
      %v1647 = vadd.f32 0.0, %v1646
      %v1648 = vpop.f32.mrb[0].mxu0
      %v1649 = vpop.f32.mrb[0].mxu0
      %v1650 = vadd.f32 0.0, %v1649
      %v1651 = vpop.f32.mrb[0].mxu0
      %1652 = vmatprep.mubr.bf16.mxu0 0
      %1653 = vmatmul.mubr.bf16.gmra.mrb[0].mxu0 %v1505
      %v1654 = vpop.f32.mrb[0].mxu0
      %v1655 = vadd.f32 0.0, %v1654
      %v1656 = vpop.f32.mrb[0].mxu0
      %v1657 = vpop.f32.mrb[0].mxu0
      %v1658 = vadd.f32 0.0, %v1657
      %v1659 = vpop.f32.mrb[0].mxu0
      %1660 = vmatprep.mubr.bf16.mxu0 0
      %1661 = vmatmul.mubr.bf16.gmra.mrb[0].mxu0 %v1508
      %v1662 = vpop.f32.mrb[0].mxu0
      %v1663 = vadd.f32 0.0, %v1662
      %v1664 = vpop.f32.mrb[0].mxu0
      %v1665 = vpop.f32.mrb[0].mxu0
      %v1666 = vadd.f32 0.0, %v1665
      %v1667 = vpop.f32.mrb[0].mxu0
      %1668 = vmatprep.mubr.bf16.mxu0 0
      %1669 = vmatmul.mubr.bf16.gmra.mrb[0].mxu0 %v1511
      %v1670 = vpop.f32.mrb[0].mxu0
      %v1671 = vadd.f32 0.0, %v1670
      %v1672 = vpop.f32.mrb[0].mxu0
      %v1673 = vpop.f32.mrb[0].mxu0
      %v1674 = vadd.f32 0.0, %v1673
      %v1675 = vpop.f32.mrb[0].mxu0
      %1676 = vdwg.mxu0
      %v1677 = vld [vmem:[#allocation3] sm:$0xff]
      %v1678 = vld [vmem:[#allocation3 + $0x8] sm:$0xff]
      %v1679 = vld [vmem:[#allocation3 + $0x10] sm:$0xff]
      %v1680 = vld [vmem:[#allocation3 + $0x18] sm:$0xff]
      %v1681 = vld [vmem:[#allocation3 + $0x20] sm:$0xff]
      %v1682 = vld [vmem:[#allocation3 + $0x28] sm:$0xff]
      %v1683 = vld [vmem:[#allocation3 + $0x30] sm:$0xff]
      %v1684 = vld [vmem:[#allocation3 + $0x38] sm:$0xff]
      %v1685 = vld [vmem:[#allocation3 + $0x40] sm:$0xff]
      %v1686 = vld [vmem:[#allocation3 + $0x48] sm:$0xff]
      %v1687 = vld [vmem:[#allocation3 + $0x50] sm:$0xff]
      %v1688 = vld [vmem:[#allocation3 + $0x58] sm:$0xff]
      %v1689 = vld [vmem:[#allocation3 + $0x60] sm:$0xff]
      %v1690 = vld [vmem:[#allocation3 + $0x68] sm:$0xff]
      %v1691 = vld [vmem:[#allocation3 + $0x70] sm:$0xff]
      %v1692 = vld [vmem:[#allocation3 + $0x78] sm:$0xff]
      %v1693 = vld [vmem:[#allocation3 + $0x80] sm:$0xff]
      %v1694 = vld [vmem:[#allocation3 + $0x88] sm:$0xff]
      %v1695 = vld [vmem:[#allocation3 + $0x90] sm:$0xff]
      %v1696 = vld [vmem:[#allocation3 + $0x98] sm:$0xff]
      %v1697 = vld [vmem:[#allocation3 + $0xa0] sm:$0xff]
      %v1698 = vld [vmem:[#allocation3 + $0xa8] sm:$0xff]
      %v1699 = vld [vmem:[#allocation3 + $0xb0] sm:$0xff]
      %v1700 = vld [vmem:[#allocation3 + $0xb8] sm:$0xff]
      %v1701 = vld [vmem:[#allocation3 + $0xc0] sm:$0xff]
      %v1702 = vld [vmem:[#allocation3 + $0xc8] sm:$0xff]
      %v1703 = vld [vmem:[#allocation3 + $0xd0] sm:$0xff]
      %v1704 = vld [vmem:[#allocation3 + $0xd8] sm:$0xff]
      %v1705 = vld [vmem:[#allocation3 + $0xe0] sm:$0xff]
      %v1706 = vld [vmem:[#allocation3 + $0xe8] sm:$0xff]
      %v1707 = vld [vmem:[#allocation3 + $0xf0] sm:$0xff]
      %v1708 = vld [vmem:[#allocation3 + $0xf8] sm:$0xff]
      %v1709 = vadd.f32 %v1677, %v1551
      %v1710 = vadd.f32 %v1678, %v1554
      %v1711 = vadd.f32 %v1679, %v1559
      %v1712 = vadd.f32 %v1680, %v1562
      %v1713 = vadd.f32 %v1681, %v1567
      %v1714 = vadd.f32 %v1682, %v1570
      %v1715 = vadd.f32 %v1683, %v1575
      %v1716 = vadd.f32 %v1684, %v1578
      %v1717 = vadd.f32 %v1685, %v1583
      %v1718 = vadd.f32 %v1686, %v1586
      %v1719 = vadd.f32 %v1687, %v1591
      %v1720 = vadd.f32 %v1688, %v1594
      %v1721 = vadd.f32 %v1689, %v1599
      %v1722 = vadd.f32 %v1690, %v1602
      %v1723 = vadd.f32 %v1691, %v1607
      %v1724 = vadd.f32 %v1692, %v1610
      %v1725 = vadd.f32 %v1693, %v1615
      %v1726 = vadd.f32 %v1694, %v1618
      %v1727 = vadd.f32 %v1695, %v1623
      %v1728 = vadd.f32 %v1696, %v1626
      %v1729 = vadd.f32 %v1697, %v1631
      %v1730 = vadd.f32 %v1698, %v1634
      %v1731 = vadd.f32 %v1699, %v1639
      %v1732 = vadd.f32 %v1700, %v1642
      %v1733 = vadd.f32 %v1701, %v1647
      %v1734 = vadd.f32 %v1702, %v1650
      %v1735 = vadd.f32 %v1703, %v1655
      %v1736 = vadd.f32 %v1704, %v1658
      %v1737 = vadd.f32 %v1705, %v1663
      %v1738 = vadd.f32 %v1706, %v1666
      %v1739 = vadd.f32 %v1707, %v1671
      %v1740 = vadd.f32 %v1708, %v1674
      %1741 = vst.msk [vmem:[#allocation3] sm:$0xff] %vm1033, %v1709
      %1742 = vst.msk [vmem:[#allocation3 + $0x8] sm:$0xff] %vm1033, %v1710
      %1743 = vst.msk [vmem:[#allocation3 + $0x10] sm:$0xff] %vm1033, %v1711
      %1744 = vst.msk [vmem:[#allocation3 + $0x18] sm:$0xff] %vm1033, %v1712
      %1745 = vst.msk [vmem:[#allocation3 + $0x20] sm:$0xff] %vm1033, %v1713
      %1746 = vst.msk [vmem:[#allocation3 + $0x28] sm:$0xff] %vm1033, %v1714
      %1747 = vst.msk [vmem:[#allocation3 + $0x30] sm:$0xff] %vm1033, %v1715
      %1748 = vst.msk [vmem:[#allocation3 + $0x38] sm:$0xff] %vm1033, %v1716
      %1749 = vst.msk [vmem:[#allocation3 + $0x40] sm:$0xff] %vm1033, %v1717
      %1750 = vst.msk [vmem:[#allocation3 + $0x48] sm:$0xff] %vm1033, %v1718
      %1751 = vst.msk [vmem:[#allocation3 + $0x50] sm:$0xff] %vm1033, %v1719
      %1752 = vst.msk [vmem:[#allocation3 + $0x58] sm:$0xff] %vm1033, %v1720
      %1753 = vst.msk [vmem:[#allocation3 + $0x60] sm:$0xff] %vm1033, %v1721
      %1754 = vst.msk [vmem:[#allocation3 + $0x68] sm:$0xff] %vm1033, %v1722
      %1755 = vst.msk [vmem:[#allocation3 + $0x70] sm:$0xff] %vm1033, %v1723
      %1756 = vst.msk [vmem:[#allocation3 + $0x78] sm:$0xff] %vm1033, %v1724
      %1757 = vst.msk [vmem:[#allocation3 + $0x80] sm:$0xff] %vm1033, %v1725
      %1758 = vst.msk [vmem:[#allocation3 + $0x88] sm:$0xff] %vm1033, %v1726
      %1759 = vst.msk [vmem:[#allocation3 + $0x90] sm:$0xff] %vm1033, %v1727
      %1760 = vst.msk [vmem:[#allocation3 + $0x98] sm:$0xff] %vm1033, %v1728
      %1761 = vst.msk [vmem:[#allocation3 + $0xa0] sm:$0xff] %vm1033, %v1729
      %1762 = vst.msk [vmem:[#allocation3 + $0xa8] sm:$0xff] %vm1033, %v1730
      %1763 = vst.msk [vmem:[#allocation3 + $0xb0] sm:$0xff] %vm1033, %v1731
      %1764 = vst.msk [vmem:[#allocation3 + $0xb8] sm:$0xff] %vm1033, %v1732
      %1765 = vst.msk [vmem:[#allocation3 + $0xc0] sm:$0xff] %vm1033, %v1733
      %1766 = vst.msk [vmem:[#allocation3 + $0xc8] sm:$0xff] %vm1033, %v1734
      %1767 = vst.msk [vmem:[#allocation3 + $0xd0] sm:$0xff] %vm1033, %v1735
      %1768 = vst.msk [vmem:[#allocation3 + $0xd8] sm:$0xff] %vm1033, %v1736
      %1769 = vst.msk [vmem:[#allocation3 + $0xe0] sm:$0xff] %vm1033, %v1737
      %1770 = vst.msk [vmem:[#allocation3 + $0xe8] sm:$0xff] %vm1033, %v1738
      %1771 = vst.msk [vmem:[#allocation3 + $0xf0] sm:$0xff] %vm1033, %v1739
      %1772 = vst.msk [vmem:[#allocation3 + $0xf8] sm:$0xff] %vm1033, %v1740
      %s1773 = scalar_lea.vmem [#allocation2], 16
      %v1774 = vld [vmem:[%s1773] sm:$0xff]
      %v1775 = vld [vmem:[%s1773 + $0x8] sm:$0xff]
      %v1776 = vld [vmem:[%s1773 + $0x10] sm:$0xff]
      %v1777 = vld [vmem:[%s1773 + $0x18] sm:$0xff]
      %v1778 = vld [vmem:[%s1773 + $0x20] sm:$0xff]
      %v1779 = vld [vmem:[%s1773 + $0x28] sm:$0xff]
      %v1780 = vld [vmem:[%s1773 + $0x30] sm:$0xff]
      %v1781 = vld [vmem:[%s1773 + $0x38] sm:$0xff]
      %v1782 = vld [vmem:[%s1773 + $0x40] sm:$0xff]
      %v1783 = vld [vmem:[%s1773 + $0x48] sm:$0xff]
      %v1784 = vld [vmem:[%s1773 + $0x50] sm:$0xff]
      %v1785 = vld [vmem:[%s1773 + $0x58] sm:$0xff]
      %v1786 = vld [vmem:[%s1773 + $0x60] sm:$0xff]
      %v1787 = vld [vmem:[%s1773 + $0x68] sm:$0xff]
      %v1788 = vld [vmem:[%s1773 + $0x70] sm:$0xff]
      %v1789 = vld [vmem:[%s1773 + $0x78] sm:$0xff]
      %s1790 = scalar_lea.vmem %s3, 24
      %v1791 = vld [vmem:[%s1790] sm:$0xf]
      %v1792 = vld [vmem:[%s1790 + $0x4] sm:$0xf]
      %v1793 = vld [vmem:[%s1790 + $0x8] sm:$0xf]
      %v1797 = vunpack.c.l.b16 %v1791
      %v1798 = vunpack.c.l.b16 %v1792
      %v1799 = vunpack.c.l.b16 %v1793
      %v1800 = vpack.c.b16 %v1798, %v1797
      %v1801 = vpack.c.b16 %v1799, %v1799
      %v1804 = vsel %vm1143, %v1774, 0
      %v1807 = vsel %vm1143, %v1775, 0
      %v1810 = vsel %vm1143, %v1776, 0
      %v1813 = vsel %vm1143, %v1777, 0
      %v1816 = vsel %vm1143, %v1778, 0
      %v1819 = vsel %vm1143, %v1779, 0
      %v1822 = vsel %vm1143, %v1780, 0
      %v1825 = vsel %vm1143, %v1781, 0
      %v1828 = vsel %vm1143, %v1782, 0
      %v1831 = vsel %vm1143, %v1783, 0
      %v1834 = vsel %vm1143, %v1784, 0
      %v1837 = vsel %vm1143, %v1785, 0
      %v1840 = vsel %vm1143, %v1786, 0
      %v1843 = vsel %vm1143, %v1787, 0
      %v1846 = vsel %vm1143, %v1788, 0
      %v1849 = vsel %vm1143, %v1789, 0
      %v1852 = vsel %vm1238, %v1801, 0
      %1854 = vmatprep.subr.bf16.mxu0 0
      %1855 = vmatpush1.bf16.msra.mxu0 %v1800
      %1856 = vmatprep.subr.bf16.mxu0 0
      %1857 = vmatpush1.bf16.msra.mxu0 %v1852
      %1858 = vmatprep.subr.bf16.mxu0 0
      %1859 = vmatpush1.bf16.msra.mxu0 0
      %1860 = vmatprep.subr.bf16.mxu0 0
      %1861 = vmatpush1.bf16.msra.mxu0 0
      %1862 = vmatprep.subr.bf16.mxu0 0
      %1863 = vmatpush1.bf16.msra.mxu0 0
      %1864 = vmatprep.subr.bf16.mxu0 0
      %1865 = vmatpush1.bf16.msra.mxu0 0
      %1866 = vmatprep.subr.bf16.mxu0 0
      %1867 = vmatpush1.bf16.msra.mxu0 0
      %1868 = vmatprep.subr.bf16.mxu0 0
      %1869 = vmatpush1.bf16.msra.mxu0 0
      %1870 = vmatprep.subr.bf16.mxu0 0
      %1871 = vmatpush1.bf16.msra.mxu0 0
      %1872 = vmatprep.subr.bf16.mxu0 0
      %1873 = vmatpush1.bf16.msra.mxu0 0
      %1874 = vmatprep.subr.bf16.mxu0 0
      %1875 = vmatpush1.bf16.msra.mxu0 0
      %1876 = vmatprep.subr.bf16.mxu0 0
      %1877 = vmatpush1.bf16.msra.mxu0 0
      %1878 = vmatprep.subr.bf16.mxu0 0
      %1879 = vmatpush1.bf16.msra.mxu0 0
      %1880 = vmatprep.subr.bf16.mxu0 0
      %1881 = vmatpush1.bf16.msra.mxu0 0
      %1882 = vmatprep.subr.bf16.mxu0 0
      %1883 = vmatpush1.bf16.msra.mxu0 0
      %1884 = vmatprep.subr.bf16.mxu0 0
      %1885 = vmatpush1.bf16.msra.mxu0 0
      %1886 = vmatprep.mubr.bf16.mxu0 0
      %1887 = vmatmul.mubr.bf16.gmra.mrb[0].mxu0 %v1804
      %v1888 = vpop.f32.mrb[0].mxu0
      %v1889 = vadd.f32 0.0, %v1888
      %v1890 = vpop.f32.mrb[0].mxu0
      %v1891 = vpop.f32.mrb[0].mxu0
      %v1892 = vadd.f32 0.0, %v1891
      %v1893 = vpop.f32.mrb[0].mxu0
      %1894 = vmatprep.mubr.bf16.mxu0 0
      %1895 = vmatmul.mubr.bf16.gmra.mrb[0].mxu0 %v1807
      %v1896 = vpop.f32.mrb[0].mxu0
      %v1897 = vadd.f32 0.0, %v1896
      %v1898 = vpop.f32.mrb[0].mxu0
      %v1899 = vpop.f32.mrb[0].mxu0
      %v1900 = vadd.f32 0.0, %v1899
      %v1901 = vpop.f32.mrb[0].mxu0
      %1902 = vmatprep.mubr.bf16.mxu0 0
      %1903 = vmatmul.mubr.bf16.gmra.mrb[0].mxu0 %v1810
      %v1904 = vpop.f32.mrb[0].mxu0
      %v1905 = vadd.f32 0.0, %v1904
      %v1906 = vpop.f32.mrb[0].mxu0
      %v1907 = vpop.f32.mrb[0].mxu0
      %v1908 = vadd.f32 0.0, %v1907
      %v1909 = vpop.f32.mrb[0].mxu0
      %1910 = vmatprep.mubr.bf16.mxu0 0
      %1911 = vmatmul.mubr.bf16.gmra.mrb[0].mxu0 %v1813
      %v1912 = vpop.f32.mrb[0].mxu0
      %v1913 = vadd.f32 0.0, %v1912
      %v1914 = vpop.f32.mrb[0].mxu0
      %v1915 = vpop.f32.mrb[0].mxu0
      %v1916 = vadd.f32 0.0, %v1915
      %v1917 = vpop.f32.mrb[0].mxu0
      %1918 = vmatprep.mubr.bf16.mxu0 0
      %1919 = vmatmul.mubr.bf16.gmra.mrb[0].mxu0 %v1816
      %v1920 = vpop.f32.mrb[0].mxu0
      %v1921 = vadd.f32 0.0, %v1920
      %v1922 = vpop.f32.mrb[0].mxu0
      %v1923 = vpop.f32.mrb[0].mxu0
      %v1924 = vadd.f32 0.0, %v1923
      %v1925 = vpop.f32.mrb[0].mxu0
      %1926 = vmatprep.mubr.bf16.mxu0 0
      %1927 = vmatmul.mubr.bf16.gmra.mrb[0].mxu0 %v1819
      %v1928 = vpop.f32.mrb[0].mxu0
      %v1929 = vadd.f32 0.0, %v1928
      %v1930 = vpop.f32.mrb[0].mxu0
      %v1931 = vpop.f32.mrb[0].mxu0
      %v1932 = vadd.f32 0.0, %v1931
      %v1933 = vpop.f32.mrb[0].mxu0
      %1934 = vmatprep.mubr.bf16.mxu0 0
      %1935 = vmatmul.mubr.bf16.gmra.mrb[0].mxu0 %v1822
      %v1936 = vpop.f32.mrb[0].mxu0
      %v1937 = vadd.f32 0.0, %v1936
      %v1938 = vpop.f32.mrb[0].mxu0
      %v1939 = vpop.f32.mrb[0].mxu0
      %v1940 = vadd.f32 0.0, %v1939
      %v1941 = vpop.f32.mrb[0].mxu0
      %1942 = vmatprep.mubr.bf16.mxu0 0
      %1943 = vmatmul.mubr.bf16.gmra.mrb[0].mxu0 %v1825
      %v1944 = vpop.f32.mrb[0].mxu0
      %v1945 = vadd.f32 0.0, %v1944
      %v1946 = vpop.f32.mrb[0].mxu0
      %v1947 = vpop.f32.mrb[0].mxu0
      %v1948 = vadd.f32 0.0, %v1947
      %v1949 = vpop.f32.mrb[0].mxu0
      %1950 = vmatprep.mubr.bf16.mxu0 0
      %1951 = vmatmul.mubr.bf16.gmra.mrb[0].mxu0 %v1828
      %v1952 = vpop.f32.mrb[0].mxu0
      %v1953 = vadd.f32 0.0, %v1952
      %v1954 = vpop.f32.mrb[0].mxu0
      %v1955 = vpop.f32.mrb[0].mxu0
      %v1956 = vadd.f32 0.0, %v1955
      %v1957 = vpop.f32.mrb[0].mxu0
      %1958 = vmatprep.mubr.bf16.mxu0 0
      %1959 = vmatmul.mubr.bf16.gmra.mrb[0].mxu0 %v1831
      %v1960 = vpop.f32.mrb[0].mxu0
      %v1961 = vadd.f32 0.0, %v1960
      %v1962 = vpop.f32.mrb[0].mxu0
      %v1963 = vpop.f32.mrb[0].mxu0
      %v1964 = vadd.f32 0.0, %v1963
      %v1965 = vpop.f32.mrb[0].mxu0
      %1966 = vmatprep.mubr.bf16.mxu0 0
      %1967 = vmatmul.mubr.bf16.gmra.mrb[0].mxu0 %v1834
      %v1968 = vpop.f32.mrb[0].mxu0
      %v1969 = vadd.f32 0.0, %v1968
      %v1970 = vpop.f32.mrb[0].mxu0
      %v1971 = vpop.f32.mrb[0].mxu0
      %v1972 = vadd.f32 0.0, %v1971
      %v1973 = vpop.f32.mrb[0].mxu0
      %1974 = vmatprep.mubr.bf16.mxu0 0
      %1975 = vmatmul.mubr.bf16.gmra.mrb[0].mxu0 %v1837
      %v1976 = vpop.f32.mrb[0].mxu0
      %v1977 = vadd.f32 0.0, %v1976
      %v1978 = vpop.f32.mrb[0].mxu0
      %v1979 = vpop.f32.mrb[0].mxu0
      %v1980 = vadd.f32 0.0, %v1979
      %v1981 = vpop.f32.mrb[0].mxu0
      %1982 = vmatprep.mubr.bf16.mxu0 0
      %1983 = vmatmul.mubr.bf16.gmra.mrb[0].mxu0 %v1840
      %v1984 = vpop.f32.mrb[0].mxu0
      %v1985 = vadd.f32 0.0, %v1984
      %v1986 = vpop.f32.mrb[0].mxu0
      %v1987 = vpop.f32.mrb[0].mxu0
      %v1988 = vadd.f32 0.0, %v1987
      %v1989 = vpop.f32.mrb[0].mxu0
      %1990 = vmatprep.mubr.bf16.mxu0 0
      %1991 = vmatmul.mubr.bf16.gmra.mrb[0].mxu0 %v1843
      %v1992 = vpop.f32.mrb[0].mxu0
      %v1993 = vadd.f32 0.0, %v1992
      %v1994 = vpop.f32.mrb[0].mxu0
      %v1995 = vpop.f32.mrb[0].mxu0
      %v1996 = vadd.f32 0.0, %v1995
      %v1997 = vpop.f32.mrb[0].mxu0
      %1998 = vmatprep.mubr.bf16.mxu0 0
      %1999 = vmatmul.mubr.bf16.gmra.mrb[0].mxu0 %v1846
      %v2000 = vpop.f32.mrb[0].mxu0
      %v2001 = vadd.f32 0.0, %v2000
      %v2002 = vpop.f32.mrb[0].mxu0
      %v2003 = vpop.f32.mrb[0].mxu0
      %v2004 = vadd.f32 0.0, %v2003
      %v2005 = vpop.f32.mrb[0].mxu0
      %2006 = vmatprep.mubr.bf16.mxu0 0
      %2007 = vmatmul.mubr.bf16.gmra.mrb[0].mxu0 %v1849
      %v2008 = vpop.f32.mrb[0].mxu0
      %v2009 = vadd.f32 0.0, %v2008
      %v2010 = vpop.f32.mrb[0].mxu0
      %v2011 = vpop.f32.mrb[0].mxu0
      %v2012 = vadd.f32 0.0, %v2011
      %v2013 = vpop.f32.mrb[0].mxu0
      %2014 = vdwg.mxu0
      %v2015 = vld [vmem:[#allocation3] sm:$0xff]
      %v2016 = vld [vmem:[#allocation3 + $0x8] sm:$0xff]
      %v2017 = vld [vmem:[#allocation3 + $0x10] sm:$0xff]
      %v2018 = vld [vmem:[#allocation3 + $0x18] sm:$0xff]
      %v2019 = vld [vmem:[#allocation3 + $0x20] sm:$0xff]
      %v2020 = vld [vmem:[#allocation3 + $0x28] sm:$0xff]
      %v2021 = vld [vmem:[#allocation3 + $0x30] sm:$0xff]
      %v2022 = vld [vmem:[#allocation3 + $0x38] sm:$0xff]
      %v2023 = vld [vmem:[#allocation3 + $0x40] sm:$0xff]
      %v2024 = vld [vmem:[#allocation3 + $0x48] sm:$0xff]
      %v2025 = vld [vmem:[#allocation3 + $0x50] sm:$0xff]
      %v2026 = vld [vmem:[#allocation3 + $0x58] sm:$0xff]
      %v2027 = vld [vmem:[#allocation3 + $0x60] sm:$0xff]
      %v2028 = vld [vmem:[#allocation3 + $0x68] sm:$0xff]
      %v2029 = vld [vmem:[#allocation3 + $0x70] sm:$0xff]
      %v2030 = vld [vmem:[#allocation3 + $0x78] sm:$0xff]
      %v2031 = vld [vmem:[#allocation3 + $0x80] sm:$0xff]
      %v2032 = vld [vmem:[#allocation3 + $0x88] sm:$0xff]
      %v2033 = vld [vmem:[#allocation3 + $0x90] sm:$0xff]
      %v2034 = vld [vmem:[#allocation3 + $0x98] sm:$0xff]
      %v2035 = vld [vmem:[#allocation3 + $0xa0] sm:$0xff]
      %v2036 = vld [vmem:[#allocation3 + $0xa8] sm:$0xff]
      %v2037 = vld [vmem:[#allocation3 + $0xb0] sm:$0xff]
      %v2038 = vld [vmem:[#allocation3 + $0xb8] sm:$0xff]
      %v2039 = vld [vmem:[#allocation3 + $0xc0] sm:$0xff]
      %v2040 = vld [vmem:[#allocation3 + $0xc8] sm:$0xff]
      %v2041 = vld [vmem:[#allocation3 + $0xd0] sm:$0xff]
      %v2042 = vld [vmem:[#allocation3 + $0xd8] sm:$0xff]
      %v2043 = vld [vmem:[#allocation3 + $0xe0] sm:$0xff]
      %v2044 = vld [vmem:[#allocation3 + $0xe8] sm:$0xff]
      %v2045 = vld [vmem:[#allocation3 + $0xf0] sm:$0xff]
      %v2046 = vld [vmem:[#allocation3 + $0xf8] sm:$0xff]
      %v2047 = vadd.f32 %v2015, %v1889
      %v2048 = vadd.f32 %v2016, %v1892
      %v2049 = vadd.f32 %v2017, %v1897
      %v2050 = vadd.f32 %v2018, %v1900
      %v2051 = vadd.f32 %v2019, %v1905
      %v2052 = vadd.f32 %v2020, %v1908
      %v2053 = vadd.f32 %v2021, %v1913
      %v2054 = vadd.f32 %v2022, %v1916
      %v2055 = vadd.f32 %v2023, %v1921
      %v2056 = vadd.f32 %v2024, %v1924
      %v2057 = vadd.f32 %v2025, %v1929
      %v2058 = vadd.f32 %v2026, %v1932
      %v2059 = vadd.f32 %v2027, %v1937
      %v2060 = vadd.f32 %v2028, %v1940
      %v2061 = vadd.f32 %v2029, %v1945
      %v2062 = vadd.f32 %v2030, %v1948
      %v2063 = vadd.f32 %v2031, %v1953
      %v2064 = vadd.f32 %v2032, %v1956
      %v2065 = vadd.f32 %v2033, %v1961
      %v2066 = vadd.f32 %v2034, %v1964
      %v2067 = vadd.f32 %v2035, %v1969
      %v2068 = vadd.f32 %v2036, %v1972
      %v2069 = vadd.f32 %v2037, %v1977
      %v2070 = vadd.f32 %v2038, %v1980
      %v2071 = vadd.f32 %v2039, %v1985
      %v2072 = vadd.f32 %v2040, %v1988
      %v2073 = vadd.f32 %v2041, %v1993
      %v2074 = vadd.f32 %v2042, %v1996
      %v2075 = vadd.f32 %v2043, %v2001
      %v2076 = vadd.f32 %v2044, %v2004
      %v2077 = vadd.f32 %v2045, %v2009
      %v2078 = vadd.f32 %v2046, %v2012
      %2079 = vst.msk [vmem:[#allocation3] sm:$0xff] %vm1033, %v2047
      %2080 = vst.msk [vmem:[#allocation3 + $0x8] sm:$0xff] %vm1033, %v2048
      %2081 = vst.msk [vmem:[#allocation3 + $0x10] sm:$0xff] %vm1033, %v2049
      %2082 = vst.msk [vmem:[#allocation3 + $0x18] sm:$0xff] %vm1033, %v2050
      %2083 = vst.msk [vmem:[#allocation3 + $0x20] sm:$0xff] %vm1033, %v2051
      %2084 = vst.msk [vmem:[#allocation3 + $0x28] sm:$0xff] %vm1033, %v2052
      %2085 = vst.msk [vmem:[#allocation3 + $0x30] sm:$0xff] %vm1033, %v2053
      %2086 = vst.msk [vmem:[#allocation3 + $0x38] sm:$0xff] %vm1033, %v2054
      %2087 = vst.msk [vmem:[#allocation3 + $0x40] sm:$0xff] %vm1033, %v2055
      %2088 = vst.msk [vmem:[#allocation3 + $0x48] sm:$0xff] %vm1033, %v2056
      %2089 = vst.msk [vmem:[#allocation3 + $0x50] sm:$0xff] %vm1033, %v2057
      %2090 = vst.msk [vmem:[#allocation3 + $0x58] sm:$0xff] %vm1033, %v2058
      %2091 = vst.msk [vmem:[#allocation3 + $0x60] sm:$0xff] %vm1033, %v2059
      %2092 = vst.msk [vmem:[#allocation3 + $0x68] sm:$0xff] %vm1033, %v2060
      %2093 = vst.msk [vmem:[#allocation3 + $0x70] sm:$0xff] %vm1033, %v2061
      %2094 = vst.msk [vmem:[#allocation3 + $0x78] sm:$0xff] %vm1033, %v2062
      %2095 = vst.msk [vmem:[#allocation3 + $0x80] sm:$0xff] %vm1033, %v2063
      %2096 = vst.msk [vmem:[#allocation3 + $0x88] sm:$0xff] %vm1033, %v2064
      %2097 = vst.msk [vmem:[#allocation3 + $0x90] sm:$0xff] %vm1033, %v2065
      %2098 = vst.msk [vmem:[#allocation3 + $0x98] sm:$0xff] %vm1033, %v2066
      %2099 = vst.msk [vmem:[#allocation3 + $0xa0] sm:$0xff] %vm1033, %v2067
      %2100 = vst.msk [vmem:[#allocation3 + $0xa8] sm:$0xff] %vm1033, %v2068
      %2101 = vst.msk [vmem:[#allocation3 + $0xb0] sm:$0xff] %vm1033, %v2069
      %2102 = vst.msk [vmem:[#allocation3 + $0xb8] sm:$0xff] %vm1033, %v2070
      %2103 = vst.msk [vmem:[#allocation3 + $0xc0] sm:$0xff] %vm1033, %v2071
      %2104 = vst.msk [vmem:[#allocation3 + $0xc8] sm:$0xff] %vm1033, %v2072
      %2105 = vst.msk [vmem:[#allocation3 + $0xd0] sm:$0xff] %vm1033, %v2073
      %2106 = vst.msk [vmem:[#allocation3 + $0xd8] sm:$0xff] %vm1033, %v2074
      %2107 = vst.msk [vmem:[#allocation3 + $0xe0] sm:$0xff] %vm1033, %v2075
      %2108 = vst.msk [vmem:[#allocation3 + $0xe8] sm:$0xff] %vm1033, %v2076
      %2109 = vst.msk [vmem:[#allocation3 + $0xf0] sm:$0xff] %vm1033, %v2077
      %2110 = vst.msk [vmem:[#allocation3 + $0xf8] sm:$0xff] %vm1033, %v2078
      %v2111 = vld [vmem:[#allocation3] sm:$0xff]
      %v2112 = vld [vmem:[#allocation3 + $0x8] sm:$0xff]
      %v2113 = vld [vmem:[#allocation3 + $0x10] sm:$0xff]
      %v2114 = vld [vmem:[#allocation3 + $0x18] sm:$0xff]
      %v2115 = vld [vmem:[#allocation3 + $0x20] sm:$0xff]
      %v2116 = vld [vmem:[#allocation3 + $0x28] sm:$0xff]
      %v2117 = vld [vmem:[#allocation3 + $0x30] sm:$0xff]
      %v2118 = vld [vmem:[#allocation3 + $0x38] sm:$0xff]
      %v2119 = vld [vmem:[#allocation3 + $0x40] sm:$0xff]
      %v2120 = vld [vmem:[#allocation3 + $0x48] sm:$0xff]
      %v2121 = vld [vmem:[#allocation3 + $0x50] sm:$0xff]
      %v2122 = vld [vmem:[#allocation3 + $0x58] sm:$0xff]
      %v2123 = vld [vmem:[#allocation3 + $0x60] sm:$0xff]
      %v2124 = vld [vmem:[#allocation3 + $0x68] sm:$0xff]
      %v2125 = vld [vmem:[#allocation3 + $0x70] sm:$0xff]
      %v2126 = vld [vmem:[#allocation3 + $0x78] sm:$0xff]
      %v2127 = vld [vmem:[#allocation3 + $0x80] sm:$0xff]
      %v2128 = vld [vmem:[#allocation3 + $0x88] sm:$0xff]
      %v2129 = vld [vmem:[#allocation3 + $0x90] sm:$0xff]
      %v2130 = vld [vmem:[#allocation3 + $0x98] sm:$0xff]
      %v2131 = vld [vmem:[#allocation3 + $0xa0] sm:$0xff]
      %v2132 = vld [vmem:[#allocation3 + $0xa8] sm:$0xff]
      %v2133 = vld [vmem:[#allocation3 + $0xb0] sm:$0xff]
      %v2134 = vld [vmem:[#allocation3 + $0xb8] sm:$0xff]
      %v2135 = vld [vmem:[#allocation3 + $0xc0] sm:$0xff]
      %v2136 = vld [vmem:[#allocation3 + $0xc8] sm:$0xff]
      %v2137 = vld [vmem:[#allocation3 + $0xd0] sm:$0xff]
      %v2138 = vld [vmem:[#allocation3 + $0xd8] sm:$0xff]
      %v2139 = vld [vmem:[#allocation3 + $0xe0] sm:$0xff]
      %v2140 = vld [vmem:[#allocation3 + $0xe8] sm:$0xff]
      %v2141 = vld [vmem:[#allocation3 + $0xf0] sm:$0xff]
      %v2142 = vld [vmem:[#allocation3 + $0xf8] sm:$0xff]
      %v2143 = vpack.c.bf16 %v2112, %v2111
      %v2144 = vpack.c.bf16 %v2114, %v2113
      %v2145 = vpack.c.bf16 %v2116, %v2115
      %v2146 = vpack.c.bf16 %v2118, %v2117
      %v2147 = vpack.c.bf16 %v2120, %v2119
      %v2148 = vpack.c.bf16 %v2122, %v2121
      %v2149 = vpack.c.bf16 %v2124, %v2123
      %v2150 = vpack.c.bf16 %v2126, %v2125
      %v2151 = vpack.c.bf16 %v2128, %v2127
      %v2152 = vpack.c.bf16 %v2130, %v2129
      %v2153 = vpack.c.bf16 %v2132, %v2131
      %v2154 = vpack.c.bf16 %v2134, %v2133
      %v2155 = vpack.c.bf16 %v2136, %v2135
      %v2156 = vpack.c.bf16 %v2138, %v2137
      %v2157 = vpack.c.bf16 %v2140, %v2139
      %v2158 = vpack.c.bf16 %v2142, %v2141
      %v2175 = vunpack.c.l.b16 %v2143
      %v2176 = vunpack.c.h.b16 %v2143
      %v2177 = vunpack.c.l.b16 %v2144
      %v2178 = vunpack.c.h.b16 %v2144
      %v2179 = vunpack.c.l.b16 %v2145
      %v2180 = vunpack.c.h.b16 %v2145
      %v2181 = vunpack.c.l.b16 %v2146
      %v2182 = vunpack.c.h.b16 %v2146
      %v2183 = vunpack.c.l.b16 %v2147
      %v2184 = vunpack.c.h.b16 %v2147
      %v2185 = vunpack.c.l.b16 %v2148
      %v2186 = vunpack.c.h.b16 %v2148
      %v2187 = vunpack.c.l.b16 %v2149
      %v2188 = vunpack.c.h.b16 %v2149
      %v2189 = vunpack.c.l.b16 %v2150
      %v2190 = vunpack.c.h.b16 %v2150
      %v2191 = vunpack.c.l.b16 %v2151
      %v2192 = vunpack.c.h.b16 %v2151
      %v2193 = vunpack.c.l.b16 %v2152
      %v2194 = vunpack.c.h.b16 %v2152
      %v2195 = vunpack.c.l.b16 %v2153
      %v2196 = vunpack.c.h.b16 %v2153
      %v2197 = vunpack.c.l.b16 %v2154
      %v2198 = vunpack.c.h.b16 %v2154
      %v2199 = vunpack.c.l.b16 %v2155
      %v2200 = vunpack.c.h.b16 %v2155
      %v2201 = vunpack.c.l.b16 %v2156
      %v2202 = vunpack.c.h.b16 %v2156
      %v2203 = vunpack.c.l.b16 %v2157
      %v2204 = vunpack.c.h.b16 %v2157
      %v2205 = vunpack.c.l.b16 %v2158
      %v2206 = vunpack.c.h.b16 %v2158
      %v2207 = vpack.c.b16 %v2175, %v2175
      %v2208 = vpack.c.b16 %v2176, %v2176
      %v2209 = vpack.c.b16 %v2177, %v2177
      %v2210 = vpack.c.b16 %v2178, %v2178
      %v2211 = vpack.c.b16 %v2179, %v2179
      %v2212 = vpack.c.b16 %v2180, %v2180
      %v2213 = vpack.c.b16 %v2181, %v2181
      %v2214 = vpack.c.b16 %v2182, %v2182
      %v2215 = vpack.c.b16 %v2183, %v2183
      %v2216 = vpack.c.b16 %v2184, %v2184
      %v2217 = vpack.c.b16 %v2185, %v2185
      %v2218 = vpack.c.b16 %v2186, %v2186
      %v2219 = vpack.c.b16 %v2187, %v2187
      %v2220 = vpack.c.b16 %v2188, %v2188
      %v2221 = vpack.c.b16 %v2189, %v2189
      %v2222 = vpack.c.b16 %v2190, %v2190
      %v2223 = vpack.c.b16 %v2191, %v2191
      %v2224 = vpack.c.b16 %v2192, %v2192
      %v2225 = vpack.c.b16 %v2193, %v2193
      %v2226 = vpack.c.b16 %v2194, %v2194
      %v2227 = vpack.c.b16 %v2195, %v2195
      %v2228 = vpack.c.b16 %v2196, %v2196
      %v2229 = vpack.c.b16 %v2197, %v2197
      %v2230 = vpack.c.b16 %v2198, %v2198
      %v2231 = vpack.c.b16 %v2199, %v2199
      %v2232 = vpack.c.b16 %v2200, %v2200
      %v2233 = vpack.c.b16 %v2201, %v2201
      %v2234 = vpack.c.b16 %v2202, %v2202
      %v2235 = vpack.c.b16 %v2203, %v2203
      %v2236 = vpack.c.b16 %v2204, %v2204
      %v2237 = vpack.c.b16 %v2205, %v2205
      %v2238 = vpack.c.b16 %v2206, %v2206
      %vm2271 = vcmask 60416
      %2272 = vst.msk [vmem:[%s457] sm:$0xf] %vm2271, %v2207
      %2273 = vst.msk [vmem:[%s457 + $0x4] sm:$0xf] %vm2271, %v2208
      %2274 = vst.msk [vmem:[%s457 + $0x8] sm:$0xf] %vm2271, %v2209
      %2275 = vst.msk [vmem:[%s457 + $0xc] sm:$0xf] %vm2271, %v2210
      %2276 = vst.msk [vmem:[%s457 + $0x10] sm:$0xf] %vm2271, %v2211
      %2277 = vst.msk [vmem:[%s457 + $0x14] sm:$0xf] %vm2271, %v2212
      %2278 = vst.msk [vmem:[%s457 + $0x18] sm:$0xf] %vm2271, %v2213
      %2279 = vst.msk [vmem:[%s457 + $0x1c] sm:$0xf] %vm2271, %v2214
      %2280 = vst.msk [vmem:[%s457 + $0x20] sm:$0xf] %vm2271, %v2215
      %2281 = vst.msk [vmem:[%s457 + $0x24] sm:$0xf] %vm2271, %v2216
      %2282 = vst.msk [vmem:[%s457 + $0x28] sm:$0xf] %vm2271, %v2217
      %2283 = vst.msk [vmem:[%s457 + $0x2c] sm:$0xf] %vm2271, %v2218
      %2284 = vst.msk [vmem:[%s457 + $0x30] sm:$0xf] %vm2271, %v2219
      %2285 = vst.msk [vmem:[%s457 + $0x34] sm:$0xf] %vm2271, %v2220
      %2286 = vst.msk [vmem:[%s457 + $0x38] sm:$0xf] %vm2271, %v2221
      %2287 = vst.msk [vmem:[%s457 + $0x3c] sm:$0xf] %vm2271, %v2222
      %2288 = vst.msk [vmem:[%s457 + $0x40] sm:$0xf] %vm2271, %v2223
      %2289 = vst.msk [vmem:[%s457 + $0x44] sm:$0xf] %vm2271, %v2224
      %2290 = vst.msk [vmem:[%s457 + $0x48] sm:$0xf] %vm2271, %v2225
      %2291 = vst.msk [vmem:[%s457 + $0x4c] sm:$0xf] %vm2271, %v2226
      %2292 = vst.msk [vmem:[%s457 + $0x50] sm:$0xf] %vm2271, %v2227
      %2293 = vst.msk [vmem:[%s457 + $0x54] sm:$0xf] %vm2271, %v2228
      %2294 = vst.msk [vmem:[%s457 + $0x58] sm:$0xf] %vm2271, %v2229
      %2295 = vst.msk [vmem:[%s457 + $0x5c] sm:$0xf] %vm2271, %v2230
      %2296 = vst.msk [vmem:[%s457 + $0x60] sm:$0xf] %vm2271, %v2231
      %2297 = vst.msk [vmem:[%s457 + $0x64] sm:$0xf] %vm2271, %v2232
      %2298 = vst.msk [vmem:[%s457 + $0x68] sm:$0xf] %vm2271, %v2233
      %2299 = vst.msk [vmem:[%s457 + $0x6c] sm:$0xf] %vm2271, %v2234
      %2300 = vst.msk [vmem:[%s457 + $0x70] sm:$0xf] %vm2271, %v2235
      %2301 = vst.msk [vmem:[%s457 + $0x74] sm:$0xf] %vm2271, %v2236
      %2302 = vst.msk [vmem:[%s457 + $0x78] sm:$0xf] %vm2271, %v2237
      %2303 = vst.msk [vmem:[%s457 + $0x7c] sm:$0xf] %vm2271, %v2238
      %v2304 = vsel %vm1033, %v2111, 0.0
      %v2305 = vsel %vm1033, %v2112, 0.0
      %v2306 = vadd.f32 %v2304, %v2305
      %v2307 = vsel %vm1033, %v2113, 0.0
      %v2308 = vadd.f32 %v2306, %v2307
      %v2309 = vsel %vm1033, %v2114, 0.0
      %v2310 = vadd.f32 %v2308, %v2309
      %v2311 = vsel %vm1033, %v2115, 0.0
      %v2312 = vadd.f32 %v2310, %v2311
      %v2313 = vsel %vm1033, %v2116, 0.0
      %v2314 = vadd.f32 %v2312, %v2313
      %v2315 = vsel %vm1033, %v2117, 0.0
      %v2316 = vadd.f32 %v2314, %v2315
      %v2317 = vsel %vm1033, %v2118, 0.0
      %v2318 = vadd.f32 %v2316, %v2317
      %v2319 = vsel %vm1033, %v2119, 0.0
      %v2320 = vadd.f32 %v2318, %v2319
      %v2321 = vsel %vm1033, %v2120, 0.0
      %v2322 = vadd.f32 %v2320, %v2321
      %v2323 = vsel %vm1033, %v2121, 0.0
      %v2324 = vadd.f32 %v2322, %v2323
      %v2325 = vsel %vm1033, %v2122, 0.0
      %v2326 = vadd.f32 %v2324, %v2325
      %v2327 = vsel %vm1033, %v2123, 0.0
      %v2328 = vadd.f32 %v2326, %v2327
      %v2329 = vsel %vm1033, %v2124, 0.0
      %v2330 = vadd.f32 %v2328, %v2329
      %v2331 = vsel %vm1033, %v2125, 0.0
      %v2332 = vadd.f32 %v2330, %v2331
      %v2333 = vsel %vm1033, %v2126, 0.0
      %v2334 = vadd.f32 %v2332, %v2333
      %v2335 = vsel %vm1033, %v2127, 0.0
      %v2336 = vadd.f32 %v2334, %v2335
      %v2337 = vsel %vm1033, %v2128, 0.0
      %v2338 = vadd.f32 %v2336, %v2337
      %v2339 = vsel %vm1033, %v2129, 0.0
      %v2340 = vadd.f32 %v2338, %v2339
      %v2341 = vsel %vm1033, %v2130, 0.0
      %v2342 = vadd.f32 %v2340, %v2341
      %v2343 = vsel %vm1033, %v2131, 0.0
      %v2344 = vadd.f32 %v2342, %v2343
      %v2345 = vsel %vm1033, %v2132, 0.0
      %v2346 = vadd.f32 %v2344, %v2345
      %v2347 = vsel %vm1033, %v2133, 0.0
      %v2348 = vadd.f32 %v2346, %v2347
      %v2349 = vsel %vm1033, %v2134, 0.0
      %v2350 = vadd.f32 %v2348, %v2349
      %v2351 = vsel %vm1033, %v2135, 0.0
      %v2352 = vadd.f32 %v2350, %v2351
      %v2353 = vsel %vm1033, %v2136, 0.0
      %v2354 = vadd.f32 %v2352, %v2353
      %v2355 = vsel %vm1033, %v2137, 0.0
      %v2356 = vadd.f32 %v2354, %v2355
      %v2357 = vsel %vm1033, %v2138, 0.0
      %v2358 = vadd.f32 %v2356, %v2357
      %v2359 = vsel %vm1033, %v2139, 0.0
      %v2360 = vadd.f32 %v2358, %v2359
      %v2361 = vsel %vm1033, %v2140, 0.0
      %v2362 = vadd.f32 %v2360, %v2361
      %v2363 = vsel %vm1033, %v2141, 0.0
      %v2364 = vadd.f32 %v2362, %v2363
      %v2365 = vsel %vm1033, %v2142, 0.0
      %v2366 = vadd.f32 %v2364, %v2365
      %v2367 = vrot.slane %v2366, 4
      %v2368 = vadd.f32 %v2366, %v2367
      %v2369 = vrot.slane %v2368, 2
      %v2370 = vadd.f32 %v2368, %v2369
      %v2371 = vrot.slane %v2370, 1
      %v2372 = vadd.f32 %v2370, %v2371
      %v2373 = vmul.f32 %v2111, %v2111
      %v2374 = vmul.f32 %v2112, %v2112
      %v2375 = vmul.f32 %v2113, %v2113
      %v2376 = vmul.f32 %v2114, %v2114
      %v2377 = vmul.f32 %v2115, %v2115
      %v2378 = vmul.f32 %v2116, %v2116
      %v2379 = vmul.f32 %v2117, %v2117
      %v2380 = vmul.f32 %v2118, %v2118
      %v2381 = vmul.f32 %v2119, %v2119
      %v2382 = vmul.f32 %v2120, %v2120
      %v2383 = vmul.f32 %v2121, %v2121
      %v2384 = vmul.f32 %v2122, %v2122
      %v2385 = vmul.f32 %v2123, %v2123
      %v2386 = vmul.f32 %v2124, %v2124
      %v2387 = vmul.f32 %v2125, %v2125
      %v2388 = vmul.f32 %v2126, %v2126
      %v2389 = vmul.f32 %v2127, %v2127
      %v2390 = vmul.f32 %v2128, %v2128
      %v2391 = vmul.f32 %v2129, %v2129
      %v2392 = vmul.f32 %v2130, %v2130
      %v2393 = vmul.f32 %v2131, %v2131
      %v2394 = vmul.f32 %v2132, %v2132
      %v2395 = vmul.f32 %v2133, %v2133
      %v2396 = vmul.f32 %v2134, %v2134
      %v2397 = vmul.f32 %v2135, %v2135
      %v2398 = vmul.f32 %v2136, %v2136
      %v2399 = vmul.f32 %v2137, %v2137
      %v2400 = vmul.f32 %v2138, %v2138
      %v2401 = vmul.f32 %v2139, %v2139
      %v2402 = vmul.f32 %v2140, %v2140
      %v2403 = vmul.f32 %v2141, %v2141
      %v2404 = vmul.f32 %v2142, %v2142
      %v2405 = vsel %vm1033, %v2373, 0.0
      %v2406 = vsel %vm1033, %v2374, 0.0
      %v2407 = vadd.f32 %v2405, %v2406
      %v2408 = vsel %vm1033, %v2375, 0.0
      %v2409 = vadd.f32 %v2407, %v2408
      %v2410 = vsel %vm1033, %v2376, 0.0
      %v2411 = vadd.f32 %v2409, %v2410
      %v2412 = vsel %vm1033, %v2377, 0.0
      %v2413 = vadd.f32 %v2411, %v2412
      %v2414 = vsel %vm1033, %v2378, 0.0
      %v2415 = vadd.f32 %v2413, %v2414
      %v2416 = vsel %vm1033, %v2379, 0.0
      %v2417 = vadd.f32 %v2415, %v2416
      %v2418 = vsel %vm1033, %v2380, 0.0
      %v2419 = vadd.f32 %v2417, %v2418
      %v2420 = vsel %vm1033, %v2381, 0.0
      %v2421 = vadd.f32 %v2419, %v2420
      %v2422 = vsel %vm1033, %v2382, 0.0
      %v2423 = vadd.f32 %v2421, %v2422
      %v2424 = vsel %vm1033, %v2383, 0.0
      %v2425 = vadd.f32 %v2423, %v2424
      %v2426 = vsel %vm1033, %v2384, 0.0
      %v2427 = vadd.f32 %v2425, %v2426
      %v2428 = vsel %vm1033, %v2385, 0.0
      %v2429 = vadd.f32 %v2427, %v2428
      %v2430 = vsel %vm1033, %v2386, 0.0
      %v2431 = vadd.f32 %v2429, %v2430
      %v2432 = vsel %vm1033, %v2387, 0.0
      %v2433 = vadd.f32 %v2431, %v2432
      %v2434 = vsel %vm1033, %v2388, 0.0
      %v2435 = vadd.f32 %v2433, %v2434
      %v2436 = vsel %vm1033, %v2389, 0.0
      %v2437 = vadd.f32 %v2435, %v2436
      %v2438 = vsel %vm1033, %v2390, 0.0
      %v2439 = vadd.f32 %v2437, %v2438
      %v2440 = vsel %vm1033, %v2391, 0.0
      %v2441 = vadd.f32 %v2439, %v2440
      %v2442 = vsel %vm1033, %v2392, 0.0
      %v2443 = vadd.f32 %v2441, %v2442
      %v2444 = vsel %vm1033, %v2393, 0.0
      %v2445 = vadd.f32 %v2443, %v2444
      %v2446 = vsel %vm1033, %v2394, 0.0
      %v2447 = vadd.f32 %v2445, %v2446
      %v2448 = vsel %vm1033, %v2395, 0.0
      %v2449 = vadd.f32 %v2447, %v2448
      %v2450 = vsel %vm1033, %v2396, 0.0
      %v2451 = vadd.f32 %v2449, %v2450
      %v2452 = vsel %vm1033, %v2397, 0.0
      %v2453 = vadd.f32 %v2451, %v2452
      %v2454 = vsel %vm1033, %v2398, 0.0
      %v2455 = vadd.f32 %v2453, %v2454
      %v2456 = vsel %vm1033, %v2399, 0.0
      %v2457 = vadd.f32 %v2455, %v2456
      %v2458 = vsel %vm1033, %v2400, 0.0
      %v2459 = vadd.f32 %v2457, %v2458
      %v2460 = vsel %vm1033, %v2401, 0.0
      %v2461 = vadd.f32 %v2459, %v2460
      %v2462 = vsel %vm1033, %v2402, 0.0
      %v2463 = vadd.f32 %v2461, %v2462
      %v2464 = vsel %vm1033, %v2403, 0.0
      %v2465 = vadd.f32 %v2463, %v2464
      %v2466 = vsel %vm1033, %v2404, 0.0
      %v2467 = vadd.f32 %v2465, %v2466
      %v2468 = vrot.slane %v2467, 4
      %v2469 = vadd.f32 %v2467, %v2468
      %v2470 = vrot.slane %v2469, 2
      %v2471 = vadd.f32 %v2469, %v2470
      %v2472 = vrot.slane %v2471, 1
      %v2473 = vadd.f32 %v2471, %v2472
      %vm2474 = vcmask 1040384
      %v2475 = vsel %vm2474, %v2372, %v2473
      %vm2476 = vcmask 58368
      %2477 = vst.msk [vmem:[%s465] sm:$0x3] %vm2476, %v2475
      %s2478 = smul.u32 16, %s24
      %p2479 = scmp.lt.s32.totalorder %s23, 1
      %s2480 = scalar_select %p2479, %s23, 1
      %p2481 = scmp.lt.s32.totalorder %s2478, 15
      %s2482 = scalar_select %p2481, %s2478, 15
      %s2483 = smul.addr %s2482, 2
      %s2484 = smul.addr %s2480, 32
      %s2485 = sadd.s32 %s2483, %s2484
      %s2486 = smul.addr %s2485, 4
      %s2487 = scalar_lea.vmem %s6, %s2486
      %p2488 = scmp.lt.s32.totalorder %s23, 1
      %s2489 = scalar_select %p2488, %s23, 1
      %p2490 = scmp.lt.s32.totalorder %s24, 0
      %s2491 = scalar_select %p2490, %s24, 0
      %s2492 = sadd.s32 %s2491, %s2489
      %s2493 = smul.addr %s2492, 2
      %s2494 = scalar_lea.vmem %s7, %s2493
      // Predicated region
      $region45: #{down_block_forward.4} parent=43 // pred_check
        %p2495 = pneg %p214
      $region46: #{down_block_forward.4} parent=43 // pred_check_branch
        %2497 = sbr.rel (%p2495) target = $region48
      $region47: #{down_block_forward.4} parent=43 // pred_region
        %s2498 = smul.u32 16, %s24
      $region48: #{down_block_forward.4} parent=43 // pred_fallthru
        _
      // Predicated region
      $region49: #{down_block_forward.4} parent=43 // pred_check
        %p2499 = pneg %p242
      $region50: #{down_block_forward.4} parent=43 // pred_check_branch
        %2501 = sbr.rel (%p2499) target = $region52
      $region51: #{down_block_forward.4} parent=43 // pred_region
        _
      $region52: #{down_block_forward.4} parent=43 // pred_fallthru
        _
    $region44: #{down_block_forward.4} parent=5 // pred_fallthru
      _
    %p2502 = scmp.le.s32.totalorder 2, %s14
    // Predicated region
    $region53: #{down_block_forward.4} parent=5 // pred_check
      %p2503 = pneg %p2502
    $region54: #{down_block_forward.4} parent=5 // pred_check_branch
      %2505 = sbr.rel (%p2503) target = $region56
    $region55: #{down_block_forward.4} parent=5 // pred_region
      %s2506 = ssub.s32 %s14, 2
      // Predicated region
      $region57: #{down_block_forward.4} parent=55 // pred_check
        %p2507 = pneg %p220
      $region58: #{down_block_forward.4} parent=55 // pred_check_branch
        %2509 = sbr.rel (%p2507) target = $region60
      $region59: #{down_block_forward.4} parent=55 // pred_region
        %s2510 = smul.u32 16, %s26
        %p2511 = scmp.lt.s32.totalorder %s25, 1
        %s2512 = scalar_select %p2511, %s25, 1
        %p2513 = scmp.lt.s32.totalorder %s2510, 15
        %s2514 = scalar_select %p2513, %s2510, 15
        %s2515 = smul.addr %s2514, 2
        %s2516 = smul.addr %s2512, 32
        %s2517 = sadd.s32 %s2515, %s2516
        %s2518 = smul.addr %s2517, 4
        %s2519 = scalar_lea.vmem %s6, %s2518
      $region60: #{down_block_forward.4} parent=55 // pred_fallthru
        _
      // Predicated region
      $region61: #{down_block_forward.4} parent=55 // pred_check
        %p2520 = pneg %p248
      $region62: #{down_block_forward.4} parent=55 // pred_check_branch
        %2522 = sbr.rel (%p2520) target = $region64
      $region63: #{down_block_forward.4} parent=55 // pred_region
        %p2523 = scmp.lt.s32.totalorder %s25, 1
        %s2524 = scalar_select %p2523, %s25, 1
        %p2525 = scmp.lt.s32.totalorder %s26, 0
        %s2526 = scalar_select %p2525, %s26, 0
        %s2527 = sadd.s32 %s2526, %s2524
        %s2528 = smul.addr %s2527, 2
        %s2529 = scalar_lea.vmem %s7, %s2528
      $region64: #{down_block_forward.4} parent=55 // pred_fallthru
        _
    $region56: #{down_block_forward.4} parent=5 // pred_fallthru
      _
  $region6: #{down_block_forward.4} parent=0 // loop_footer
    %s18 = sadd.s32 1, %s14
  $region7: #{down_block_forward.4} parent=0 // loop_footer_branch
    %13 = sbr.rel target = $region3
  $region8: #{down_block_forward.4} parent=0 // loop_exit
    _

</llo_original>
